<compile_context>
chip_gen: v7x
topology: tpu7x:2x2x1
jax: 0.10.0
libtpu: 0.0.40
codegen_flags: <defaults>
</compile_context>

<pallas_src>
import math

import jax
import jax.numpy as jnp
from jax.experimental import pallas as pl
from jax.experimental.pallas import tpu as pltpu


# -----------------------------------------------------------------------------
# In-kernel helpers
# -----------------------------------------------------------------------------
def _gelu(x):
    # TODO(synk): tanh-approx GELU (transcendental goes to the EUP); PyTorch nn.GELU()
    # is exact-erf, difference is <= ~1e-3 absolute (within the bf16-weight tolerance).
    c = math.sqrt(2.0 / math.pi)
    return 0.5 * x * (1.0 + jnp.tanh(c * (x + 0.044715 * (x * x * x))))


def _gate(keep, arr):
    # Zero a halo row when it falls outside the image (scalar predicate * array).
    return arr * jnp.where(keep, 1.0, 0.0).astype(arr.dtype)


def _row_tile(n, target=8):
    t = max(1, min(target, n))
    while n % t:
        t -= 1
    return t


def _cost(flops, bytes_accessed, transcendentals=0):
    return pl.CostEstimate(flops=int(flops), transcendentals=int(transcendentals),
                           bytes_accessed=int(bytes_accessed))


# -----------------------------------------------------------------------------
# Stem Conv2d(k=3, s=1, p=1): row-striped, halo rows as two 1-row side blocks,
# column taps folded into K (3 dots of K=3*Cin per stripe), vreg/f32 accumulation.
# -----------------------------------------------------------------------------
def _stem_conv3x3(x, w, b):
    """x: (B,H,W,Cin); w: (3, 3*Cin, Cout) bf16; b: (1,Cout) f32 -> (B,H,W,Cout) bf16."""
    B, H, W, Cin = x.shape
    Cout = w.shape[-1]
    T = _row_tile(H, 8)
    ns = H // T

    def kernel(xb_ref, xt_ref, xbt_ref, w_ref, b_ref, o_ref):
        i = pl.program_id(0)
        top = _gate(i > 0, xt_ref[...])
        bot = _gate(i < ns - 1, xbt_ref[...])
        xt = jnp.concatenate([top, xb_ref[...], bot], axis=0).astype(jnp.bfloat16)
        zc = jnp.zeros((T + 2, 1, Cin), jnp.bfloat16)
        xt = jnp.concatenate([zc, xt, zc], axis=1)          # (T+2, W+2, Cin)
        acc = jnp.zeros((T * W, Cout), jnp.float32)
        for dh in range(3):                                 # 3 row taps, static unroll
            taps = jnp.concatenate(
                [xt[dh:dh + T, dv:dv + W, :] for dv in range(3)],
                axis=-1).reshape(T * W, 3 * Cin)
            acc = acc + jnp.dot(taps, w_ref[dh], preferred_element_type=jnp.float32)
        y = acc + b_ref[...]
        o_ref[...] = y.reshape(T, W, Cout).astype(o_ref.dtype)

    flops = 2 * B * H * W * 9 * Cin * Cout
    bytes_acc = (x.size * x.dtype.itemsize * (T + 2) / T + w.size * 2
                 + B * H * W * Cout * 2)
    return pl.pallas_call(
        kernel,
        out_shape=jax.ShapeDtypeStruct((B, H, W, Cout), jnp.bfloat16),
        grid=(ns, B),
        in_specs=[
            pl.BlockSpec((None, T, W, Cin), lambda i, b_: (b_, i, 0, 0)),
            pl.BlockSpec((None, 1, W, Cin),
                         lambda i, b_: (b_, jnp.maximum(i * T - 1, 0), 0, 0)),
            pl.BlockSpec((None, 1, W, Cin),
                         lambda i, b_: (b_, jnp.minimum(i * T + T, H - 1), 0, 0)),
            pl.BlockSpec((3, 3 * Cin, Cout), lambda i, b_: (0, 0, 0)),   # resident
            pl.BlockSpec((1, Cout), lambda i, b_: (0, 0)),               # resident
        ],
        out_specs=pl.BlockSpec((None, T, W, Cout), lambda i, b_: (b_, i, 0, 0)),
        compiler_params=pltpu.CompilerParams(
            dimension_semantics=("parallel", "parallel")),
        cost_estimate=_cost(flops, bytes_acc),
    )(x, x, x, w, b)


# -----------------------------------------------------------------------------
# Block "front": folded (1x1 reduce -> level-1 Haar DWT -> concat -> 1x1 ff) + GELU
# == a single 1x1 matmul on the phase-grouped trunk (K = 4*fd, no spatial taps).
# -----------------------------------------------------------------------------
def _block_front(P, wA, bA):
    """P: (B,h2,w2,4*fd) bf16; wA: (4*fd, N1) bf16; bA: (1,N1) f32 -> (B,h2,w2,N1) bf16."""
    B, h2, w2, K = P.shape
    N1 = wA.shape[-1]
    T = _row_tile(h2, 8)
    ns = h2 // T

    def kernel(p_ref, w_ref, b_ref, o_ref):
        x = p_ref[...].reshape(T * w2, K)
        y = jnp.dot(x, w_ref[...], preferred_element_type=jnp.float32) + b_ref[...]
        y = _gelu(y)
        o_ref[...] = y.reshape(T, w2, N1).astype(o_ref.dtype)

    flops = 2 * B * h2 * w2 * K * N1
    bytes_acc = P.size * 2 + wA.size * 2 + B * h2 * w2 * N1 * 2
    return pl.pallas_call(
        kernel,
        out_shape=jax.ShapeDtypeStruct((B, h2, w2, N1), jnp.bfloat16),
        grid=(ns, B),
        in_specs=[
            pl.BlockSpec((None, T, w2, K), lambda i, b_: (b_, i, 0, 0)),
            pl.BlockSpec((K, N1), lambda i, b_: (0, 0)),                 # resident
            pl.BlockSpec((1, N1), lambda i, b_: (0, 0)),                 # resident
        ],
        out_specs=pl.BlockSpec((None, T, w2, N1), lambda i, b_: (b_, i, 0, 0)),
        compiler_params=pltpu.CompilerParams(
            dimension_semantics=("parallel", "parallel")),
        cost_estimate=_cost(flops, bytes_acc, transcendentals=B * h2 * w2 * N1),
    )(P, wA, bA)


# -----------------------------------------------------------------------------
# Block "up": polyphase ConvTranspose2d(N1 -> fd, 4, s=2, p=1) with folded BN,
# all 4 output phases per step, residual fused, output in trunk phase layout.
# -----------------------------------------------------------------------------
def _block_up(h, wB, bB, P):
    """h: (B,h2,w2,N1) bf16; wB: (4,2,2,N1,fd) bf16; bB: (1,4*fd) f32;
    P (residual): (B,h2,w2,4*fd) bf16 -> new trunk (B,h2,w2,4*fd) bf16."""
    B, h2, w2, N1 = h.shape
    fd = wB.shape[-1]
    C = 4 * fd
    T = _row_tile(h2, 8)
    ns = h2 // T

    def kernel(hb_ref, ht_ref, hbt_ref, w_ref, b_ref, res_ref, o_ref):
        i = pl.program_id(0)
        top = _gate(i > 0, ht_ref[...])
        bot = _gate(i < ns - 1, hbt_ref[...])
        hh = jnp.concatenate([top, hb_ref[...], bot], axis=0)       # (T+2, w2, N1)
        zc = jnp.zeros((T + 2, 1, N1), hh.dtype)
        hh = jnp.concatenate([zc, hh, zc], axis=1)                  # (T+2, w2+2, N1)
        groups = []
        for ph in range(2):
            for pw in range(2):
                p = ph * 2 + pw
                acc = jnp.zeros((T * w2, fd), jnp.float32)
                for dh in range(2):
                    for dv in range(2):
                        xs = hh[ph + dh:ph + dh + T, pw + dv:pw + dv + w2, :]
                        acc = acc + jnp.dot(xs.reshape(T * w2, N1), w_ref[p, dh, dv],
                                            preferred_element_type=jnp.float32)
                groups.append(acc)
        y = jnp.concatenate(groups, axis=-1) + b_ref[...]           # (T*w2, 4*fd)
        y = y + res_ref[...].reshape(T * w2, C).astype(jnp.float32)
        o_ref[...] = y.reshape(T, w2, C).astype(o_ref.dtype)

    flops = 2 * B * h2 * w2 * 16 * N1 * fd
    bytes_acc = h.size * 2 * (T + 2) / T + wB.size * 2 + 2 * P.size * 2
    return pl.pallas_call(
        kernel,
        out_shape=jax.ShapeDtypeStruct((B, h2, w2, C), jnp.bfloat16),
        grid=(ns, B),
        in_specs=[
            pl.BlockSpec((None, T, w2, N1), lambda i, b_: (b_, i, 0, 0)),
            pl.BlockSpec((None, 1, w2, N1),
                         lambda i, b_: (b_, jnp.maximum(i * T - 1, 0), 0, 0)),
            pl.BlockSpec((None, 1, w2, N1),
                         lambda i, b_: (b_, jnp.minimum(i * T + T, h2 - 1), 0, 0)),
            pl.BlockSpec((4, 2, 2, N1, fd), lambda i, b_: (0, 0, 0, 0, 0)),  # resident
            pl.BlockSpec((1, C), lambda i, b_: (0, 0)),                      # resident
            pl.BlockSpec((None, T, w2, C), lambda i, b_: (b_, i, 0, 0)),     # residual
        ],
        out_specs=pl.BlockSpec((None, T, w2, C), lambda i, b_: (b_, i, 0, 0)),
        compiler_params=pltpu.CompilerParams(
            dimension_semantics=("parallel", "parallel")),
        cost_estimate=_cost(flops, bytes_acc),
    )(h, h, h, wB, bB, P)


# -----------------------------------------------------------------------------
# Expand: polyphase (ConvTranspose2d(fd -> fd/2, 4, s2, p1) o Conv2d(fd/2 -> 3, 1))
# folded together; all 4 phases per step, output channel = phase*3 + rgb.
# -----------------------------------------------------------------------------
def _expand_up(x, wE, bE):
    """x: (B,H,W,fd) bf16; wE: (4,2,2,fd,3) bf16; bE: (1,12) f32 -> (B,H,W,12) f32."""
    B, H, W, fd = x.shape
    T = _row_tile(H, 8)
    ns = H // T

    def kernel(xb_ref, xt_ref, xbt_ref, w_ref, b_ref, o_ref):
        i = pl.program_id(0)
        top = _gate(i > 0, xt_ref[...])
        bot = _gate(i < ns - 1, xbt_ref[...])
        xt = jnp.concatenate([top, xb_ref[...], bot], axis=0)       # (T+2, W, fd)
        zc = jnp.zeros((T + 2, 1, fd), xt.dtype)
        xt = jnp.concatenate([zc, xt, zc], axis=1)                  # (T+2, W+2, fd)
        groups = []
        for ph in range(2):
            for pw in range(2):
                p = ph * 2 + pw
                acc = jnp.zeros((T * W, 3), jnp.float32)
                for dh in range(2):
                    for dv in range(2):
                        xs = xt[ph + dh:ph + dh + T, pw + dv:pw + dv + W, :]
                        acc = acc + jnp.dot(xs.reshape(T * W, fd), w_ref[p, dh, dv],
                                            preferred_element_type=jnp.float32)
                groups.append(acc)
        y = jnp.concatenate(groups, axis=-1) + b_ref[...]           # (T*W, 12)
        # TODO(synk): 12-wide last dim -> masked stores; lane-dense (3, W) layout would
        # need an in-kernel transpose.  Output tensor is small; accepted.
        o_ref[...] = y.reshape(T, W, 12).astype(o_ref.dtype)

    flops = 2 * B * H * W * 16 * fd * 3
    bytes_acc = x.size * 2 * (T + 2) / T + wE.size * 2 + B * H * W * 12 * 4
    return pl.pallas_call(
        kernel,
        out_shape=jax.ShapeDtypeStruct((B, H, W, 12), jnp.float32),
        grid=(ns, B),
        in_specs=[
            pl.BlockSpec((None, T, W, fd), lambda i, b_: (b_, i, 0, 0)),
            pl.BlockSpec((None, 1, W, fd),
                         lambda i, b_: (b_, jnp.maximum(i * T - 1, 0), 0, 0)),
            pl.BlockSpec((None, 1, W, fd),
                         lambda i, b_: (b_, jnp.minimum(i * T + T, H - 1), 0, 0)),
            pl.BlockSpec((4, 2, 2, fd, 3), lambda i, b_: (0, 0, 0, 0, 0)),   # resident
            pl.BlockSpec((1, 12), lambda i, b_: (0, 0)),                     # resident
        ],
        out_specs=pl.BlockSpec((None, T, W, 12), lambda i, b_: (b_, i, 0, 0)),
        compiler_params=pltpu.CompilerParams(
            dimension_semantics=("parallel", "parallel")),
        cost_estimate=_cost(flops, bytes_acc),
    )(x, x, x, wE, bE)


# -----------------------------------------------------------------------------
# WaveMix forward
# -----------------------------------------------------------------------------
def wavemix_forward(img, plan):
    """img: (B, 3, H, W) NCHW float32 -> (B, 3, 2H, 2W) NCHW float32."""
    B, _, H, W = img.shape
    assert H % 2 == 0 and W % 2 == 0
    x = jnp.transpose(img, (0, 2, 3, 1)).astype(jnp.float32)        # NHWC
    x = _stem_conv3x3(x, plan["stem0_w"], plan["stem0_b"])          # (B,H,W,fd/2) bf16
    x = _stem_conv3x3(x, plan["stem1_w"], plan["stem1_b"])          # (B,H,W,fd)   bf16
    fd = x.shape[-1]
    h2, w2 = H // 2, W // 2
    # Trunk in half-res, phase-grouped-channel layout: channel = phase*fd + c,
    # phase = 2*(row parity) + (col parity).
    P = (x.reshape(B, h2, 2, w2, 2, fd).transpose(0, 1, 3, 2, 4, 5)
          .reshape(B, h2, w2, 4 * fd))
    for blk in plan["blocks"]:
        # nn.Dropout(p=0.0) is the identity.
        hmid = _block_front(P, blk["wA"], blk["bA"])                # GELU fused
        P = _block_up(hmid, blk["wB"], blk["bB"], P)                # residual fused
    xf = (P.reshape(B, h2, w2, 2, 2, fd).transpose(0, 1, 3, 2, 4, 5)
           .reshape(B, H, W, fd))                                   # full-res bf16
    y12 = _expand_up(xf, plan["exp_w"], plan["exp_b"])              # (B,H,W,12) f32
    y = (y12.reshape(B, H, W, 2, 2, 3).transpose(0, 5, 1, 3, 2, 4)
            .reshape(B, 3, 2 * H, 2 * W))
    return y


# -----------------------------------------------------------------------------
# Offline weight preparation (BN / linear-chain / Haar folding, layout, bf16 cast)
# -----------------------------------------------------------------------------
def _conv3x3_pack(w_oihw):
    # (Cout, Cin, 3, 3) -> (kh, kw*Cin, Cout): column taps folded into K.
    w = jnp.transpose(w_oihw, (2, 3, 1, 0))            # (3, 3, Cin, Cout)
    return w.reshape(3, 3 * w.shape[2], w.shape[3])


def _polyphase_weight(w_iohw):
    """ConvTranspose2d(k=4, s=2, p=1) weight (Cin, Cout, 4, 4) -> (4, 2, 2, Cin, Cout).
    Output phase p = 2*(row parity) + (col parity) at half-res (m, n) is
    sum_{dh,dv in {0,1}} x[m + ph - 1 + dh, n + pw - 1 + dv] @ out[p, dh, dv]."""
    Cin, Cout = w_iohw.shape[0], w_iohw.shape[1]
    out = jnp.zeros((4, 2, 2, Cin, Cout), jnp.float32)
    for ph in range(2):
        for pw in range(2):
            p = ph * 2 + pw
            for dh in range(2):
                for dv in range(2):
                    kh = 3 - ph - 2 * dh
                    kw = 3 - pw - 2 * dv
                    out = out.at[p, dh, dv].set(w_iohw[:, :, kh, kw])
    return out


def prepare_params(params):
    plan = {
        "stem0_w": _conv3x3_pack(params["conv0_w"]).astype(jnp.bfloat16),
        "stem0_b": params["conv0_b"].reshape(1, -1).astype(jnp.float32),
        "stem1_w": _conv3x3_pack(params["conv1_w"]).astype(jnp.bfloat16),
        "stem1_b": params["conv1_b"].reshape(1, -1).astype(jnp.float32),
    }
    blocks = []
    for blk in params["blocks"]:
        cr, fd = blk["red_w"].shape[0], blk["red_w"].shape[1]
        W_r = blk["red_w"][:, :, 0, 0].T                    # (fd, cr)
        b_r = blk["red_b"]
        W_f1 = blk["ff1_w"][:, :, 0, 0].T                   # (4*cr, N1)
        b_f1 = blk["ff1_b"]
        # TODO(synk): Haar band order assumed [LL | per-channel (B0,B1,B2)] with the
        # DWTForward('db1', mode='zero') sign convention, as in the previous version.
        W_L = W_f1[:cr]
        G_L = 0.5 * (W_r @ W_L)
        G = [0.5 * (W_r @ W_f1[cr + band::3]) for band in range(3)]
        taps = [G_L + G[0] + G[1] + G[2],       # x[2i,   2j  ]
                G_L + G[0] - G[1] - G[2],       # x[2i,   2j+1]
                G_L - G[0] + G[1] - G[2],       # x[2i+1, 2j  ]
                G_L - G[0] - G[1] + G[2]]       # x[2i+1, 2j+1]
        wA = jnp.concatenate(taps, axis=0).astype(jnp.bfloat16)      # (4*fd, N1)
        bA = (b_f1 + 2.0 * (b_r @ W_L)).reshape(1, -1).astype(jnp.float32)

        # ConvTranspose2d + eval-mode BatchNorm folded into weights/bias.
        w_ct = blk["ffct_w"] * blk["bn_scale"][None, :, None, None]
        b_ct = blk["ffct_b"] * blk["bn_scale"] + blk["bn_shift"]
        blocks.append({
            "wA": wA, "bA": bA,
            "wB": _polyphase_weight(w_ct).astype(jnp.bfloat16),      # (4,2,2,N1,fd)
            "bB": jnp.tile(b_ct, 4).reshape(1, -1).astype(jnp.float32),
        })
    plan["blocks"] = blocks

    # expand = ConvTranspose2d(fd, fd/2, 4, 2, 1) then Conv2d(fd/2, 3, 1): fold the 1x1
    # into the transposed conv, then polyphase it.
    W_pw = params["exp_pw_w"][:, :, 0, 0].T                          # (fd/2, 3)
    w_exp = jnp.einsum("imhw,mo->iohw", params["exp_ct_w"], W_pw)    # (fd, 3, 4, 4)
    b_exp = params["exp_ct_b"] @ W_pw + params["exp_pw_b"]
    plan["exp_w"] = _polyphase_weight(w_exp).astype(jnp.bfloat16)    # (4,2,2,fd,3)
    plan["exp_b"] = jnp.tile(b_exp, 4).reshape(1, -1).astype(jnp.float32)
    return plan


# -----------------------------------------------------------------------------
# Deterministic parameter init (PyTorch-default-style uniform bounds)
# -----------------------------------------------------------------------------
def _conv_init(key, cout, cin, k):
    fan_in = cin * k * k
    bound = 1.0 / math.sqrt(fan_in)
    kw, kb = jax.random.split(key)
    w = jax.random.uniform(kw, (cout, cin, k, k), jnp.float32, -bound, bound)
    b = jax.random.uniform(kb, (cout,), jnp.float32, -bound, bound)
    return w, b


def _convT_init(key, cin, cout, k):
    fan_in = cout * k * k  # PyTorch ConvTranspose2d fan_in convention
    bound = 1.0 / math.sqrt(fan_in)
    kw, kb = jax.random.split(key)
    w = jax.random.uniform(kw, (cin, cout, k, k), jnp.float32, -bound, bound)
    b = jax.random.uniform(kb, (cout,), jnp.float32, -bound, bound)
    return w, b


def init_params(key, *, depth, mult, ff_channel, final_dim):
    assert ff_channel == final_dim, "residual x = attn(x) + x requires ff_channel == final_dim"
    assert final_dim % 4 == 0
    fd = final_dim
    keys = jax.random.split(key, 4 + depth)
    p = {}
    p["conv0_w"], p["conv0_b"] = _conv_init(keys[0], fd // 2, 3, 3)
    p["conv1_w"], p["conv1_b"] = _conv_init(keys[1], fd, fd // 2, 3)
    blocks = []
    for i in range(depth):
        bk = jax.random.split(keys[4 + i], 3)
        blk = {}
        blk["red_w"], blk["red_b"] = _conv_init(bk[0], fd // 4, fd, 1)
        blk["ff1_w"], blk["ff1_b"] = _conv_init(bk[1], fd * mult, fd, 1)
        blk["ffct_w"], blk["ffct_b"] = _convT_init(bk[2], fd * mult, ff_channel, 4)
        # BatchNorm2d(ff_channel) at default init, eval mode:
        gamma = jnp.ones((ff_channel,), jnp.float32)
        beta = jnp.zeros((ff_channel,), jnp.float32)
        rmean = jnp.zeros((ff_channel,), jnp.float32)
        rvar = jnp.ones((ff_channel,), jnp.float32)
        bn_scale = gamma / jnp.sqrt(rvar + 1e-5)
        blk["bn_scale"] = bn_scale
        blk["bn_shift"] = beta - rmean * bn_scale
        blocks.append(blk)
    p["blocks"] = blocks
    p["exp_ct_w"], p["exp_ct_b"] = _convT_init(keys[2], fd, fd // 2, 4)
    p["exp_pw_w"], p["exp_pw_b"] = _conv_init(keys[3], 3, fd // 2, 1)
    return p


# -----------------------------------------------------------------------------
if __name__ == "__main__":
    # Small, module-consistent config: depth=2, mult=2, ff_channel=final_dim=16, level=1.
    depth, mult, ff_channel, final_dim = 2, 2, 16, 16
    key = jax.random.PRNGKey(0)
    kp, kx = jax.random.split(key)
    params = init_params(kp, depth=depth, mult=mult,
                         ff_channel=ff_channel, final_dim=final_dim)
    plan = prepare_params(params)
    img = jax.random.normal(kx, (2, 3, 16, 16), jnp.float32)        # NCHW, like PyTorch

    fwd = jax.jit(wavemix_forward)
    out = jax.block_until_ready(fwd(img, plan))

    assert out.shape == (2, 3, 32, 32), out.shape
    assert out.dtype == jnp.float32
    assert bool(jnp.all(jnp.isfinite(out)))
    print("KERNEL_OK")
</pallas_src>

<mosaic_0001>
module attributes {stable_mosaic.version = 11 : i64} {
  func.func @kernel(%arg0: i32, %arg1: i32, %arg2: memref<1x8x16x8xbf16, #tpu.memory_space<vmem>>, %arg3: memref<1x1x16x8xbf16, #tpu.memory_space<vmem>>, %arg4: memref<1x1x16x8xbf16, #tpu.memory_space<vmem>>, %arg5: memref<3x24x16xbf16, #tpu.memory_space<vmem>>, %arg6: memref<1x16xf32, #tpu.memory_space<vmem>>, %arg7: memref<1x8x16x16xbf16, #tpu.memory_space<vmem>>) attributes {dimension_semantics = [#tpu.dimension_semantics<parallel>, #tpu.dimension_semantics<parallel>], iteration_bounds = array<i64: 2, 2>, scalar_prefetch = 0 : i64, scratch_operands = 0 : i64, tpu.core_type = #tpu.core_type<tc>, window_params = [{transform_indices = @transform_0, window_bounds = array<i64: 1, 8, 16, 8>}, {transform_indices = @transform_1, window_bounds = array<i64: 1, 1, 16, 8>}, {transform_indices = @transform_2, window_bounds = array<i64: 1, 1, 16, 8>}, {pipeline_mode = #tpu.pipeline_mode<synchronous>, transform_indices = @transform_3, window_bounds = array<i64: 3, 24, 16>}, {pipeline_mode = #tpu.pipeline_mode<synchronous>, transform_indices = @transform_4, window_bounds = array<i64: 1, 16>}, {transform_indices = @transform_5, window_bounds = array<i64: 1, 8, 16, 16>}]} {
    %c0_i32 = arith.constant 0 : i32
    %0 = arith.cmpi sgt, %arg0, %c0_i32 : i32
    %c0 = arith.constant 0 : index
    %c0_0 = arith.constant 0 : index
    %c0_1 = arith.constant 0 : index
    %c0_2 = arith.constant 0 : index
    %1 = vector.load %arg3[%c0, %c0_0, %c0_1, %c0_2] : memref<1x1x16x8xbf16, #tpu.memory_space<vmem>>, vector<1x1x16x8xbf16>
    %2 = vector.shape_cast %1 : vector<1x1x16x8xbf16> to vector<1x16x8xbf16>
    %cst = arith.constant 1.000000e+00 : f32
    %cst_3 = arith.constant 0.000000e+00 : f32
    %3 = arith.select %0, %cst, %cst_3 : f32
    %4 = arith.truncf %3 : f32 to bf16
    %5 = vector.broadcast %4 : bf16 to vector<1x16x8xbf16>
    %6 = arith.mulf %2, %5 : vector<1x16x8xbf16>
    %c1_i32 = arith.constant 1 : i32
    %7 = arith.cmpi slt, %arg0, %c1_i32 : i32
    %c0_4 = arith.constant 0 : index
    %c0_5 = arith.constant 0 : index
    %c0_6 = arith.constant 0 : index
    %c0_7 = arith.constant 0 : index
    %8 = vector.load %arg4[%c0_4, %c0_5, %c0_6, %c0_7] : memref<1x1x16x8xbf16, #tpu.memory_space<vmem>>, vector<1x1x16x8xbf16>
    %9 = vector.shape_cast %8 : vector<1x1x16x8xbf16> to vector<1x16x8xbf16>
    %cst_8 = arith.constant 1.000000e+00 : f32
    %cst_9 = arith.constant 0.000000e+00 : f32
    %10 = arith.select %7, %cst_8, %cst_9 : f32
    %11 = arith.truncf %10 : f32 to bf16
    %12 = vector.broadcast %11 : bf16 to vector<1x16x8xbf16>
    %13 = arith.mulf %9, %12 : vector<1x16x8xbf16>
    %c0_10 = arith.constant 0 : index
    %c0_11 = arith.constant 0 : index
    %c0_12 = arith.constant 0 : index
    %c0_13 = arith.constant 0 : index
    %14 = vector.load %arg2[%c0_10, %c0_11, %c0_12, %c0_13] : memref<1x8x16x8xbf16, #tpu.memory_space<vmem>>, vector<1x8x16x8xbf16>
    %15 = vector.shape_cast %14 : vector<1x8x16x8xbf16> to vector<8x16x8xbf16>
    %16 = tpu.concatenate %6, %15, %13 in 0 : vector<1x16x8xbf16>, vector<8x16x8xbf16>, vector<1x16x8xbf16> -> vector<10x16x8xbf16>
    %cst_14 = arith.constant 0.000000e+00 : bf16
    %17 = vector.broadcast %cst_14 : bf16 to vector<10x1x8xbf16>
    %18 = tpu.concatenate %17, %16, %17 in 1 : vector<10x1x8xbf16>, vector<10x16x8xbf16>, vector<10x1x8xbf16> -> vector<10x18x8xbf16>
    %cst_15 = arith.constant 0.000000e+00 : f32
    %19 = vector.broadcast %cst_15 : f32 to vector<128x16xf32>
    %20 = vector.extract_strided_slice %18 {offsets = [0, 0, 0], sizes = [8, 16, 8], strides = [1, 1, 1]} : vector<10x18x8xbf16> to vector<8x16x8xbf16>
    %21 = vector.extract_strided_slice %18 {offsets = [0, 1, 0], sizes = [8, 16, 8], strides = [1, 1, 1]} : vector<10x18x8xbf16> to vector<8x16x8xbf16>
    %22 = vector.extract_strided_slice %18 {offsets = [0, 2, 0], sizes = [8, 16, 8], strides = [1, 1, 1]} : vector<10x18x8xbf16> to vector<8x16x8xbf16>
    %23 = tpu.concatenate %20, %21, %22 in 2 : vector<8x16x8xbf16>, vector<8x16x8xbf16>, vector<8x16x8xbf16> -> vector<8x16x24xbf16>
    %24 = vector.shape_cast %23 : vector<8x16x24xbf16> to vector<128x24xbf16>
    %c0_16 = arith.constant 0 : index
    %c0_17 = arith.constant 0 : index
    %c0_18 = arith.constant 0 : index
    %25 = vector.load %arg5[%c0_16, %c0_17, %c0_18] : memref<3x24x16xbf16, #tpu.memory_space<vmem>>, vector<1x24x16xbf16>
    %26 = vector.shape_cast %25 : vector<1x24x16xbf16> to vector<24x16xbf16>
    %cst_19 = arith.constant dense<0.000000e+00> : vector<128x16xf32>
    %27 = tpu.matmul %24, %26, %cst_19 {dimension_numbers = #tpu.dot_dimension_numbers<[1], [0], [0], [1], [0, 0, 1, 1], [], []>} : vector<128x24xbf16>, vector<24x16xbf16>, vector<128x16xf32> -> vector<128x16xf32>
    %28 = arith.addf %19, %27 : vector<128x16xf32>
    %29 = vector.extract_strided_slice %18 {offsets = [1, 0, 0], sizes = [8, 16, 8], strides = [1, 1, 1]} : vector<10x18x8xbf16> to vector<8x16x8xbf16>
    %30 = vector.extract_strided_slice %18 {offsets = [1, 1, 0], sizes = [8, 16, 8], strides = [1, 1, 1]} : vector<10x18x8xbf16> to vector<8x16x8xbf16>
    %31 = vector.extract_strided_slice %18 {offsets = [1, 2, 0], sizes = [8, 16, 8], strides = [1, 1, 1]} : vector<10x18x8xbf16> to vector<8x16x8xbf16>
    %32 = tpu.concatenate %29, %30, %31 in 2 : vector<8x16x8xbf16>, vector<8x16x8xbf16>, vector<8x16x8xbf16> -> vector<8x16x24xbf16>
    %33 = vector.shape_cast %32 : vector<8x16x24xbf16> to vector<128x24xbf16>
    %c1 = arith.constant 1 : index
    %c0_20 = arith.constant 0 : index
    %c0_21 = arith.constant 0 : index
    %34 = vector.load %arg5[%c1, %c0_20, %c0_21] : memref<3x24x16xbf16, #tpu.memory_space<vmem>>, vector<1x24x16xbf16>
    %35 = vector.shape_cast %34 : vector<1x24x16xbf16> to vector<24x16xbf16>
    %cst_22 = arith.constant dense<0.000000e+00> : vector<128x16xf32>
    %36 = tpu.matmul %33, %35, %cst_22 {dimension_numbers = #tpu.dot_dimension_numbers<[1], [0], [0], [1], [0, 0, 1, 1], [], []>} : vector<128x24xbf16>, vector<24x16xbf16>, vector<128x16xf32> -> vector<128x16xf32>
    %37 = arith.addf %28, %36 : vector<128x16xf32>
    %38 = vector.extract_strided_slice %18 {offsets = [2, 0, 0], sizes = [8, 16, 8], strides = [1, 1, 1]} : vector<10x18x8xbf16> to vector<8x16x8xbf16>
    %39 = vector.extract_strided_slice %18 {offsets = [2, 1, 0], sizes = [8, 16, 8], strides = [1, 1, 1]} : vector<10x18x8xbf16> to vector<8x16x8xbf16>
    %40 = vector.extract_strided_slice %18 {offsets = [2, 2, 0], sizes = [8, 16, 8], strides = [1, 1, 1]} : vector<10x18x8xbf16> to vector<8x16x8xbf16>
    %41 = tpu.concatenate %38, %39, %40 in 2 : vector<8x16x8xbf16>, vector<8x16x8xbf16>, vector<8x16x8xbf16> -> vector<8x16x24xbf16>
    %42 = vector.shape_cast %41 : vector<8x16x24xbf16> to vector<128x24xbf16>
    %c2 = arith.constant 2 : index
    %c0_23 = arith.constant 0 : index
    %c0_24 = arith.constant 0 : index
    %43 = vector.load %arg5[%c2, %c0_23, %c0_24] : memref<3x24x16xbf16, #tpu.memory_space<vmem>>, vector<1x24x16xbf16>
    %44 = vector.shape_cast %43 : vector<1x24x16xbf16> to vector<24x16xbf16>
    %cst_25 = arith.constant dense<0.000000e+00> : vector<128x16xf32>
    %45 = tpu.matmul %42, %44, %cst_25 {dimension_numbers = #tpu.dot_dimension_numbers<[1], [0], [0], [1], [0, 0, 1, 1], [], []>} : vector<128x24xbf16>, vector<24x16xbf16>, vector<128x16xf32> -> vector<128x16xf32>
    %46 = arith.addf %37, %45 : vector<128x16xf32>
    %c0_26 = arith.constant 0 : index
    %c0_27 = arith.constant 0 : index
    %47 = vector.load %arg6[%c0_26, %c0_27] : memref<1x16xf32, #tpu.memory_space<vmem>>, vector<1x16xf32>
    %48 = vector.broadcast %47 : vector<1x16xf32> to vector<128x16xf32>
    %49 = arith.addf %46, %48 : vector<128x16xf32>
    %50 = vector.shape_cast %49 : vector<128x16xf32> to vector<8x16x16xf32>
    %51 = arith.truncf %50 : vector<8x16x16xf32> to vector<8x16x16xbf16>
    %c0_28 = arith.constant 0 : index
    %c0_29 = arith.constant 0 : index
    %c0_30 = arith.constant 0 : index
    %c0_31 = arith.constant 0 : index
    %52 = vector.load %arg7[%c0_28, %c0_29, %c0_30, %c0_31] : memref<1x8x16x16xbf16, #tpu.memory_space<vmem>>, vector<1x8x16x16xbf16>
    %53 = vector.shape_cast %52 : vector<1x8x16x16xbf16> to vector<8x16x16xbf16>
    %54 = vector.shape_cast %51 : vector<8x16x16xbf16> to vector<1x8x16x16xbf16>
    tpu.vector_store %arg7[%c0_28, %c0_29, %c0_30, %c0_31], %54 {strides = array<i32>} : memref<1x8x16x16xbf16, #tpu.memory_space<vmem>>, vector<1x8x16x16xbf16>,
    return
  }
  func.func @transform_0(%arg0: i32, %arg1: i32) -> (i32, i32, i32, i32) {
    %c0_i32 = arith.constant 0 : i32
    %c0_i32_0 = arith.constant 0 : i32
    %c0_i32_1 = arith.constant 0 : i32
    return %arg1, %arg0, %c0_i32, %c0_i32_0 : i32, i32, i32, i32
  }
  func.func @transform_1(%arg0: i32, %arg1: i32) -> (i32, i32, i32, i32) {
    %c8_i32 = arith.constant 8 : i32
    %0 = arith.muli %arg0, %c8_i32 : i32
    %c1_i32 = arith.constant 1 : i32
    %1 = arith.subi %0, %c1_i32 : i32
    %c0_i32 = arith.constant 0 : i32
    %2 = arith.maxsi %1, %c0_i32 : i32
    %c0_i32_0 = arith.constant 0 : i32
    %c0_i32_1 = arith.constant 0 : i32
    %c0_i32_2 = arith.constant 0 : i32
    return %arg1, %2, %c0_i32_0, %c0_i32_1 : i32, i32, i32, i32
  }
  func.func @transform_2(%arg0: i32, %arg1: i32) -> (i32, i32, i32, i32) {
    %c8_i32 = arith.constant 8 : i32
    %0 = arith.muli %arg0, %c8_i32 : i32
    %c8_i32_0 = arith.constant 8 : i32
    %1 = arith.addi %0, %c8_i32_0 : i32
    %c15_i32 = arith.constant 15 : i32
    %2 = arith.minsi %1, %c15_i32 : i32
    %c0_i32 = arith.constant 0 : i32
    %c0_i32_1 = arith.constant 0 : i32
    %c0_i32_2 = arith.constant 0 : i32
    return %arg1, %2, %c0_i32, %c0_i32_1 : i32, i32, i32, i32
  }
  func.func @transform_3(%arg0: i32, %arg1: i32) -> (i32, i32, i32) {
    %c0_i32 = arith.constant 0 : i32
    %c0_i32_0 = arith.constant 0 : i32
    %c0_i32_1 = arith.constant 0 : i32
    %c0_i32_2 = arith.constant 0 : i32
    return %c0_i32, %c0_i32_0, %c0_i32_1 : i32, i32, i32
  }
  func.func @transform_4(%arg0: i32, %arg1: i32) -> (i32, i32) {
    %c0_i32 = arith.constant 0 : i32
    %c0_i32_0 = arith.constant 0 : i32
    %c0_i32_1 = arith.constant 0 : i32
    return %c0_i32, %c0_i32_0 : i32, i32
  }
  func.func @transform_5(%arg0: i32, %arg1: i32) -> (i32, i32, i32, i32) {
    %c0_i32 = arith.constant 0 : i32
    %c0_i32_0 = arith.constant 0 : i32
    %c0_i32_1 = arith.constant 0 : i32
    return %arg1, %arg0, %c0_i32, %c0_i32_0 : i32, i32, i32, i32
  }
}

module attributes {stable_mosaic.version = 11 : i64} {
  func.func @kernel(%arg0: i32, %arg1: i32, %arg2: memref<1x8x16x3xf32, #tpu.memory_space<vmem>>, %arg3: memref<1x1x16x3xf32, #tpu.memory_space<vmem>>, %arg4: memref<1x1x16x3xf32, #tpu.memory_space<vmem>>, %arg5: memref<3x9x8xbf16, #tpu.memory_space<vmem>>, %arg6: memref<1x8xf32, #tpu.memory_space<vmem>>, %arg7: memref<1x8x16x8xbf16, #tpu.memory_space<vmem>>) attributes {dimension_semantics = [#tpu.dimension_semantics<parallel>, #tpu.dimension_semantics<parallel>], iteration_bounds = array<i64: 2, 2>, scalar_prefetch = 0 : i64, scratch_operands = 0 : i64, tpu.core_type = #tpu.core_type<tc>, window_params = [{transform_indices = @transform_0, window_bounds = array<i64: 1, 8, 16, 3>}, {transform_indices = @transform_1, window_bounds = array<i64: 1, 1, 16, 3>}, {transform_indices = @transform_2, window_bounds = array<i64: 1, 1, 16, 3>}, {pipeline_mode = #tpu.pipeline_mode<synchronous>, transform_indices = @transform_3, window_bounds = array<i64: 3, 9, 8>}, {pipeline_mode = #tpu.pipeline_mode<synchronous>, transform_indices = @transform_4, window_bounds = array<i64: 1, 8>}, {transform_indices = @transform_5, window_bounds = array<i64: 1, 8, 16, 8>}]} {
    %c0_i32 = arith.constant 0 : i32
    %0 = arith.cmpi sgt, %arg0, %c0_i32 : i32
    %c0 = arith.constant 0 : index
    %c0_0 = arith.constant 0 : index
    %c0_1 = arith.constant 0 : index
    %c0_2 = arith.constant 0 : index
    %1 = vector.load %arg3[%c0, %c0_0, %c0_1, %c0_2] : memref<1x1x16x3xf32, #tpu.memory_space<vmem>>, vector<1x1x16x3xf32>
    %2 = vector.shape_cast %1 : vector<1x1x16x3xf32> to vector<1x16x3xf32>
    %cst = arith.constant 1.000000e+00 : f32
    %cst_3 = arith.constant 0.000000e+00 : f32
    %3 = arith.select %0, %cst, %cst_3 : f32
    %4 = vector.broadcast %3 : f32 to vector<1x16x3xf32>
    %5 = arith.mulf %2, %4 : vector<1x16x3xf32>
    %c1_i32 = arith.constant 1 : i32
    %6 = arith.cmpi slt, %arg0, %c1_i32 : i32
    %c0_4 = arith.constant 0 : index
    %c0_5 = arith.constant 0 : index
    %c0_6 = arith.constant 0 : index
    %c0_7 = arith.constant 0 : index
    %7 = vector.load %arg4[%c0_4, %c0_5, %c0_6, %c0_7] : memref<1x1x16x3xf32, #tpu.memory_space<vmem>>, vector<1x1x16x3xf32>
    %8 = vector.shape_cast %7 : vector<1x1x16x3xf32> to vector<1x16x3xf32>
    %cst_8 = arith.constant 1.000000e+00 : f32
    %cst_9 = arith.constant 0.000000e+00 : f32
    %9 = arith.select %6, %cst_8, %cst_9 : f32
    %10 = vector.broadcast %9 : f32 to vector<1x16x3xf32>
    %11 = arith.mulf %8, %10 : vector<1x16x3xf32>
    %c0_10 = arith.constant 0 : index
    %c0_11 = arith.constant 0 : index
    %c0_12 = arith.constant 0 : index
    %c0_13 = arith.constant 0 : index
    %12 = vector.load %arg2[%c0_10, %c0_11, %c0_12, %c0_13] : memref<1x8x16x3xf32, #tpu.memory_space<vmem>>, vector<1x8x16x3xf32>
    %13 = vector.shape_cast %12 : vector<1x8x16x3xf32> to vector<8x16x3xf32>
    %14 = tpu.concatenate %5, %13, %11 in 0 : vector<1x16x3xf32>, vector<8x16x3xf32>, vector<1x16x3xf32> -> vector<10x16x3xf32>
    %15 = arith.truncf %14 : vector<10x16x3xf32> to vector<10x16x3xbf16>
    %cst_14 = arith.constant 0.000000e+00 : bf16
    %16 = vector.broadcast %cst_14 : bf16 to vector<10x1x3xbf16>
    %17 = tpu.concatenate %16, %15, %16 in 1 : vector<10x1x3xbf16>, vector<10x16x3xbf16>, vector<10x1x3xbf16> -> vector<10x18x3xbf16>
    %cst_15 = arith.constant 0.000000e+00 : f32
    %18 = vector.broadcast %cst_15 : f32 to vector<128x8xf32>
    %19 = vector.extract_strided_slice %17 {offsets = [0, 0, 0], sizes = [8, 16, 3], strides = [1, 1, 1]} : vector<10x18x3xbf16> to vector<8x16x3xbf16>
    %20 = vector.extract_strided_slice %17 {offsets = [0, 1, 0], sizes = [8, 16, 3], strides = [1, 1, 1]} : vector<10x18x3xbf16> to vector<8x16x3xbf16>
    %21 = vector.extract_strided_slice %17 {offsets = [0, 2, 0], sizes = [8, 16, 3], strides = [1, 1, 1]} : vector<10x18x3xbf16> to vector<8x16x3xbf16>
    %22 = tpu.concatenate %19, %20, %21 in 2 : vector<8x16x3xbf16>, vector<8x16x3xbf16>, vector<8x16x3xbf16> -> vector<8x16x9xbf16>
    %23 = vector.shape_cast %22 : vector<8x16x9xbf16> to vector<128x9xbf16>
    %c0_16 = arith.constant 0 : index
    %c0_17 = arith.constant 0 : index
    %c0_18 = arith.constant 0 : index
    %24 = vector.load %arg5[%c0_16, %c0_17, %c0_18] : memref<3x9x8xbf16, #tpu.memory_space<vmem>>, vector<1x9x8xbf16>
    %25 = vector.shape_cast %24 : vector<1x9x8xbf16> to vector<9x8xbf16>
    %cst_19 = arith.constant dense<0.000000e+00> : vector<128x8xf32>
    %26 = tpu.matmul %23, %25, %cst_19 {dimension_numbers = #tpu.dot_dimension_numbers<[1], [0], [0], [1], [0, 0, 1, 1], [], []>} : vector<128x9xbf16>, vector<9x8xbf16>, vector<128x8xf32> -> vector<128x8xf32>
    %27 = arith.addf %18, %26 : vector<128x8xf32>
    %28 = vector.extract_strided_slice %17 {offsets = [1, 0, 0], sizes = [8, 16, 3], strides = [1, 1, 1]} : vector<10x18x3xbf16> to vector<8x16x3xbf16>
    %29 = vector.extract_strided_slice %17 {offsets = [1, 1, 0], sizes = [8, 16, 3], strides = [1, 1, 1]} : vector<10x18x3xbf16> to vector<8x16x3xbf16>
    %30 = vector.extract_strided_slice %17 {offsets = [1, 2, 0], sizes = [8, 16, 3], strides = [1, 1, 1]} : vector<10x18x3xbf16> to vector<8x16x3xbf16>
    %31 = tpu.concatenate %28, %29, %30 in 2 : vector<8x16x3xbf16>, vector<8x16x3xbf16>, vector<8x16x3xbf16> -> vector<8x16x9xbf16>
    %32 = vector.shape_cast %31 : vector<8x16x9xbf16> to vector<128x9xbf16>
    %c1 = arith.constant 1 : index
    %c0_20 = arith.constant 0 : index
    %c0_21 = arith.constant 0 : index
    %33 = vector.load %arg5[%c1, %c0_20, %c0_21] : memref<3x9x8xbf16, #tpu.memory_space<vmem>>, vector<1x9x8xbf16>
    %34 = vector.shape_cast %33 : vector<1x9x8xbf16> to vector<9x8xbf16>
    %cst_22 = arith.constant dense<0.000000e+00> : vector<128x8xf32>
    %35 = tpu.matmul %32, %34, %cst_22 {dimension_numbers = #tpu.dot_dimension_numbers<[1], [0], [0], [1], [0, 0, 1, 1], [], []>} : vector<128x9xbf16>, vector<9x8xbf16>, vector<128x8xf32> -> vector<128x8xf32>
    %36 = arith.addf %27, %35 : vector<128x8xf32>
    %37 = vector.extract_strided_slice %17 {offsets = [2, 0, 0], sizes = [8, 16, 3], strides = [1, 1, 1]} : vector<10x18x3xbf16> to vector<8x16x3xbf16>
    %38 = vector.extract_strided_slice %17 {offsets = [2, 1, 0], sizes = [8, 16, 3], strides = [1, 1, 1]} : vector<10x18x3xbf16> to vector<8x16x3xbf16>
    %39 = vector.extract_strided_slice %17 {offsets = [2, 2, 0], sizes = [8, 16, 3], strides = [1, 1, 1]} : vector<10x18x3xbf16> to vector<8x16x3xbf16>
    %40 = tpu.concatenate %37, %38, %39 in 2 : vector<8x16x3xbf16>, vector<8x16x3xbf16>, vector<8x16x3xbf16> -> vector<8x16x9xbf16>
    %41 = vector.shape_cast %40 : vector<8x16x9xbf16> to vector<128x9xbf16>
    %c2 = arith.constant 2 : index
    %c0_23 = arith.constant 0 : index
    %c0_24 = arith.constant 0 : index
    %42 = vector.load %arg5[%c2, %c0_23, %c0_24] : memref<3x9x8xbf16, #tpu.memory_space<vmem>>, vector<1x9x8xbf16>
    %43 = vector.shape_cast %42 : vector<1x9x8xbf16> to vector<9x8xbf16>
    %cst_25 = arith.constant dense<0.000000e+00> : vector<128x8xf32>
    %44 = tpu.matmul %41, %43, %cst_25 {dimension_numbers = #tpu.dot_dimension_numbers<[1], [0], [0], [1], [0, 0, 1, 1], [], []>} : vector<128x9xbf16>, vector<9x8xbf16>, vector<128x8xf32> -> vector<128x8xf32>
    %45 = arith.addf %36, %44 : vector<128x8xf32>
    %c0_26 = arith.constant 0 : index
    %c0_27 = arith.constant 0 : index
    %46 = vector.load %arg6[%c0_26, %c0_27] : memref<1x8xf32, #tpu.memory_space<vmem>>, vector<1x8xf32>
    %47 = vector.broadcast %46 : vector<1x8xf32> to vector<128x8xf32>
    %48 = arith.addf %45, %47 : vector<128x8xf32>
    %49 = vector.shape_cast %48 : vector<128x8xf32> to vector<8x16x8xf32>
    %50 = arith.truncf %49 : vector<8x16x8xf32> to vector<8x16x8xbf16>
    %c0_28 = arith.constant 0 : index
    %c0_29 = arith.constant 0 : index
    %c0_30 = arith.constant 0 : index
    %c0_31 = arith.constant 0 : index
    %51 = vector.load %arg7[%c0_28, %c0_29, %c0_30, %c0_31] : memref<1x8x16x8xbf16, #tpu.memory_space<vmem>>, vector<1x8x16x8xbf16>
    %52 = vector.shape_cast %51 : vector<1x8x16x8xbf16> to vector<8x16x8xbf16>
    %53 = vector.shape_cast %50 : vector<8x16x8xbf16> to vector<1x8x16x8xbf16>
    tpu.vector_store %arg7[%c0_28, %c0_29, %c0_30, %c0_31], %53 {strides = array<i32>} : memref<1x8x16x8xbf16, #tpu.memory_space<vmem>>, vector<1x8x16x8xbf16>,
    return
  }
  func.func @transform_0(%arg0: i32, %arg1: i32) -> (i32, i32, i32, i32) {
    %c0_i32 = arith.constant 0 : i32
    %c0_i32_0 = arith.constant 0 : i32
    %c0_i32_1 = arith.constant 0 : i32
    return %arg1, %arg0, %c0_i32, %c0_i32_0 : i32, i32, i32, i32
  }
  func.func @transform_1(%arg0: i32, %arg1: i32) -> (i32, i32, i32, i32) {
    %c8_i32 = arith.constant 8 : i32
    %0 = arith.muli %arg0, %c8_i32 : i32
    %c1_i32 = arith.constant 1 : i32
    %1 = arith.subi %0, %c1_i32 : i32
    %c0_i32 = arith.constant 0 : i32
    %2 = arith.maxsi %1, %c0_i32 : i32
    %c0_i32_0 = arith.constant 0 : i32
    %c0_i32_1 = arith.constant 0 : i32
    %c0_i32_2 = arith.constant 0 : i32
    return %arg1, %2, %c0_i32_0, %c0_i32_1 : i32, i32, i32, i32
  }
  func.func @transform_2(%arg0: i32, %arg1: i32) -> (i32, i32, i32, i32) {
    %c8_i32 = arith.constant 8 : i32
    %0 = arith.muli %arg0, %c8_i32 : i32
    %c8_i32_0 = arith.constant 8 : i32
    %1 = arith.addi %0, %c8_i32_0 : i32
    %c15_i32 = arith.constant 15 : i32
    %2 = arith.minsi %1, %c15_i32 : i32
    %c0_i32 = arith.constant 0 : i32
    %c0_i32_1 = arith.constant 0 : i32
    %c0_i32_2 = arith.constant 0 : i32
    return %arg1, %2, %c0_i32, %c0_i32_1 : i32, i32, i32, i32
  }
  func.func @transform_3(%arg0: i32, %arg1: i32) -> (i32, i32, i32) {
    %c0_i32 = arith.constant 0 : i32
    %c0_i32_0 = arith.constant 0 : i32
    %c0_i32_1 = arith.constant 0 : i32
    %c0_i32_2 = arith.constant 0 : i32
    return %c0_i32, %c0_i32_0, %c0_i32_1 : i32, i32, i32
  }
  func.func @transform_4(%arg0: i32, %arg1: i32) -> (i32, i32) {
    %c0_i32 = arith.constant 0 : i32
    %c0_i32_0 = arith.constant 0 : i32
    %c0_i32_1 = arith.constant 0 : i32
    return %c0_i32, %c0_i32_0 : i32, i32
  }
  func.func @transform_5(%arg0: i32, %arg1: i32) -> (i32, i32, i32, i32) {
    %c0_i32 = arith.constant 0 : i32
    %c0_i32_0 = arith.constant 0 : i32
    %c0_i32_1 = arith.constant 0 : i32
    return %arg1, %arg0, %c0_i32, %c0_i32_0 : i32, i32, i32, i32
  }
}

module attributes {stable_mosaic.version = 11 : i64} {
  func.func @kernel(%arg0: i32, %arg1: i32, %arg2: memref<1x8x8x64xbf16, #tpu.memory_space<vmem>>, %arg3: memref<64x32xbf16, #tpu.memory_space<vmem>>, %arg4: memref<1x32xf32, #tpu.memory_space<vmem>>, %arg5: memref<1x8x8x32xbf16, #tpu.memory_space<vmem>>) attributes {dimension_semantics = [#tpu.dimension_semantics<parallel>, #tpu.dimension_semantics<parallel>], iteration_bounds = array<i64: 1, 2>, scalar_prefetch = 0 : i64, scratch_operands = 0 : i64, tpu.core_type = #tpu.core_type<tc>, window_params = [{transform_indices = @transform_0, window_bounds = array<i64: 1, 8, 8, 64>}, {pipeline_mode = #tpu.pipeline_mode<synchronous>, transform_indices = @transform_1, window_bounds = array<i64: 64, 32>}, {pipeline_mode = #tpu.pipeline_mode<synchronous>, transform_indices = @transform_2, window_bounds = array<i64: 1, 32>}, {transform_indices = @transform_3, window_bounds = array<i64: 1, 8, 8, 32>}]} {
    %c0 = arith.constant 0 : index
    %c0_0 = arith.constant 0 : index
    %c0_1 = arith.constant 0 : index
    %c0_2 = arith.constant 0 : index
    %0 = vector.load %arg2[%c0, %c0_0, %c0_1, %c0_2] : memref<1x8x8x64xbf16, #tpu.memory_space<vmem>>, vector<1x8x8x64xbf16>
    %1 = vector.shape_cast %0 : vector<1x8x8x64xbf16> to vector<8x8x64xbf16>
    %2 = vector.shape_cast %1 : vector<8x8x64xbf16> to vector<64x64xbf16>
    %c0_3 = arith.constant 0 : index
    %c0_4 = arith.constant 0 : index
    %3 = vector.load %arg3[%c0_3, %c0_4] : memref<64x32xbf16, #tpu.memory_space<vmem>>, vector<64x32xbf16>
    %cst = arith.constant dense<0.000000e+00> : vector<64x32xf32>
    %4 = tpu.matmul %2, %3, %cst {dimension_numbers = #tpu.dot_dimension_numbers<[1], [0], [0], [1], [0, 0, 1, 1], [], []>} : vector<64x64xbf16>, vector<64x32xbf16>, vector<64x32xf32> -> vector<64x32xf32>
    %c0_5 = arith.constant 0 : index
    %c0_6 = arith.constant 0 : index
    %5 = vector.load %arg4[%c0_5, %c0_6] : memref<1x32xf32, #tpu.memory_space<vmem>>, vector<1x32xf32>
    %6 = vector.broadcast %5 : vector<1x32xf32> to vector<64x32xf32>
    %7 = arith.addf %4, %6 : vector<64x32xf32>
    %cst_7 = arith.constant 5.000000e-01 : f32
    %8 = vector.broadcast %cst_7 : f32 to vector<64x32xf32>
    %9 = arith.mulf %8, %7 : vector<64x32xf32>
    %10 = arith.mulf %7, %7 : vector<64x32xf32>
    %11 = arith.mulf %10, %7 : vector<64x32xf32>
    %cst_8 = arith.constant 4.471500e-02 : f32
    %12 = vector.broadcast %cst_8 : f32 to vector<64x32xf32>
    %13 = arith.mulf %12, %11 : vector<64x32xf32>
    %14 = arith.addf %7, %13 : vector<64x32xf32>
    %cst_9 = arith.constant 0.797884583 : f32
    %15 = vector.broadcast %cst_9 : f32 to vector<64x32xf32>
    %16 = arith.mulf %15, %14 : vector<64x32xf32>
    %17 = math.tanh %16 : vector<64x32xf32>
    %cst_10 = arith.constant 1.000000e+00 : f32
    %18 = vector.broadcast %cst_10 : f32 to vector<64x32xf32>
    %19 = arith.addf %18, %17 : vector<64x32xf32>
    %20 = arith.mulf %9, %19 : vector<64x32xf32>
    %21 = vector.shape_cast %20 : vector<64x32xf32> to vector<8x8x32xf32>
    %22 = arith.truncf %21 : vector<8x8x32xf32> to vector<8x8x32xbf16>
    %c0_11 = arith.constant 0 : index
    %c0_12 = arith.constant 0 : index
    %c0_13 = arith.constant 0 : index
    %c0_14 = arith.constant 0 : index
    %23 = vector.load %arg5[%c0_11, %c0_12, %c0_13, %c0_14] : memref<1x8x8x32xbf16, #tpu.memory_space<vmem>>, vector<1x8x8x32xbf16>
    %24 = vector.shape_cast %23 : vector<1x8x8x32xbf16> to vector<8x8x32xbf16>
    %25 = vector.shape_cast %22 : vector<8x8x32xbf16> to vector<1x8x8x32xbf16>
    tpu.vector_store %arg5[%c0_11, %c0_12, %c0_13, %c0_14], %25 {strides = array<i32>} : memref<1x8x8x32xbf16, #tpu.memory_space<vmem>>, vector<1x8x8x32xbf16>,
    return
  }
  func.func @transform_0(%arg0: i32, %arg1: i32) -> (i32, i32, i32, i32) {
    %c0_i32 = arith.constant 0 : i32
    %c0_i32_0 = arith.constant 0 : i32
    %c0_i32_1 = arith.constant 0 : i32
    return %arg1, %arg0, %c0_i32, %c0_i32_0 : i32, i32, i32, i32
  }
  func.func @transform_1(%arg0: i32, %arg1: i32) -> (i32, i32) {
    %c0_i32 = arith.constant 0 : i32
    %c0_i32_0 = arith.constant 0 : i32
    %c0_i32_1 = arith.constant 0 : i32
    return %c0_i32, %c0_i32_0 : i32, i32
  }
  func.func @transform_2(%arg0: i32, %arg1: i32) -> (i32, i32) {
    %c0_i32 = arith.constant 0 : i32
    %c0_i32_0 = arith.constant 0 : i32
    %c0_i32_1 = arith.constant 0 : i32
    return %c0_i32, %c0_i32_0 : i32, i32
  }
  func.func @transform_3(%arg0: i32, %arg1: i32) -> (i32, i32, i32, i32) {
    %c0_i32 = arith.constant 0 : i32
    %c0_i32_0 = arith.constant 0 : i32
    %c0_i32_1 = arith.constant 0 : i32
    return %arg1, %arg0, %c0_i32, %c0_i32_0 : i32, i32, i32, i32
  }
}

module attributes {stable_mosaic.version = 11 : i64} {
  func.func @kernel(%arg0: i32, %arg1: i32, %arg2: memref<1x8x8x32xbf16, #tpu.memory_space<vmem>>, %arg3: memref<1x1x8x32xbf16, #tpu.memory_space<vmem>>, %arg4: memref<1x1x8x32xbf16, #tpu.memory_space<vmem>>, %arg5: memref<4x2x2x32x16xbf16, #tpu.memory_space<vmem>>, %arg6: memref<1x64xf32, #tpu.memory_space<vmem>>, %arg7: memref<1x8x8x64xbf16, #tpu.memory_space<vmem>>, %arg8: memref<1x8x8x64xbf16, #tpu.memory_space<vmem>>) attributes {dimension_semantics = [#tpu.dimension_semantics<parallel>, #tpu.dimension_semantics<parallel>], iteration_bounds = array<i64: 1, 2>, scalar_prefetch = 0 : i64, scratch_operands = 0 : i64, tpu.core_type = #tpu.core_type<tc>, window_params = [{transform_indices = @transform_0, window_bounds = array<i64: 1, 8, 8, 32>}, {transform_indices = @transform_1, window_bounds = array<i64: 1, 1, 8, 32>}, {transform_indices = @transform_2, window_bounds = array<i64: 1, 1, 8, 32>}, {pipeline_mode = #tpu.pipeline_mode<synchronous>, transform_indices = @transform_3, window_bounds = array<i64: 4, 2, 2, 32, 16>}, {pipeline_mode = #tpu.pipeline_mode<synchronous>, transform_indices = @transform_4, window_bounds = array<i64: 1, 64>}, {transform_indices = @transform_5, window_bounds = array<i64: 1, 8, 8, 64>}, {transform_indices = @transform_6, window_bounds = array<i64: 1, 8, 8, 64>}]} {
    %c0_i32 = arith.constant 0 : i32
    %0 = arith.cmpi sgt, %arg0, %c0_i32 : i32
    %c0 = arith.constant 0 : index
    %c0_0 = arith.constant 0 : index
    %c0_1 = arith.constant 0 : index
    %c0_2 = arith.constant 0 : index
    %1 = vector.load %arg3[%c0, %c0_0, %c0_1, %c0_2] : memref<1x1x8x32xbf16, #tpu.memory_space<vmem>>, vector<1x1x8x32xbf16>
    %2 = vector.shape_cast %1 : vector<1x1x8x32xbf16> to vector<1x8x32xbf16>
    %cst = arith.constant 1.000000e+00 : f32
    %cst_3 = arith.constant 0.000000e+00 : f32
    %3 = arith.select %0, %cst, %cst_3 : f32
    %4 = arith.truncf %3 : f32 to bf16
    %5 = vector.broadcast %4 : bf16 to vector<1x8x32xbf16>
    %6 = arith.mulf %2, %5 : vector<1x8x32xbf16>
    %c0_i32_4 = arith.constant 0 : i32
    %7 = arith.cmpi slt, %arg0, %c0_i32_4 : i32
    %c0_5 = arith.constant 0 : index
    %c0_6 = arith.constant 0 : index
    %c0_7 = arith.constant 0 : index
    %c0_8 = arith.constant 0 : index
    %8 = vector.load %arg4[%c0_5, %c0_6, %c0_7, %c0_8] : memref<1x1x8x32xbf16, #tpu.memory_space<vmem>>, vector<1x1x8x32xbf16>
    %9 = vector.shape_cast %8 : vector<1x1x8x32xbf16> to vector<1x8x32xbf16>
    %cst_9 = arith.constant 1.000000e+00 : f32
    %cst_10 = arith.constant 0.000000e+00 : f32
    %10 = arith.select %7, %cst_9, %cst_10 : f32
    %11 = arith.truncf %10 : f32 to bf16
    %12 = vector.broadcast %11 : bf16 to vector<1x8x32xbf16>
    %13 = arith.mulf %9, %12 : vector<1x8x32xbf16>
    %c0_11 = arith.constant 0 : index
    %c0_12 = arith.constant 0 : index
    %c0_13 = arith.constant 0 : index
    %c0_14 = arith.constant 0 : index
    %14 = vector.load %arg2[%c0_11, %c0_12, %c0_13, %c0_14] : memref<1x8x8x32xbf16, #tpu.memory_space<vmem>>, vector<1x8x8x32xbf16>
    %15 = vector.shape_cast %14 : vector<1x8x8x32xbf16> to vector<8x8x32xbf16>
    %16 = tpu.concatenate %6, %15, %13 in 0 : vector<1x8x32xbf16>, vector<8x8x32xbf16>, vector<1x8x32xbf16> -> vector<10x8x32xbf16>
    %cst_15 = arith.constant 0.000000e+00 : bf16
    %17 = vector.broadcast %cst_15 : bf16 to vector<10x1x32xbf16>
    %18 = tpu.concatenate %17, %16, %17 in 1 : vector<10x1x32xbf16>, vector<10x8x32xbf16>, vector<10x1x32xbf16> -> vector<10x10x32xbf16>
    %cst_16 = arith.constant 0.000000e+00 : f32
    %19 = vector.broadcast %cst_16 : f32 to vector<64x16xf32>
    %20 = vector.extract_strided_slice %18 {offsets = [0, 0, 0], sizes = [8, 8, 32], strides = [1, 1, 1]} : vector<10x10x32xbf16> to vector<8x8x32xbf16>
    %21 = vector.shape_cast %20 : vector<8x8x32xbf16> to vector<64x32xbf16>
    %c0_17 = arith.constant 0 : index
    %c0_18 = arith.constant 0 : index
    %c0_19 = arith.constant 0 : index
    %c0_20 = arith.constant 0 : index
    %c0_21 = arith.constant 0 : index
    %22 = vector.load %arg5[%c0_17, %c0_18, %c0_19, %c0_20, %c0_21] : memref<4x2x2x32x16xbf16, #tpu.memory_space<vmem>>, vector<1x1x1x32x16xbf16>
    %23 = vector.shape_cast %22 : vector<1x1x1x32x16xbf16> to vector<32x16xbf16>
    %cst_22 = arith.constant dense<0.000000e+00> : vector<64x16xf32>
    %24 = tpu.matmul %21, %23, %cst_22 {dimension_numbers = #tpu.dot_dimension_numbers<[1], [0], [0], [1], [0, 0, 1, 1], [], []>} : vector<64x32xbf16>, vector<32x16xbf16>, vector<64x16xf32> -> vector<64x16xf32>
    %25 = arith.addf %19, %24 : vector<64x16xf32>
    %26 = vector.extract_strided_slice %18 {offsets = [0, 1, 0], sizes = [8, 8, 32], strides = [1, 1, 1]} : vector<10x10x32xbf16> to vector<8x8x32xbf16>
    %27 = vector.shape_cast %26 : vector<8x8x32xbf16> to vector<64x32xbf16>
    %c0_23 = arith.constant 0 : index
    %c0_24 = arith.constant 0 : index
    %c1 = arith.constant 1 : index
    %c0_25 = arith.constant 0 : index
    %c0_26 = arith.constant 0 : index
    %28 = vector.load %arg5[%c0_23, %c0_24, %c1, %c0_25, %c0_26] : memref<4x2x2x32x16xbf16, #tpu.memory_space<vmem>>, vector<1x1x1x32x16xbf16>
    %29 = vector.shape_cast %28 : vector<1x1x1x32x16xbf16> to vector<32x16xbf16>
    %cst_27 = arith.constant dense<0.000000e+00> : vector<64x16xf32>
    %30 = tpu.matmul %27, %29, %cst_27 {dimension_numbers = #tpu.dot_dimension_numbers<[1], [0], [0], [1], [0, 0, 1, 1], [], []>} : vector<64x32xbf16>, vector<32x16xbf16>, vector<64x16xf32> -> vector<64x16xf32>
    %31 = arith.addf %25, %30 : vector<64x16xf32>
    %32 = vector.extract_strided_slice %18 {offsets = [1, 0, 0], sizes = [8, 8, 32], strides = [1, 1, 1]} : vector<10x10x32xbf16> to vector<8x8x32xbf16>
    %33 = vector.shape_cast %32 : vector<8x8x32xbf16> to vector<64x32xbf16>
    %c0_28 = arith.constant 0 : index
    %c1_29 = arith.constant 1 : index
    %c0_30 = arith.constant 0 : index
    %c0_31 = arith.constant 0 : index
    %c0_32 = arith.constant 0 : index
    %34 = vector.load %arg5[%c0_28, %c1_29, %c0_30, %c0_31, %c0_32] : memref<4x2x2x32x16xbf16, #tpu.memory_space<vmem>>, vector<1x1x1x32x16xbf16>
    %35 = vector.shape_cast %34 : vector<1x1x1x32x16xbf16> to vector<32x16xbf16>
    %cst_33 = arith.constant dense<0.000000e+00> : vector<64x16xf32>
    %36 = tpu.matmul %33, %35, %cst_33 {dimension_numbers = #tpu.dot_dimension_numbers<[1], [0], [0], [1], [0, 0, 1, 1], [], []>} : vector<64x32xbf16>, vector<32x16xbf16>, vector<64x16xf32> -> vector<64x16xf32>
    %37 = arith.addf %31, %36 : vector<64x16xf32>
    %38 = vector.extract_strided_slice %18 {offsets = [1, 1, 0], sizes = [8, 8, 32], strides = [1, 1, 1]} : vector<10x10x32xbf16> to vector<8x8x32xbf16>
    %39 = vector.shape_cast %38 : vector<8x8x32xbf16> to vector<64x32xbf16>
    %c0_34 = arith.constant 0 : index
    %c1_35 = arith.constant 1 : index
    %c1_36 = arith.constant 1 : index
    %c0_37 = arith.constant 0 : index
    %c0_38 = arith.constant 0 : index
    %40 = vector.load %arg5[%c0_34, %c1_35, %c1_36, %c0_37, %c0_38] : memref<4x2x2x32x16xbf16, #tpu.memory_space<vmem>>, vector<1x1x1x32x16xbf16>
    %41 = vector.shape_cast %40 : vector<1x1x1x32x16xbf16> to vector<32x16xbf16>
    %cst_39 = arith.constant dense<0.000000e+00> : vector<64x16xf32>
    %42 = tpu.matmul %39, %41, %cst_39 {dimension_numbers = #tpu.dot_dimension_numbers<[1], [0], [0], [1], [0, 0, 1, 1], [], []>} : vector<64x32xbf16>, vector<32x16xbf16>, vector<64x16xf32> -> vector<64x16xf32>
    %43 = arith.addf %37, %42 : vector<64x16xf32>
    %cst_40 = arith.constant 0.000000e+00 : f32
    %44 = vector.broadcast %cst_40 : f32 to vector<64x16xf32>
    %45 = vector.extract_strided_slice %18 {offsets = [0, 1, 0], sizes = [8, 8, 32], strides = [1, 1, 1]} : vector<10x10x32xbf16> to vector<8x8x32xbf16>
    %46 = vector.shape_cast %45 : vector<8x8x32xbf16> to vector<64x32xbf16>
    %c1_41 = arith.constant 1 : index
    %c0_42 = arith.constant 0 : index
    %c0_43 = arith.constant 0 : index
    %c0_44 = arith.constant 0 : index
    %c0_45 = arith.constant 0 : index
    %47 = vector.load %arg5[%c1_41, %c0_42, %c0_43, %c0_44, %c0_45] : memref<4x2x2x32x16xbf16, #tpu.memory_space<vmem>>, vector<1x1x1x32x16xbf16>
    %48 = vector.shape_cast %47 : vector<1x1x1x32x16xbf16> to vector<32x16xbf16>
    %cst_46 = arith.constant dense<0.000000e+00> : vector<64x16xf32>
    %49 = tpu.matmul %46, %48, %cst_46 {dimension_numbers = #tpu.dot_dimension_numbers<[1], [0], [0], [1], [0, 0, 1, 1], [], []>} : vector<64x32xbf16>, vector<32x16xbf16>, vector<64x16xf32> -> vector<64x16xf32>
    %50 = arith.addf %44, %49 : vector<64x16xf32>
    %51 = vector.extract_strided_slice %18 {offsets = [0, 2, 0], sizes = [8, 8, 32], strides = [1, 1, 1]} : vector<10x10x32xbf16> to vector<8x8x32xbf16>
    %52 = vector.shape_cast %51 : vector<8x8x32xbf16> to vector<64x32xbf16>
    %c1_47 = arith.constant 1 : index
    %c0_48 = arith.constant 0 : index
    %c1_49 = arith.constant 1 : index
    %c0_50 = arith.constant 0 : index
    %c0_51 = arith.constant 0 : index
    %53 = vector.load %arg5[%c1_47, %c0_48, %c1_49, %c0_50, %c0_51] : memref<4x2x2x32x16xbf16, #tpu.memory_space<vmem>>, vector<1x1x1x32x16xbf16>
    %54 = vector.shape_cast %53 : vector<1x1x1x32x16xbf16> to vector<32x16xbf16>
    %cst_52 = arith.constant dense<0.000000e+00> : vector<64x16xf32>
    %55 = tpu.matmul %52, %54, %cst_52 {dimension_numbers = #tpu.dot_dimension_numbers<[1], [0], [0], [1], [0, 0, 1, 1], [], []>} : vector<64x32xbf16>, vector<32x16xbf16>, vector<64x16xf32> -> vector<64x16xf32>
    %56 = arith.addf %50, %55 : vector<64x16xf32>
    %57 = vector.extract_strided_slice %18 {offsets = [1, 1, 0], sizes = [8, 8, 32], strides = [1, 1, 1]} : vector<10x10x32xbf16> to vector<8x8x32xbf16>
    %58 = vector.shape_cast %57 : vector<8x8x32xbf16> to vector<64x32xbf16>
    %c1_53 = arith.constant 1 : index
    %c1_54 = arith.constant 1 : index
    %c0_55 = arith.constant 0 : index
    %c0_56 = arith.constant 0 : index
    %c0_57 = arith.constant 0 : index
    %59 = vector.load %arg5[%c1_53, %c1_54, %c0_55, %c0_56, %c0_57] : memref<4x2x2x32x16xbf16, #tpu.memory_space<vmem>>, vector<1x1x1x32x16xbf16>
    %60 = vector.shape_cast %59 : vector<1x1x1x32x16xbf16> to vector<32x16xbf16>
    %cst_58 = arith.constant dense<0.000000e+00> : vector<64x16xf32>
    %61 = tpu.matmul %58, %60, %cst_58 {dimension_numbers = #tpu.dot_dimension_numbers<[1], [0], [0], [1], [0, 0, 1, 1], [], []>} : vector<64x32xbf16>, vector<32x16xbf16>, vector<64x16xf32> -> vector<64x16xf32>
    %62 = arith.addf %56, %61 : vector<64x16xf32>
    %63 = vector.extract_strided_slice %18 {offsets = [1, 2, 0], sizes = [8, 8, 32], strides = [1, 1, 1]} : vector<10x10x32xbf16> to vector<8x8x32xbf16>
    %64 = vector.shape_cast %63 : vector<8x8x32xbf16> to vector<64x32xbf16>
    %c1_59 = arith.constant 1 : index
    %c1_60 = arith.constant 1 : index
    %c1_61 = arith.constant 1 : index
    %c0_62 = arith.constant 0 : index
    %c0_63 = arith.constant 0 : index
    %65 = vector.load %arg5[%c1_59, %c1_60, %c1_61, %c0_62, %c0_63] : memref<4x2x2x32x16xbf16, #tpu.memory_space<vmem>>, vector<1x1x1x32x16xbf16>
    %66 = vector.shape_cast %65 : vector<1x1x1x32x16xbf16> to vector<32x16xbf16>
    %cst_64 = arith.constant dense<0.000000e+00> : vector<64x16xf32>
    %67 = tpu.matmul %64, %66, %cst_64 {dimension_numbers = #tpu.dot_dimension_numbers<[1], [0], [0], [1], [0, 0, 1, 1], [], []>} : vector<64x32xbf16>, vector<32x16xbf16>, vector<64x16xf32> -> vector<64x16xf32>
    %68 = arith.addf %62, %67 : vector<64x16xf32>
    %cst_65 = arith.constant 0.000000e+00 : f32
    %69 = vector.broadcast %cst_65 : f32 to vector<64x16xf32>
    %70 = vector.extract_strided_slice %18 {offsets = [1, 0, 0], sizes = [8, 8, 32], strides = [1, 1, 1]} : vector<10x10x32xbf16> to vector<8x8x32xbf16>
    %71 = vector.shape_cast %70 : vector<8x8x32xbf16> to vector<64x32xbf16>
    %c2 = arith.constant 2 : index
    %c0_66 = arith.constant 0 : index
    %c0_67 = arith.constant 0 : index
    %c0_68 = arith.constant 0 : index
    %c0_69 = arith.constant 0 : index
    %72 = vector.load %arg5[%c2, %c0_66, %c0_67, %c0_68, %c0_69] : memref<4x2x2x32x16xbf16, #tpu.memory_space<vmem>>, vector<1x1x1x32x16xbf16>
    %73 = vector.shape_cast %72 : vector<1x1x1x32x16xbf16> to vector<32x16xbf16>
    %cst_70 = arith.constant dense<0.000000e+00> : vector<64x16xf32>
    %74 = tpu.matmul %71, %73, %cst_70 {dimension_numbers = #tpu.dot_dimension_numbers<[1], [0], [0], [1], [0, 0, 1, 1], [], []>} : vector<64x32xbf16>, vector<32x16xbf16>, vector<64x16xf32> -> vector<64x16xf32>
    %75 = arith.addf %69, %74 : vector<64x16xf32>
    %76 = vector.extract_strided_slice %18 {offsets = [1, 1, 0], sizes = [8, 8, 32], strides = [1, 1, 1]} : vector<10x10x32xbf16> to vector<8x8x32xbf16>
    %77 = vector.shape_cast %76 : vector<8x8x32xbf16> to vector<64x32xbf16>
    %c2_71 = arith.constant 2 : index
    %c0_72 = arith.constant 0 : index
    %c1_73 = arith.constant 1 : index
    %c0_74 = arith.constant 0 : index
    %c0_75 = arith.constant 0 : index
    %78 = vector.load %arg5[%c2_71, %c0_72, %c1_73, %c0_74, %c0_75] : memref<4x2x2x32x16xbf16, #tpu.memory_space<vmem>>, vector<1x1x1x32x16xbf16>
    %79 = vector.shape_cast %78 : vector<1x1x1x32x16xbf16> to vector<32x16xbf16>
    %cst_76 = arith.constant dense<0.000000e+00> : vector<64x16xf32>
    %80 = tpu.matmul %77, %79, %cst_76 {dimension_numbers = #tpu.dot_dimension_numbers<[1], [0], [0], [1], [0, 0, 1, 1], [], []>} : vector<64x32xbf16>, vector<32x16xbf16>, vector<64x16xf32> -> vector<64x16xf32>
    %81 = arith.addf %75, %80 : vector<64x16xf32>
    %82 = vector.extract_strided_slice %18 {offsets = [2, 0, 0], sizes = [8, 8, 32], strides = [1, 1, 1]} : vector<10x10x32xbf16> to vector<8x8x32xbf16>
    %83 = vector.shape_cast %82 : vector<8x8x32xbf16> to vector<64x32xbf16>
    %c2_77 = arith.constant 2 : index
    %c1_78 = arith.constant 1 : index
    %c0_79 = arith.constant 0 : index
    %c0_80 = arith.constant 0 : index
    %c0_81 = arith.constant 0 : index
    %84 = vector.load %arg5[%c2_77, %c1_78, %c0_79, %c0_80, %c0_81] : memref<4x2x2x32x16xbf16, #tpu.memory_space<vmem>>, vector<1x1x1x32x16xbf16>
    %85 = vector.shape_cast %84 : vector<1x1x1x32x16xbf16> to vector<32x16xbf16>
    %cst_82 = arith.constant dense<0.000000e+00> : vector<64x16xf32>
    %86 = tpu.matmul %83, %85, %cst_82 {dimension_numbers = #tpu.dot_dimension_numbers<[1], [0], [0], [1], [0, 0, 1, 1], [], []>} : vector<64x32xbf16>, vector<32x16xbf16>, vector<64x16xf32> -> vector<64x16xf32>
    %87 = arith.addf %81, %86 : vector<64x16xf32>
    %88 = vector.extract_strided_slice %18 {offsets = [2, 1, 0], sizes = [8, 8, 32], strides = [1, 1, 1]} : vector<10x10x32xbf16> to vector<8x8x32xbf16>
    %89 = vector.shape_cast %88 : vector<8x8x32xbf16> to vector<64x32xbf16>
    %c2_83 = arith.constant 2 : index
    %c1_84 = arith.constant 1 : index
    %c1_85 = arith.constant 1 : index
    %c0_86 = arith.constant 0 : index
    %c0_87 = arith.constant 0 : index
    %90 = vector.load %arg5[%c2_83, %c1_84, %c1_85, %c0_86, %c0_87] : memref<4x2x2x32x16xbf16, #tpu.memory_space<vmem>>, vector<1x1x1x32x16xbf16>
    %91 = vector.shape_cast %90 : vector<1x1x1x32x16xbf16> to vector<32x16xbf16>
    %cst_88 = arith.constant dense<0.000000e+00> : vector<64x16xf32>
    %92 = tpu.matmul %89, %91, %cst_88 {dimension_numbers = #tpu.dot_dimension_numbers<[1], [0], [0], [1], [0, 0, 1, 1], [], []>} : vector<64x32xbf16>, vector<32x16xbf16>, vector<64x16xf32> -> vector<64x16xf32>
    %93 = arith.addf %87, %92 : vector<64x16xf32>
    %cst_89 = arith.constant 0.000000e+00 : f32
    %94 = vector.broadcast %cst_89 : f32 to vector<64x16xf32>
    %95 = vector.extract_strided_slice %18 {offsets = [1, 1, 0], sizes = [8, 8, 32], strides = [1, 1, 1]} : vector<10x10x32xbf16> to vector<8x8x32xbf16>
    %96 = vector.shape_cast %95 : vector<8x8x32xbf16> to vector<64x32xbf16>
    %c3 = arith.constant 3 : index
    %c0_90 = arith.constant 0 : index
    %c0_91 = arith.constant 0 : index
    %c0_92 = arith.constant 0 : index
    %c0_93 = arith.constant 0 : index
    %97 = vector.load %arg5[%c3, %c0_90, %c0_91, %c0_92, %c0_93] : memref<4x2x2x32x16xbf16, #tpu.memory_space<vmem>>, vector<1x1x1x32x16xbf16>
    %98 = vector.shape_cast %97 : vector<1x1x1x32x16xbf16> to vector<32x16xbf16>
    %cst_94 = arith.constant dense<0.000000e+00> : vector<64x16xf32>
    %99 = tpu.matmul %96, %98, %cst_94 {dimension_numbers = #tpu.dot_dimension_numbers<[1], [0], [0], [1], [0, 0, 1, 1], [], []>} : vector<64x32xbf16>, vector<32x16xbf16>, vector<64x16xf32> -> vector<64x16xf32>
    %100 = arith.addf %94, %99 : vector<64x16xf32>
    %101 = vector.extract_strided_slice %18 {offsets = [1, 2, 0], sizes = [8, 8, 32], strides = [1, 1, 1]} : vector<10x10x32xbf16> to vector<8x8x32xbf16>
    %102 = vector.shape_cast %101 : vector<8x8x32xbf16> to vector<64x32xbf16>
    %c3_95 = arith.constant 3 : index
    %c0_96 = arith.constant 0 : index
    %c1_97 = arith.constant 1 : index
    %c0_98 = arith.constant 0 : index
    %c0_99 = arith.constant 0 : index
    %103 = vector.load %arg5[%c3_95, %c0_96, %c1_97, %c0_98, %c0_99] : memref<4x2x2x32x16xbf16, #tpu.memory_space<vmem>>, vector<1x1x1x32x16xbf16>
    %104 = vector.shape_cast %103 : vector<1x1x1x32x16xbf16> to vector<32x16xbf16>
    %cst_100 = arith.constant dense<0.000000e+00> : vector<64x16xf32>
    %105 = tpu.matmul %102, %104, %cst_100 {dimension_numbers = #tpu.dot_dimension_numbers<[1], [0], [0], [1], [0, 0, 1, 1], [], []>} : vector<64x32xbf16>, vector<32x16xbf16>, vector<64x16xf32> -> vector<64x16xf32>
    %106 = arith.addf %100, %105 : vector<64x16xf32>
    %107 = vector.extract_strided_slice %18 {offsets = [2, 1, 0], sizes = [8, 8, 32], strides = [1, 1, 1]} : vector<10x10x32xbf16> to vector<8x8x32xbf16>
    %108 = vector.shape_cast %107 : vector<8x8x32xbf16> to vector<64x32xbf16>
    %c3_101 = arith.constant 3 : index
    %c1_102 = arith.constant 1 : index
    %c0_103 = arith.constant 0 : index
    %c0_104 = arith.constant 0 : index
    %c0_105 = arith.constant 0 : index
    %109 = vector.load %arg5[%c3_101, %c1_102, %c0_103, %c0_104, %c0_105] : memref<4x2x2x32x16xbf16, #tpu.memory_space<vmem>>, vector<1x1x1x32x16xbf16>
    %110 = vector.shape_cast %109 : vector<1x1x1x32x16xbf16> to vector<32x16xbf16>
    %cst_106 = arith.constant dense<0.000000e+00> : vector<64x16xf32>
    %111 = tpu.matmul %108, %110, %cst_106 {dimension_numbers = #tpu.dot_dimension_numbers<[1], [0], [0], [1], [0, 0, 1, 1], [], []>} : vector<64x32xbf16>, vector<32x16xbf16>, vector<64x16xf32> -> vector<64x16xf32>
    %112 = arith.addf %106, %111 : vector<64x16xf32>
    %113 = vector.extract_strided_slice %18 {offsets = [2, 2, 0], sizes = [8, 8, 32], strides = [1, 1, 1]} : vector<10x10x32xbf16> to vector<8x8x32xbf16>
    %114 = vector.shape_cast %113 : vector<8x8x32xbf16> to vector<64x32xbf16>
    %c3_107 = arith.constant 3 : index
    %c1_108 = arith.constant 1 : index
    %c1_109 = arith.constant 1 : index
    %c0_110 = arith.constant 0 : index
    %c0_111 = arith.constant 0 : index
    %115 = vector.load %arg5[%c3_107, %c1_108, %c1_109, %c0_110, %c0_111] : memref<4x2x2x32x16xbf16, #tpu.memory_space<vmem>>, vector<1x1x1x32x16xbf16>
    %116 = vector.shape_cast %115 : vector<1x1x1x32x16xbf16> to vector<32x16xbf16>
    %cst_112 = arith.constant dense<0.000000e+00> : vector<64x16xf32>
    %117 = tpu.matmul %114, %116, %cst_112 {dimension_numbers = #tpu.dot_dimension_numbers<[1], [0], [0], [1], [0, 0, 1, 1], [], []>} : vector<64x32xbf16>, vector<32x16xbf16>, vector<64x16xf32> -> vector<64x16xf32>
    %118 = arith.addf %112, %117 : vector<64x16xf32>
    %119 = tpu.concatenate %43, %68, %93, %118 in 1 : vector<64x16xf32>, vector<64x16xf32>, vector<64x16xf32>, vector<64x16xf32> -> vector<64x64xf32>
    %c0_113 = arith.constant 0 : index
    %c0_114 = arith.constant 0 : index
    %120 = vector.load %arg6[%c0_113, %c0_114] : memref<1x64xf32, #tpu.memory_space<vmem>>, vector<1x64xf32>
    %121 = vector.broadcast %120 : vector<1x64xf32> to vector<64x64xf32>
    %122 = arith.addf %119, %121 : vector<64x64xf32>
    %c0_115 = arith.constant 0 : index
    %c0_116 = arith.constant 0 : index
    %c0_117 = arith.constant 0 : index
    %c0_118 = arith.constant 0 : index
    %123 = vector.load %arg7[%c0_115, %c0_116, %c0_117, %c0_118] : memref<1x8x8x64xbf16, #tpu.memory_space<vmem>>, vector<1x8x8x64xbf16>
    %124 = vector.shape_cast %123 : vector<1x8x8x64xbf16> to vector<8x8x64xbf16>
    %125 = vector.shape_cast %124 : vector<8x8x64xbf16> to vector<64x64xbf16>
    %126 = arith.extf %125 : vector<64x64xbf16> to vector<64x64xf32>
    %127 = arith.addf %122, %126 : vector<64x64xf32>
    %128 = vector.shape_cast %127 : vector<64x64xf32> to vector<8x8x64xf32>
    %129 = arith.truncf %128 : vector<8x8x64xf32> to vector<8x8x64xbf16>
    %c0_119 = arith.constant 0 : index
    %c0_120 = arith.constant 0 : index
    %c0_121 = arith.constant 0 : index
    %c0_122 = arith.constant 0 : index
    %130 = vector.load %arg8[%c0_119, %c0_120, %c0_121, %c0_122] : memref<1x8x8x64xbf16, #tpu.memory_space<vmem>>, vector<1x8x8x64xbf16>
    %131 = vector.shape_cast %130 : vector<1x8x8x64xbf16> to vector<8x8x64xbf16>
    %132 = vector.shape_cast %129 : vector<8x8x64xbf16> to vector<1x8x8x64xbf16>
    tpu.vector_store %arg8[%c0_119, %c0_120, %c0_121, %c0_122], %132 {strides = array<i32>} : memref<1x8x8x64xbf16, #tpu.memory_space<vmem>>, vector<1x8x8x64xbf16>,
    return
  }
  func.func @transform_0(%arg0: i32, %arg1: i32) -> (i32, i32, i32, i32) {
    %c0_i32 = arith.constant 0 : i32
    %c0_i32_0 = arith.constant 0 : i32
    %c0_i32_1 = arith.constant 0 : i32
    return %arg1, %arg0, %c0_i32, %c0_i32_0 : i32, i32, i32, i32
  }
  func.func @transform_1(%arg0: i32, %arg1: i32) -> (i32, i32, i32, i32) {
    %c8_i32 = arith.constant 8 : i32
    %0 = arith.muli %arg0, %c8_i32 : i32
    %c1_i32 = arith.constant 1 : i32
    %1 = arith.subi %0, %c1_i32 : i32
    %c0_i32 = arith.constant 0 : i32
    %2 = arith.maxsi %1, %c0_i32 : i32
    %c0_i32_0 = arith.constant 0 : i32
    %c0_i32_1 = arith.constant 0 : i32
    %c0_i32_2 = arith.constant 0 : i32
    return %arg1, %2, %c0_i32_0, %c0_i32_1 : i32, i32, i32, i32
  }
  func.func @transform_2(%arg0: i32, %arg1: i32) -> (i32, i32, i32, i32) {
    %c8_i32 = arith.constant 8 : i32
    %0 = arith.muli %arg0, %c8_i32 : i32
    %c8_i32_0 = arith.constant 8 : i32
    %1 = arith.addi %0, %c8_i32_0 : i32
    %c7_i32 = arith.constant 7 : i32
    %2 = arith.minsi %1, %c7_i32 : i32
    %c0_i32 = arith.constant 0 : i32
    %c0_i32_1 = arith.constant 0 : i32
    %c0_i32_2 = arith.constant 0 : i32
    return %arg1, %2, %c0_i32, %c0_i32_1 : i32, i32, i32, i32
  }
  func.func @transform_3(%arg0: i32, %arg1: i32) -> (i32, i32, i32, i32, i32) {
    %c0_i32 = arith.constant 0 : i32
    %c0_i32_0 = arith.constant 0 : i32
    %c0_i32_1 = arith.constant 0 : i32
    %c0_i32_2 = arith.constant 0 : i32
    %c0_i32_3 = arith.constant 0 : i32
    %c0_i32_4 = arith.constant 0 : i32
    return %c0_i32, %c0_i32_0, %c0_i32_1, %c0_i32_2, %c0_i32_3 : i32, i32, i32, i32, i32
  }
  func.func @transform_4(%arg0: i32, %arg1: i32) -> (i32, i32) {
    %c0_i32 = arith.constant 0 : i32
    %c0_i32_0 = arith.constant 0 : i32
    %c0_i32_1 = arith.constant 0 : i32
    return %c0_i32, %c0_i32_0 : i32, i32
  }
  func.func @transform_5(%arg0: i32, %arg1: i32) -> (i32, i32, i32, i32) {
    %c0_i32 = arith.constant 0 : i32
    %c0_i32_0 = arith.constant 0 : i32
    %c0_i32_1 = arith.constant 0 : i32
    return %arg1, %arg0, %c0_i32, %c0_i32_0 : i32, i32, i32, i32
  }
  func.func @transform_6(%arg0: i32, %arg1: i32) -> (i32, i32, i32, i32) {
    %c0_i32 = arith.constant 0 : i32
    %c0_i32_0 = arith.constant 0 : i32
    %c0_i32_1 = arith.constant 0 : i32
    return %arg1, %arg0, %c0_i32, %c0_i32_0 : i32, i32, i32, i32
  }
}

module attributes {stable_mosaic.version = 11 : i64} {
  func.func @kernel(%arg0: i32, %arg1: i32, %arg2: memref<1x8x16x16xbf16, #tpu.memory_space<vmem>>, %arg3: memref<1x1x16x16xbf16, #tpu.memory_space<vmem>>, %arg4: memref<1x1x16x16xbf16, #tpu.memory_space<vmem>>, %arg5: memref<4x2x2x16x3xbf16, #tpu.memory_space<vmem>>, %arg6: memref<1x12xf32, #tpu.memory_space<vmem>>, %arg7: memref<1x8x16x12xf32, #tpu.memory_space<vmem>>) attributes {dimension_semantics = [#tpu.dimension_semantics<parallel>, #tpu.dimension_semantics<parallel>], iteration_bounds = array<i64: 2, 2>, scalar_prefetch = 0 : i64, scratch_operands = 0 : i64, tpu.core_type = #tpu.core_type<tc>, window_params = [{transform_indices = @transform_0, window_bounds = array<i64: 1, 8, 16, 16>}, {transform_indices = @transform_1, window_bounds = array<i64: 1, 1, 16, 16>}, {transform_indices = @transform_2, window_bounds = array<i64: 1, 1, 16, 16>}, {pipeline_mode = #tpu.pipeline_mode<synchronous>, transform_indices = @transform_3, window_bounds = array<i64: 4, 2, 2, 16, 3>}, {pipeline_mode = #tpu.pipeline_mode<synchronous>, transform_indices = @transform_4, window_bounds = array<i64: 1, 12>}, {transform_indices = @transform_5, window_bounds = array<i64: 1, 8, 16, 12>}]} {
    %c0_i32 = arith.constant 0 : i32
    %0 = arith.cmpi sgt, %arg0, %c0_i32 : i32
    %c0 = arith.constant 0 : index
    %c0_0 = arith.constant 0 : index
    %c0_1 = arith.constant 0 : index
    %c0_2 = arith.constant 0 : index
    %1 = vector.load %arg3[%c0, %c0_0, %c0_1, %c0_2] : memref<1x1x16x16xbf16, #tpu.memory_space<vmem>>, vector<1x1x16x16xbf16>
    %2 = vector.shape_cast %1 : vector<1x1x16x16xbf16> to vector<1x16x16xbf16>
    %cst = arith.constant 1.000000e+00 : f32
    %cst_3 = arith.constant 0.000000e+00 : f32
    %3 = arith.select %0, %cst, %cst_3 : f32
    %4 = arith.truncf %3 : f32 to bf16
    %5 = vector.broadcast %4 : bf16 to vector<1x16x16xbf16>
    %6 = arith.mulf %2, %5 : vector<1x16x16xbf16>
    %c1_i32 = arith.constant 1 : i32
    %7 = arith.cmpi slt, %arg0, %c1_i32 : i32
    %c0_4 = arith.constant 0 : index
    %c0_5 = arith.constant 0 : index
    %c0_6 = arith.constant 0 : index
    %c0_7 = arith.constant 0 : index
    %8 = vector.load %arg4[%c0_4, %c0_5, %c0_6, %c0_7] : memref<1x1x16x16xbf16, #tpu.memory_space<vmem>>, vector<1x1x16x16xbf16>
    %9 = vector.shape_cast %8 : vector<1x1x16x16xbf16> to vector<1x16x16xbf16>
    %cst_8 = arith.constant 1.000000e+00 : f32
    %cst_9 = arith.constant 0.000000e+00 : f32
    %10 = arith.select %7, %cst_8, %cst_9 : f32
    %11 = arith.truncf %10 : f32 to bf16
    %12 = vector.broadcast %11 : bf16 to vector<1x16x16xbf16>
    %13 = arith.mulf %9, %12 : vector<1x16x16xbf16>
    %c0_10 = arith.constant 0 : index
    %c0_11 = arith.constant 0 : index
    %c0_12 = arith.constant 0 : index
    %c0_13 = arith.constant 0 : index
    %14 = vector.load %arg2[%c0_10, %c0_11, %c0_12, %c0_13] : memref<1x8x16x16xbf16, #tpu.memory_space<vmem>>, vector<1x8x16x16xbf16>
    %15 = vector.shape_cast %14 : vector<1x8x16x16xbf16> to vector<8x16x16xbf16>
    %16 = tpu.concatenate %6, %15, %13 in 0 : vector<1x16x16xbf16>, vector<8x16x16xbf16>, vector<1x16x16xbf16> -> vector<10x16x16xbf16>
    %cst_14 = arith.constant 0.000000e+00 : bf16
    %17 = vector.broadcast %cst_14 : bf16 to vector<10x1x16xbf16>
    %18 = tpu.concatenate %17, %16, %17 in 1 : vector<10x1x16xbf16>, vector<10x16x16xbf16>, vector<10x1x16xbf16> -> vector<10x18x16xbf16>
    %cst_15 = arith.constant 0.000000e+00 : f32
    %19 = vector.broadcast %cst_15 : f32 to vector<128x3xf32>
    %20 = vector.extract_strided_slice %18 {offsets = [0, 0, 0], sizes = [8, 16, 16], strides = [1, 1, 1]} : vector<10x18x16xbf16> to vector<8x16x16xbf16>
    %21 = vector.shape_cast %20 : vector<8x16x16xbf16> to vector<128x16xbf16>
    %c0_16 = arith.constant 0 : index
    %c0_17 = arith.constant 0 : index
    %c0_18 = arith.constant 0 : index
    %c0_19 = arith.constant 0 : index
    %c0_20 = arith.constant 0 : index
    %22 = vector.load %arg5[%c0_16, %c0_17, %c0_18, %c0_19, %c0_20] : memref<4x2x2x16x3xbf16, #tpu.memory_space<vmem>>, vector<1x1x1x16x3xbf16>
    %23 = vector.shape_cast %22 : vector<1x1x1x16x3xbf16> to vector<16x3xbf16>
    %cst_21 = arith.constant dense<0.000000e+00> : vector<128x3xf32>
    %24 = tpu.matmul %21, %23, %cst_21 {dimension_numbers = #tpu.dot_dimension_numbers<[1], [0], [0], [1], [0, 0, 1, 1], [], []>} : vector<128x16xbf16>, vector<16x3xbf16>, vector<128x3xf32> -> vector<128x3xf32>
    %25 = arith.addf %19, %24 : vector<128x3xf32>
    %26 = vector.extract_strided_slice %18 {offsets = [0, 1, 0], sizes = [8, 16, 16], strides = [1, 1, 1]} : vector<10x18x16xbf16> to vector<8x16x16xbf16>
    %27 = vector.shape_cast %26 : vector<8x16x16xbf16> to vector<128x16xbf16>
    %c0_22 = arith.constant 0 : index
    %c0_23 = arith.constant 0 : index
    %c1 = arith.constant 1 : index
    %c0_24 = arith.constant 0 : index
    %c0_25 = arith.constant 0 : index
    %28 = vector.load %arg5[%c0_22, %c0_23, %c1, %c0_24, %c0_25] : memref<4x2x2x16x3xbf16, #tpu.memory_space<vmem>>, vector<1x1x1x16x3xbf16>
    %29 = vector.shape_cast %28 : vector<1x1x1x16x3xbf16> to vector<16x3xbf16>
    %cst_26 = arith.constant dense<0.000000e+00> : vector<128x3xf32>
    %30 = tpu.matmul %27, %29, %cst_26 {dimension_numbers = #tpu.dot_dimension_numbers<[1], [0], [0], [1], [0, 0, 1, 1], [], []>} : vector<128x16xbf16>, vector<16x3xbf16>, vector<128x3xf32> -> vector<128x3xf32>
    %31 = arith.addf %25, %30 : vector<128x3xf32>
    %32 = vector.extract_strided_slice %18 {offsets = [1, 0, 0], sizes = [8, 16, 16], strides = [1, 1, 1]} : vector<10x18x16xbf16> to vector<8x16x16xbf16>
    %33 = vector.shape_cast %32 : vector<8x16x16xbf16> to vector<128x16xbf16>
    %c0_27 = arith.constant 0 : index
    %c1_28 = arith.constant 1 : index
    %c0_29 = arith.constant 0 : index
    %c0_30 = arith.constant 0 : index
    %c0_31 = arith.constant 0 : index
    %34 = vector.load %arg5[%c0_27, %c1_28, %c0_29, %c0_30, %c0_31] : memref<4x2x2x16x3xbf16, #tpu.memory_space<vmem>>, vector<1x1x1x16x3xbf16>
    %35 = vector.shape_cast %34 : vector<1x1x1x16x3xbf16> to vector<16x3xbf16>
    %cst_32 = arith.constant dense<0.000000e+00> : vector<128x3xf32>
    %36 = tpu.matmul %33, %35, %cst_32 {dimension_numbers = #tpu.dot_dimension_numbers<[1], [0], [0], [1], [0, 0, 1, 1], [], []>} : vector<128x16xbf16>, vector<16x3xbf16>, vector<128x3xf32> -> vector<128x3xf32>
    %37 = arith.addf %31, %36 : vector<128x3xf32>
    %38 = vector.extract_strided_slice %18 {offsets = [1, 1, 0], sizes = [8, 16, 16], strides = [1, 1, 1]} : vector<10x18x16xbf16> to vector<8x16x16xbf16>
    %39 = vector.shape_cast %38 : vector<8x16x16xbf16> to vector<128x16xbf16>
    %c0_33 = arith.constant 0 : index
    %c1_34 = arith.constant 1 : index
    %c1_35 = arith.constant 1 : index
    %c0_36 = arith.constant 0 : index
    %c0_37 = arith.constant 0 : index
    %40 = vector.load %arg5[%c0_33, %c1_34, %c1_35, %c0_36, %c0_37] : memref<4x2x2x16x3xbf16, #tpu.memory_space<vmem>>, vector<1x1x1x16x3xbf16>
    %41 = vector.shape_cast %40 : vector<1x1x1x16x3xbf16> to vector<16x3xbf16>
    %cst_38 = arith.constant dense<0.000000e+00> : vector<128x3xf32>
    %42 = tpu.matmul %39, %41, %cst_38 {dimension_numbers = #tpu.dot_dimension_numbers<[1], [0], [0], [1], [0, 0, 1, 1], [], []>} : vector<128x16xbf16>, vector<16x3xbf16>, vector<128x3xf32> -> vector<128x3xf32>
    %43 = arith.addf %37, %42 : vector<128x3xf32>
    %cst_39 = arith.constant 0.000000e+00 : f32
    %44 = vector.broadcast %cst_39 : f32 to vector<128x3xf32>
    %45 = vector.extract_strided_slice %18 {offsets = [0, 1, 0], sizes = [8, 16, 16], strides = [1, 1, 1]} : vector<10x18x16xbf16> to vector<8x16x16xbf16>
    %46 = vector.shape_cast %45 : vector<8x16x16xbf16> to vector<128x16xbf16>
    %c1_40 = arith.constant 1 : index
    %c0_41 = arith.constant 0 : index
    %c0_42 = arith.constant 0 : index
    %c0_43 = arith.constant 0 : index
    %c0_44 = arith.constant 0 : index
    %47 = vector.load %arg5[%c1_40, %c0_41, %c0_42, %c0_43, %c0_44] : memref<4x2x2x16x3xbf16, #tpu.memory_space<vmem>>, vector<1x1x1x16x3xbf16>
    %48 = vector.shape_cast %47 : vector<1x1x1x16x3xbf16> to vector<16x3xbf16>
    %cst_45 = arith.constant dense<0.000000e+00> : vector<128x3xf32>
    %49 = tpu.matmul %46, %48, %cst_45 {dimension_numbers = #tpu.dot_dimension_numbers<[1], [0], [0], [1], [0, 0, 1, 1], [], []>} : vector<128x16xbf16>, vector<16x3xbf16>, vector<128x3xf32> -> vector<128x3xf32>
    %50 = arith.addf %44, %49 : vector<128x3xf32>
    %51 = vector.extract_strided_slice %18 {offsets = [0, 2, 0], sizes = [8, 16, 16], strides = [1, 1, 1]} : vector<10x18x16xbf16> to vector<8x16x16xbf16>
    %52 = vector.shape_cast %51 : vector<8x16x16xbf16> to vector<128x16xbf16>
    %c1_46 = arith.constant 1 : index
    %c0_47 = arith.constant 0 : index
    %c1_48 = arith.constant 1 : index
    %c0_49 = arith.constant 0 : index
    %c0_50 = arith.constant 0 : index
    %53 = vector.load %arg5[%c1_46, %c0_47, %c1_48, %c0_49, %c0_50] : memref<4x2x2x16x3xbf16, #tpu.memory_space<vmem>>, vector<1x1x1x16x3xbf16>
    %54 = vector.shape_cast %53 : vector<1x1x1x16x3xbf16> to vector<16x3xbf16>
    %cst_51 = arith.constant dense<0.000000e+00> : vector<128x3xf32>
    %55 = tpu.matmul %52, %54, %cst_51 {dimension_numbers = #tpu.dot_dimension_numbers<[1], [0], [0], [1], [0, 0, 1, 1], [], []>} : vector<128x16xbf16>, vector<16x3xbf16>, vector<128x3xf32> -> vector<128x3xf32>
    %56 = arith.addf %50, %55 : vector<128x3xf32>
    %57 = vector.extract_strided_slice %18 {offsets = [1, 1, 0], sizes = [8, 16, 16], strides = [1, 1, 1]} : vector<10x18x16xbf16> to vector<8x16x16xbf16>
    %58 = vector.shape_cast %57 : vector<8x16x16xbf16> to vector<128x16xbf16>
    %c1_52 = arith.constant 1 : index
    %c1_53 = arith.constant 1 : index
    %c0_54 = arith.constant 0 : index
    %c0_55 = arith.constant 0 : index
    %c0_56 = arith.constant 0 : index
    %59 = vector.load %arg5[%c1_52, %c1_53, %c0_54, %c0_55, %c0_56] : memref<4x2x2x16x3xbf16, #tpu.memory_space<vmem>>, vector<1x1x1x16x3xbf16>
    %60 = vector.shape_cast %59 : vector<1x1x1x16x3xbf16> to vector<16x3xbf16>
    %cst_57 = arith.constant dense<0.000000e+00> : vector<128x3xf32>
    %61 = tpu.matmul %58, %60, %cst_57 {dimension_numbers = #tpu.dot_dimension_numbers<[1], [0], [0], [1], [0, 0, 1, 1], [], []>} : vector<128x16xbf16>, vector<16x3xbf16>, vector<128x3xf32> -> vector<128x3xf32>
    %62 = arith.addf %56, %61 : vector<128x3xf32>
    %63 = vector.extract_strided_slice %18 {offsets = [1, 2, 0], sizes = [8, 16, 16], strides = [1, 1, 1]} : vector<10x18x16xbf16> to vector<8x16x16xbf16>
    %64 = vector.shape_cast %63 : vector<8x16x16xbf16> to vector<128x16xbf16>
    %c1_58 = arith.constant 1 : index
    %c1_59 = arith.constant 1 : index
    %c1_60 = arith.constant 1 : index
    %c0_61 = arith.constant 0 : index
    %c0_62 = arith.constant 0 : index
    %65 = vector.load %arg5[%c1_58, %c1_59, %c1_60, %c0_61, %c0_62] : memref<4x2x2x16x3xbf16, #tpu.memory_space<vmem>>, vector<1x1x1x16x3xbf16>
    %66 = vector.shape_cast %65 : vector<1x1x1x16x3xbf16> to vector<16x3xbf16>
    %cst_63 = arith.constant dense<0.000000e+00> : vector<128x3xf32>
    %67 = tpu.matmul %64, %66, %cst_63 {dimension_numbers = #tpu.dot_dimension_numbers<[1], [0], [0], [1], [0, 0, 1, 1], [], []>} : vector<128x16xbf16>, vector<16x3xbf16>, vector<128x3xf32> -> vector<128x3xf32>
    %68 = arith.addf %62, %67 : vector<128x3xf32>
    %cst_64 = arith.constant 0.000000e+00 : f32
    %69 = vector.broadcast %cst_64 : f32 to vector<128x3xf32>
    %70 = vector.extract_strided_slice %18 {offsets = [1, 0, 0], sizes = [8, 16, 16], strides = [1, 1, 1]} : vector<10x18x16xbf16> to vector<8x16x16xbf16>
    %71 = vector.shape_cast %70 : vector<8x16x16xbf16> to vector<128x16xbf16>
    %c2 = arith.constant 2 : index
    %c0_65 = arith.constant 0 : index
    %c0_66 = arith.constant 0 : index
    %c0_67 = arith.constant 0 : index
    %c0_68 = arith.constant 0 : index
    %72 = vector.load %arg5[%c2, %c0_65, %c0_66, %c0_67, %c0_68] : memref<4x2x2x16x3xbf16, #tpu.memory_space<vmem>>, vector<1x1x1x16x3xbf16>
    %73 = vector.shape_cast %72 : vector<1x1x1x16x3xbf16> to vector<16x3xbf16>
    %cst_69 = arith.constant dense<0.000000e+00> : vector<128x3xf32>
    %74 = tpu.matmul %71, %73, %cst_69 {dimension_numbers = #tpu.dot_dimension_numbers<[1], [0], [0], [1], [0, 0, 1, 1], [], []>} : vector<128x16xbf16>, vector<16x3xbf16>, vector<128x3xf32> -> vector<128x3xf32>
    %75 = arith.addf %69, %74 : vector<128x3xf32>
    %76 = vector.extract_strided_slice %18 {offsets = [1, 1, 0], sizes = [8, 16, 16], strides = [1, 1, 1]} : vector<10x18x16xbf16> to vector<8x16x16xbf16>
    %77 = vector.shape_cast %76 : vector<8x16x16xbf16> to vector<128x16xbf16>
    %c2_70 = arith.constant 2 : index
    %c0_71 = arith.constant 0 : index
    %c1_72 = arith.constant 1 : index
    %c0_73 = arith.constant 0 : index
    %c0_74 = arith.constant 0 : index
    %78 = vector.load %arg5[%c2_70, %c0_71, %c1_72, %c0_73, %c0_74] : memref<4x2x2x16x3xbf16, #tpu.memory_space<vmem>>, vector<1x1x1x16x3xbf16>
    %79 = vector.shape_cast %78 : vector<1x1x1x16x3xbf16> to vector<16x3xbf16>
    %cst_75 = arith.constant dense<0.000000e+00> : vector<128x3xf32>
    %80 = tpu.matmul %77, %79, %cst_75 {dimension_numbers = #tpu.dot_dimension_numbers<[1], [0], [0], [1], [0, 0, 1, 1], [], []>} : vector<128x16xbf16>, vector<16x3xbf16>, vector<128x3xf32> -> vector<128x3xf32>
    %81 = arith.addf %75, %80 : vector<128x3xf32>
    %82 = vector.extract_strided_slice %18 {offsets = [2, 0, 0], sizes = [8, 16, 16], strides = [1, 1, 1]} : vector<10x18x16xbf16> to vector<8x16x16xbf16>
    %83 = vector.shape_cast %82 : vector<8x16x16xbf16> to vector<128x16xbf16>
    %c2_76 = arith.constant 2 : index
    %c1_77 = arith.constant 1 : index
    %c0_78 = arith.constant 0 : index
    %c0_79 = arith.constant 0 : index
    %c0_80 = arith.constant 0 : index
    %84 = vector.load %arg5[%c2_76, %c1_77, %c0_78, %c0_79, %c0_80] : memref<4x2x2x16x3xbf16, #tpu.memory_space<vmem>>, vector<1x1x1x16x3xbf16>
    %85 = vector.shape_cast %84 : vector<1x1x1x16x3xbf16> to vector<16x3xbf16>
    %cst_81 = arith.constant dense<0.000000e+00> : vector<128x3xf32>
    %86 = tpu.matmul %83, %85, %cst_81 {dimension_numbers = #tpu.dot_dimension_numbers<[1], [0], [0], [1], [0, 0, 1, 1], [], []>} : vector<128x16xbf16>, vector<16x3xbf16>, vector<128x3xf32> -> vector<128x3xf32>
    %87 = arith.addf %81, %86 : vector<128x3xf32>
    %88 = vector.extract_strided_slice %18 {offsets = [2, 1, 0], sizes = [8, 16, 16], strides = [1, 1, 1]} : vector<10x18x16xbf16> to vector<8x16x16xbf16>
    %89 = vector.shape_cast %88 : vector<8x16x16xbf16> to vector<128x16xbf16>
    %c2_82 = arith.constant 2 : index
    %c1_83 = arith.constant 1 : index
    %c1_84 = arith.constant 1 : index
    %c0_85 = arith.constant 0 : index
    %c0_86 = arith.constant 0 : index
    %90 = vector.load %arg5[%c2_82, %c1_83, %c1_84, %c0_85, %c0_86] : memref<4x2x2x16x3xbf16, #tpu.memory_space<vmem>>, vector<1x1x1x16x3xbf16>
    %91 = vector.shape_cast %90 : vector<1x1x1x16x3xbf16> to vector<16x3xbf16>
    %cst_87 = arith.constant dense<0.000000e+00> : vector<128x3xf32>
    %92 = tpu.matmul %89, %91, %cst_87 {dimension_numbers = #tpu.dot_dimension_numbers<[1], [0], [0], [1], [0, 0, 1, 1], [], []>} : vector<128x16xbf16>, vector<16x3xbf16>, vector<128x3xf32> -> vector<128x3xf32>
    %93 = arith.addf %87, %92 : vector<128x3xf32>
    %cst_88 = arith.constant 0.000000e+00 : f32
    %94 = vector.broadcast %cst_88 : f32 to vector<128x3xf32>
    %95 = vector.extract_strided_slice %18 {offsets = [1, 1, 0], sizes = [8, 16, 16], strides = [1, 1, 1]} : vector<10x18x16xbf16> to vector<8x16x16xbf16>
    %96 = vector.shape_cast %95 : vector<8x16x16xbf16> to vector<128x16xbf16>
    %c3 = arith.constant 3 : index
    %c0_89 = arith.constant 0 : index
    %c0_90 = arith.constant 0 : index
    %c0_91 = arith.constant 0 : index
    %c0_92 = arith.constant 0 : index
    %97 = vector.load %arg5[%c3, %c0_89, %c0_90, %c0_91, %c0_92] : memref<4x2x2x16x3xbf16, #tpu.memory_space<vmem>>, vector<1x1x1x16x3xbf16>
    %98 = vector.shape_cast %97 : vector<1x1x1x16x3xbf16> to vector<16x3xbf16>
    %cst_93 = arith.constant dense<0.000000e+00> : vector<128x3xf32>
    %99 = tpu.matmul %96, %98, %cst_93 {dimension_numbers = #tpu.dot_dimension_numbers<[1], [0], [0], [1], [0, 0, 1, 1], [], []>} : vector<128x16xbf16>, vector<16x3xbf16>, vector<128x3xf32> -> vector<128x3xf32>
    %100 = arith.addf %94, %99 : vector<128x3xf32>
    %101 = vector.extract_strided_slice %18 {offsets = [1, 2, 0], sizes = [8, 16, 16], strides = [1, 1, 1]} : vector<10x18x16xbf16> to vector<8x16x16xbf16>
    %102 = vector.shape_cast %101 : vector<8x16x16xbf16> to vector<128x16xbf16>
    %c3_94 = arith.constant 3 : index
    %c0_95 = arith.constant 0 : index
    %c1_96 = arith.constant 1 : index
    %c0_97 = arith.constant 0 : index
    %c0_98 = arith.constant 0 : index
    %103 = vector.load %arg5[%c3_94, %c0_95, %c1_96, %c0_97, %c0_98] : memref<4x2x2x16x3xbf16, #tpu.memory_space<vmem>>, vector<1x1x1x16x3xbf16>
    %104 = vector.shape_cast %103 : vector<1x1x1x16x3xbf16> to vector<16x3xbf16>
    %cst_99 = arith.constant dense<0.000000e+00> : vector<128x3xf32>
    %105 = tpu.matmul %102, %104, %cst_99 {dimension_numbers = #tpu.dot_dimension_numbers<[1], [0], [0], [1], [0, 0, 1, 1], [], []>} : vector<128x16xbf16>, vector<16x3xbf16>, vector<128x3xf32> -> vector<128x3xf32>
    %106 = arith.addf %100, %105 : vector<128x3xf32>
    %107 = vector.extract_strided_slice %18 {offsets = [2, 1, 0], sizes = [8, 16, 16], strides = [1, 1, 1]} : vector<10x18x16xbf16> to vector<8x16x16xbf16>
    %108 = vector.shape_cast %107 : vector<8x16x16xbf16> to vector<128x16xbf16>
    %c3_100 = arith.constant 3 : index
    %c1_101 = arith.constant 1 : index
    %c0_102 = arith.constant 0 : index
    %c0_103 = arith.constant 0 : index
    %c0_104 = arith.constant 0 : index
    %109 = vector.load %arg5[%c3_100, %c1_101, %c0_102, %c0_103, %c0_104] : memref<4x2x2x16x3xbf16, #tpu.memory_space<vmem>>, vector<1x1x1x16x3xbf16>
    %110 = vector.shape_cast %109 : vector<1x1x1x16x3xbf16> to vector<16x3xbf16>
    %cst_105 = arith.constant dense<0.000000e+00> : vector<128x3xf32>
    %111 = tpu.matmul %108, %110, %cst_105 {dimension_numbers = #tpu.dot_dimension_numbers<[1], [0], [0], [1], [0, 0, 1, 1], [], []>} : vector<128x16xbf16>, vector<16x3xbf16>, vector<128x3xf32> -> vector<128x3xf32>
    %112 = arith.addf %106, %111 : vector<128x3xf32>
    %113 = vector.extract_strided_slice %18 {offsets = [2, 2, 0], sizes = [8, 16, 16], strides = [1, 1, 1]} : vector<10x18x16xbf16> to vector<8x16x16xbf16>
    %114 = vector.shape_cast %113 : vector<8x16x16xbf16> to vector<128x16xbf16>
    %c3_106 = arith.constant 3 : index
    %c1_107 = arith.constant 1 : index
    %c1_108 = arith.constant 1 : index
    %c0_109 = arith.constant 0 : index
    %c0_110 = arith.constant 0 : index
    %115 = vector.load %arg5[%c3_106, %c1_107, %c1_108, %c0_109, %c0_110] : memref<4x2x2x16x3xbf16, #tpu.memory_space<vmem>>, vector<1x1x1x16x3xbf16>
    %116 = vector.shape_cast %115 : vector<1x1x1x16x3xbf16> to vector<16x3xbf16>
    %cst_111 = arith.constant dense<0.000000e+00> : vector<128x3xf32>
    %117 = tpu.matmul %114, %116, %cst_111 {dimension_numbers = #tpu.dot_dimension_numbers<[1], [0], [0], [1], [0, 0, 1, 1], [], []>} : vector<128x16xbf16>, vector<16x3xbf16>, vector<128x3xf32> -> vector<128x3xf32>
    %118 = arith.addf %112, %117 : vector<128x3xf32>
    %119 = tpu.concatenate %43, %68, %93, %118 in 1 : vector<128x3xf32>, vector<128x3xf32>, vector<128x3xf32>, vector<128x3xf32> -> vector<128x12xf32>
    %c0_112 = arith.constant 0 : index
    %c0_113 = arith.constant 0 : index
    %120 = vector.load %arg6[%c0_112, %c0_113] : memref<1x12xf32, #tpu.memory_space<vmem>>, vector<1x12xf32>
    %121 = vector.broadcast %120 : vector<1x12xf32> to vector<128x12xf32>
    %122 = arith.addf %119, %121 : vector<128x12xf32>
    %123 = vector.shape_cast %122 : vector<128x12xf32> to vector<8x16x12xf32>
    %c0_114 = arith.constant 0 : index
    %c0_115 = arith.constant 0 : index
    %c0_116 = arith.constant 0 : index
    %c0_117 = arith.constant 0 : index
    %124 = vector.load %arg7[%c0_114, %c0_115, %c0_116, %c0_117] : memref<1x8x16x12xf32, #tpu.memory_space<vmem>>, vector<1x8x16x12xf32>
    %125 = vector.shape_cast %124 : vector<1x8x16x12xf32> to vector<8x16x12xf32>
    %126 = vector.shape_cast %123 : vector<8x16x12xf32> to vector<1x8x16x12xf32>
    tpu.vector_store %arg7[%c0_114, %c0_115, %c0_116, %c0_117], %126 {strides = array<i32>} : memref<1x8x16x12xf32, #tpu.memory_space<vmem>>, vector<1x8x16x12xf32>,
    return
  }
  func.func @transform_0(%arg0: i32, %arg1: i32) -> (i32, i32, i32, i32) {
    %c0_i32 = arith.constant 0 : i32
    %c0_i32_0 = arith.constant 0 : i32
    %c0_i32_1 = arith.constant 0 : i32
    return %arg1, %arg0, %c0_i32, %c0_i32_0 : i32, i32, i32, i32
  }
  func.func @transform_1(%arg0: i32, %arg1: i32) -> (i32, i32, i32, i32) {
    %c8_i32 = arith.constant 8 : i32
    %0 = arith.muli %arg0, %c8_i32 : i32
    %c1_i32 = arith.constant 1 : i32
    %1 = arith.subi %0, %c1_i32 : i32
    %c0_i32 = arith.constant 0 : i32
    %2 = arith.maxsi %1, %c0_i32 : i32
    %c0_i32_0 = arith.constant 0 : i32
    %c0_i32_1 = arith.constant 0 : i32
    %c0_i32_2 = arith.constant 0 : i32
    return %arg1, %2, %c0_i32_0, %c0_i32_1 : i32, i32, i32, i32
  }
  func.func @transform_2(%arg0: i32, %arg1: i32) -> (i32, i32, i32, i32) {
    %c8_i32 = arith.constant 8 : i32
    %0 = arith.muli %arg0, %c8_i32 : i32
    %c8_i32_0 = arith.constant 8 : i32
    %1 = arith.addi %0, %c8_i32_0 : i32
    %c15_i32 = arith.constant 15 : i32
    %2 = arith.minsi %1, %c15_i32 : i32
    %c0_i32 = arith.constant 0 : i32
    %c0_i32_1 = arith.constant 0 : i32
    %c0_i32_2 = arith.constant 0 : i32
    return %arg1, %2, %c0_i32, %c0_i32_1 : i32, i32, i32, i32
  }
  func.func @transform_3(%arg0: i32, %arg1: i32) -> (i32, i32, i32, i32, i32) {
    %c0_i32 = arith.constant 0 : i32
    %c0_i32_0 = arith.constant 0 : i32
    %c0_i32_1 = arith.constant 0 : i32
    %c0_i32_2 = arith.constant 0 : i32
    %c0_i32_3 = arith.constant 0 : i32
    %c0_i32_4 = arith.constant 0 : i32
    return %c0_i32, %c0_i32_0, %c0_i32_1, %c0_i32_2, %c0_i32_3 : i32, i32, i32, i32, i32
  }
  func.func @transform_4(%arg0: i32, %arg1: i32) -> (i32, i32) {
    %c0_i32 = arith.constant 0 : i32
    %c0_i32_0 = arith.constant 0 : i32
    %c0_i32_1 = arith.constant 0 : i32
    return %c0_i32, %c0_i32_0 : i32, i32
  }
  func.func @transform_5(%arg0: i32, %arg1: i32) -> (i32, i32, i32, i32) {
    %c0_i32 = arith.constant 0 : i32
    %c0_i32_0 = arith.constant 0 : i32
    %c0_i32_1 = arith.constant 0 : i32
    return %arg1, %arg0, %c0_i32, %c0_i32_0 : i32, i32, i32, i32
  }
}

</mosaic_0001>

<llo_original>
// kernel: wavemix_forward.8
$region0: #{wavemix_forward.8}
  #allocation0 [shape = 'u32[]', space=smem, size = 0x4, offset = 0x4, fixed_abs, tag = 'smem constant byte address 0x4 - core index']
  #allocation1 [shape = 'u32[144,128]{1,0:T(1,128)}', space=vmem, size = 0x12000, scoped, tag = 'internal scratch']
  %s0 = inlined_call_operand.vmem [shape: bf16[2,16,16,8], index: 0, kind: input, shape index: {}, may-alias: {0,1,2}]
  %s1 = inlined_call_operand.vmem [shape: bf16[2,16,16,8], index: 1, kind: input, shape index: {}, may-alias: {0,1,2}]
  %s2 = inlined_call_operand.vmem [shape: bf16[2,16,16,8], index: 2, kind: input, shape index: {}, may-alias: {0,1,2}]
  %s3 = inlined_call_operand.vmem [shape: bf16[3,24,16], index: 3, kind: input, shape index: {}]
  %s4 = inlined_call_operand.vmem [shape: f32[1,16], index: 4, kind: input, shape index: {}]
  %s5 = inlined_call_operand.vmem [shape: bf16[2,16,16,16], index: 5, kind: output, shape index: {}]
  %s6 = sld [smem:[#allocation0]]
  $region53: #{wavemix_forward.8} parent=0
    _
  %s8 = ssub.s32 1, %s6
  %s9 = scalar_select 0, %s8, %s6
  loop: start=0, step=1, limit=6
  $region2: #{wavemix_forward.8} parent=0 // loop_pre_header
    _
  $region3: #{wavemix_forward.8} parent=0 // loop_header
    %s11 = sphi 0, %s15
    %p12 = scmp.ge.s32.totalorder %s11, 6
    %s18 = sphi 0, %s30
    %s19 = sphi 0, %s26
    %s20 = sphi 0, %s18
    %s21 = sphi 0, %s19
    %s22 = sphi 0, %s20
    %s23 = sphi 0, %s21
    %s35 = sphi 0, %s37
    %s38 = sphi 0, %s35
    %s39 = sphi 0, %s38
    %s55 = sphi 0, %s39
    %s71 = sphi 0, %s73
    %s74 = sphi 0, %s71
    %s75 = sphi 0, %s74
    %s91 = sphi 0, %s75
    %s107 = sphi 0, %s109
    %s110 = sphi 0, %s107
    %s111 = sphi 0, %s110
    %s127 = sphi 0, %s111
    %s131 = sphi 0, %s131
    %s133 = sphi 0, %s131
    %s134 = sphi 0, %s133
    %s148 = sphi 0, %s134
    %s152 = sphi 0, %s152
    %s154 = sphi 0, %s152
    %s155 = sphi 0, %s154
    %s169 = sphi 0, %s155
    %s177 = sphi 0, %s179
    %s180 = sphi 0, %s177
    %s181 = sphi 0, %s180
    %s197 = sphi 0, %s181
  $region4: #{wavemix_forward.8} parent=0 // loop_header_branch
    %14 = sbr.rel (%p12) target = $region8
  $region5: #{wavemix_forward.8} parent=0 // loop_body
    %s16 = ssub.s32 %s11, 1
    %s17 = ssub.s32 %s11, 2
    %s24 = sadd.s32 1, %s19
    %p25 = scmp.ge.s32.totalorder %s24, 2
    %s26 = scalar_select %p25, 0, %s24
    %s27 = sadd.s32 1, %s18
    %s28 = scalar_select %p25, %s27, %s18
    %p29 = scmp.ge.s32.totalorder %s28, 2
    %s30 = scalar_select %p29, 0, %s28
    %s31 = ssub.s32 %s19, %s26
    %s32 = ssub.s32 %s18, %s30
    %s33 = sor.u32 %s31, %s32
    %p34 = scmp.eq.s32.totalorder %s33, 0
    %s36 = sadd.s32 %s35, 1
    %s37 = scalar_select %p34, %s35, %s36
    %p40 = pneg %p34
    %p41 = scmp.eq.s32.totalorder %s11, 3
    %p42 = por %p40, %p41
    %p43 = scmp.ne.s32.totalorder %s35, %s38
    %p44 = scmp.eq.s32.totalorder %s11, 0
    %p45 = por %p43, %p44
    %p46 = scmp.ne.s32.totalorder %s35, %s38
    %p47 = scmp.eq.s32.totalorder %s16, 3
    %p48 = por %p46, %p47
    %p49 = scmp.ne.s32.totalorder %s38, %s39
    %p50 = scmp.eq.s32.totalorder %s16, 0
    %p51 = por %p49, %p50
    %p52 = scmp.ne.s32.totalorder %s38, %s39
    %p53 = scmp.eq.s32.totalorder %s17, 3
    %p54 = por %p52, %p53
    %p56 = scmp.ne.s32.totalorder %s39, %s55
    %p57 = scmp.eq.s32.totalorder %s17, 0
    %p58 = por %p56, %p57
    %s59 = smul.u32 %s18, 8
    %s60 = ssub.s32 %s59, 1
    %p61 = scmp.gt.s32.totalorder %s60, 0
    %s62 = scalar_select %p61, %s60, 0
    %s63 = smul.u32 %s30, 8
    %s64 = ssub.s32 %s63, 1
    %p65 = scmp.gt.s32.totalorder %s64, 0
    %s66 = scalar_select %p65, %s64, 0
    %s67 = ssub.s32 %s19, %s26
    %s68 = ssub.s32 %s62, %s66
    %s69 = sor.u32 %s67, %s68
    %p70 = scmp.eq.s32.totalorder %s69, 0
    %s72 = sadd.s32 %s71, 1
    %s73 = scalar_select %p70, %s71, %s72
    %p76 = pneg %p70
    %p77 = scmp.eq.s32.totalorder %s11, 3
    %p78 = por %p76, %p77
    %p79 = scmp.ne.s32.totalorder %s71, %s74
    %p80 = scmp.eq.s32.totalorder %s11, 0
    %p81 = por %p79, %p80
    %p82 = scmp.ne.s32.totalorder %s71, %s74
    %p83 = scmp.eq.s32.totalorder %s16, 3
    %p84 = por %p82, %p83
    %p85 = scmp.ne.s32.totalorder %s74, %s75
    %p86 = scmp.eq.s32.totalorder %s16, 0
    %p87 = por %p85, %p86
    %p88 = scmp.ne.s32.totalorder %s74, %s75
    %p89 = scmp.eq.s32.totalorder %s17, 3
    %p90 = por %p88, %p89
    %p92 = scmp.ne.s32.totalorder %s75, %s91
    %p93 = scmp.eq.s32.totalorder %s17, 0
    %p94 = por %p92, %p93
    %s95 = smul.u32 %s18, 8
    %s96 = sadd.s32 %s95, 8
    %p97 = scmp.lt.s32.totalorder %s96, 15
    %s98 = scalar_select %p97, %s96, 15
    %s99 = smul.u32 %s30, 8
    %s100 = sadd.s32 %s99, 8
    %p101 = scmp.lt.s32.totalorder %s100, 15
    %s102 = scalar_select %p101, %s100, 15
    %s103 = ssub.s32 %s19, %s26
    %s104 = ssub.s32 %s98, %s102
    %s105 = sor.u32 %s103, %s104
    %p106 = scmp.eq.s32.totalorder %s105, 0
    %s108 = sadd.s32 %s107, 1
    %s109 = scalar_select %p106, %s107, %s108
    %p112 = pneg %p106
    %p113 = scmp.eq.s32.totalorder %s11, 3
    %p114 = por %p112, %p113
    %p115 = scmp.ne.s32.totalorder %s107, %s110
    %p116 = scmp.eq.s32.totalorder %s11, 0
    %p117 = por %p115, %p116
    %p118 = scmp.ne.s32.totalorder %s107, %s110
    %p119 = scmp.eq.s32.totalorder %s16, 3
    %p120 = por %p118, %p119
    %p121 = scmp.ne.s32.totalorder %s110, %s111
    %p122 = scmp.eq.s32.totalorder %s16, 0
    %p123 = por %p121, %p122
    %p124 = scmp.ne.s32.totalorder %s110, %s111
    %p125 = scmp.eq.s32.totalorder %s17, 3
    %p126 = por %p124, %p125
    %p128 = scmp.ne.s32.totalorder %s111, %s127
    %p129 = scmp.eq.s32.totalorder %s17, 0
    %p130 = por %p128, %p129
    %s132 = sadd.s32 %s131, 1
    %p135 = scmp.eq.s32.totalorder %s11, 3
    %p136 = scmp.ne.s32.totalorder %s131, %s133
    %p137 = scmp.eq.s32.totalorder %s11, 0
    %p138 = por %p136, %p137
    %p139 = scmp.ne.s32.totalorder %s131, %s133
    %p140 = scmp.eq.s32.totalorder %s16, 3
    %p141 = por %p139, %p140
    %p142 = scmp.ne.s32.totalorder %s133, %s134
    %p143 = scmp.eq.s32.totalorder %s16, 0
    %p144 = por %p142, %p143
    %p145 = scmp.ne.s32.totalorder %s133, %s134
    %p146 = scmp.eq.s32.totalorder %s17, 3
    %p147 = por %p145, %p146
    %p149 = scmp.ne.s32.totalorder %s134, %s148
    %p150 = scmp.eq.s32.totalorder %s17, 0
    %p151 = por %p149, %p150
    %s153 = sadd.s32 %s152, 1
    %p156 = scmp.eq.s32.totalorder %s11, 3
    %p157 = scmp.ne.s32.totalorder %s152, %s154
    %p158 = scmp.eq.s32.totalorder %s11, 0
    %p159 = por %p157, %p158
    %p160 = scmp.ne.s32.totalorder %s152, %s154
    %p161 = scmp.eq.s32.totalorder %s16, 3
    %p162 = por %p160, %p161
    %p163 = scmp.ne.s32.totalorder %s154, %s155
    %p164 = scmp.eq.s32.totalorder %s16, 0
    %p165 = por %p163, %p164
    %p166 = scmp.ne.s32.totalorder %s154, %s155
    %p167 = scmp.eq.s32.totalorder %s17, 3
    %p168 = por %p166, %p167
    %p170 = scmp.ne.s32.totalorder %s155, %s169
    %p171 = scmp.eq.s32.totalorder %s17, 0
    %p172 = por %p170, %p171
    %s173 = ssub.s32 %s19, %s26
    %s174 = ssub.s32 %s18, %s30
    %s175 = sor.u32 %s173, %s174
    %p176 = scmp.eq.s32.totalorder %s175, 0
    %s178 = sadd.s32 %s177, 1
    %s179 = scalar_select %p176, %s177, %s178
    %p182 = pneg %p176
    %p183 = scmp.eq.s32.totalorder %s11, 3
    %p184 = por %p182, %p183
    %p185 = scmp.ne.s32.totalorder %s177, %s180
    %p186 = scmp.eq.s32.totalorder %s11, 0
    %p187 = por %p185, %p186
    %p188 = scmp.ne.s32.totalorder %s177, %s180
    %p189 = scmp.eq.s32.totalorder %s16, 3
    %p190 = por %p188, %p189
    %p191 = scmp.ne.s32.totalorder %s180, %s181
    %p192 = scmp.eq.s32.totalorder %s16, 0
    %p193 = por %p191, %p192
    %p194 = scmp.ne.s32.totalorder %s180, %s181
    %p195 = scmp.eq.s32.totalorder %s17, 3
    %p196 = por %p194, %p195
    %p198 = scmp.ne.s32.totalorder %s181, %s197
    %p199 = scmp.eq.s32.totalorder %s17, 0
    %p200 = por %p198, %p199
    %p201 = scmp.le.s32.totalorder 1, %s11
    %p202 = scmp.lt.s32.totalorder %s11, 5
    %p203 = pnand %p201, %p202
    %p204 = pneg %p203
    // Predicated region
    $region9: #{wavemix_forward.8} parent=5 // pred_check
      _
    $region10: #{wavemix_forward.8} parent=5 // pred_check_branch
      %206 = sbr.rel (%p203) target = $region12
    $region11: #{wavemix_forward.8} parent=5 // pred_region
      %s207 = ssub.s32 %s11, 1
      // Predicated region
      $region13: #{wavemix_forward.8} parent=11 // pred_check
        %p208 = pneg %p144
      $region14: #{wavemix_forward.8} parent=11 // pred_check_branch
        %210 = sbr.rel (%p208) target = $region16
      $region15: #{wavemix_forward.8} parent=11 // pred_region
        _
      $region16: #{wavemix_forward.8} parent=11 // pred_fallthru
        _
      // Predicated region
      $region17: #{wavemix_forward.8} parent=11 // pred_check
        %p211 = pneg %p165
      $region18: #{wavemix_forward.8} parent=11 // pred_check_branch
        %213 = sbr.rel (%p211) target = $region20
      $region19: #{wavemix_forward.8} parent=11 // pred_region
        _
      $region20: #{wavemix_forward.8} parent=11 // pred_fallthru
        _
    $region12: #{wavemix_forward.8} parent=5 // pred_fallthru
      _
    %p214 = scmp.lt.s32.totalorder %s11, 4
    // Predicated region
    $region21: #{wavemix_forward.8} parent=5 // pred_check
      %p215 = pneg %p214
    $region22: #{wavemix_forward.8} parent=5 // pred_check_branch
      %217 = sbr.rel (%p215) target = $region24
    $region23: #{wavemix_forward.8} parent=5 // pred_region
      // Predicated region
      $region25: #{wavemix_forward.8} parent=23 // pred_check
        %p218 = pneg %p45
      $region26: #{wavemix_forward.8} parent=23 // pred_check_branch
        %220 = sbr.rel (%p218) target = $region28
      $region27: #{wavemix_forward.8} parent=23 // pred_region
        %s221 = smul.u32 8, %s18
        %p222 = scmp.lt.s32.totalorder %s19, 1
        %s223 = scalar_select %p222, %s19, 1
        %p224 = scmp.lt.s32.totalorder %s221, 15
        %s225 = scalar_select %p224, %s221, 15
        %s226 = smul.addr %s225, 2
        %s227 = smul.addr %s223, 32
        %s228 = sadd.s32 %s226, %s227
        %s229 = smul.addr %s228, 4
        %s230 = scalar_lea.vmem %s0, %s229
        %s231 = smul.u32 8, %s18
      $region28: #{wavemix_forward.8} parent=23 // pred_fallthru
        _
      // Predicated region
      $region29: #{wavemix_forward.8} parent=23 // pred_check
        %p232 = pneg %p81
      $region30: #{wavemix_forward.8} parent=23 // pred_check_branch
        %234 = sbr.rel (%p232) target = $region32
      $region31: #{wavemix_forward.8} parent=23 // pred_region
        %s235 = smul.u32 %s18, 8
        %s236 = ssub.s32 %s235, 1
        %p237 = scmp.gt.s32.totalorder %s236, 0
        %s238 = scalar_select %p237, %s236, 0
        %p239 = scmp.lt.s32.totalorder %s19, 1
        %s240 = scalar_select %p239, %s19, 1
        %p241 = scmp.lt.s32.totalorder %s238, 15
        %s242 = scalar_select %p241, %s238, 15
        %s243 = smul.addr %s242, 2
        %s244 = smul.addr %s240, 32
        %s245 = sadd.s32 %s243, %s244
        %s246 = smul.addr %s245, 4
        %s247 = scalar_lea.vmem %s1, %s246
        %s248 = smul.u32 %s18, 8
        %s249 = ssub.s32 %s248, 1
        %p250 = scmp.gt.s32.totalorder %s249, 0
        %s251 = scalar_select %p250, %s249, 0
      $region32: #{wavemix_forward.8} parent=23 // pred_fallthru
        _
      // Predicated region
      $region33: #{wavemix_forward.8} parent=23 // pred_check
        %p252 = pneg %p117
      $region34: #{wavemix_forward.8} parent=23 // pred_check_branch
        %254 = sbr.rel (%p252) target = $region36
      $region35: #{wavemix_forward.8} parent=23 // pred_region
        %s255 = smul.u32 %s18, 8
        %s256 = sadd.s32 %s255, 8
        %p257 = scmp.lt.s32.totalorder %s256, 15
        %s258 = scalar_select %p257, %s256, 15
        %p259 = scmp.lt.s32.totalorder %s19, 1
        %s260 = scalar_select %p259, %s19, 1
        %p261 = scmp.lt.s32.totalorder %s258, 15
        %s262 = scalar_select %p261, %s258, 15
        %s263 = smul.addr %s262, 2
        %s264 = smul.addr %s260, 32
        %s265 = sadd.s32 %s263, %s264
        %s266 = smul.addr %s265, 4
        %s267 = scalar_lea.vmem %s2, %s266
        %s268 = smul.u32 %s18, 8
        %s269 = sadd.s32 %s268, 8
        %p270 = scmp.lt.s32.totalorder %s269, 15
        %s271 = scalar_select %p270, %s269, 15
      $region36: #{wavemix_forward.8} parent=23 // pred_fallthru
        _
    $region24: #{wavemix_forward.8} parent=5 // pred_fallthru
      _
    %p272 = scmp.le.s32.totalorder 1, %s11
    %p273 = scmp.lt.s32.totalorder %s11, 5
    %p274 = pnand %p272, %p273
    %p275 = pneg %p274
    // Predicated region
    $region37: #{wavemix_forward.8} parent=5 // pred_check
      _
    $region38: #{wavemix_forward.8} parent=5 // pred_check_branch
      %277 = sbr.rel (%p274) target = $region40
    $region39: #{wavemix_forward.8} parent=5 // pred_region
      %s278 = ssub.s32 %s11, 1
      %s279 = smul.u32 8, %s20
      %p280 = scmp.lt.s32.totalorder %s21, 1
      %s281 = scalar_select %p280, %s21, 1
      %p282 = scmp.lt.s32.totalorder %s279, 15
      %s283 = scalar_select %p282, %s279, 15
      %s284 = smul.addr %s283, 2
      %s285 = smul.addr %s281, 32
      %s286 = sadd.s32 %s284, %s285
      %s287 = smul.addr %s286, 4
      %s288 = scalar_lea.vmem %s0, %s287
      %p289 = pneg %p51
      %p290 = pneg %p48
      %s291 = smul.u32 %s20, 8
      %s292 = ssub.s32 %s291, 1
      %p293 = scmp.gt.s32.totalorder %s292, 0
      %s294 = scalar_select %p293, %s292, 0
      %p295 = scmp.lt.s32.totalorder %s21, 1
      %s296 = scalar_select %p295, %s21, 1
      %p297 = scmp.lt.s32.totalorder %s294, 15
      %s298 = scalar_select %p297, %s294, 15
      %s299 = smul.addr %s298, 2
      %s300 = smul.addr %s296, 32
      %s301 = sadd.s32 %s299, %s300
      %s302 = smul.addr %s301, 4
      %s303 = scalar_lea.vmem %s1, %s302
      %p304 = pneg %p87
      %p305 = pneg %p84
      %s306 = smul.u32 %s20, 8
      %s307 = sadd.s32 %s306, 8
      %p308 = scmp.lt.s32.totalorder %s307, 15
      %s309 = scalar_select %p308, %s307, 15
      %p310 = scmp.lt.s32.totalorder %s21, 1
      %s311 = scalar_select %p310, %s21, 1
      %p312 = scmp.lt.s32.totalorder %s309, 15
      %s313 = scalar_select %p312, %s309, 15
      %s314 = smul.addr %s313, 2
      %s315 = smul.addr %s311, 32
      %s316 = sadd.s32 %s314, %s315
      %s317 = smul.addr %s316, 4
      %s318 = scalar_lea.vmem %s2, %s317
      %p319 = pneg %p123
      %p320 = pneg %p120
      %p321 = pneg %p144
      %p322 = pneg %p141
      %p323 = pneg %p165
      %p324 = pneg %p162
      %p325 = pneg %p193
      %p326 = pneg %p190
      %s327 = smul.u32 8, %s20
      %p328 = scmp.lt.s32.totalorder %s21, 1
      %s329 = scalar_select %p328, %s21, 1
      %p330 = scmp.lt.s32.totalorder %s327, 15
      %s331 = scalar_select %p330, %s327, 15
      %s332 = smul.addr %s331, 2
      %s333 = smul.addr %s329, 32
      %s334 = sadd.s32 %s332, %s333
      %s335 = smul.addr %s334, 4
      %s336 = scalar_lea.vmem %s5, %s335
      %s337 = smul.u32 8, %s20
      %p338 = scmp.lt.s32.totalorder %s21, 1
      %s339 = scalar_select %p338, %s21, 1
      %p340 = scmp.lt.s32.totalorder %s337, 15
      %s341 = scalar_select %p340, %s337, 15
      %s342 = smul.addr %s341, 2
      %s343 = smul.addr %s339, 32
      %s344 = sadd.s32 %s342, %s343
      %s345 = smul.addr %s344, 4
      %s346 = scalar_lea.vmem %s0, %s345
      %s347 = smul.u32 8, %s20
      %s348 = smul.u32 %s20, 8
      %s349 = ssub.s32 %s348, 1
      %p350 = scmp.gt.s32.totalorder %s349, 0
      %s351 = scalar_select %p350, %s349, 0
      %p352 = scmp.lt.s32.totalorder %s21, 1
      %s353 = scalar_select %p352, %s21, 1
      %p354 = scmp.lt.s32.totalorder %s351, 15
      %s355 = scalar_select %p354, %s351, 15
      %s356 = smul.addr %s355, 2
      %s357 = smul.addr %s353, 32
      %s358 = sadd.s32 %s356, %s357
      %s359 = smul.addr %s358, 4
      %s360 = scalar_lea.vmem %s1, %s359
      %s361 = smul.u32 %s20, 8
      %s362 = ssub.s32 %s361, 1
      %p363 = scmp.gt.s32.totalorder %s362, 0
      %s364 = scalar_select %p363, %s362, 0
      %s365 = smul.u32 %s20, 8
      %s366 = sadd.s32 %s365, 8
      %p367 = scmp.lt.s32.totalorder %s366, 15
      %s368 = scalar_select %p367, %s366, 15
      %p369 = scmp.lt.s32.totalorder %s21, 1
      %s370 = scalar_select %p369, %s21, 1
      %p371 = scmp.lt.s32.totalorder %s368, 15
      %s372 = scalar_select %p371, %s368, 15
      %s373 = smul.addr %s372, 2
      %s374 = smul.addr %s370, 32
      %s375 = sadd.s32 %s373, %s374
      %s376 = smul.addr %s375, 4
      %s377 = scalar_lea.vmem %s2, %s376
      %s378 = smul.u32 %s20, 8
      %s379 = sadd.s32 %s378, 8
      %p380 = scmp.lt.s32.totalorder %s379, 15
      %s381 = scalar_select %p380, %s379, 15
      %s382 = smul.u32 8, %s20
      %p383 = scmp.lt.s32.totalorder %s21, 1
      %s384 = scalar_select %p383, %s21, 1
      %p385 = scmp.lt.s32.totalorder %s382, 15
      %s386 = scalar_select %p385, %s382, 15
      %s387 = smul.addr %s386, 2
      %s388 = smul.addr %s384, 32
      %s389 = sadd.s32 %s387, %s388
      %s390 = smul.addr %s389, 4
      %s391 = scalar_lea.vmem %s5, %s390
      %s392 = smul.u32 8, %s20
      %p394 = scmp.gt.s32.totalorder %s20, 0
      %v395 = vld [vmem:[%s360] sm:$0xf]
      %v396 = vld [vmem:[%s360 + $0x4] sm:$0xf]
      %s397 = scalar_select %p394, 1.0, 0.0
      %p399 = scmp.ne.f32.partialorder %s397, %s397
      %s400 = sshrl.u32 %s397, 16
      %s401 = sand.u32 %s400, 1
      %s402 = sadd.s32 32767, %s401
      %s403 = sadd.s32 %s397, %s402
      %s404 = sand.u32 %s403, 4294901760
      %s405 = scalar_select %p399, 2143289344, %s404
      %s407 = sshrl.u32 %s405, 16
      %s408 = sshll.u32 %s407, 16
      %s409 = sor.u32 %s407, %s408
      %v410 = vstv %s409
      %v412 = vmul.bf16 %v395, %v410
      %v413 = vmul.bf16 %v396, %v410
      %p414 = scmp.lt.s32.totalorder %s20, 1
      %v415 = vld [vmem:[%s377] sm:$0xf]
      %v416 = vld [vmem:[%s377 + $0x4] sm:$0xf]
      %s417 = scalar_select %p414, 1.0, 0.0
      %p419 = scmp.ne.f32.partialorder %s417, %s417
      %s420 = sshrl.u32 %s417, 16
      %s421 = sand.u32 %s420, 1
      %s422 = sadd.s32 32767, %s421
      %s423 = sadd.s32 %s417, %s422
      %s424 = sand.u32 %s423, 4294901760
      %s425 = scalar_select %p419, 2143289344, %s424
      %s427 = sshrl.u32 %s425, 16
      %s428 = sshll.u32 %s427, 16
      %s429 = sor.u32 %s427, %s428
      %v430 = vstv %s429
      %v432 = vmul.bf16 %v415, %v430
      %v433 = vmul.bf16 %v416, %v430
      %v434 = vld [vmem:[%s346] sm:$0xf]
      %v435 = vld [vmem:[%s346 + $0x4] sm:$0xf]
      %v436 = vld [vmem:[%s346 + $0x8] sm:$0xf]
      %v437 = vld [vmem:[%s346 + $0xc] sm:$0xf]
      %v438 = vld [vmem:[%s346 + $0x10] sm:$0xf]
      %v439 = vld [vmem:[%s346 + $0x14] sm:$0xf]
      %v440 = vld [vmem:[%s346 + $0x18] sm:$0xf]
      %v441 = vld [vmem:[%s346 + $0x1c] sm:$0xf]
      %v442 = vld [vmem:[%s346 + $0x20] sm:$0xf]
      %v443 = vld [vmem:[%s346 + $0x24] sm:$0xf]
      %v444 = vld [vmem:[%s346 + $0x28] sm:$0xf]
      %v445 = vld [vmem:[%s346 + $0x2c] sm:$0xf]
      %v446 = vld [vmem:[%s346 + $0x30] sm:$0xf]
      %v447 = vld [vmem:[%s346 + $0x34] sm:$0xf]
      %v448 = vld [vmem:[%s346 + $0x38] sm:$0xf]
      %v449 = vld [vmem:[%s346 + $0x3c] sm:$0xf]
      %v470 = vunpack.c.l.b16 %v412
      %v471 = vunpack.c.l.b16 %v413
      %v472 = vunpack.c.l.b16 %v434
      %v473 = vunpack.c.l.b16 %v435
      %v474 = vunpack.c.l.b16 %v436
      %v475 = vunpack.c.l.b16 %v437
      %v476 = vunpack.c.l.b16 %v438
      %v477 = vunpack.c.l.b16 %v439
      %v478 = vunpack.c.l.b16 %v440
      %v479 = vunpack.c.l.b16 %v441
      %v480 = vunpack.c.l.b16 %v442
      %v481 = vunpack.c.l.b16 %v443
      %v482 = vunpack.c.l.b16 %v444
      %v483 = vunpack.c.l.b16 %v445
      %v484 = vunpack.c.l.b16 %v446
      %v485 = vunpack.c.l.b16 %v447
      %v486 = vunpack.c.l.b16 %v448
      %v487 = vunpack.c.l.b16 %v449
      %v488 = vunpack.c.l.b16 %v432
      %v489 = vunpack.c.l.b16 %v433
      %v490 = vpack.c.b16 %v471, %v470
      %v491 = vpack.c.b16 %v473, %v472
      %v492 = vpack.c.b16 %v475, %v474
      %v493 = vpack.c.b16 %v477, %v476
      %v494 = vpack.c.b16 %v479, %v478
      %v495 = vpack.c.b16 %v481, %v480
      %v496 = vpack.c.b16 %v483, %v482
      %v497 = vpack.c.b16 %v485, %v484
      %v498 = vpack.c.b16 %v487, %v486
      %v499 = vpack.c.b16 %v489, %v488
      %v501 = vshrl.u32 %v490, 16
      %v503 = vrot.slane %v501, 7
      %v504 = vshll.u32 %v490, 16
      %v506 = vor.u32 %v503, %v504
      %v508 = vshrl.u32 %v491, 16
      %v510 = vrot.slane %v508, 7
      %v511 = vshll.u32 %v491, 16
      %v513 = vor.u32 %v510, %v511
      %v515 = vshrl.u32 %v492, 16
      %v517 = vrot.slane %v515, 7
      %v518 = vshll.u32 %v492, 16
      %v520 = vor.u32 %v517, %v518
      %v522 = vshrl.u32 %v493, 16
      %v524 = vrot.slane %v522, 7
      %v525 = vshll.u32 %v493, 16
      %v527 = vor.u32 %v524, %v525
      %v529 = vshrl.u32 %v494, 16
      %v531 = vrot.slane %v529, 7
      %v532 = vshll.u32 %v494, 16
      %v534 = vor.u32 %v531, %v532
      %v536 = vshrl.u32 %v495, 16
      %v538 = vrot.slane %v536, 7
      %v539 = vshll.u32 %v495, 16
      %v541 = vor.u32 %v538, %v539
      %v543 = vshrl.u32 %v496, 16
      %v545 = vrot.slane %v543, 7
      %v546 = vshll.u32 %v496, 16
      %v548 = vor.u32 %v545, %v546
      %v550 = vshrl.u32 %v497, 16
      %v552 = vrot.slane %v550, 7
      %v553 = vshll.u32 %v497, 16
      %v555 = vor.u32 %v552, %v553
      %v557 = vshrl.u32 %v498, 16
      %v559 = vrot.slane %v557, 7
      %v560 = vshll.u32 %v498, 16
      %v562 = vor.u32 %v559, %v560
      %v564 = vshrl.u32 %v499, 16
      %v566 = vrot.slane %v564, 7
      %v567 = vshll.u32 %v499, 16
      %v569 = vor.u32 %v566, %v567
      %vm590 = vcmask 1040384
      %vm591 = vsmask.f32 256
      %vm592 = vmand %vm590, %vm591
      %v593 = vsel %vm592, 0, %v506
      %v594 = vsel %vm592, 0, %v513
      %v595 = vsel %vm592, 0, %v520
      %v596 = vsel %vm592, 0, %v527
      %v597 = vsel %vm592, 0, %v534
      %v598 = vsel %vm592, 0, %v541
      %v599 = vsel %vm592, 0, %v548
      %v600 = vsel %vm592, 0, %v555
      %v601 = vsel %vm592, 0, %v562
      %v602 = vsel %vm592, 0, %v569
      %v603 = vsel %vm592, %v503, 0
      %v604 = vsel %vm592, %v510, 0
      %v605 = vsel %vm592, %v517, 0
      %v606 = vsel %vm592, %v524, 0
      %v607 = vsel %vm592, %v531, 0
      %v608 = vsel %vm592, %v538, 0
      %v609 = vsel %vm592, %v545, 0
      %v610 = vsel %vm592, %v552, 0
      %v611 = vsel %vm592, %v559, 0
      %v612 = vsel %vm592, %v566, 0
      %vm613 = vsmask.f32 7424
      %v615 = vshrl.u32 %v593, 16
      %v617 = vshll.u32 %v593, 16
      %v619 = vrot.slane %v617, 1
      %v620 = vor.u32 %v615, %v619
      %v622 = vshll.u32 %v603, 16
      %v624 = vrot.slane %v622, 1
      %v625 = vsel %vm613, %v620, %v624
      %v627 = vshrl.u32 %v594, 16
      %v629 = vshll.u32 %v594, 16
      %v631 = vrot.slane %v629, 1
      %v632 = vor.u32 %v627, %v631
      %v634 = vshll.u32 %v604, 16
      %v636 = vrot.slane %v634, 1
      %v637 = vsel %vm613, %v632, %v636
      %v639 = vshrl.u32 %v595, 16
      %v641 = vshll.u32 %v595, 16
      %v643 = vrot.slane %v641, 1
      %v644 = vor.u32 %v639, %v643
      %v646 = vshll.u32 %v605, 16
      %v648 = vrot.slane %v646, 1
      %v649 = vsel %vm613, %v644, %v648
      %v651 = vshrl.u32 %v596, 16
      %v653 = vshll.u32 %v596, 16
      %v655 = vrot.slane %v653, 1
      %v656 = vor.u32 %v651, %v655
      %v658 = vshll.u32 %v606, 16
      %v660 = vrot.slane %v658, 1
      %v661 = vsel %vm613, %v656, %v660
      %v663 = vshrl.u32 %v597, 16
      %v665 = vshll.u32 %v597, 16
      %v667 = vrot.slane %v665, 1
      %v668 = vor.u32 %v663, %v667
      %v670 = vshll.u32 %v607, 16
      %v672 = vrot.slane %v670, 1
      %v673 = vsel %vm613, %v668, %v672
      %v675 = vshrl.u32 %v598, 16
      %v677 = vshll.u32 %v598, 16
      %v679 = vrot.slane %v677, 1
      %v680 = vor.u32 %v675, %v679
      %v682 = vshll.u32 %v608, 16
      %v684 = vrot.slane %v682, 1
      %v685 = vsel %vm613, %v680, %v684
      %v687 = vshrl.u32 %v599, 16
      %v689 = vshll.u32 %v599, 16
      %v691 = vrot.slane %v689, 1
      %v692 = vor.u32 %v687, %v691
      %v694 = vshll.u32 %v609, 16
      %v696 = vrot.slane %v694, 1
      %v697 = vsel %vm613, %v692, %v696
      %v699 = vshrl.u32 %v600, 16
      %v701 = vshll.u32 %v600, 16
      %v703 = vrot.slane %v701, 1
      %v704 = vor.u32 %v699, %v703
      %v706 = vshll.u32 %v610, 16
      %v708 = vrot.slane %v706, 1
      %v709 = vsel %vm613, %v704, %v708
      %710 = vrot.lane.b32.xlu0 %v625, 8
      %v711 = vpop.permute.xlu0 %710
      %712 = vrot.lane.b32.xlu0 %v637, 8
      %v713 = vpop.permute.xlu0 %712
      %714 = vrot.lane.b32.xlu0 %v649, 8
      %v715 = vpop.permute.xlu0 %714
      %716 = vrot.lane.b32.xlu0 %v661, 8
      %v717 = vpop.permute.xlu0 %716
      %718 = vrot.lane.b32.xlu0 %v673, 8
      %v719 = vpop.permute.xlu0 %718
      %720 = vrot.lane.b32.xlu0 %v685, 8
      %v721 = vpop.permute.xlu0 %720
      %722 = vrot.lane.b32.xlu0 %v697, 8
      %v723 = vpop.permute.xlu0 %722
      %724 = vrot.lane.b32.xlu0 %v709, 8
      %v725 = vpop.permute.xlu0 %724
      %vm742 = vcmask 1046528
      %v743 = vrot.slane %v593, 1
      %v744 = vrot.slane %v603, 1
      %v745 = vsel %vm742, %v743, %v744
      %v746 = vrot.slane %v594, 1
      %v747 = vrot.slane %v604, 1
      %v748 = vsel %vm742, %v746, %v747
      %v749 = vrot.slane %v595, 1
      %v750 = vrot.slane %v605, 1
      %v751 = vsel %vm742, %v749, %v750
      %v752 = vrot.slane %v596, 1
      %v753 = vrot.slane %v606, 1
      %v754 = vsel %vm742, %v752, %v753
      %v755 = vrot.slane %v597, 1
      %v756 = vrot.slane %v607, 1
      %v757 = vsel %vm742, %v755, %v756
      %v758 = vrot.slane %v598, 1
      %v759 = vrot.slane %v608, 1
      %v760 = vsel %vm742, %v758, %v759
      %v761 = vrot.slane %v599, 1
      %v762 = vrot.slane %v609, 1
      %v763 = vsel %vm742, %v761, %v762
      %v764 = vrot.slane %v600, 1
      %v765 = vrot.slane %v610, 1
      %v766 = vsel %vm742, %v764, %v765
      %767 = vrot.lane.b32.xlu0 %v745, 16
      %v768 = vpop.permute.xlu0 %767
      %769 = vrot.lane.b32.xlu0 %v748, 16
      %v770 = vpop.permute.xlu0 %769
      %771 = vrot.lane.b32.xlu0 %v751, 16
      %v772 = vpop.permute.xlu0 %771
      %773 = vrot.lane.b32.xlu0 %v754, 16
      %v774 = vpop.permute.xlu0 %773
      %775 = vrot.lane.b32.xlu0 %v757, 16
      %v776 = vpop.permute.xlu0 %775
      %777 = vrot.lane.b32.xlu0 %v760, 16
      %v778 = vpop.permute.xlu0 %777
      %779 = vrot.lane.b32.xlu0 %v763, 16
      %v780 = vpop.permute.xlu0 %779
      %781 = vrot.lane.b32.xlu0 %v766, 16
      %v782 = vpop.permute.xlu0 %781
      %vm783 = vcmask 64512
      %v785 = vsel %vm783, %v593, %v711
      %v787 = vsel %vm783, %v594, %v713
      %v789 = vsel %vm783, %v595, %v715
      %v791 = vsel %vm783, %v596, %v717
      %v793 = vsel %vm783, %v597, %v719
      %v795 = vsel %vm783, %v598, %v721
      %v797 = vsel %vm783, %v599, %v723
      %v799 = vsel %vm783, %v600, %v725
      %vm800 = vcmask 130048
      %v802 = vsel %vm800, %v785, %v768
      %v804 = vsel %vm800, %v787, %v770
      %v806 = vsel %vm800, %v789, %v772
      %v808 = vsel %vm800, %v791, %v774
      %v810 = vsel %vm800, %v793, %v776
      %v812 = vsel %vm800, %v795, %v778
      %v814 = vsel %vm800, %v797, %v780
      %v816 = vsel %vm800, %v799, %v782
      %v817 = vld [vmem:[%s3] sm:$0xf]
      %v818 = vld [vmem:[%s3 + $0x4] sm:$0xf]
      %v819 = vld [vmem:[%s3 + $0x8] sm:$0xf]
      %v821 = vshrl.u32 %v601, 16
      %v823 = vshll.u32 %v601, 16
      %v825 = vrot.slane %v823, 1
      %v826 = vor.u32 %v821, %v825
      %v828 = vshll.u32 %v611, 16
      %v830 = vrot.slane %v828, 1
      %v831 = vsel %vm613, %v826, %v830
      %832 = vrot.lane.b32.xlu0 %v831, 8
      %v833 = vpop.permute.xlu0 %832
      %v836 = vrot.slane %v601, 1
      %v837 = vrot.slane %v611, 1
      %v838 = vsel %vm742, %v836, %v837
      %839 = vrot.lane.b32.xlu0 %v838, 16
      %v840 = vpop.permute.xlu0 %839
      %v842 = vsel %vm783, %v601, %v833
      %v844 = vsel %vm800, %v842, %v840
      %s845 = scalar_lea.vmem %s3, 12
      %v846 = vld [vmem:[%s845] sm:$0xf]
      %v847 = vld [vmem:[%s845 + $0x4] sm:$0xf]
      %v848 = vld [vmem:[%s845 + $0x8] sm:$0xf]
      %v852 = vunpack.c.l.b16 %v846
      %v853 = vunpack.c.l.b16 %v847
      %v854 = vunpack.c.l.b16 %v848
      %v855 = vpack.c.b16 %v853, %v852
      %v856 = vpack.c.b16 %v854, %v854
      %vm858 = vcmask 195584
      %v859 = vsel %vm858, %v804, 0
      %v861 = vsel %vm858, %v806, 0
      %v863 = vsel %vm858, %v808, 0
      %v865 = vsel %vm858, %v810, 0
      %v867 = vsel %vm858, %v812, 0
      %v869 = vsel %vm858, %v814, 0
      %v871 = vsel %vm858, %v816, 0
      %v873 = vsel %vm858, %v844, 0
      %vm875 = vcmask 1043456
      %v877 = vsel %vm875, %v856, 0
      %879 = vmatprep.subr.bf16.mxu0 0
      %880 = vmatpush1.bf16.msra.mxu0 %v855
      %881 = vmatprep.subr.bf16.mxu0 0
      %882 = vmatpush1.bf16.msra.mxu0 %v877
      %883 = vmatprep.subr.bf16.mxu0 0
      %884 = vmatpush1.bf16.msra.mxu0 0
      %885 = vmatprep.subr.bf16.mxu0 0
      %886 = vmatpush1.bf16.msra.mxu0 0
      %887 = vmatprep.subr.bf16.mxu0 0
      %888 = vmatpush1.bf16.msra.mxu0 0
      %889 = vmatprep.subr.bf16.mxu0 0
      %890 = vmatpush1.bf16.msra.mxu0 0
      %891 = vmatprep.subr.bf16.mxu0 0
      %892 = vmatpush1.bf16.msra.mxu0 0
      %893 = vmatprep.subr.bf16.mxu0 0
      %894 = vmatpush1.bf16.msra.mxu0 0
      %895 = vmatprep.subr.bf16.mxu0 0
      %896 = vmatpush1.bf16.msra.mxu0 0
      %897 = vmatprep.subr.bf16.mxu0 0
      %898 = vmatpush1.bf16.msra.mxu0 0
      %899 = vmatprep.subr.bf16.mxu0 0
      %900 = vmatpush1.bf16.msra.mxu0 0
      %901 = vmatprep.subr.bf16.mxu0 0
      %902 = vmatpush1.bf16.msra.mxu0 0
      %903 = vmatprep.subr.bf16.mxu0 0
      %904 = vmatpush1.bf16.msra.mxu0 0
      %905 = vmatprep.subr.bf16.mxu0 0
      %906 = vmatpush1.bf16.msra.mxu0 0
      %907 = vmatprep.subr.bf16.mxu0 0
      %908 = vmatpush1.bf16.msra.mxu0 0
      %909 = vmatprep.subr.bf16.mxu0 0
      %910 = vmatpush1.bf16.msra.mxu0 0
      %911 = vmatprep.mubr.bf16.mxu0 0
      %912 = vmatmul.mubr.bf16.gmra.mrb[0].mxu0 %v859
      %v913 = vpop.f32.mrb[0].mxu0
      %v914 = vadd.f32 0.0, %v913
      %v915 = vpop.f32.mrb[0].mxu0
      %v916 = vpop.f32.mrb[0].mxu0
      %v917 = vadd.f32 0.0, %v916
      %v918 = vpop.f32.mrb[0].mxu0
      %919 = vmatprep.mubr.bf16.mxu0 0
      %920 = vmatmul.mubr.bf16.gmra.mrb[0].mxu0 %v861
      %v921 = vpop.f32.mrb[0].mxu0
      %v922 = vadd.f32 0.0, %v921
      %v923 = vpop.f32.mrb[0].mxu0
      %v924 = vpop.f32.mrb[0].mxu0
      %v925 = vadd.f32 0.0, %v924
      %v926 = vpop.f32.mrb[0].mxu0
      %927 = vmatprep.mubr.bf16.mxu0 0
      %928 = vmatmul.mubr.bf16.gmra.mrb[0].mxu0 %v863
      %v929 = vpop.f32.mrb[0].mxu0
      %v930 = vadd.f32 0.0, %v929
      %v931 = vpop.f32.mrb[0].mxu0
      %v932 = vpop.f32.mrb[0].mxu0
      %v933 = vadd.f32 0.0, %v932
      %v934 = vpop.f32.mrb[0].mxu0
      %935 = vmatprep.mubr.bf16.mxu0 0
      %936 = vmatmul.mubr.bf16.gmra.mrb[0].mxu0 %v865
      %v937 = vpop.f32.mrb[0].mxu0
      %v938 = vadd.f32 0.0, %v937
      %v939 = vpop.f32.mrb[0].mxu0
      %v940 = vpop.f32.mrb[0].mxu0
      %v941 = vadd.f32 0.0, %v940
      %v942 = vpop.f32.mrb[0].mxu0
      %943 = vmatprep.mubr.bf16.mxu0 0
      %944 = vmatmul.mubr.bf16.gmra.mrb[0].mxu0 %v867
      %v945 = vpop.f32.mrb[0].mxu0
      %v946 = vadd.f32 0.0, %v945
      %v947 = vpop.f32.mrb[0].mxu0
      %v948 = vpop.f32.mrb[0].mxu0
      %v949 = vadd.f32 0.0, %v948
      %v950 = vpop.f32.mrb[0].mxu0
      %951 = vmatprep.mubr.bf16.mxu0 0
      %952 = vmatmul.mubr.bf16.gmra.mrb[0].mxu0 %v869
      %v953 = vpop.f32.mrb[0].mxu0
      %v954 = vadd.f32 0.0, %v953
      %v955 = vpop.f32.mrb[0].mxu0
      %v956 = vpop.f32.mrb[0].mxu0
      %v957 = vadd.f32 0.0, %v956
      %v958 = vpop.f32.mrb[0].mxu0
      %959 = vmatprep.mubr.bf16.mxu0 0
      %960 = vmatmul.mubr.bf16.gmra.mrb[0].mxu0 %v871
      %v961 = vpop.f32.mrb[0].mxu0
      %v962 = vadd.f32 0.0, %v961
      %v963 = vpop.f32.mrb[0].mxu0
      %v964 = vpop.f32.mrb[0].mxu0
      %v965 = vadd.f32 0.0, %v964
      %v966 = vpop.f32.mrb[0].mxu0
      %967 = vmatprep.mubr.bf16.mxu0 0
      %968 = vmatmul.mubr.bf16.gmra.mrb[0].mxu0 %v873
      %v969 = vpop.f32.mrb[0].mxu0
      %v970 = vadd.f32 0.0, %v969
      %v971 = vpop.f32.mrb[0].mxu0
      %v972 = vpop.f32.mrb[0].mxu0
      %v973 = vadd.f32 0.0, %v972
      %v974 = vpop.f32.mrb[0].mxu0
      %975 = vdwg.mxu0
      %v979 = vunpack.c.l.b16 %v817
      %v980 = vunpack.c.l.b16 %v818
      %v981 = vunpack.c.l.b16 %v819
      %v982 = vpack.c.b16 %v980, %v979
      %v983 = vpack.c.b16 %v981, %v981
      %v985 = vsel %vm858, %v802, 0
      %v988 = vsel %vm875, %v983, 0
      %990 = vmatprep.subr.bf16.mxu0 0
      %991 = vmatpush1.bf16.msra.mxu0 %v982
      %992 = vmatprep.subr.bf16.mxu0 0
      %993 = vmatpush1.bf16.msra.mxu0 %v988
      %994 = vmatprep.subr.bf16.mxu0 0
      %995 = vmatpush1.bf16.msra.mxu0 0
      %996 = vmatprep.subr.bf16.mxu0 0
      %997 = vmatpush1.bf16.msra.mxu0 0
      %998 = vmatprep.subr.bf16.mxu0 0
      %999 = vmatpush1.bf16.msra.mxu0 0
      %1000 = vmatprep.subr.bf16.mxu0 0
      %1001 = vmatpush1.bf16.msra.mxu0 0
      %1002 = vmatprep.subr.bf16.mxu0 0
      %1003 = vmatpush1.bf16.msra.mxu0 0
      %1004 = vmatprep.subr.bf16.mxu0 0
      %1005 = vmatpush1.bf16.msra.mxu0 0
      %1006 = vmatprep.subr.bf16.mxu0 0
      %1007 = vmatpush1.bf16.msra.mxu0 0
      %1008 = vmatprep.subr.bf16.mxu0 0
      %1009 = vmatpush1.bf16.msra.mxu0 0
      %1010 = vmatprep.subr.bf16.mxu0 0
      %1011 = vmatpush1.bf16.msra.mxu0 0
      %1012 = vmatprep.subr.bf16.mxu0 0
      %1013 = vmatpush1.bf16.msra.mxu0 0
      %1014 = vmatprep.subr.bf16.mxu0 0
      %1015 = vmatpush1.bf16.msra.mxu0 0
      %1016 = vmatprep.subr.bf16.mxu0 0
      %1017 = vmatpush1.bf16.msra.mxu0 0
      %1018 = vmatprep.subr.bf16.mxu0 0
      %1019 = vmatpush1.bf16.msra.mxu0 0
      %1020 = vmatprep.subr.bf16.mxu0 0
      %1021 = vmatpush1.bf16.msra.mxu0 0
      %1022 = vmatprep.mubr.bf16.mxu0 0
      %1023 = vmatmul.mubr.bf16.gmra.mrb[0].mxu0 %v985
      %v1024 = vpop.f32.mrb[0].mxu0
      %v1025 = vadd.f32 %v914, %v1024
      %v1026 = vpop.f32.mrb[0].mxu0
      %v1027 = vpop.f32.mrb[0].mxu0
      %v1028 = vadd.f32 %v917, %v1027
      %v1029 = vpop.f32.mrb[0].mxu0
      %1030 = vmatprep.mubr.bf16.mxu0 0
      %1031 = vmatmul.mubr.bf16.gmra.mrb[0].mxu0 %v859
      %v1032 = vpop.f32.mrb[0].mxu0
      %v1033 = vadd.f32 %v922, %v1032
      %v1034 = vpop.f32.mrb[0].mxu0
      %v1035 = vpop.f32.mrb[0].mxu0
      %v1036 = vadd.f32 %v925, %v1035
      %v1037 = vpop.f32.mrb[0].mxu0
      %1038 = vmatprep.mubr.bf16.mxu0 0
      %1039 = vmatmul.mubr.bf16.gmra.mrb[0].mxu0 %v861
      %v1040 = vpop.f32.mrb[0].mxu0
      %v1041 = vadd.f32 %v930, %v1040
      %v1042 = vpop.f32.mrb[0].mxu0
      %v1043 = vpop.f32.mrb[0].mxu0
      %v1044 = vadd.f32 %v933, %v1043
      %v1045 = vpop.f32.mrb[0].mxu0
      %1046 = vmatprep.mubr.bf16.mxu0 0
      %1047 = vmatmul.mubr.bf16.gmra.mrb[0].mxu0 %v863
      %v1048 = vpop.f32.mrb[0].mxu0
      %v1049 = vadd.f32 %v938, %v1048
      %v1050 = vpop.f32.mrb[0].mxu0
      %v1051 = vpop.f32.mrb[0].mxu0
      %v1052 = vadd.f32 %v941, %v1051
      %v1053 = vpop.f32.mrb[0].mxu0
      %1054 = vmatprep.mubr.bf16.mxu0 0
      %1055 = vmatmul.mubr.bf16.gmra.mrb[0].mxu0 %v865
      %v1056 = vpop.f32.mrb[0].mxu0
      %v1057 = vadd.f32 %v946, %v1056
      %v1058 = vpop.f32.mrb[0].mxu0
      %v1059 = vpop.f32.mrb[0].mxu0
      %v1060 = vadd.f32 %v949, %v1059
      %v1061 = vpop.f32.mrb[0].mxu0
      %1062 = vmatprep.mubr.bf16.mxu0 0
      %1063 = vmatmul.mubr.bf16.gmra.mrb[0].mxu0 %v867
      %v1064 = vpop.f32.mrb[0].mxu0
      %v1065 = vadd.f32 %v954, %v1064
      %v1066 = vpop.f32.mrb[0].mxu0
      %v1067 = vpop.f32.mrb[0].mxu0
      %v1068 = vadd.f32 %v957, %v1067
      %v1069 = vpop.f32.mrb[0].mxu0
      %1070 = vmatprep.mubr.bf16.mxu0 0
      %1071 = vmatmul.mubr.bf16.gmra.mrb[0].mxu0 %v869
      %v1072 = vpop.f32.mrb[0].mxu0
      %v1073 = vadd.f32 %v962, %v1072
      %v1074 = vpop.f32.mrb[0].mxu0
      %v1075 = vpop.f32.mrb[0].mxu0
      %v1076 = vadd.f32 %v965, %v1075
      %v1077 = vpop.f32.mrb[0].mxu0
      %1078 = vmatprep.mubr.bf16.mxu0 0
      %1079 = vmatmul.mubr.bf16.gmra.mrb[0].mxu0 %v871
      %v1080 = vpop.f32.mrb[0].mxu0
      %v1081 = vadd.f32 %v970, %v1080
      %v1082 = vpop.f32.mrb[0].mxu0
      %v1083 = vpop.f32.mrb[0].mxu0
      %v1084 = vadd.f32 %v973, %v1083
      %v1085 = vpop.f32.mrb[0].mxu0
      %1086 = vdwg.mxu0
      %v1088 = vshrl.u32 %v602, 16
      %v1090 = vshll.u32 %v602, 16
      %v1092 = vrot.slane %v1090, 1
      %v1093 = vor.u32 %v1088, %v1092
      %v1095 = vshll.u32 %v612, 16
      %v1097 = vrot.slane %v1095, 1
      %v1098 = vsel %vm613, %v1093, %v1097
      %1099 = vrot.lane.b32.xlu0 %v1098, 8
      %v1100 = vpop.permute.xlu0 %1099
      %v1103 = vrot.slane %v602, 1
      %v1104 = vrot.slane %v612, 1
      %v1105 = vsel %vm742, %v1103, %v1104
      %1106 = vrot.lane.b32.xlu0 %v1105, 16
      %v1107 = vpop.permute.xlu0 %1106
      %v1109 = vsel %vm783, %v602, %v1100
      %v1111 = vsel %vm800, %v1109, %v1107
      %s1112 = scalar_lea.vmem %s3, 24
      %v1113 = vld [vmem:[%s1112] sm:$0xf]
      %v1114 = vld [vmem:[%s1112 + $0x4] sm:$0xf]
      %v1115 = vld [vmem:[%s1112 + $0x8] sm:$0xf]
      %v1119 = vunpack.c.l.b16 %v1113
      %v1120 = vunpack.c.l.b16 %v1114
      %v1121 = vunpack.c.l.b16 %v1115
      %v1122 = vpack.c.b16 %v1120, %v1119
      %v1123 = vpack.c.b16 %v1121, %v1121
      %v1125 = vsel %vm858, %v1111, 0
      %v1128 = vsel %vm875, %v1123, 0
      %1130 = vmatprep.subr.bf16.mxu0 0
      %1131 = vmatpush1.bf16.msra.mxu0 %v1122
      %1132 = vmatprep.subr.bf16.mxu0 0
      %1133 = vmatpush1.bf16.msra.mxu0 %v1128
      %1134 = vmatprep.subr.bf16.mxu0 0
      %1135 = vmatpush1.bf16.msra.mxu0 0
      %1136 = vmatprep.subr.bf16.mxu0 0
      %1137 = vmatpush1.bf16.msra.mxu0 0
      %1138 = vmatprep.subr.bf16.mxu0 0
      %1139 = vmatpush1.bf16.msra.mxu0 0
      %1140 = vmatprep.subr.bf16.mxu0 0
      %1141 = vmatpush1.bf16.msra.mxu0 0
      %1142 = vmatprep.subr.bf16.mxu0 0
      %1143 = vmatpush1.bf16.msra.mxu0 0
      %1144 = vmatprep.subr.bf16.mxu0 0
      %1145 = vmatpush1.bf16.msra.mxu0 0
      %1146 = vmatprep.subr.bf16.mxu0 0
      %1147 = vmatpush1.bf16.msra.mxu0 0
      %1148 = vmatprep.subr.bf16.mxu0 0
      %1149 = vmatpush1.bf16.msra.mxu0 0
      %1150 = vmatprep.subr.bf16.mxu0 0
      %1151 = vmatpush1.bf16.msra.mxu0 0
      %1152 = vmatprep.subr.bf16.mxu0 0
      %1153 = vmatpush1.bf16.msra.mxu0 0
      %1154 = vmatprep.subr.bf16.mxu0 0
      %1155 = vmatpush1.bf16.msra.mxu0 0
      %1156 = vmatprep.subr.bf16.mxu0 0
      %1157 = vmatpush1.bf16.msra.mxu0 0
      %1158 = vmatprep.subr.bf16.mxu0 0
      %1159 = vmatpush1.bf16.msra.mxu0 0
      %1160 = vmatprep.subr.bf16.mxu0 0
      %1161 = vmatpush1.bf16.msra.mxu0 0
      %1162 = vmatprep.mubr.bf16.mxu0 0
      %1163 = vmatmul.mubr.bf16.gmra.mrb[0].mxu0 %v861
      %v1164 = vpop.f32.mrb[0].mxu0
      %v1165 = vadd.f32 0.0, %v1164
      %v1166 = vpop.f32.mrb[0].mxu0
      %v1167 = vpop.f32.mrb[0].mxu0
      %v1168 = vadd.f32 0.0, %v1167
      %v1169 = vpop.f32.mrb[0].mxu0
      %1170 = vmatprep.mubr.bf16.mxu0 0
      %1171 = vmatmul.mubr.bf16.gmra.mrb[0].mxu0 %v863
      %v1172 = vpop.f32.mrb[0].mxu0
      %v1173 = vadd.f32 0.0, %v1172
      %v1174 = vpop.f32.mrb[0].mxu0
      %v1175 = vpop.f32.mrb[0].mxu0
      %v1176 = vadd.f32 0.0, %v1175
      %v1177 = vpop.f32.mrb[0].mxu0
      %1178 = vmatprep.mubr.bf16.mxu0 0
      %1179 = vmatmul.mubr.bf16.gmra.mrb[0].mxu0 %v865
      %v1180 = vpop.f32.mrb[0].mxu0
      %v1181 = vadd.f32 0.0, %v1180
      %v1182 = vpop.f32.mrb[0].mxu0
      %v1183 = vpop.f32.mrb[0].mxu0
      %v1184 = vadd.f32 0.0, %v1183
      %v1185 = vpop.f32.mrb[0].mxu0
      %1186 = vmatprep.mubr.bf16.mxu0 0
      %1187 = vmatmul.mubr.bf16.gmra.mrb[0].mxu0 %v867
      %v1188 = vpop.f32.mrb[0].mxu0
      %v1189 = vadd.f32 0.0, %v1188
      %v1190 = vpop.f32.mrb[0].mxu0
      %v1191 = vpop.f32.mrb[0].mxu0
      %v1192 = vadd.f32 0.0, %v1191
      %v1193 = vpop.f32.mrb[0].mxu0
      %1194 = vmatprep.mubr.bf16.mxu0 0
      %1195 = vmatmul.mubr.bf16.gmra.mrb[0].mxu0 %v869
      %v1196 = vpop.f32.mrb[0].mxu0
      %v1197 = vadd.f32 0.0, %v1196
      %v1198 = vpop.f32.mrb[0].mxu0
      %v1199 = vpop.f32.mrb[0].mxu0
      %v1200 = vadd.f32 0.0, %v1199
      %v1201 = vpop.f32.mrb[0].mxu0
      %1202 = vmatprep.mubr.bf16.mxu0 0
      %1203 = vmatmul.mubr.bf16.gmra.mrb[0].mxu0 %v871
      %v1204 = vpop.f32.mrb[0].mxu0
      %v1205 = vadd.f32 0.0, %v1204
      %v1206 = vpop.f32.mrb[0].mxu0
      %v1207 = vpop.f32.mrb[0].mxu0
      %v1208 = vadd.f32 0.0, %v1207
      %v1209 = vpop.f32.mrb[0].mxu0
      %1210 = vmatprep.mubr.bf16.mxu0 0
      %1211 = vmatmul.mubr.bf16.gmra.mrb[0].mxu0 %v873
      %v1212 = vpop.f32.mrb[0].mxu0
      %v1213 = vadd.f32 0.0, %v1212
      %v1214 = vpop.f32.mrb[0].mxu0
      %v1215 = vpop.f32.mrb[0].mxu0
      %v1216 = vadd.f32 0.0, %v1215
      %v1217 = vpop.f32.mrb[0].mxu0
      %1218 = vmatprep.mubr.bf16.mxu0 0
      %1219 = vmatmul.mubr.bf16.gmra.mrb[0].mxu0 %v1125
      %v1220 = vpop.f32.mrb[0].mxu0
      %v1221 = vadd.f32 0.0, %v1220
      %v1222 = vpop.f32.mrb[0].mxu0
      %v1223 = vpop.f32.mrb[0].mxu0
      %v1224 = vadd.f32 0.0, %v1223
      %v1225 = vpop.f32.mrb[0].mxu0
      %1226 = vdwg.mxu0
      %v1227 = vadd.f32 %v1025, %v1165
      %v1228 = vadd.f32 %v1028, %v1168
      %v1229 = vadd.f32 %v1033, %v1173
      %v1230 = vadd.f32 %v1036, %v1176
      %v1231 = vadd.f32 %v1041, %v1181
      %v1232 = vadd.f32 %v1044, %v1184
      %v1233 = vadd.f32 %v1049, %v1189
      %v1234 = vadd.f32 %v1052, %v1192
      %v1235 = vadd.f32 %v1057, %v1197
      %v1236 = vadd.f32 %v1060, %v1200
      %v1237 = vadd.f32 %v1065, %v1205
      %v1238 = vadd.f32 %v1068, %v1208
      %v1239 = vadd.f32 %v1073, %v1213
      %v1240 = vadd.f32 %v1076, %v1216
      %v1241 = vadd.f32 %v1081, %v1221
      %v1242 = vadd.f32 %v1084, %v1224
      %v1243 = vld [vmem:[%s4] sm:$0x1]
      %v1245 = vlaneseq
      %v1246 = vshrl.u32 %v1245, 7
      %v1247 = vsub.s32 0, %v1246
      %v1248 = vrot.slane %v1243, %v1247
      %v1250 = vadd.f32 %v1227, %v1248
      %v1251 = vadd.f32 %v1228, %v1248
      %v1252 = vadd.f32 %v1229, %v1248
      %v1253 = vadd.f32 %v1230, %v1248
      %v1254 = vadd.f32 %v1231, %v1248
      %v1255 = vadd.f32 %v1232, %v1248
      %v1256 = vadd.f32 %v1233, %v1248
      %v1257 = vadd.f32 %v1234, %v1248
      %v1258 = vadd.f32 %v1235, %v1248
      %v1259 = vadd.f32 %v1236, %v1248
      %v1260 = vadd.f32 %v1237, %v1248
      %v1261 = vadd.f32 %v1238, %v1248
      %v1262 = vadd.f32 %v1239, %v1248
      %v1263 = vadd.f32 %v1240, %v1248
      %v1264 = vadd.f32 %v1241, %v1248
      %v1265 = vadd.f32 %v1242, %v1248
      %v1266 = vpack.c.bf16 %v1251, %v1250
      %v1267 = vpack.c.bf16 %v1253, %v1252
      %v1268 = vpack.c.bf16 %v1255, %v1254
      %v1269 = vpack.c.bf16 %v1257, %v1256
      %v1270 = vpack.c.bf16 %v1259, %v1258
      %v1271 = vpack.c.bf16 %v1261, %v1260
      %v1272 = vpack.c.bf16 %v1263, %v1262
      %v1273 = vpack.c.bf16 %v1265, %v1264
      %v1282 = vunpack.c.l.b16 %v1266
      %v1283 = vunpack.c.h.b16 %v1266
      %v1284 = vunpack.c.l.b16 %v1267
      %v1285 = vunpack.c.h.b16 %v1267
      %v1286 = vunpack.c.l.b16 %v1268
      %v1287 = vunpack.c.h.b16 %v1268
      %v1288 = vunpack.c.l.b16 %v1269
      %v1289 = vunpack.c.h.b16 %v1269
      %v1290 = vunpack.c.l.b16 %v1270
      %v1291 = vunpack.c.h.b16 %v1270
      %v1292 = vunpack.c.l.b16 %v1271
      %v1293 = vunpack.c.h.b16 %v1271
      %v1294 = vunpack.c.l.b16 %v1272
      %v1295 = vunpack.c.h.b16 %v1272
      %v1296 = vunpack.c.l.b16 %v1273
      %v1297 = vunpack.c.h.b16 %v1273
      %v1298 = vpack.c.b16 %v1282, %v1282
      %v1299 = vpack.c.b16 %v1283, %v1283
      %v1300 = vpack.c.b16 %v1284, %v1284
      %v1301 = vpack.c.b16 %v1285, %v1285
      %v1302 = vpack.c.b16 %v1286, %v1286
      %v1303 = vpack.c.b16 %v1287, %v1287
      %v1304 = vpack.c.b16 %v1288, %v1288
      %v1305 = vpack.c.b16 %v1289, %v1289
      %v1306 = vpack.c.b16 %v1290, %v1290
      %v1307 = vpack.c.b16 %v1291, %v1291
      %v1308 = vpack.c.b16 %v1292, %v1292
      %v1309 = vpack.c.b16 %v1293, %v1293
      %v1310 = vpack.c.b16 %v1294, %v1294
      %v1311 = vpack.c.b16 %v1295, %v1295
      %v1312 = vpack.c.b16 %v1296, %v1296
      %v1313 = vpack.c.b16 %v1297, %v1297
      %vm1330 = vcmask 125952
      %1331 = vst.msk [vmem:[%s391] sm:$0xf] %vm1330, %v1298
      %1332 = vst.msk [vmem:[%s391 + $0x4] sm:$0xf] %vm1330, %v1299
      %1333 = vst.msk [vmem:[%s391 + $0x8] sm:$0xf] %vm1330, %v1300
      %1334 = vst.msk [vmem:[%s391 + $0xc] sm:$0xf] %vm1330, %v1301
      %1335 = vst.msk [vmem:[%s391 + $0x10] sm:$0xf] %vm1330, %v1302
      %1336 = vst.msk [vmem:[%s391 + $0x14] sm:$0xf] %vm1330, %v1303
      %1337 = vst.msk [vmem:[%s391 + $0x18] sm:$0xf] %vm1330, %v1304
      %1338 = vst.msk [vmem:[%s391 + $0x1c] sm:$0xf] %vm1330, %v1305
      %1339 = vst.msk [vmem:[%s391 + $0x20] sm:$0xf] %vm1330, %v1306
      %1340 = vst.msk [vmem:[%s391 + $0x24] sm:$0xf] %vm1330, %v1307
      %1341 = vst.msk [vmem:[%s391 + $0x28] sm:$0xf] %vm1330, %v1308
      %1342 = vst.msk [vmem:[%s391 + $0x2c] sm:$0xf] %vm1330, %v1309
      %1343 = vst.msk [vmem:[%s391 + $0x30] sm:$0xf] %vm1330, %v1310
      %1344 = vst.msk [vmem:[%s391 + $0x34] sm:$0xf] %vm1330, %v1311
      %1345 = vst.msk [vmem:[%s391 + $0x38] sm:$0xf] %vm1330, %v1312
      %1346 = vst.msk [vmem:[%s391 + $0x3c] sm:$0xf] %vm1330, %v1313
      %s1347 = smul.u32 8, %s20
      %p1348 = scmp.lt.s32.totalorder %s21, 1
      %s1349 = scalar_select %p1348, %s21, 1
      %p1350 = scmp.lt.s32.totalorder %s1347, 15
      %s1351 = scalar_select %p1350, %s1347, 15
      %s1352 = smul.addr %s1351, 2
      %s1353 = smul.addr %s1349, 32
      %s1354 = sadd.s32 %s1352, %s1353
      %s1355 = smul.addr %s1354, 4
      %s1356 = scalar_lea.vmem %s5, %s1355
      // Predicated region
      $region41: #{wavemix_forward.8} parent=39 // pred_check
        %p1357 = pneg %p190
      $region42: #{wavemix_forward.8} parent=39 // pred_check_branch
        %1359 = sbr.rel (%p1357) target = $region44
      $region43: #{wavemix_forward.8} parent=39 // pred_region
        %s1360 = smul.u32 8, %s20
      $region44: #{wavemix_forward.8} parent=39 // pred_fallthru
        _
    $region40: #{wavemix_forward.8} parent=5 // pred_fallthru
      _
    %p1361 = scmp.le.s32.totalorder 2, %s11
    // Predicated region
    $region45: #{wavemix_forward.8} parent=5 // pred_check
      %p1362 = pneg %p1361
    $region46: #{wavemix_forward.8} parent=5 // pred_check_branch
      %1364 = sbr.rel (%p1362) target = $region48
    $region47: #{wavemix_forward.8} parent=5 // pred_region
      %s1365 = ssub.s32 %s11, 2
      // Predicated region
      $region49: #{wavemix_forward.8} parent=47 // pred_check
        %p1366 = pneg %p196
      $region50: #{wavemix_forward.8} parent=47 // pred_check_branch
        %1368 = sbr.rel (%p1366) target = $region52
      $region51: #{wavemix_forward.8} parent=47 // pred_region
        %s1369 = smul.u32 8, %s22
        %p1370 = scmp.lt.s32.totalorder %s23, 1
        %s1371 = scalar_select %p1370, %s23, 1
        %p1372 = scmp.lt.s32.totalorder %s1369, 15
        %s1373 = scalar_select %p1372, %s1369, 15
        %s1374 = smul.addr %s1373, 2
        %s1375 = smul.addr %s1371, 32
        %s1376 = sadd.s32 %s1374, %s1375
        %s1377 = smul.addr %s1376, 4
        %s1378 = scalar_lea.vmem %s5, %s1377
      $region52: #{wavemix_forward.8} parent=47 // pred_fallthru
        _
    $region48: #{wavemix_forward.8} parent=5 // pred_fallthru
      _
  $region6: #{wavemix_forward.8} parent=0 // loop_footer
    %s15 = sadd.s32 1, %s11
  $region7: #{wavemix_forward.8} parent=0 // loop_footer_branch
    %10 = sbr.rel target = $region3
  $region8: #{wavemix_forward.8} parent=0 // loop_exit
    _

// kernel: wavemix_forward.7
$region0: #{wavemix_forward.7}
  #allocation0 [shape = 'u32[]', space=smem, size = 0x4, offset = 0x4, fixed_abs, tag = 'smem constant byte address 0x4 - core index']
  #allocation1 [shape = 'u32[144,128]{1,0:T(1,128)}', space=vmem, size = 0x12000, scoped, tag = 'internal scratch']
  %s0 = inlined_call_operand.vmem [shape: f32[2,16,16,3], index: 0, kind: input, shape index: {}, may-alias: {0,1,2}]
  %s1 = inlined_call_operand.vmem [shape: f32[2,16,16,3], index: 1, kind: input, shape index: {}, may-alias: {0,1,2}]
  %s2 = inlined_call_operand.vmem [shape: f32[2,16,16,3], index: 2, kind: input, shape index: {}, may-alias: {0,1,2}]
  %s3 = inlined_call_operand.vmem [shape: bf16[3,9,8], index: 3, kind: input, shape index: {}]
  %s4 = inlined_call_operand.hbm [shape: f32[1,8], index: 4, kind: input, shape index: {}]
  %s5 = inlined_call_operand.vmem [shape: bf16[2,16,16,8], index: 5, kind: output, shape index: {}]
  %s6 = sld [smem:[#allocation0]]
  $region57: #{wavemix_forward.7} parent=0
    _
  %s8 = ssub.s32 1, %s6
  %s9 = scalar_select 0, %s8, %s6
  $region1: #{wavemix_forward.7} parent=0
    #allocation2 [shape = 'u8[512]{0}', space=vmem, size = 0x400, scoped, tag = 'input window, operand 4, single buffered']
    #allocation3 [shape = 's32[2]{0}', space=sflag, size = 0x8, scoped, tag = 'scoped memory for wavemix_forward.7']
    %10 = vsyncpa [#allocation3], 0
    loop: start=0, step=1, limit=6
    $region2: #{wavemix_forward.7} parent=1 // loop_pre_header
      _
    $region3: #{wavemix_forward.7} parent=1 // loop_header
      %s12 = sphi 0, %s16
      %p13 = scmp.ge.s32.totalorder %s12, 6
      %s19 = sphi 0, %s31
      %s20 = sphi 0, %s27
      %s21 = sphi 0, %s19
      %s22 = sphi 0, %s20
      %s23 = sphi 0, %s21
      %s24 = sphi 0, %s22
      %s36 = sphi 0, %s38
      %s39 = sphi 0, %s36
      %s40 = sphi 0, %s39
      %s56 = sphi 0, %s40
      %s72 = sphi 0, %s74
      %s75 = sphi 0, %s72
      %s76 = sphi 0, %s75
      %s92 = sphi 0, %s76
      %s108 = sphi 0, %s110
      %s111 = sphi 0, %s108
      %s112 = sphi 0, %s111
      %s128 = sphi 0, %s112
      %s132 = sphi 0, %s132
      %s134 = sphi 0, %s132
      %s135 = sphi 0, %s134
      %s149 = sphi 0, %s135
      %s153 = sphi 0, %s153
      %s155 = sphi 0, %s153
      %s156 = sphi 0, %s155
      %s170 = sphi 0, %s156
      %s178 = sphi 0, %s180
      %s181 = sphi 0, %s178
      %s182 = sphi 0, %s181
      %s198 = sphi 0, %s182
    $region4: #{wavemix_forward.7} parent=1 // loop_header_branch
      %15 = sbr.rel (%p13) target = $region8
    $region5: #{wavemix_forward.7} parent=1 // loop_body
      %s17 = ssub.s32 %s12, 1
      %s18 = ssub.s32 %s12, 2
      %s25 = sadd.s32 1, %s20
      %p26 = scmp.ge.s32.totalorder %s25, 2
      %s27 = scalar_select %p26, 0, %s25
      %s28 = sadd.s32 1, %s19
      %s29 = scalar_select %p26, %s28, %s19
      %p30 = scmp.ge.s32.totalorder %s29, 2
      %s31 = scalar_select %p30, 0, %s29
      %s32 = ssub.s32 %s20, %s27
      %s33 = ssub.s32 %s19, %s31
      %s34 = sor.u32 %s32, %s33
      %p35 = scmp.eq.s32.totalorder %s34, 0
      %s37 = sadd.s32 %s36, 1
      %s38 = scalar_select %p35, %s36, %s37
      %p41 = pneg %p35
      %p42 = scmp.eq.s32.totalorder %s12, 3
      %p43 = por %p41, %p42
      %p44 = scmp.ne.s32.totalorder %s36, %s39
      %p45 = scmp.eq.s32.totalorder %s12, 0
      %p46 = por %p44, %p45
      %p47 = scmp.ne.s32.totalorder %s36, %s39
      %p48 = scmp.eq.s32.totalorder %s17, 3
      %p49 = por %p47, %p48
      %p50 = scmp.ne.s32.totalorder %s39, %s40
      %p51 = scmp.eq.s32.totalorder %s17, 0
      %p52 = por %p50, %p51
      %p53 = scmp.ne.s32.totalorder %s39, %s40
      %p54 = scmp.eq.s32.totalorder %s18, 3
      %p55 = por %p53, %p54
      %p57 = scmp.ne.s32.totalorder %s40, %s56
      %p58 = scmp.eq.s32.totalorder %s18, 0
      %p59 = por %p57, %p58
      %s60 = smul.u32 %s19, 8
      %s61 = ssub.s32 %s60, 1
      %p62 = scmp.gt.s32.totalorder %s61, 0
      %s63 = scalar_select %p62, %s61, 0
      %s64 = smul.u32 %s31, 8
      %s65 = ssub.s32 %s64, 1
      %p66 = scmp.gt.s32.totalorder %s65, 0
      %s67 = scalar_select %p66, %s65, 0
      %s68 = ssub.s32 %s20, %s27
      %s69 = ssub.s32 %s63, %s67
      %s70 = sor.u32 %s68, %s69
      %p71 = scmp.eq.s32.totalorder %s70, 0
      %s73 = sadd.s32 %s72, 1
      %s74 = scalar_select %p71, %s72, %s73
      %p77 = pneg %p71
      %p78 = scmp.eq.s32.totalorder %s12, 3
      %p79 = por %p77, %p78
      %p80 = scmp.ne.s32.totalorder %s72, %s75
      %p81 = scmp.eq.s32.totalorder %s12, 0
      %p82 = por %p80, %p81
      %p83 = scmp.ne.s32.totalorder %s72, %s75
      %p84 = scmp.eq.s32.totalorder %s17, 3
      %p85 = por %p83, %p84
      %p86 = scmp.ne.s32.totalorder %s75, %s76
      %p87 = scmp.eq.s32.totalorder %s17, 0
      %p88 = por %p86, %p87
      %p89 = scmp.ne.s32.totalorder %s75, %s76
      %p90 = scmp.eq.s32.totalorder %s18, 3
      %p91 = por %p89, %p90
      %p93 = scmp.ne.s32.totalorder %s76, %s92
      %p94 = scmp.eq.s32.totalorder %s18, 0
      %p95 = por %p93, %p94
      %s96 = smul.u32 %s19, 8
      %s97 = sadd.s32 %s96, 8
      %p98 = scmp.lt.s32.totalorder %s97, 15
      %s99 = scalar_select %p98, %s97, 15
      %s100 = smul.u32 %s31, 8
      %s101 = sadd.s32 %s100, 8
      %p102 = scmp.lt.s32.totalorder %s101, 15
      %s103 = scalar_select %p102, %s101, 15
      %s104 = ssub.s32 %s20, %s27
      %s105 = ssub.s32 %s99, %s103
      %s106 = sor.u32 %s104, %s105
      %p107 = scmp.eq.s32.totalorder %s106, 0
      %s109 = sadd.s32 %s108, 1
      %s110 = scalar_select %p107, %s108, %s109
      %p113 = pneg %p107
      %p114 = scmp.eq.s32.totalorder %s12, 3
      %p115 = por %p113, %p114
      %p116 = scmp.ne.s32.totalorder %s108, %s111
      %p117 = scmp.eq.s32.totalorder %s12, 0
      %p118 = por %p116, %p117
      %p119 = scmp.ne.s32.totalorder %s108, %s111
      %p120 = scmp.eq.s32.totalorder %s17, 3
      %p121 = por %p119, %p120
      %p122 = scmp.ne.s32.totalorder %s111, %s112
      %p123 = scmp.eq.s32.totalorder %s17, 0
      %p124 = por %p122, %p123
      %p125 = scmp.ne.s32.totalorder %s111, %s112
      %p126 = scmp.eq.s32.totalorder %s18, 3
      %p127 = por %p125, %p126
      %p129 = scmp.ne.s32.totalorder %s112, %s128
      %p130 = scmp.eq.s32.totalorder %s18, 0
      %p131 = por %p129, %p130
      %s133 = sadd.s32 %s132, 1
      %p136 = scmp.eq.s32.totalorder %s12, 3
      %p137 = scmp.ne.s32.totalorder %s132, %s134
      %p138 = scmp.eq.s32.totalorder %s12, 0
      %p139 = por %p137, %p138
      %p140 = scmp.ne.s32.totalorder %s132, %s134
      %p141 = scmp.eq.s32.totalorder %s17, 3
      %p142 = por %p140, %p141
      %p143 = scmp.ne.s32.totalorder %s134, %s135
      %p144 = scmp.eq.s32.totalorder %s17, 0
      %p145 = por %p143, %p144
      %p146 = scmp.ne.s32.totalorder %s134, %s135
      %p147 = scmp.eq.s32.totalorder %s18, 3
      %p148 = por %p146, %p147
      %p150 = scmp.ne.s32.totalorder %s135, %s149
      %p151 = scmp.eq.s32.totalorder %s18, 0
      %p152 = por %p150, %p151
      %s154 = sadd.s32 %s153, 1
      %p157 = scmp.eq.s32.totalorder %s12, 3
      %p158 = scmp.ne.s32.totalorder %s153, %s155
      %p159 = scmp.eq.s32.totalorder %s12, 0
      %p160 = por %p158, %p159
      %p161 = scmp.ne.s32.totalorder %s153, %s155
      %p162 = scmp.eq.s32.totalorder %s17, 3
      %p163 = por %p161, %p162
      %p164 = scmp.ne.s32.totalorder %s155, %s156
      %p165 = scmp.eq.s32.totalorder %s17, 0
      %p166 = por %p164, %p165
      %p167 = scmp.ne.s32.totalorder %s155, %s156
      %p168 = scmp.eq.s32.totalorder %s18, 3
      %p169 = por %p167, %p168
      %p171 = scmp.ne.s32.totalorder %s156, %s170
      %p172 = scmp.eq.s32.totalorder %s18, 0
      %p173 = por %p171, %p172
      %s174 = ssub.s32 %s20, %s27
      %s175 = ssub.s32 %s19, %s31
      %s176 = sor.u32 %s174, %s175
      %p177 = scmp.eq.s32.totalorder %s176, 0
      %s179 = sadd.s32 %s178, 1
      %s180 = scalar_select %p177, %s178, %s179
      %p183 = pneg %p177
      %p184 = scmp.eq.s32.totalorder %s12, 3
      %p185 = por %p183, %p184
      %p186 = scmp.ne.s32.totalorder %s178, %s181
      %p187 = scmp.eq.s32.totalorder %s12, 0
      %p188 = por %p186, %p187
      %p189 = scmp.ne.s32.totalorder %s178, %s181
      %p190 = scmp.eq.s32.totalorder %s17, 3
      %p191 = por %p189, %p190
      %p192 = scmp.ne.s32.totalorder %s181, %s182
      %p193 = scmp.eq.s32.totalorder %s17, 0
      %p194 = por %p192, %p193
      %p195 = scmp.ne.s32.totalorder %s181, %s182
      %p196 = scmp.eq.s32.totalorder %s18, 3
      %p197 = por %p195, %p196
      %p199 = scmp.ne.s32.totalorder %s182, %s198
      %p200 = scmp.eq.s32.totalorder %s18, 0
      %p201 = por %p199, %p200
      %p202 = scmp.le.s32.totalorder 1, %s12
      %p203 = scmp.lt.s32.totalorder %s12, 5
      %p204 = pnand %p202, %p203
      %p205 = pneg %p204
      // Predicated region
      $region9: #{wavemix_forward.7} parent=5 // pred_check
        _
      $region10: #{wavemix_forward.7} parent=5 // pred_check_branch
        %207 = sbr.rel (%p204) target = $region12
      $region11: #{wavemix_forward.7} parent=5 // pred_region
        %s208 = ssub.s32 %s12, 1
        // Predicated region
        $region13: #{wavemix_forward.7} parent=11 // pred_check
          %p209 = pneg %p145
        $region14: #{wavemix_forward.7} parent=11 // pred_check_branch
          %211 = sbr.rel (%p209) target = $region16
        $region15: #{wavemix_forward.7} parent=11 // pred_region
          _
        $region16: #{wavemix_forward.7} parent=11 // pred_fallthru
          _
        // Predicated region
        $region17: #{wavemix_forward.7} parent=11 // pred_check
          %p212 = pneg %p166
        $region18: #{wavemix_forward.7} parent=11 // pred_check_branch
          %214 = sbr.rel (%p212) target = $region20
        $region19: #{wavemix_forward.7} parent=11 // pred_region
          %s216 = ssub.s32 16, 16
          %217 = vsyncadd [#allocation3], %s216
          %s219 = sshll.u32 [#allocation2], 4
          %s220 = int_to_ptr.vmem [resolvable:$true] %s219
          %222 = dma.hbm_to_vmem [thread:$0]  %s4, 16, %s220, [#allocation3]
        $region20: #{wavemix_forward.7} parent=11 // pred_fallthru
          _
      $region12: #{wavemix_forward.7} parent=5 // pred_fallthru
        _
      %p223 = scmp.lt.s32.totalorder %s12, 4
      // Predicated region
      $region21: #{wavemix_forward.7} parent=5 // pred_check
        %p224 = pneg %p223
      $region22: #{wavemix_forward.7} parent=5 // pred_check_branch
        %226 = sbr.rel (%p224) target = $region24
      $region23: #{wavemix_forward.7} parent=5 // pred_region
        // Predicated region
        $region25: #{wavemix_forward.7} parent=23 // pred_check
          %p227 = pneg %p46
        $region26: #{wavemix_forward.7} parent=23 // pred_check_branch
          %229 = sbr.rel (%p227) target = $region28
        $region27: #{wavemix_forward.7} parent=23 // pred_region
          %s230 = smul.u32 8, %s19
          %p231 = scmp.lt.s32.totalorder %s20, 1
          %s232 = scalar_select %p231, %s20, 1
          %p233 = scmp.lt.s32.totalorder %s230, 15
          %s234 = scalar_select %p233, %s230, 15
          %s235 = smul.addr %s234, 2
          %s236 = smul.addr %s232, 32
          %s237 = sadd.s32 %s235, %s236
          %s238 = smul.addr %s237, 8
          %s239 = scalar_lea.vmem %s0, %s238
          %s240 = smul.u32 8, %s19
        $region28: #{wavemix_forward.7} parent=23 // pred_fallthru
          _
        // Predicated region
        $region29: #{wavemix_forward.7} parent=23 // pred_check
          %p241 = pneg %p82
        $region30: #{wavemix_forward.7} parent=23 // pred_check_branch
          %243 = sbr.rel (%p241) target = $region32
        $region31: #{wavemix_forward.7} parent=23 // pred_region
          %s244 = smul.u32 %s19, 8
          %s245 = ssub.s32 %s244, 1
          %p246 = scmp.gt.s32.totalorder %s245, 0
          %s247 = scalar_select %p246, %s245, 0
          %p248 = scmp.lt.s32.totalorder %s20, 1
          %s249 = scalar_select %p248, %s20, 1
          %p250 = scmp.lt.s32.totalorder %s247, 15
          %s251 = scalar_select %p250, %s247, 15
          %s252 = smul.addr %s251, 2
          %s253 = smul.addr %s249, 32
          %s254 = sadd.s32 %s252, %s253
          %s255 = smul.addr %s254, 8
          %s256 = scalar_lea.vmem %s1, %s255
          %s257 = smul.u32 %s19, 8
          %s258 = ssub.s32 %s257, 1
          %p259 = scmp.gt.s32.totalorder %s258, 0
          %s260 = scalar_select %p259, %s258, 0
        $region32: #{wavemix_forward.7} parent=23 // pred_fallthru
          _
        // Predicated region
        $region33: #{wavemix_forward.7} parent=23 // pred_check
          %p261 = pneg %p118
        $region34: #{wavemix_forward.7} parent=23 // pred_check_branch
          %263 = sbr.rel (%p261) target = $region36
        $region35: #{wavemix_forward.7} parent=23 // pred_region
          %s264 = smul.u32 %s19, 8
          %s265 = sadd.s32 %s264, 8
          %p266 = scmp.lt.s32.totalorder %s265, 15
          %s267 = scalar_select %p266, %s265, 15
          %p268 = scmp.lt.s32.totalorder %s20, 1
          %s269 = scalar_select %p268, %s20, 1
          %p270 = scmp.lt.s32.totalorder %s267, 15
          %s271 = scalar_select %p270, %s267, 15
          %s272 = smul.addr %s271, 2
          %s273 = smul.addr %s269, 32
          %s274 = sadd.s32 %s272, %s273
          %s275 = smul.addr %s274, 8
          %s276 = scalar_lea.vmem %s2, %s275
          %s277 = smul.u32 %s19, 8
          %s278 = sadd.s32 %s277, 8
          %p279 = scmp.lt.s32.totalorder %s278, 15
          %s280 = scalar_select %p279, %s278, 15
        $region36: #{wavemix_forward.7} parent=23 // pred_fallthru
          _
      $region24: #{wavemix_forward.7} parent=5 // pred_fallthru
        _
      %p281 = scmp.le.s32.totalorder 1, %s12
      %p282 = scmp.lt.s32.totalorder %s12, 5
      %p283 = pnand %p281, %p282
      %p284 = pneg %p283
      // Predicated region
      $region37: #{wavemix_forward.7} parent=5 // pred_check
        _
      $region38: #{wavemix_forward.7} parent=5 // pred_check_branch
        %286 = sbr.rel (%p283) target = $region40
      $region39: #{wavemix_forward.7} parent=5 // pred_region
        %s287 = ssub.s32 %s12, 1
        // Predicated region
        $region41: #{wavemix_forward.7} parent=39 // pred_check
          %p288 = pneg %p166
        $region42: #{wavemix_forward.7} parent=39 // pred_check_branch
          %290 = sbr.rel (%p288) target = $region44
        $region43: #{wavemix_forward.7} parent=39 // pred_region
          %291 = dma.done [#allocation3], 16
        $region44: #{wavemix_forward.7} parent=39 // pred_fallthru
          _
        %s292 = smul.u32 8, %s21
        %p293 = scmp.lt.s32.totalorder %s22, 1
        %s294 = scalar_select %p293, %s22, 1
        %p295 = scmp.lt.s32.totalorder %s292, 15
        %s296 = scalar_select %p295, %s292, 15
        %s297 = smul.addr %s296, 2
        %s298 = smul.addr %s294, 32
        %s299 = sadd.s32 %s297, %s298
        %s300 = smul.addr %s299, 8
        %s301 = scalar_lea.vmem %s0, %s300
        %p302 = pneg %p52
        %p303 = pneg %p49
        %s304 = smul.u32 %s21, 8
        %s305 = ssub.s32 %s304, 1
        %p306 = scmp.gt.s32.totalorder %s305, 0
        %s307 = scalar_select %p306, %s305, 0
        %p308 = scmp.lt.s32.totalorder %s22, 1
        %s309 = scalar_select %p308, %s22, 1
        %p310 = scmp.lt.s32.totalorder %s307, 15
        %s311 = scalar_select %p310, %s307, 15
        %s312 = smul.addr %s311, 2
        %s313 = smul.addr %s309, 32
        %s314 = sadd.s32 %s312, %s313
        %s315 = smul.addr %s314, 8
        %s316 = scalar_lea.vmem %s1, %s315
        %p317 = pneg %p88
        %p318 = pneg %p85
        %s319 = smul.u32 %s21, 8
        %s320 = sadd.s32 %s319, 8
        %p321 = scmp.lt.s32.totalorder %s320, 15
        %s322 = scalar_select %p321, %s320, 15
        %p323 = scmp.lt.s32.totalorder %s22, 1
        %s324 = scalar_select %p323, %s22, 1
        %p325 = scmp.lt.s32.totalorder %s322, 15
        %s326 = scalar_select %p325, %s322, 15
        %s327 = smul.addr %s326, 2
        %s328 = smul.addr %s324, 32
        %s329 = sadd.s32 %s327, %s328
        %s330 = smul.addr %s329, 8
        %s331 = scalar_lea.vmem %s2, %s330
        %p332 = pneg %p124
        %p333 = pneg %p121
        %p334 = pneg %p145
        %p335 = pneg %p142
        %p336 = pneg %p166
        %p337 = pneg %p163
        %p338 = pneg %p194
        %p339 = pneg %p191
        %s340 = smul.u32 8, %s21
        %p341 = scmp.lt.s32.totalorder %s22, 1
        %s342 = scalar_select %p341, %s22, 1
        %p343 = scmp.lt.s32.totalorder %s340, 15
        %s344 = scalar_select %p343, %s340, 15
        %s345 = smul.addr %s344, 2
        %s346 = smul.addr %s342, 32
        %s347 = sadd.s32 %s345, %s346
        %s348 = smul.addr %s347, 4
        %s349 = scalar_lea.vmem %s5, %s348
        %s350 = smul.u32 8, %s21
        %p351 = scmp.lt.s32.totalorder %s22, 1
        %s352 = scalar_select %p351, %s22, 1
        %p353 = scmp.lt.s32.totalorder %s350, 15
        %s354 = scalar_select %p353, %s350, 15
        %s355 = smul.addr %s354, 2
        %s356 = smul.addr %s352, 32
        %s357 = sadd.s32 %s355, %s356
        %s358 = smul.addr %s357, 8
        %s359 = scalar_lea.vmem %s0, %s358
        %s360 = smul.u32 8, %s21
        %s361 = smul.u32 %s21, 8
        %s362 = ssub.s32 %s361, 1
        %p363 = scmp.gt.s32.totalorder %s362, 0
        %s364 = scalar_select %p363, %s362, 0
        %p365 = scmp.lt.s32.totalorder %s22, 1
        %s366 = scalar_select %p365, %s22, 1
        %p367 = scmp.lt.s32.totalorder %s364, 15
        %s368 = scalar_select %p367, %s364, 15
        %s369 = smul.addr %s368, 2
        %s370 = smul.addr %s366, 32
        %s371 = sadd.s32 %s369, %s370
        %s372 = smul.addr %s371, 8
        %s373 = scalar_lea.vmem %s1, %s372
        %s374 = smul.u32 %s21, 8
        %s375 = ssub.s32 %s374, 1
        %p376 = scmp.gt.s32.totalorder %s375, 0
        %s377 = scalar_select %p376, %s375, 0
        %s378 = smul.u32 %s21, 8
        %s379 = sadd.s32 %s378, 8
        %p380 = scmp.lt.s32.totalorder %s379, 15
        %s381 = scalar_select %p380, %s379, 15
        %p382 = scmp.lt.s32.totalorder %s22, 1
        %s383 = scalar_select %p382, %s22, 1
        %p384 = scmp.lt.s32.totalorder %s381, 15
        %s385 = scalar_select %p384, %s381, 15
        %s386 = smul.addr %s385, 2
        %s387 = smul.addr %s383, 32
        %s388 = sadd.s32 %s386, %s387
        %s389 = smul.addr %s388, 8
        %s390 = scalar_lea.vmem %s2, %s389
        %s391 = smul.u32 %s21, 8
        %s392 = sadd.s32 %s391, 8
        %p393 = scmp.lt.s32.totalorder %s392, 15
        %s394 = scalar_select %p393, %s392, 15
        %s395 = smul.u32 8, %s21
        %p396 = scmp.lt.s32.totalorder %s22, 1
        %s397 = scalar_select %p396, %s22, 1
        %p398 = scmp.lt.s32.totalorder %s395, 15
        %s399 = scalar_select %p398, %s395, 15
        %s400 = smul.addr %s399, 2
        %s401 = smul.addr %s397, 32
        %s402 = sadd.s32 %s400, %s401
        %s403 = smul.addr %s402, 4
        %s404 = scalar_lea.vmem %s5, %s403
        %s405 = smul.u32 8, %s21
        %p407 = scmp.gt.s32.totalorder %s21, 0
        %v408 = vld [vmem:[%s373] sm:$0xff]
        %v409 = vld [vmem:[%s373 + $0x8] sm:$0xff]
        %s410 = scalar_select %p407, 1.0, 0.0
        %v411 = vstv %s410
        %v412 = vmul.f32 %v408, %v411
        %v413 = vmul.f32 %v409, %v411
        %p414 = scmp.lt.s32.totalorder %s21, 1
        %v415 = vld [vmem:[%s390] sm:$0xff]
        %v416 = vld [vmem:[%s390 + $0x8] sm:$0xff]
        %s417 = scalar_select %p414, 1.0, 0.0
        %v418 = vstv %s417
        %v419 = vmul.f32 %v415, %v418
        %v420 = vmul.f32 %v416, %v418
        %v421 = vld [vmem:[%s359] sm:$0xff]
        %v422 = vld [vmem:[%s359 + $0x8] sm:$0xff]
        %v423 = vld [vmem:[%s359 + $0x10] sm:$0xff]
        %v424 = vld [vmem:[%s359 + $0x18] sm:$0xff]
        %v425 = vld [vmem:[%s359 + $0x20] sm:$0xff]
        %v426 = vld [vmem:[%s359 + $0x28] sm:$0xff]
        %v427 = vld [vmem:[%s359 + $0x30] sm:$0xff]
        %v428 = vld [vmem:[%s359 + $0x38] sm:$0xff]
        %v429 = vld [vmem:[%s359 + $0x40] sm:$0xff]
        %v430 = vld [vmem:[%s359 + $0x48] sm:$0xff]
        %v431 = vld [vmem:[%s359 + $0x50] sm:$0xff]
        %v432 = vld [vmem:[%s359 + $0x58] sm:$0xff]
        %v433 = vld [vmem:[%s359 + $0x60] sm:$0xff]
        %v434 = vld [vmem:[%s359 + $0x68] sm:$0xff]
        %v435 = vld [vmem:[%s359 + $0x70] sm:$0xff]
        %v436 = vld [vmem:[%s359 + $0x78] sm:$0xff]
        %v437 = vpack.c.bf16 %v413, %v412
        %v438 = vpack.c.bf16 %v422, %v421
        %v439 = vpack.c.bf16 %v424, %v423
        %v440 = vpack.c.bf16 %v426, %v425
        %v441 = vpack.c.bf16 %v428, %v427
        %v442 = vpack.c.bf16 %v430, %v429
        %v443 = vpack.c.bf16 %v432, %v431
        %v444 = vpack.c.bf16 %v434, %v433
        %v445 = vpack.c.bf16 %v436, %v435
        %v446 = vpack.c.bf16 %v420, %v419
        %v448 = vshrl.u32 %v437, 16
        %v450 = vrot.slane %v448, 7
        %v451 = vshll.u32 %v437, 16
        %v453 = vor.u32 %v450, %v451
        %v455 = vshrl.u32 %v438, 16
        %v457 = vrot.slane %v455, 7
        %v458 = vshll.u32 %v438, 16
        %v460 = vor.u32 %v457, %v458
        %v462 = vshrl.u32 %v439, 16
        %v464 = vrot.slane %v462, 7
        %v465 = vshll.u32 %v439, 16
        %v467 = vor.u32 %v464, %v465
        %v469 = vshrl.u32 %v440, 16
        %v471 = vrot.slane %v469, 7
        %v472 = vshll.u32 %v440, 16
        %v474 = vor.u32 %v471, %v472
        %v476 = vshrl.u32 %v441, 16
        %v478 = vrot.slane %v476, 7
        %v479 = vshll.u32 %v441, 16
        %v481 = vor.u32 %v478, %v479
        %v483 = vshrl.u32 %v442, 16
        %v485 = vrot.slane %v483, 7
        %v486 = vshll.u32 %v442, 16
        %v488 = vor.u32 %v485, %v486
        %v490 = vshrl.u32 %v443, 16
        %v492 = vrot.slane %v490, 7
        %v493 = vshll.u32 %v443, 16
        %v495 = vor.u32 %v492, %v493
        %v497 = vshrl.u32 %v444, 16
        %v499 = vrot.slane %v497, 7
        %v500 = vshll.u32 %v444, 16
        %v502 = vor.u32 %v499, %v500
        %v504 = vshrl.u32 %v445, 16
        %v506 = vrot.slane %v504, 7
        %v507 = vshll.u32 %v445, 16
        %v509 = vor.u32 %v506, %v507
        %v511 = vshrl.u32 %v446, 16
        %v513 = vrot.slane %v511, 7
        %v514 = vshll.u32 %v446, 16
        %v516 = vor.u32 %v513, %v514
        %vm537 = vcmask 1040384
        %vm538 = vsmask.f32 256
        %vm539 = vmand %vm537, %vm538
        %v540 = vsel %vm539, 0, %v453
        %v541 = vsel %vm539, 0, %v460
        %v542 = vsel %vm539, 0, %v467
        %v543 = vsel %vm539, 0, %v474
        %v544 = vsel %vm539, 0, %v481
        %v545 = vsel %vm539, 0, %v488
        %v546 = vsel %vm539, 0, %v495
        %v547 = vsel %vm539, 0, %v502
        %v548 = vsel %vm539, 0, %v509
        %v549 = vsel %vm539, 0, %v516
        %v550 = vsel %vm539, %v450, 0
        %v551 = vsel %vm539, %v457, 0
        %v552 = vsel %vm539, %v464, 0
        %v553 = vsel %vm539, %v471, 0
        %v554 = vsel %vm539, %v478, 0
        %v555 = vsel %vm539, %v485, 0
        %v556 = vsel %vm539, %v492, 0
        %v557 = vsel %vm539, %v499, 0
        %v558 = vsel %vm539, %v506, 0
        %v559 = vsel %vm539, %v513, 0
        %vm560 = vsmask.f32 7424
        %v562 = vshrl.u32 %v540, 16
        %v564 = vshll.u32 %v540, 16
        %v566 = vrot.slane %v564, 1
        %v567 = vor.u32 %v562, %v566
        %v569 = vshll.u32 %v550, 16
        %v571 = vrot.slane %v569, 1
        %v572 = vsel %vm560, %v567, %v571
        %v574 = vshrl.u32 %v541, 16
        %v576 = vshll.u32 %v541, 16
        %v578 = vrot.slane %v576, 1
        %v579 = vor.u32 %v574, %v578
        %v581 = vshll.u32 %v551, 16
        %v583 = vrot.slane %v581, 1
        %v584 = vsel %vm560, %v579, %v583
        %v586 = vshrl.u32 %v542, 16
        %v588 = vshll.u32 %v542, 16
        %v590 = vrot.slane %v588, 1
        %v591 = vor.u32 %v586, %v590
        %v593 = vshll.u32 %v552, 16
        %v595 = vrot.slane %v593, 1
        %v596 = vsel %vm560, %v591, %v595
        %v598 = vshrl.u32 %v543, 16
        %v600 = vshll.u32 %v543, 16
        %v602 = vrot.slane %v600, 1
        %v603 = vor.u32 %v598, %v602
        %v605 = vshll.u32 %v553, 16
        %v607 = vrot.slane %v605, 1
        %v608 = vsel %vm560, %v603, %v607
        %v610 = vshrl.u32 %v544, 16
        %v612 = vshll.u32 %v544, 16
        %v614 = vrot.slane %v612, 1
        %v615 = vor.u32 %v610, %v614
        %v617 = vshll.u32 %v554, 16
        %v619 = vrot.slane %v617, 1
        %v620 = vsel %vm560, %v615, %v619
        %v622 = vshrl.u32 %v545, 16
        %v624 = vshll.u32 %v545, 16
        %v626 = vrot.slane %v624, 1
        %v627 = vor.u32 %v622, %v626
        %v629 = vshll.u32 %v555, 16
        %v631 = vrot.slane %v629, 1
        %v632 = vsel %vm560, %v627, %v631
        %v634 = vshrl.u32 %v546, 16
        %v636 = vshll.u32 %v546, 16
        %v638 = vrot.slane %v636, 1
        %v639 = vor.u32 %v634, %v638
        %v641 = vshll.u32 %v556, 16
        %v643 = vrot.slane %v641, 1
        %v644 = vsel %vm560, %v639, %v643
        %v646 = vshrl.u32 %v547, 16
        %v648 = vshll.u32 %v547, 16
        %v650 = vrot.slane %v648, 1
        %v651 = vor.u32 %v646, %v650
        %v653 = vshll.u32 %v557, 16
        %v655 = vrot.slane %v653, 1
        %v656 = vsel %vm560, %v651, %v655
        %657 = vrot.lane.b32.xlu0 %v572, 3
        %v658 = vpop.permute.xlu0 %657
        %659 = vrot.lane.b32.xlu0 %v584, 3
        %v660 = vpop.permute.xlu0 %659
        %661 = vrot.lane.b32.xlu0 %v596, 3
        %v662 = vpop.permute.xlu0 %661
        %663 = vrot.lane.b32.xlu0 %v608, 3
        %v664 = vpop.permute.xlu0 %663
        %665 = vrot.lane.b32.xlu0 %v620, 3
        %v666 = vpop.permute.xlu0 %665
        %667 = vrot.lane.b32.xlu0 %v632, 3
        %v668 = vpop.permute.xlu0 %667
        %669 = vrot.lane.b32.xlu0 %v644, 3
        %v670 = vpop.permute.xlu0 %669
        %671 = vrot.lane.b32.xlu0 %v656, 3
        %v672 = vpop.permute.xlu0 %671
        %vm689 = vcmask 1046528
        %v690 = vrot.slane %v540, 1
        %v691 = vrot.slane %v550, 1
        %v692 = vsel %vm689, %v690, %v691
        %v693 = vrot.slane %v541, 1
        %v694 = vrot.slane %v551, 1
        %v695 = vsel %vm689, %v693, %v694
        %v696 = vrot.slane %v542, 1
        %v697 = vrot.slane %v552, 1
        %v698 = vsel %vm689, %v696, %v697
        %v699 = vrot.slane %v543, 1
        %v700 = vrot.slane %v553, 1
        %v701 = vsel %vm689, %v699, %v700
        %v702 = vrot.slane %v544, 1
        %v703 = vrot.slane %v554, 1
        %v704 = vsel %vm689, %v702, %v703
        %v705 = vrot.slane %v545, 1
        %v706 = vrot.slane %v555, 1
        %v707 = vsel %vm689, %v705, %v706
        %v708 = vrot.slane %v546, 1
        %v709 = vrot.slane %v556, 1
        %v710 = vsel %vm689, %v708, %v709
        %v711 = vrot.slane %v547, 1
        %v712 = vrot.slane %v557, 1
        %v713 = vsel %vm689, %v711, %v712
        %714 = vrot.lane.b32.xlu0 %v692, 6
        %v715 = vpop.permute.xlu0 %714
        %716 = vrot.lane.b32.xlu0 %v695, 6
        %v717 = vpop.permute.xlu0 %716
        %718 = vrot.lane.b32.xlu0 %v698, 6
        %v719 = vpop.permute.xlu0 %718
        %720 = vrot.lane.b32.xlu0 %v701, 6
        %v721 = vpop.permute.xlu0 %720
        %722 = vrot.lane.b32.xlu0 %v704, 6
        %v723 = vpop.permute.xlu0 %722
        %724 = vrot.lane.b32.xlu0 %v707, 6
        %v725 = vpop.permute.xlu0 %724
        %726 = vrot.lane.b32.xlu0 %v710, 6
        %v727 = vpop.permute.xlu0 %726
        %728 = vrot.lane.b32.xlu0 %v713, 6
        %v729 = vpop.permute.xlu0 %728
        %vm730 = vcmask 23552
        %v732 = vsel %vm730, %v540, %v658
        %v734 = vsel %vm730, %v541, %v660
        %v736 = vsel %vm730, %v542, %v662
        %v738 = vsel %vm730, %v543, %v664
        %v740 = vsel %vm730, %v544, %v666
        %v742 = vsel %vm730, %v545, %v668
        %v744 = vsel %vm730, %v546, %v670
        %v746 = vsel %vm730, %v547, %v672
        %vm747 = vcmask 48128
        %v749 = vsel %vm747, %v732, %v715
        %v751 = vsel %vm747, %v734, %v717
        %v753 = vsel %vm747, %v736, %v719
        %v755 = vsel %vm747, %v738, %v721
        %v757 = vsel %vm747, %v740, %v723
        %v759 = vsel %vm747, %v742, %v725
        %v761 = vsel %vm747, %v744, %v727
        %v763 = vsel %vm747, %v746, %v729
        %v764 = vld [vmem:[%s3] sm:$0xf]
        %v765 = vld [vmem:[%s3 + $0x4] sm:$0x1]
        %v767 = vshrl.u32 %v548, 16
        %v769 = vshll.u32 %v548, 16
        %v771 = vrot.slane %v769, 1
        %v772 = vor.u32 %v767, %v771
        %v774 = vshll.u32 %v558, 16
        %v776 = vrot.slane %v774, 1
        %v777 = vsel %vm560, %v772, %v776
        %778 = vrot.lane.b32.xlu0 %v777, 3
        %v779 = vpop.permute.xlu0 %778
        %v782 = vrot.slane %v548, 1
        %v783 = vrot.slane %v558, 1
        %v784 = vsel %vm689, %v782, %v783
        %785 = vrot.lane.b32.xlu0 %v784, 6
        %v786 = vpop.permute.xlu0 %785
        %v788 = vsel %vm730, %v548, %v779
        %v790 = vsel %vm747, %v788, %v786
        %s791 = scalar_lea.vmem %s3, 8
        %v792 = vld [vmem:[%s791] sm:$0xf]
        %v793 = vld [vmem:[%s791 + $0x4] sm:$0x1]
        %v796 = vunpack.c.l.b16 %v792
        %v797 = vunpack.c.l.b16 %v793
        %v798 = vpack.c.b16 %v797, %v796
        %vm799 = vcmask 72704
        %v800 = vsel %vm799, %v751, 0
        %v802 = vsel %vm799, %v753, 0
        %v804 = vsel %vm799, %v755, 0
        %v806 = vsel %vm799, %v757, 0
        %v808 = vsel %vm799, %v759, 0
        %v810 = vsel %vm799, %v761, 0
        %v812 = vsel %vm799, %v763, 0
        %v814 = vsel %vm799, %v790, 0
        %vm816 = vcmask 1043456
        %vm817 = vcmask 1044480
        %v818 = vsel %vm816, 4294967295, 65535
        %v819 = vsel %vm817, %v818, 0
        %v821 = vand.u32 %v798, %v819
        %823 = vmatprep.subr.bf16.mxu0 0
        %824 = vmatpush1.bf16.msra.mxu0 %v821
        %825 = vmatprep.subr.bf16.mxu0 0
        %826 = vmatpush1.bf16.msra.mxu0 0
        %827 = vmatprep.subr.bf16.mxu0 0
        %828 = vmatpush1.bf16.msra.mxu0 0
        %829 = vmatprep.subr.bf16.mxu0 0
        %830 = vmatpush1.bf16.msra.mxu0 0
        %831 = vmatprep.subr.bf16.mxu0 0
        %832 = vmatpush1.bf16.msra.mxu0 0
        %833 = vmatprep.subr.bf16.mxu0 0
        %834 = vmatpush1.bf16.msra.mxu0 0
        %835 = vmatprep.subr.bf16.mxu0 0
        %836 = vmatpush1.bf16.msra.mxu0 0
        %837 = vmatprep.subr.bf16.mxu0 0
        %838 = vmatpush1.bf16.msra.mxu0 0
        %839 = vmatprep.subr.bf16.mxu0 0
        %840 = vmatpush1.bf16.msra.mxu0 0
        %841 = vmatprep.subr.bf16.mxu0 0
        %842 = vmatpush1.bf16.msra.mxu0 0
        %843 = vmatprep.subr.bf16.mxu0 0
        %844 = vmatpush1.bf16.msra.mxu0 0
        %845 = vmatprep.subr.bf16.mxu0 0
        %846 = vmatpush1.bf16.msra.mxu0 0
        %847 = vmatprep.subr.bf16.mxu0 0
        %848 = vmatpush1.bf16.msra.mxu0 0
        %849 = vmatprep.subr.bf16.mxu0 0
        %850 = vmatpush1.bf16.msra.mxu0 0
        %851 = vmatprep.subr.bf16.mxu0 0
        %852 = vmatpush1.bf16.msra.mxu0 0
        %853 = vmatprep.subr.bf16.mxu0 0
        %854 = vmatpush1.bf16.msra.mxu0 0
        %855 = vmatprep.mubr.bf16.mxu0 0
        %856 = vmatmul.mubr.bf16.gmra.mrb[0].mxu0 %v800
        %v857 = vpop.f32.mrb[0].mxu0
        %v858 = vadd.f32 0.0, %v857
        %v859 = vpop.f32.mrb[0].mxu0
        %v860 = vpop.f32.mrb[0].mxu0
        %v861 = vadd.f32 0.0, %v860
        %v862 = vpop.f32.mrb[0].mxu0
        %863 = vmatprep.mubr.bf16.mxu0 0
        %864 = vmatmul.mubr.bf16.gmra.mrb[0].mxu0 %v802
        %v865 = vpop.f32.mrb[0].mxu0
        %v866 = vadd.f32 0.0, %v865
        %v867 = vpop.f32.mrb[0].mxu0
        %v868 = vpop.f32.mrb[0].mxu0
        %v869 = vadd.f32 0.0, %v868
        %v870 = vpop.f32.mrb[0].mxu0
        %871 = vmatprep.mubr.bf16.mxu0 0
        %872 = vmatmul.mubr.bf16.gmra.mrb[0].mxu0 %v804
        %v873 = vpop.f32.mrb[0].mxu0
        %v874 = vadd.f32 0.0, %v873
        %v875 = vpop.f32.mrb[0].mxu0
        %v876 = vpop.f32.mrb[0].mxu0
        %v877 = vadd.f32 0.0, %v876
        %v878 = vpop.f32.mrb[0].mxu0
        %879 = vmatprep.mubr.bf16.mxu0 0
        %880 = vmatmul.mubr.bf16.gmra.mrb[0].mxu0 %v806
        %v881 = vpop.f32.mrb[0].mxu0
        %v882 = vadd.f32 0.0, %v881
        %v883 = vpop.f32.mrb[0].mxu0
        %v884 = vpop.f32.mrb[0].mxu0
        %v885 = vadd.f32 0.0, %v884
        %v886 = vpop.f32.mrb[0].mxu0
        %887 = vmatprep.mubr.bf16.mxu0 0
        %888 = vmatmul.mubr.bf16.gmra.mrb[0].mxu0 %v808
        %v889 = vpop.f32.mrb[0].mxu0
        %v890 = vadd.f32 0.0, %v889
        %v891 = vpop.f32.mrb[0].mxu0
        %v892 = vpop.f32.mrb[0].mxu0
        %v893 = vadd.f32 0.0, %v892
        %v894 = vpop.f32.mrb[0].mxu0
        %895 = vmatprep.mubr.bf16.mxu0 0
        %896 = vmatmul.mubr.bf16.gmra.mrb[0].mxu0 %v810
        %v897 = vpop.f32.mrb[0].mxu0
        %v898 = vadd.f32 0.0, %v897
        %v899 = vpop.f32.mrb[0].mxu0
        %v900 = vpop.f32.mrb[0].mxu0
        %v901 = vadd.f32 0.0, %v900
        %v902 = vpop.f32.mrb[0].mxu0
        %903 = vmatprep.mubr.bf16.mxu0 0
        %904 = vmatmul.mubr.bf16.gmra.mrb[0].mxu0 %v812
        %v905 = vpop.f32.mrb[0].mxu0
        %v906 = vadd.f32 0.0, %v905
        %v907 = vpop.f32.mrb[0].mxu0
        %v908 = vpop.f32.mrb[0].mxu0
        %v909 = vadd.f32 0.0, %v908
        %v910 = vpop.f32.mrb[0].mxu0
        %911 = vmatprep.mubr.bf16.mxu0 0
        %912 = vmatmul.mubr.bf16.gmra.mrb[0].mxu0 %v814
        %v913 = vpop.f32.mrb[0].mxu0
        %v914 = vadd.f32 0.0, %v913
        %v915 = vpop.f32.mrb[0].mxu0
        %v916 = vpop.f32.mrb[0].mxu0
        %v917 = vadd.f32 0.0, %v916
        %v918 = vpop.f32.mrb[0].mxu0
        %919 = vdwg.mxu0
        %v922 = vunpack.c.l.b16 %v764
        %v923 = vunpack.c.l.b16 %v765
        %v924 = vpack.c.b16 %v923, %v922
        %v925 = vsel %vm799, %v749, 0
        %v928 = vand.u32 %v924, %v819
        %930 = vmatprep.subr.bf16.mxu0 0
        %931 = vmatpush1.bf16.msra.mxu0 %v928
        %932 = vmatprep.subr.bf16.mxu0 0
        %933 = vmatpush1.bf16.msra.mxu0 0
        %934 = vmatprep.subr.bf16.mxu0 0
        %935 = vmatpush1.bf16.msra.mxu0 0
        %936 = vmatprep.subr.bf16.mxu0 0
        %937 = vmatpush1.bf16.msra.mxu0 0
        %938 = vmatprep.subr.bf16.mxu0 0
        %939 = vmatpush1.bf16.msra.mxu0 0
        %940 = vmatprep.subr.bf16.mxu0 0
        %941 = vmatpush1.bf16.msra.mxu0 0
        %942 = vmatprep.subr.bf16.mxu0 0
        %943 = vmatpush1.bf16.msra.mxu0 0
        %944 = vmatprep.subr.bf16.mxu0 0
        %945 = vmatpush1.bf16.msra.mxu0 0
        %946 = vmatprep.subr.bf16.mxu0 0
        %947 = vmatpush1.bf16.msra.mxu0 0
        %948 = vmatprep.subr.bf16.mxu0 0
        %949 = vmatpush1.bf16.msra.mxu0 0
        %950 = vmatprep.subr.bf16.mxu0 0
        %951 = vmatpush1.bf16.msra.mxu0 0
        %952 = vmatprep.subr.bf16.mxu0 0
        %953 = vmatpush1.bf16.msra.mxu0 0
        %954 = vmatprep.subr.bf16.mxu0 0
        %955 = vmatpush1.bf16.msra.mxu0 0
        %956 = vmatprep.subr.bf16.mxu0 0
        %957 = vmatpush1.bf16.msra.mxu0 0
        %958 = vmatprep.subr.bf16.mxu0 0
        %959 = vmatpush1.bf16.msra.mxu0 0
        %960 = vmatprep.subr.bf16.mxu0 0
        %961 = vmatpush1.bf16.msra.mxu0 0
        %962 = vmatprep.mubr.bf16.mxu0 0
        %963 = vmatmul.mubr.bf16.gmra.mrb[0].mxu0 %v925
        %v964 = vpop.f32.mrb[0].mxu0
        %v965 = vadd.f32 %v858, %v964
        %v966 = vpop.f32.mrb[0].mxu0
        %v967 = vpop.f32.mrb[0].mxu0
        %v968 = vadd.f32 %v861, %v967
        %v969 = vpop.f32.mrb[0].mxu0
        %970 = vmatprep.mubr.bf16.mxu0 0
        %971 = vmatmul.mubr.bf16.gmra.mrb[0].mxu0 %v800
        %v972 = vpop.f32.mrb[0].mxu0
        %v973 = vadd.f32 %v866, %v972
        %v974 = vpop.f32.mrb[0].mxu0
        %v975 = vpop.f32.mrb[0].mxu0
        %v976 = vadd.f32 %v869, %v975
        %v977 = vpop.f32.mrb[0].mxu0
        %978 = vmatprep.mubr.bf16.mxu0 0
        %979 = vmatmul.mubr.bf16.gmra.mrb[0].mxu0 %v802
        %v980 = vpop.f32.mrb[0].mxu0
        %v981 = vadd.f32 %v874, %v980
        %v982 = vpop.f32.mrb[0].mxu0
        %v983 = vpop.f32.mrb[0].mxu0
        %v984 = vadd.f32 %v877, %v983
        %v985 = vpop.f32.mrb[0].mxu0
        %986 = vmatprep.mubr.bf16.mxu0 0
        %987 = vmatmul.mubr.bf16.gmra.mrb[0].mxu0 %v804
        %v988 = vpop.f32.mrb[0].mxu0
        %v989 = vadd.f32 %v882, %v988
        %v990 = vpop.f32.mrb[0].mxu0
        %v991 = vpop.f32.mrb[0].mxu0
        %v992 = vadd.f32 %v885, %v991
        %v993 = vpop.f32.mrb[0].mxu0
        %994 = vmatprep.mubr.bf16.mxu0 0
        %995 = vmatmul.mubr.bf16.gmra.mrb[0].mxu0 %v806
        %v996 = vpop.f32.mrb[0].mxu0
        %v997 = vadd.f32 %v890, %v996
        %v998 = vpop.f32.mrb[0].mxu0
        %v999 = vpop.f32.mrb[0].mxu0
        %v1000 = vadd.f32 %v893, %v999
        %v1001 = vpop.f32.mrb[0].mxu0
        %1002 = vmatprep.mubr.bf16.mxu0 0
        %1003 = vmatmul.mubr.bf16.gmra.mrb[0].mxu0 %v808
        %v1004 = vpop.f32.mrb[0].mxu0
        %v1005 = vadd.f32 %v898, %v1004
        %v1006 = vpop.f32.mrb[0].mxu0
        %v1007 = vpop.f32.mrb[0].mxu0
        %v1008 = vadd.f32 %v901, %v1007
        %v1009 = vpop.f32.mrb[0].mxu0
        %1010 = vmatprep.mubr.bf16.mxu0 0
        %1011 = vmatmul.mubr.bf16.gmra.mrb[0].mxu0 %v810
        %v1012 = vpop.f32.mrb[0].mxu0
        %v1013 = vadd.f32 %v906, %v1012
        %v1014 = vpop.f32.mrb[0].mxu0
        %v1015 = vpop.f32.mrb[0].mxu0
        %v1016 = vadd.f32 %v909, %v1015
        %v1017 = vpop.f32.mrb[0].mxu0
        %1018 = vmatprep.mubr.bf16.mxu0 0
        %1019 = vmatmul.mubr.bf16.gmra.mrb[0].mxu0 %v812
        %v1020 = vpop.f32.mrb[0].mxu0
        %v1021 = vadd.f32 %v914, %v1020
        %v1022 = vpop.f32.mrb[0].mxu0
        %v1023 = vpop.f32.mrb[0].mxu0
        %v1024 = vadd.f32 %v917, %v1023
        %v1025 = vpop.f32.mrb[0].mxu0
        %1026 = vdwg.mxu0
        %v1028 = vshrl.u32 %v549, 16
        %v1030 = vshll.u32 %v549, 16
        %v1032 = vrot.slane %v1030, 1
        %v1033 = vor.u32 %v1028, %v1032
        %v1035 = vshll.u32 %v559, 16
        %v1037 = vrot.slane %v1035, 1
        %v1038 = vsel %vm560, %v1033, %v1037
        %1039 = vrot.lane.b32.xlu0 %v1038, 3
        %v1040 = vpop.permute.xlu0 %1039
        %v1043 = vrot.slane %v549, 1
        %v1044 = vrot.slane %v559, 1
        %v1045 = vsel %vm689, %v1043, %v1044
        %1046 = vrot.lane.b32.xlu0 %v1045, 6
        %v1047 = vpop.permute.xlu0 %1046
        %v1049 = vsel %vm730, %v549, %v1040
        %v1051 = vsel %vm747, %v1049, %v1047
        %s1052 = scalar_lea.vmem %s3, 16
        %v1053 = vld [vmem:[%s1052] sm:$0xf]
        %v1054 = vld [vmem:[%s1052 + $0x4] sm:$0x1]
        %v1057 = vunpack.c.l.b16 %v1053
        %v1058 = vunpack.c.l.b16 %v1054
        %v1059 = vpack.c.b16 %v1058, %v1057
        %v1060 = vsel %vm799, %v1051, 0
        %v1063 = vand.u32 %v1059, %v819
        %1065 = vmatprep.subr.bf16.mxu0 0
        %1066 = vmatpush1.bf16.msra.mxu0 %v1063
        %1067 = vmatprep.subr.bf16.mxu0 0
        %1068 = vmatpush1.bf16.msra.mxu0 0
        %1069 = vmatprep.subr.bf16.mxu0 0
        %1070 = vmatpush1.bf16.msra.mxu0 0
        %1071 = vmatprep.subr.bf16.mxu0 0
        %1072 = vmatpush1.bf16.msra.mxu0 0
        %1073 = vmatprep.subr.bf16.mxu0 0
        %1074 = vmatpush1.bf16.msra.mxu0 0
        %1075 = vmatprep.subr.bf16.mxu0 0
        %1076 = vmatpush1.bf16.msra.mxu0 0
        %1077 = vmatprep.subr.bf16.mxu0 0
        %1078 = vmatpush1.bf16.msra.mxu0 0
        %1079 = vmatprep.subr.bf16.mxu0 0
        %1080 = vmatpush1.bf16.msra.mxu0 0
        %1081 = vmatprep.subr.bf16.mxu0 0
        %1082 = vmatpush1.bf16.msra.mxu0 0
        %1083 = vmatprep.subr.bf16.mxu0 0
        %1084 = vmatpush1.bf16.msra.mxu0 0
        %1085 = vmatprep.subr.bf16.mxu0 0
        %1086 = vmatpush1.bf16.msra.mxu0 0
        %1087 = vmatprep.subr.bf16.mxu0 0
        %1088 = vmatpush1.bf16.msra.mxu0 0
        %1089 = vmatprep.subr.bf16.mxu0 0
        %1090 = vmatpush1.bf16.msra.mxu0 0
        %1091 = vmatprep.subr.bf16.mxu0 0
        %1092 = vmatpush1.bf16.msra.mxu0 0
        %1093 = vmatprep.subr.bf16.mxu0 0
        %1094 = vmatpush1.bf16.msra.mxu0 0
        %1095 = vmatprep.subr.bf16.mxu0 0
        %1096 = vmatpush1.bf16.msra.mxu0 0
        %1097 = vmatprep.mubr.bf16.mxu0 0
        %1098 = vmatmul.mubr.bf16.gmra.mrb[0].mxu0 %v802
        %v1099 = vpop.f32.mrb[0].mxu0
        %v1100 = vadd.f32 0.0, %v1099
        %v1101 = vpop.f32.mrb[0].mxu0
        %v1102 = vpop.f32.mrb[0].mxu0
        %v1103 = vadd.f32 0.0, %v1102
        %v1104 = vpop.f32.mrb[0].mxu0
        %1105 = vmatprep.mubr.bf16.mxu0 0
        %1106 = vmatmul.mubr.bf16.gmra.mrb[0].mxu0 %v804
        %v1107 = vpop.f32.mrb[0].mxu0
        %v1108 = vadd.f32 0.0, %v1107
        %v1109 = vpop.f32.mrb[0].mxu0
        %v1110 = vpop.f32.mrb[0].mxu0
        %v1111 = vadd.f32 0.0, %v1110
        %v1112 = vpop.f32.mrb[0].mxu0
        %1113 = vmatprep.mubr.bf16.mxu0 0
        %1114 = vmatmul.mubr.bf16.gmra.mrb[0].mxu0 %v806
        %v1115 = vpop.f32.mrb[0].mxu0
        %v1116 = vadd.f32 0.0, %v1115
        %v1117 = vpop.f32.mrb[0].mxu0
        %v1118 = vpop.f32.mrb[0].mxu0
        %v1119 = vadd.f32 0.0, %v1118
        %v1120 = vpop.f32.mrb[0].mxu0
        %1121 = vmatprep.mubr.bf16.mxu0 0
        %1122 = vmatmul.mubr.bf16.gmra.mrb[0].mxu0 %v808
        %v1123 = vpop.f32.mrb[0].mxu0
        %v1124 = vadd.f32 0.0, %v1123
        %v1125 = vpop.f32.mrb[0].mxu0
        %v1126 = vpop.f32.mrb[0].mxu0
        %v1127 = vadd.f32 0.0, %v1126
        %v1128 = vpop.f32.mrb[0].mxu0
        %1129 = vmatprep.mubr.bf16.mxu0 0
        %1130 = vmatmul.mubr.bf16.gmra.mrb[0].mxu0 %v810
        %v1131 = vpop.f32.mrb[0].mxu0
        %v1132 = vadd.f32 0.0, %v1131
        %v1133 = vpop.f32.mrb[0].mxu0
        %v1134 = vpop.f32.mrb[0].mxu0
        %v1135 = vadd.f32 0.0, %v1134
        %v1136 = vpop.f32.mrb[0].mxu0
        %1137 = vmatprep.mubr.bf16.mxu0 0
        %1138 = vmatmul.mubr.bf16.gmra.mrb[0].mxu0 %v812
        %v1139 = vpop.f32.mrb[0].mxu0
        %v1140 = vadd.f32 0.0, %v1139
        %v1141 = vpop.f32.mrb[0].mxu0
        %v1142 = vpop.f32.mrb[0].mxu0
        %v1143 = vadd.f32 0.0, %v1142
        %v1144 = vpop.f32.mrb[0].mxu0
        %1145 = vmatprep.mubr.bf16.mxu0 0
        %1146 = vmatmul.mubr.bf16.gmra.mrb[0].mxu0 %v814
        %v1147 = vpop.f32.mrb[0].mxu0
        %v1148 = vadd.f32 0.0, %v1147
        %v1149 = vpop.f32.mrb[0].mxu0
        %v1150 = vpop.f32.mrb[0].mxu0
        %v1151 = vadd.f32 0.0, %v1150
        %v1152 = vpop.f32.mrb[0].mxu0
        %1153 = vmatprep.mubr.bf16.mxu0 0
        %1154 = vmatmul.mubr.bf16.gmra.mrb[0].mxu0 %v1060
        %v1155 = vpop.f32.mrb[0].mxu0
        %v1156 = vadd.f32 0.0, %v1155
        %v1157 = vpop.f32.mrb[0].mxu0
        %v1158 = vpop.f32.mrb[0].mxu0
        %v1159 = vadd.f32 0.0, %v1158
        %v1160 = vpop.f32.mrb[0].mxu0
        %1161 = vdwg.mxu0
        %v1162 = vadd.f32 %v965, %v1100
        %v1163 = vadd.f32 %v968, %v1103
        %v1164 = vadd.f32 %v973, %v1108
        %v1165 = vadd.f32 %v976, %v1111
        %v1166 = vadd.f32 %v981, %v1116
        %v1167 = vadd.f32 %v984, %v1119
        %v1168 = vadd.f32 %v989, %v1124
        %v1169 = vadd.f32 %v992, %v1127
        %v1170 = vadd.f32 %v997, %v1132
        %v1171 = vadd.f32 %v1000, %v1135
        %v1172 = vadd.f32 %v1005, %v1140
        %v1173 = vadd.f32 %v1008, %v1143
        %v1174 = vadd.f32 %v1013, %v1148
        %v1175 = vadd.f32 %v1016, %v1151
        %v1176 = vadd.f32 %v1021, %v1156
        %v1177 = vadd.f32 %v1024, %v1159
        %v1178 = vld [vmem:[#allocation2] sm:$0x1]
        %v1180 = vlaneseq
        %v1181 = vshrl.u32 %v1180, 7
        %v1182 = vsub.s32 0, %v1181
        %v1183 = vrot.slane %v1178, %v1182
        %v1185 = vadd.f32 %v1162, %v1183
        %v1186 = vadd.f32 %v1163, %v1183
        %v1187 = vadd.f32 %v1164, %v1183
        %v1188 = vadd.f32 %v1165, %v1183
        %v1189 = vadd.f32 %v1166, %v1183
        %v1190 = vadd.f32 %v1167, %v1183
        %v1191 = vadd.f32 %v1168, %v1183
        %v1192 = vadd.f32 %v1169, %v1183
        %v1193 = vadd.f32 %v1170, %v1183
        %v1194 = vadd.f32 %v1171, %v1183
        %v1195 = vadd.f32 %v1172, %v1183
        %v1196 = vadd.f32 %v1173, %v1183
        %v1197 = vadd.f32 %v1174, %v1183
        %v1198 = vadd.f32 %v1175, %v1183
        %v1199 = vadd.f32 %v1176, %v1183
        %v1200 = vadd.f32 %v1177, %v1183
        %v1201 = vpack.c.bf16 %v1186, %v1185
        %v1202 = vpack.c.bf16 %v1188, %v1187
        %v1203 = vpack.c.bf16 %v1190, %v1189
        %v1204 = vpack.c.bf16 %v1192, %v1191
        %v1205 = vpack.c.bf16 %v1194, %v1193
        %v1206 = vpack.c.bf16 %v1196, %v1195
        %v1207 = vpack.c.bf16 %v1198, %v1197
        %v1208 = vpack.c.bf16 %v1200, %v1199
        %v1217 = vunpack.c.l.b16 %v1201
        %v1218 = vunpack.c.h.b16 %v1201
        %v1219 = vunpack.c.l.b16 %v1202
        %v1220 = vunpack.c.h.b16 %v1202
        %v1221 = vunpack.c.l.b16 %v1203
        %v1222 = vunpack.c.h.b16 %v1203
        %v1223 = vunpack.c.l.b16 %v1204
        %v1224 = vunpack.c.h.b16 %v1204
        %v1225 = vunpack.c.l.b16 %v1205
        %v1226 = vunpack.c.h.b16 %v1205
        %v1227 = vunpack.c.l.b16 %v1206
        %v1228 = vunpack.c.h.b16 %v1206
        %v1229 = vunpack.c.l.b16 %v1207
        %v1230 = vunpack.c.h.b16 %v1207
        %v1231 = vunpack.c.l.b16 %v1208
        %v1232 = vunpack.c.h.b16 %v1208
        %v1233 = vpack.c.b16 %v1217, %v1217
        %v1234 = vpack.c.b16 %v1218, %v1218
        %v1235 = vpack.c.b16 %v1219, %v1219
        %v1236 = vpack.c.b16 %v1220, %v1220
        %v1237 = vpack.c.b16 %v1221, %v1221
        %v1238 = vpack.c.b16 %v1222, %v1222
        %v1239 = vpack.c.b16 %v1223, %v1223
        %v1240 = vpack.c.b16 %v1224, %v1224
        %v1241 = vpack.c.b16 %v1225, %v1225
        %v1242 = vpack.c.b16 %v1226, %v1226
        %v1243 = vpack.c.b16 %v1227, %v1227
        %v1244 = vpack.c.b16 %v1228, %v1228
        %v1245 = vpack.c.b16 %v1229, %v1229
        %v1246 = vpack.c.b16 %v1230, %v1230
        %v1247 = vpack.c.b16 %v1231, %v1231
        %v1248 = vpack.c.b16 %v1232, %v1232
        %vm1265 = vcmask 60416
        %1266 = vst.msk [vmem:[%s404] sm:$0xf] %vm1265, %v1233
        %1267 = vst.msk [vmem:[%s404 + $0x4] sm:$0xf] %vm1265, %v1234
        %1268 = vst.msk [vmem:[%s404 + $0x8] sm:$0xf] %vm1265, %v1235
        %1269 = vst.msk [vmem:[%s404 + $0xc] sm:$0xf] %vm1265, %v1236
        %1270 = vst.msk [vmem:[%s404 + $0x10] sm:$0xf] %vm1265, %v1237
        %1271 = vst.msk [vmem:[%s404 + $0x14] sm:$0xf] %vm1265, %v1238
        %1272 = vst.msk [vmem:[%s404 + $0x18] sm:$0xf] %vm1265, %v1239
        %1273 = vst.msk [vmem:[%s404 + $0x1c] sm:$0xf] %vm1265, %v1240
        %1274 = vst.msk [vmem:[%s404 + $0x20] sm:$0xf] %vm1265, %v1241
        %1275 = vst.msk [vmem:[%s404 + $0x24] sm:$0xf] %vm1265, %v1242
        %1276 = vst.msk [vmem:[%s404 + $0x28] sm:$0xf] %vm1265, %v1243
        %1277 = vst.msk [vmem:[%s404 + $0x2c] sm:$0xf] %vm1265, %v1244
        %1278 = vst.msk [vmem:[%s404 + $0x30] sm:$0xf] %vm1265, %v1245
        %1279 = vst.msk [vmem:[%s404 + $0x34] sm:$0xf] %vm1265, %v1246
        %1280 = vst.msk [vmem:[%s404 + $0x38] sm:$0xf] %vm1265, %v1247
        %1281 = vst.msk [vmem:[%s404 + $0x3c] sm:$0xf] %vm1265, %v1248
        %s1282 = smul.u32 8, %s21
        %p1283 = scmp.lt.s32.totalorder %s22, 1
        %s1284 = scalar_select %p1283, %s22, 1
        %p1285 = scmp.lt.s32.totalorder %s1282, 15
        %s1286 = scalar_select %p1285, %s1282, 15
        %s1287 = smul.addr %s1286, 2
        %s1288 = smul.addr %s1284, 32
        %s1289 = sadd.s32 %s1287, %s1288
        %s1290 = smul.addr %s1289, 4
        %s1291 = scalar_lea.vmem %s5, %s1290
        // Predicated region
        $region45: #{wavemix_forward.7} parent=39 // pred_check
          %p1292 = pneg %p191
        $region46: #{wavemix_forward.7} parent=39 // pred_check_branch
          %1294 = sbr.rel (%p1292) target = $region48
        $region47: #{wavemix_forward.7} parent=39 // pred_region
          %s1295 = smul.u32 8, %s21
        $region48: #{wavemix_forward.7} parent=39 // pred_fallthru
          _
      $region40: #{wavemix_forward.7} parent=5 // pred_fallthru
        _
      %p1296 = scmp.le.s32.totalorder 2, %s12
      // Predicated region
      $region49: #{wavemix_forward.7} parent=5 // pred_check
        %p1297 = pneg %p1296
      $region50: #{wavemix_forward.7} parent=5 // pred_check_branch
        %1299 = sbr.rel (%p1297) target = $region52
      $region51: #{wavemix_forward.7} parent=5 // pred_region
        %s1300 = ssub.s32 %s12, 2
        // Predicated region
        $region53: #{wavemix_forward.7} parent=51 // pred_check
          %p1301 = pneg %p197
        $region54: #{wavemix_forward.7} parent=51 // pred_check_branch
          %1303 = sbr.rel (%p1301) target = $region56
        $region55: #{wavemix_forward.7} parent=51 // pred_region
          %s1304 = smul.u32 8, %s23
          %p1305 = scmp.lt.s32.totalorder %s24, 1
          %s1306 = scalar_select %p1305, %s24, 1
          %p1307 = scmp.lt.s32.totalorder %s1304, 15
          %s1308 = scalar_select %p1307, %s1304, 15
          %s1309 = smul.addr %s1308, 2
          %s1310 = smul.addr %s1306, 32
          %s1311 = sadd.s32 %s1309, %s1310
          %s1312 = smul.addr %s1311, 4
          %s1313 = scalar_lea.vmem %s5, %s1312
        $region56: #{wavemix_forward.7} parent=51 // pred_fallthru
          _
      $region52: #{wavemix_forward.7} parent=5 // pred_fallthru
        _
    $region6: #{wavemix_forward.7} parent=1 // loop_footer
      %s16 = sadd.s32 1, %s12
    $region7: #{wavemix_forward.7} parent=1 // loop_footer_branch
      %11 = sbr.rel target = $region3
    $region8: #{wavemix_forward.7} parent=1 // loop_exit
      _
    %1314 = vsyncpa [#allocation3], 1
    %s1315 = scalar_lea.sflag [#allocation3], 1
    %1316 = vsyncpa %s1315, 1

// kernel: wavemix_forward.9
$region0: #{wavemix_forward.9}
  #allocation0 [shape = 'u32[]', space=smem, size = 0x4, offset = 0x4, fixed_abs, tag = 'smem constant byte address 0x4 - core index']
  #allocation1 [shape = 'u32[144,128]{1,0:T(1,128)}', space=vmem, size = 0x12000, scoped, tag = 'internal scratch']
  %s0 = inlined_call_operand.vmem [shape: bf16[2,8,8,64], index: 0, kind: input, shape index: {}]
  %s1 = inlined_call_operand.vmem [shape: bf16[64,32], index: 1, kind: input, shape index: {}]
  %s2 = inlined_call_operand.vmem [shape: f32[1,32], index: 2, kind: input, shape index: {}]
  %s3 = inlined_call_operand.vmem [shape: bf16[2,8,8,32], index: 3, kind: output, shape index: {}]
  %s4 = sld [smem:[#allocation0]]
  $region45: #{wavemix_forward.9} parent=0
    _
  %s6 = ssub.s32 1, %s4
  %s7 = scalar_select 0, %s6, %s4
  loop: start=0, step=1, limit=4
  $region2: #{wavemix_forward.9} parent=0 // loop_pre_header
    _
  $region3: #{wavemix_forward.9} parent=0 // loop_header
    %s9 = sphi 0, %s13
    %p10 = scmp.ge.s32.totalorder %s9, 4
    %s16 = sphi 0, %s28
    %s17 = sphi 0, %s24
    %s18 = sphi 0, %s16
    %s19 = sphi 0, %s17
    %s20 = sphi 0, %s18
    %s21 = sphi 0, %s19
    %s33 = sphi 0, %s35
    %s36 = sphi 0, %s33
    %s37 = sphi 0, %s36
    %s53 = sphi 0, %s37
    %s57 = sphi 0, %s57
    %s59 = sphi 0, %s57
    %s60 = sphi 0, %s59
    %s74 = sphi 0, %s60
    %s78 = sphi 0, %s78
    %s80 = sphi 0, %s78
    %s81 = sphi 0, %s80
    %s95 = sphi 0, %s81
    %s103 = sphi 0, %s105
    %s106 = sphi 0, %s103
    %s107 = sphi 0, %s106
    %s123 = sphi 0, %s107
  $region4: #{wavemix_forward.9} parent=0 // loop_header_branch
    %12 = sbr.rel (%p10) target = $region8
  $region5: #{wavemix_forward.9} parent=0 // loop_body
    %s14 = ssub.s32 %s9, 1
    %s15 = ssub.s32 %s9, 2
    %s22 = sadd.s32 1, %s17
    %p23 = scmp.ge.s32.totalorder %s22, 2
    %s24 = scalar_select %p23, 0, %s22
    %s25 = sadd.s32 1, %s16
    %s26 = scalar_select %p23, %s25, %s16
    %p27 = scmp.ge.s32.totalorder %s26, 1
    %s28 = scalar_select %p27, 0, %s26
    %s29 = ssub.s32 %s17, %s24
    %s30 = ssub.s32 %s16, %s28
    %s31 = sor.u32 %s29, %s30
    %p32 = scmp.eq.s32.totalorder %s31, 0
    %s34 = sadd.s32 %s33, 1
    %s35 = scalar_select %p32, %s33, %s34
    %p38 = pneg %p32
    %p39 = scmp.eq.s32.totalorder %s9, 1
    %p40 = por %p38, %p39
    %p41 = scmp.ne.s32.totalorder %s33, %s36
    %p42 = scmp.eq.s32.totalorder %s9, 0
    %p43 = por %p41, %p42
    %p44 = scmp.ne.s32.totalorder %s33, %s36
    %p45 = scmp.eq.s32.totalorder %s14, 1
    %p46 = por %p44, %p45
    %p47 = scmp.ne.s32.totalorder %s36, %s37
    %p48 = scmp.eq.s32.totalorder %s14, 0
    %p49 = por %p47, %p48
    %p50 = scmp.ne.s32.totalorder %s36, %s37
    %p51 = scmp.eq.s32.totalorder %s15, 1
    %p52 = por %p50, %p51
    %p54 = scmp.ne.s32.totalorder %s37, %s53
    %p55 = scmp.eq.s32.totalorder %s15, 0
    %p56 = por %p54, %p55
    %s58 = sadd.s32 %s57, 1
    %p61 = scmp.eq.s32.totalorder %s9, 1
    %p62 = scmp.ne.s32.totalorder %s57, %s59
    %p63 = scmp.eq.s32.totalorder %s9, 0
    %p64 = por %p62, %p63
    %p65 = scmp.ne.s32.totalorder %s57, %s59
    %p66 = scmp.eq.s32.totalorder %s14, 1
    %p67 = por %p65, %p66
    %p68 = scmp.ne.s32.totalorder %s59, %s60
    %p69 = scmp.eq.s32.totalorder %s14, 0
    %p70 = por %p68, %p69
    %p71 = scmp.ne.s32.totalorder %s59, %s60
    %p72 = scmp.eq.s32.totalorder %s15, 1
    %p73 = por %p71, %p72
    %p75 = scmp.ne.s32.totalorder %s60, %s74
    %p76 = scmp.eq.s32.totalorder %s15, 0
    %p77 = por %p75, %p76
    %s79 = sadd.s32 %s78, 1
    %p82 = scmp.eq.s32.totalorder %s9, 1
    %p83 = scmp.ne.s32.totalorder %s78, %s80
    %p84 = scmp.eq.s32.totalorder %s9, 0
    %p85 = por %p83, %p84
    %p86 = scmp.ne.s32.totalorder %s78, %s80
    %p87 = scmp.eq.s32.totalorder %s14, 1
    %p88 = por %p86, %p87
    %p89 = scmp.ne.s32.totalorder %s80, %s81
    %p90 = scmp.eq.s32.totalorder %s14, 0
    %p91 = por %p89, %p90
    %p92 = scmp.ne.s32.totalorder %s80, %s81
    %p93 = scmp.eq.s32.totalorder %s15, 1
    %p94 = por %p92, %p93
    %p96 = scmp.ne.s32.totalorder %s81, %s95
    %p97 = scmp.eq.s32.totalorder %s15, 0
    %p98 = por %p96, %p97
    %s99 = ssub.s32 %s17, %s24
    %s100 = ssub.s32 %s16, %s28
    %s101 = sor.u32 %s99, %s100
    %p102 = scmp.eq.s32.totalorder %s101, 0
    %s104 = sadd.s32 %s103, 1
    %s105 = scalar_select %p102, %s103, %s104
    %p108 = pneg %p102
    %p109 = scmp.eq.s32.totalorder %s9, 1
    %p110 = por %p108, %p109
    %p111 = scmp.ne.s32.totalorder %s103, %s106
    %p112 = scmp.eq.s32.totalorder %s9, 0
    %p113 = por %p111, %p112
    %p114 = scmp.ne.s32.totalorder %s103, %s106
    %p115 = scmp.eq.s32.totalorder %s14, 1
    %p116 = por %p114, %p115
    %p117 = scmp.ne.s32.totalorder %s106, %s107
    %p118 = scmp.eq.s32.totalorder %s14, 0
    %p119 = por %p117, %p118
    %p120 = scmp.ne.s32.totalorder %s106, %s107
    %p121 = scmp.eq.s32.totalorder %s15, 1
    %p122 = por %p120, %p121
    %p124 = scmp.ne.s32.totalorder %s107, %s123
    %p125 = scmp.eq.s32.totalorder %s15, 0
    %p126 = por %p124, %p125
    %p127 = scmp.le.s32.totalorder 1, %s9
    %p128 = scmp.lt.s32.totalorder %s9, 3
    %p129 = pnand %p127, %p128
    %p130 = pneg %p129
    // Predicated region
    $region9: #{wavemix_forward.9} parent=5 // pred_check
      _
    $region10: #{wavemix_forward.9} parent=5 // pred_check_branch
      %132 = sbr.rel (%p129) target = $region12
    $region11: #{wavemix_forward.9} parent=5 // pred_region
      %s133 = ssub.s32 %s9, 1
      // Predicated region
      $region13: #{wavemix_forward.9} parent=11 // pred_check
        %p134 = pneg %p70
      $region14: #{wavemix_forward.9} parent=11 // pred_check_branch
        %136 = sbr.rel (%p134) target = $region16
      $region15: #{wavemix_forward.9} parent=11 // pred_region
        _
      $region16: #{wavemix_forward.9} parent=11 // pred_fallthru
        _
      // Predicated region
      $region17: #{wavemix_forward.9} parent=11 // pred_check
        %p137 = pneg %p91
      $region18: #{wavemix_forward.9} parent=11 // pred_check_branch
        %139 = sbr.rel (%p137) target = $region20
      $region19: #{wavemix_forward.9} parent=11 // pred_region
        _
      $region20: #{wavemix_forward.9} parent=11 // pred_fallthru
        _
    $region12: #{wavemix_forward.9} parent=5 // pred_fallthru
      _
    %p140 = scmp.lt.s32.totalorder %s9, 2
    // Predicated region
    $region21: #{wavemix_forward.9} parent=5 // pred_check
      %p141 = pneg %p140
    $region22: #{wavemix_forward.9} parent=5 // pred_check_branch
      %143 = sbr.rel (%p141) target = $region24
    $region23: #{wavemix_forward.9} parent=5 // pred_region
      // Predicated region
      $region25: #{wavemix_forward.9} parent=23 // pred_check
        %p144 = pneg %p43
      $region26: #{wavemix_forward.9} parent=23 // pred_check_branch
        %146 = sbr.rel (%p144) target = $region28
      $region27: #{wavemix_forward.9} parent=23 // pred_region
        %s147 = smul.u32 8, %s16
        %p148 = scmp.lt.s32.totalorder %s17, 1
        %s149 = scalar_select %p148, %s17, 1
        %p150 = scmp.lt.s32.totalorder %s147, 7
        %s151 = scalar_select %p150, %s147, 7
        %s152 = smul.addr %s149, 8
        %s153 = sadd.s32 %s151, %s152
        %s154 = smul.addr %s153, 4
        %s155 = scalar_lea.vmem %s0, %s154
        %s156 = smul.u32 8, %s16
      $region28: #{wavemix_forward.9} parent=23 // pred_fallthru
        _
    $region24: #{wavemix_forward.9} parent=5 // pred_fallthru
      _
    %p157 = scmp.le.s32.totalorder 1, %s9
    %p158 = scmp.lt.s32.totalorder %s9, 3
    %p159 = pnand %p157, %p158
    %p160 = pneg %p159
    // Predicated region
    $region29: #{wavemix_forward.9} parent=5 // pred_check
      _
    $region30: #{wavemix_forward.9} parent=5 // pred_check_branch
      %162 = sbr.rel (%p159) target = $region32
    $region31: #{wavemix_forward.9} parent=5 // pred_region
      %s163 = ssub.s32 %s9, 1
      %s164 = smul.u32 8, %s18
      %p165 = scmp.lt.s32.totalorder %s19, 1
      %s166 = scalar_select %p165, %s19, 1
      %p167 = scmp.lt.s32.totalorder %s164, 7
      %s168 = scalar_select %p167, %s164, 7
      %s169 = smul.addr %s166, 8
      %s170 = sadd.s32 %s168, %s169
      %s171 = smul.addr %s170, 4
      %s172 = scalar_lea.vmem %s0, %s171
      %p173 = pneg %p49
      %p174 = pneg %p46
      %p175 = pneg %p70
      %p176 = pneg %p67
      %p177 = pneg %p91
      %p178 = pneg %p88
      %p179 = pneg %p119
      %p180 = pneg %p116
      %s181 = smul.u32 8, %s18
      %p182 = scmp.lt.s32.totalorder %s19, 1
      %s183 = scalar_select %p182, %s19, 1
      %p184 = scmp.lt.s32.totalorder %s181, 7
      %s185 = scalar_select %p184, %s181, 7
      %s186 = smul.addr %s183, 8
      %s187 = sadd.s32 %s185, %s186
      %s188 = smul.addr %s187, 4
      %s189 = scalar_lea.vmem %s3, %s188
      %s190 = smul.u32 8, %s18
      %p191 = scmp.lt.s32.totalorder %s19, 1
      %s192 = scalar_select %p191, %s19, 1
      %p193 = scmp.lt.s32.totalorder %s190, 7
      %s194 = scalar_select %p193, %s190, 7
      %s195 = smul.addr %s192, 8
      %s196 = sadd.s32 %s194, %s195
      %s197 = smul.addr %s196, 4
      %s198 = scalar_lea.vmem %s0, %s197
      %s199 = smul.u32 8, %s18
      %s200 = smul.u32 8, %s18
      %p201 = scmp.lt.s32.totalorder %s19, 1
      %s202 = scalar_select %p201, %s19, 1
      %p203 = scmp.lt.s32.totalorder %s200, 7
      %s204 = scalar_select %p203, %s200, 7
      %s205 = smul.addr %s202, 8
      %s206 = sadd.s32 %s204, %s205
      %s207 = smul.addr %s206, 4
      %s208 = scalar_lea.vmem %s3, %s207
      %s209 = smul.u32 8, %s18
      %v211 = vld [vmem:[%s198] sm:$0xf]
      %v212 = vld [vmem:[%s198 + $0x4] sm:$0xf]
      %v213 = vld [vmem:[%s198 + $0x8] sm:$0xf]
      %v214 = vld [vmem:[%s198 + $0xc] sm:$0xf]
      %v215 = vld [vmem:[%s198 + $0x10] sm:$0xf]
      %v216 = vld [vmem:[%s198 + $0x14] sm:$0xf]
      %v217 = vld [vmem:[%s198 + $0x18] sm:$0xf]
      %v218 = vld [vmem:[%s198 + $0x1c] sm:$0xf]
      %v219 = vld [vmem:[%s1] sm:$0xf]
      %v220 = vld [vmem:[%s1 + $0x4] sm:$0xf]
      %v221 = vld [vmem:[%s1 + $0x8] sm:$0xf]
      %v222 = vld [vmem:[%s1 + $0xc] sm:$0xf]
      %v223 = vld [vmem:[%s1 + $0x10] sm:$0xf]
      %v224 = vld [vmem:[%s1 + $0x14] sm:$0xf]
      %v225 = vld [vmem:[%s1 + $0x18] sm:$0xf]
      %v226 = vld [vmem:[%s1 + $0x1c] sm:$0xf]
      %v227 = vld [vmem:[%s2] sm:$0x1]
      %v229 = vlaneseq
      %v230 = vshrl.u32 %v229, 7
      %v231 = vsub.s32 0, %v230
      %v232 = vrot.slane %v227, %v231
      %v242 = vunpack.c.l.b16 %v211
      %v243 = vunpack.c.l.b16 %v212
      %v244 = vunpack.c.l.b16 %v213
      %v245 = vunpack.c.l.b16 %v214
      %v246 = vunpack.c.l.b16 %v215
      %v247 = vunpack.c.l.b16 %v216
      %v248 = vunpack.c.l.b16 %v217
      %v249 = vunpack.c.l.b16 %v218
      %v250 = vpack.c.b16 %v243, %v242
      %v251 = vpack.c.b16 %v245, %v244
      %v252 = vpack.c.b16 %v247, %v246
      %v253 = vpack.c.b16 %v249, %v248
      %v262 = vunpack.c.l.b16 %v219
      %v263 = vunpack.c.l.b16 %v220
      %v264 = vunpack.c.l.b16 %v221
      %v265 = vunpack.c.l.b16 %v222
      %v266 = vunpack.c.l.b16 %v223
      %v267 = vunpack.c.l.b16 %v224
      %v268 = vunpack.c.l.b16 %v225
      %v269 = vunpack.c.l.b16 %v226
      %v270 = vpack.c.b16 %v263, %v262
      %v271 = vpack.c.b16 %v265, %v264
      %v272 = vpack.c.b16 %v267, %v266
      %v273 = vpack.c.b16 %v269, %v268
      %vm278 = vcmask 523264
      %v280 = vsel %vm278, %v250, 0
      %v283 = vsel %vm278, %v251, 0
      %v286 = vsel %vm278, %v252, 0
      %v289 = vsel %vm278, %v253, 0
      %291 = vmatprep.subr.bf16.mxu0 0
      %292 = vmatpush1.bf16.msra.mxu0 %v270
      %293 = vmatprep.subr.bf16.mxu0 0
      %294 = vmatpush1.bf16.msra.mxu0 %v271
      %295 = vmatprep.subr.bf16.mxu0 0
      %296 = vmatpush1.bf16.msra.mxu0 %v272
      %297 = vmatprep.subr.bf16.mxu0 0
      %298 = vmatpush1.bf16.msra.mxu0 %v273
      %299 = vmatprep.subr.bf16.mxu0 0
      %300 = vmatpush1.bf16.msra.mxu0 0
      %301 = vmatprep.subr.bf16.mxu0 0
      %302 = vmatpush1.bf16.msra.mxu0 0
      %303 = vmatprep.subr.bf16.mxu0 0
      %304 = vmatpush1.bf16.msra.mxu0 0
      %305 = vmatprep.subr.bf16.mxu0 0
      %306 = vmatpush1.bf16.msra.mxu0 0
      %307 = vmatprep.subr.bf16.mxu0 0
      %308 = vmatpush1.bf16.msra.mxu0 0
      %309 = vmatprep.subr.bf16.mxu0 0
      %310 = vmatpush1.bf16.msra.mxu0 0
      %311 = vmatprep.subr.bf16.mxu0 0
      %312 = vmatpush1.bf16.msra.mxu0 0
      %313 = vmatprep.subr.bf16.mxu0 0
      %314 = vmatpush1.bf16.msra.mxu0 0
      %315 = vmatprep.subr.bf16.mxu0 0
      %316 = vmatpush1.bf16.msra.mxu0 0
      %317 = vmatprep.subr.bf16.mxu0 0
      %318 = vmatpush1.bf16.msra.mxu0 0
      %319 = vmatprep.subr.bf16.mxu0 0
      %320 = vmatpush1.bf16.msra.mxu0 0
      %321 = vmatprep.subr.bf16.mxu0 0
      %322 = vmatpush1.bf16.msra.mxu0 0
      %323 = vmatprep.mubr.bf16.mxu0 0
      %324 = vmatmul.mubr.bf16.gmra.mrb[0].mxu0 %v280
      %v325 = vpop.f32.mrb[0].mxu0
      %v326 = vadd.f32 %v232, %v325
      %v327 = vpop.f32.mrb[0].mxu0
      %v328 = vpop.f32.mrb[0].mxu0
      %v329 = vadd.f32 %v232, %v328
      %v330 = vpop.f32.mrb[0].mxu0
      %331 = vmatprep.mubr.bf16.mxu0 0
      %332 = vmatmul.mubr.bf16.gmra.mrb[0].mxu0 %v283
      %v333 = vpop.f32.mrb[0].mxu0
      %v334 = vadd.f32 %v232, %v333
      %v335 = vpop.f32.mrb[0].mxu0
      %v336 = vpop.f32.mrb[0].mxu0
      %v337 = vadd.f32 %v232, %v336
      %v338 = vpop.f32.mrb[0].mxu0
      %339 = vmatprep.mubr.bf16.mxu0 0
      %340 = vmatmul.mubr.bf16.gmra.mrb[0].mxu0 %v286
      %v341 = vpop.f32.mrb[0].mxu0
      %v342 = vadd.f32 %v232, %v341
      %v343 = vpop.f32.mrb[0].mxu0
      %v344 = vpop.f32.mrb[0].mxu0
      %v345 = vadd.f32 %v232, %v344
      %v346 = vpop.f32.mrb[0].mxu0
      %347 = vmatprep.mubr.bf16.mxu0 0
      %348 = vmatmul.mubr.bf16.gmra.mrb[0].mxu0 %v289
      %v349 = vpop.f32.mrb[0].mxu0
      %v350 = vadd.f32 %v232, %v349
      %v351 = vpop.f32.mrb[0].mxu0
      %v352 = vpop.f32.mrb[0].mxu0
      %v353 = vadd.f32 %v232, %v352
      %v354 = vpop.f32.mrb[0].mxu0
      %355 = vdwg.mxu0
      %v356 = vmul.f32 %v326, 0.5
      %v357 = vmul.f32 %v329, 0.5
      %v358 = vmul.f32 %v334, 0.5
      %v359 = vmul.f32 %v337, 0.5
      %v360 = vmul.f32 %v342, 0.5
      %v361 = vmul.f32 %v345, 0.5
      %v362 = vmul.f32 %v350, 0.5
      %v363 = vmul.f32 %v353, 0.5
      %v364 = vmul.f32 %v326, %v326
      %v365 = vmul.f32 %v329, %v329
      %v366 = vmul.f32 %v334, %v334
      %v367 = vmul.f32 %v337, %v337
      %v368 = vmul.f32 %v342, %v342
      %v369 = vmul.f32 %v345, %v345
      %v370 = vmul.f32 %v350, %v350
      %v371 = vmul.f32 %v353, %v353
      %v372 = vmul.f32 %v364, %v326
      %v373 = vmul.f32 %v365, %v329
      %v374 = vmul.f32 %v366, %v334
      %v375 = vmul.f32 %v367, %v337
      %v376 = vmul.f32 %v368, %v342
      %v377 = vmul.f32 %v369, %v345
      %v378 = vmul.f32 %v370, %v350
      %v379 = vmul.f32 %v371, %v353
      %v380 = vmul.f32 %v372, 0.044715
      %v381 = vmul.f32 %v373, 0.044715
      %v382 = vmul.f32 %v374, 0.044715
      %v383 = vmul.f32 %v375, 0.044715
      %v384 = vmul.f32 %v376, 0.044715
      %v385 = vmul.f32 %v377, 0.044715
      %v386 = vmul.f32 %v378, 0.044715
      %v387 = vmul.f32 %v379, 0.044715
      %v388 = vadd.f32 %v326, %v380
      %v389 = vadd.f32 %v329, %v381
      %v390 = vadd.f32 %v334, %v382
      %v391 = vadd.f32 %v337, %v383
      %v392 = vadd.f32 %v342, %v384
      %v393 = vadd.f32 %v345, %v385
      %v394 = vadd.f32 %v350, %v386
      %v395 = vadd.f32 %v353, %v387
      %v396 = vmul.f32 %v388, 0.7978846
      %v397 = vmul.f32 %v389, 0.7978846
      %v398 = vmul.f32 %v390, 0.7978846
      %v399 = vmul.f32 %v391, 0.7978846
      %v400 = vmul.f32 %v392, 0.7978846
      %v401 = vmul.f32 %v393, 0.7978846
      %v402 = vmul.f32 %v394, 0.7978846
      %v403 = vmul.f32 %v395, 0.7978846
      %v404 = vtanh.pop %v396
      %v405 = vtanh.pop %v397
      %v406 = vtanh.pop %v398
      %v407 = vtanh.pop %v399
      %v408 = vtanh.pop %v400
      %v409 = vtanh.pop %v401
      %v410 = vtanh.pop %v402
      %v411 = vtanh.pop %v403
      %v412 = vadd.f32 %v404, 1.0
      %v413 = vadd.f32 %v405, 1.0
      %v414 = vadd.f32 %v406, 1.0
      %v415 = vadd.f32 %v407, 1.0
      %v416 = vadd.f32 %v408, 1.0
      %v417 = vadd.f32 %v409, 1.0
      %v418 = vadd.f32 %v410, 1.0
      %v419 = vadd.f32 %v411, 1.0
      %v420 = vmul.f32 %v356, %v412
      %v421 = vmul.f32 %v357, %v413
      %v422 = vmul.f32 %v358, %v414
      %v423 = vmul.f32 %v359, %v415
      %v424 = vmul.f32 %v360, %v416
      %v425 = vmul.f32 %v361, %v417
      %v426 = vmul.f32 %v362, %v418
      %v427 = vmul.f32 %v363, %v419
      %v428 = vpack.c.bf16 %v420, %v420
      %v429 = vpack.c.bf16 %v421, %v421
      %v430 = vpack.c.bf16 %v422, %v422
      %v431 = vpack.c.bf16 %v423, %v423
      %v432 = vpack.c.bf16 %v424, %v424
      %v433 = vpack.c.bf16 %v425, %v425
      %v434 = vpack.c.bf16 %v426, %v426
      %v435 = vpack.c.bf16 %v427, %v427
      %vm436 = vcmask 257024
      %437 = vst.msk [vmem:[%s208] sm:$0xf] %vm436, %v428
      %438 = vst.msk [vmem:[%s208 + $0x4] sm:$0xf] %vm436, %v429
      %439 = vst.msk [vmem:[%s208 + $0x8] sm:$0xf] %vm436, %v430
      %440 = vst.msk [vmem:[%s208 + $0xc] sm:$0xf] %vm436, %v431
      %441 = vst.msk [vmem:[%s208 + $0x10] sm:$0xf] %vm436, %v432
      %442 = vst.msk [vmem:[%s208 + $0x14] sm:$0xf] %vm436, %v433
      %443 = vst.msk [vmem:[%s208 + $0x18] sm:$0xf] %vm436, %v434
      %444 = vst.msk [vmem:[%s208 + $0x1c] sm:$0xf] %vm436, %v435
      %s445 = smul.u32 8, %s18
      %p446 = scmp.lt.s32.totalorder %s19, 1
      %s447 = scalar_select %p446, %s19, 1
      %p448 = scmp.lt.s32.totalorder %s445, 7
      %s449 = scalar_select %p448, %s445, 7
      %s450 = smul.addr %s447, 8
      %s451 = sadd.s32 %s449, %s450
      %s452 = smul.addr %s451, 4
      %s453 = scalar_lea.vmem %s3, %s452
      // Predicated region
      $region33: #{wavemix_forward.9} parent=31 // pred_check
        %p454 = pneg %p116
      $region34: #{wavemix_forward.9} parent=31 // pred_check_branch
        %456 = sbr.rel (%p454) target = $region36
      $region35: #{wavemix_forward.9} parent=31 // pred_region
        %s457 = smul.u32 8, %s18
      $region36: #{wavemix_forward.9} parent=31 // pred_fallthru
        _
    $region32: #{wavemix_forward.9} parent=5 // pred_fallthru
      _
    %p458 = scmp.le.s32.totalorder 2, %s9
    // Predicated region
    $region37: #{wavemix_forward.9} parent=5 // pred_check
      %p459 = pneg %p458
    $region38: #{wavemix_forward.9} parent=5 // pred_check_branch
      %461 = sbr.rel (%p459) target = $region40
    $region39: #{wavemix_forward.9} parent=5 // pred_region
      %s462 = ssub.s32 %s9, 2
      // Predicated region
      $region41: #{wavemix_forward.9} parent=39 // pred_check
        %p463 = pneg %p122
      $region42: #{wavemix_forward.9} parent=39 // pred_check_branch
        %465 = sbr.rel (%p463) target = $region44
      $region43: #{wavemix_forward.9} parent=39 // pred_region
        %s466 = smul.u32 8, %s20
        %p467 = scmp.lt.s32.totalorder %s21, 1
        %s468 = scalar_select %p467, %s21, 1
        %p469 = scmp.lt.s32.totalorder %s466, 7
        %s470 = scalar_select %p469, %s466, 7
        %s471 = smul.addr %s468, 8
        %s472 = sadd.s32 %s470, %s471
        %s473 = smul.addr %s472, 4
        %s474 = scalar_lea.vmem %s3, %s473
      $region44: #{wavemix_forward.9} parent=39 // pred_fallthru
        _
    $region40: #{wavemix_forward.9} parent=5 // pred_fallthru
      _
  $region6: #{wavemix_forward.9} parent=0 // loop_footer
    %s13 = sadd.s32 1, %s9
  $region7: #{wavemix_forward.9} parent=0 // loop_footer_branch
    %8 = sbr.rel target = $region3
  $region8: #{wavemix_forward.9} parent=0 // loop_exit
    _

// kernel: wavemix_forward.10
$region0: #{wavemix_forward.10}
  #allocation0 [shape = 'u32[]', space=smem, size = 0x4, offset = 0x4, fixed_abs, tag = 'smem constant byte address 0x4 - core index']
  #allocation1 [shape = 'u32[144,128]{1,0:T(1,128)}', space=vmem, size = 0x12000, scoped, tag = 'internal scratch']
  %s0 = inlined_call_operand.vmem [shape: bf16[2,8,8,32], index: 0, kind: input, shape index: {}, may-alias: {0,1,2}]
  %s1 = inlined_call_operand.vmem [shape: bf16[2,8,8,32], index: 1, kind: input, shape index: {}, may-alias: {0,1,2}]
  %s2 = inlined_call_operand.vmem [shape: bf16[2,8,8,32], index: 2, kind: input, shape index: {}, may-alias: {0,1,2}]
  %s3 = inlined_call_operand.vmem [shape: bf16[4,2,2,32,16], index: 3, kind: input, shape index: {}]
  %s4 = inlined_call_operand.vmem [shape: f32[1,64], index: 4, kind: input, shape index: {}]
  %s5 = inlined_call_operand.vmem [shape: bf16[2,8,8,64], index: 5, kind: input, shape index: {}]
  %s6 = inlined_call_operand.vmem [shape: bf16[2,8,8,64], index: 6, kind: output, shape index: {}]
  %s7 = sld [smem:[#allocation0]]
  $region57: #{wavemix_forward.10} parent=0
    _
  %s9 = ssub.s32 1, %s7
  %s10 = scalar_select 0, %s9, %s7
  loop: start=0, step=1, limit=4
  $region2: #{wavemix_forward.10} parent=0 // loop_pre_header
    _
  $region3: #{wavemix_forward.10} parent=0 // loop_header
    %s12 = sphi 0, %s16
    %p13 = scmp.ge.s32.totalorder %s12, 4
    %s19 = sphi 0, %s31
    %s20 = sphi 0, %s27
    %s21 = sphi 0, %s19
    %s22 = sphi 0, %s20
    %s23 = sphi 0, %s21
    %s24 = sphi 0, %s22
    %s36 = sphi 0, %s38
    %s39 = sphi 0, %s36
    %s40 = sphi 0, %s39
    %s56 = sphi 0, %s40
    %s72 = sphi 0, %s74
    %s75 = sphi 0, %s72
    %s76 = sphi 0, %s75
    %s92 = sphi 0, %s76
    %s108 = sphi 0, %s110
    %s111 = sphi 0, %s108
    %s112 = sphi 0, %s111
    %s128 = sphi 0, %s112
    %s132 = sphi 0, %s132
    %s134 = sphi 0, %s132
    %s135 = sphi 0, %s134
    %s149 = sphi 0, %s135
    %s153 = sphi 0, %s153
    %s155 = sphi 0, %s153
    %s156 = sphi 0, %s155
    %s170 = sphi 0, %s156
    %s178 = sphi 0, %s180
    %s181 = sphi 0, %s178
    %s182 = sphi 0, %s181
    %s198 = sphi 0, %s182
    %s206 = sphi 0, %s208
    %s209 = sphi 0, %s206
    %s210 = sphi 0, %s209
    %s226 = sphi 0, %s210
  $region4: #{wavemix_forward.10} parent=0 // loop_header_branch
    %15 = sbr.rel (%p13) target = $region8
  $region5: #{wavemix_forward.10} parent=0 // loop_body
    %s17 = ssub.s32 %s12, 1
    %s18 = ssub.s32 %s12, 2
    %s25 = sadd.s32 1, %s20
    %p26 = scmp.ge.s32.totalorder %s25, 2
    %s27 = scalar_select %p26, 0, %s25
    %s28 = sadd.s32 1, %s19
    %s29 = scalar_select %p26, %s28, %s19
    %p30 = scmp.ge.s32.totalorder %s29, 1
    %s31 = scalar_select %p30, 0, %s29
    %s32 = ssub.s32 %s20, %s27
    %s33 = ssub.s32 %s19, %s31
    %s34 = sor.u32 %s32, %s33
    %p35 = scmp.eq.s32.totalorder %s34, 0
    %s37 = sadd.s32 %s36, 1
    %s38 = scalar_select %p35, %s36, %s37
    %p41 = pneg %p35
    %p42 = scmp.eq.s32.totalorder %s12, 1
    %p43 = por %p41, %p42
    %p44 = scmp.ne.s32.totalorder %s36, %s39
    %p45 = scmp.eq.s32.totalorder %s12, 0
    %p46 = por %p44, %p45
    %p47 = scmp.ne.s32.totalorder %s36, %s39
    %p48 = scmp.eq.s32.totalorder %s17, 1
    %p49 = por %p47, %p48
    %p50 = scmp.ne.s32.totalorder %s39, %s40
    %p51 = scmp.eq.s32.totalorder %s17, 0
    %p52 = por %p50, %p51
    %p53 = scmp.ne.s32.totalorder %s39, %s40
    %p54 = scmp.eq.s32.totalorder %s18, 1
    %p55 = por %p53, %p54
    %p57 = scmp.ne.s32.totalorder %s40, %s56
    %p58 = scmp.eq.s32.totalorder %s18, 0
    %p59 = por %p57, %p58
    %s60 = smul.u32 %s19, 8
    %s61 = ssub.s32 %s60, 1
    %p62 = scmp.gt.s32.totalorder %s61, 0
    %s63 = scalar_select %p62, %s61, 0
    %s64 = smul.u32 %s31, 8
    %s65 = ssub.s32 %s64, 1
    %p66 = scmp.gt.s32.totalorder %s65, 0
    %s67 = scalar_select %p66, %s65, 0
    %s68 = ssub.s32 %s20, %s27
    %s69 = ssub.s32 %s63, %s67
    %s70 = sor.u32 %s68, %s69
    %p71 = scmp.eq.s32.totalorder %s70, 0
    %s73 = sadd.s32 %s72, 1
    %s74 = scalar_select %p71, %s72, %s73
    %p77 = pneg %p71
    %p78 = scmp.eq.s32.totalorder %s12, 1
    %p79 = por %p77, %p78
    %p80 = scmp.ne.s32.totalorder %s72, %s75
    %p81 = scmp.eq.s32.totalorder %s12, 0
    %p82 = por %p80, %p81
    %p83 = scmp.ne.s32.totalorder %s72, %s75
    %p84 = scmp.eq.s32.totalorder %s17, 1
    %p85 = por %p83, %p84
    %p86 = scmp.ne.s32.totalorder %s75, %s76
    %p87 = scmp.eq.s32.totalorder %s17, 0
    %p88 = por %p86, %p87
    %p89 = scmp.ne.s32.totalorder %s75, %s76
    %p90 = scmp.eq.s32.totalorder %s18, 1
    %p91 = por %p89, %p90
    %p93 = scmp.ne.s32.totalorder %s76, %s92
    %p94 = scmp.eq.s32.totalorder %s18, 0
    %p95 = por %p93, %p94
    %s96 = smul.u32 %s19, 8
    %s97 = sadd.s32 %s96, 8
    %p98 = scmp.lt.s32.totalorder %s97, 7
    %s99 = scalar_select %p98, %s97, 7
    %s100 = smul.u32 %s31, 8
    %s101 = sadd.s32 %s100, 8
    %p102 = scmp.lt.s32.totalorder %s101, 7
    %s103 = scalar_select %p102, %s101, 7
    %s104 = ssub.s32 %s20, %s27
    %s105 = ssub.s32 %s99, %s103
    %s106 = sor.u32 %s104, %s105
    %p107 = scmp.eq.s32.totalorder %s106, 0
    %s109 = sadd.s32 %s108, 1
    %s110 = scalar_select %p107, %s108, %s109
    %p113 = pneg %p107
    %p114 = scmp.eq.s32.totalorder %s12, 1
    %p115 = por %p113, %p114
    %p116 = scmp.ne.s32.totalorder %s108, %s111
    %p117 = scmp.eq.s32.totalorder %s12, 0
    %p118 = por %p116, %p117
    %p119 = scmp.ne.s32.totalorder %s108, %s111
    %p120 = scmp.eq.s32.totalorder %s17, 1
    %p121 = por %p119, %p120
    %p122 = scmp.ne.s32.totalorder %s111, %s112
    %p123 = scmp.eq.s32.totalorder %s17, 0
    %p124 = por %p122, %p123
    %p125 = scmp.ne.s32.totalorder %s111, %s112
    %p126 = scmp.eq.s32.totalorder %s18, 1
    %p127 = por %p125, %p126
    %p129 = scmp.ne.s32.totalorder %s112, %s128
    %p130 = scmp.eq.s32.totalorder %s18, 0
    %p131 = por %p129, %p130
    %s133 = sadd.s32 %s132, 1
    %p136 = scmp.eq.s32.totalorder %s12, 1
    %p137 = scmp.ne.s32.totalorder %s132, %s134
    %p138 = scmp.eq.s32.totalorder %s12, 0
    %p139 = por %p137, %p138
    %p140 = scmp.ne.s32.totalorder %s132, %s134
    %p141 = scmp.eq.s32.totalorder %s17, 1
    %p142 = por %p140, %p141
    %p143 = scmp.ne.s32.totalorder %s134, %s135
    %p144 = scmp.eq.s32.totalorder %s17, 0
    %p145 = por %p143, %p144
    %p146 = scmp.ne.s32.totalorder %s134, %s135
    %p147 = scmp.eq.s32.totalorder %s18, 1
    %p148 = por %p146, %p147
    %p150 = scmp.ne.s32.totalorder %s135, %s149
    %p151 = scmp.eq.s32.totalorder %s18, 0
    %p152 = por %p150, %p151
    %s154 = sadd.s32 %s153, 1
    %p157 = scmp.eq.s32.totalorder %s12, 1
    %p158 = scmp.ne.s32.totalorder %s153, %s155
    %p159 = scmp.eq.s32.totalorder %s12, 0
    %p160 = por %p158, %p159
    %p161 = scmp.ne.s32.totalorder %s153, %s155
    %p162 = scmp.eq.s32.totalorder %s17, 1
    %p163 = por %p161, %p162
    %p164 = scmp.ne.s32.totalorder %s155, %s156
    %p165 = scmp.eq.s32.totalorder %s17, 0
    %p166 = por %p164, %p165
    %p167 = scmp.ne.s32.totalorder %s155, %s156
    %p168 = scmp.eq.s32.totalorder %s18, 1
    %p169 = por %p167, %p168
    %p171 = scmp.ne.s32.totalorder %s156, %s170
    %p172 = scmp.eq.s32.totalorder %s18, 0
    %p173 = por %p171, %p172
    %s174 = ssub.s32 %s20, %s27
    %s175 = ssub.s32 %s19, %s31
    %s176 = sor.u32 %s174, %s175
    %p177 = scmp.eq.s32.totalorder %s176, 0
    %s179 = sadd.s32 %s178, 1
    %s180 = scalar_select %p177, %s178, %s179
    %p183 = pneg %p177
    %p184 = scmp.eq.s32.totalorder %s12, 1
    %p185 = por %p183, %p184
    %p186 = scmp.ne.s32.totalorder %s178, %s181
    %p187 = scmp.eq.s32.totalorder %s12, 0
    %p188 = por %p186, %p187
    %p189 = scmp.ne.s32.totalorder %s178, %s181
    %p190 = scmp.eq.s32.totalorder %s17, 1
    %p191 = por %p189, %p190
    %p192 = scmp.ne.s32.totalorder %s181, %s182
    %p193 = scmp.eq.s32.totalorder %s17, 0
    %p194 = por %p192, %p193
    %p195 = scmp.ne.s32.totalorder %s181, %s182
    %p196 = scmp.eq.s32.totalorder %s18, 1
    %p197 = por %p195, %p196
    %p199 = scmp.ne.s32.totalorder %s182, %s198
    %p200 = scmp.eq.s32.totalorder %s18, 0
    %p201 = por %p199, %p200
    %s202 = ssub.s32 %s20, %s27
    %s203 = ssub.s32 %s19, %s31
    %s204 = sor.u32 %s202, %s203
    %p205 = scmp.eq.s32.totalorder %s204, 0
    %s207 = sadd.s32 %s206, 1
    %s208 = scalar_select %p205, %s206, %s207
    %p211 = pneg %p205
    %p212 = scmp.eq.s32.totalorder %s12, 1
    %p213 = por %p211, %p212
    %p214 = scmp.ne.s32.totalorder %s206, %s209
    %p215 = scmp.eq.s32.totalorder %s12, 0
    %p216 = por %p214, %p215
    %p217 = scmp.ne.s32.totalorder %s206, %s209
    %p218 = scmp.eq.s32.totalorder %s17, 1
    %p219 = por %p217, %p218
    %p220 = scmp.ne.s32.totalorder %s209, %s210
    %p221 = scmp.eq.s32.totalorder %s17, 0
    %p222 = por %p220, %p221
    %p223 = scmp.ne.s32.totalorder %s209, %s210
    %p224 = scmp.eq.s32.totalorder %s18, 1
    %p225 = por %p223, %p224
    %p227 = scmp.ne.s32.totalorder %s210, %s226
    %p228 = scmp.eq.s32.totalorder %s18, 0
    %p229 = por %p227, %p228
    %p230 = scmp.le.s32.totalorder 1, %s12
    %p231 = scmp.lt.s32.totalorder %s12, 3
    %p232 = pnand %p230, %p231
    %p233 = pneg %p232
    // Predicated region
    $region9: #{wavemix_forward.10} parent=5 // pred_check
      _
    $region10: #{wavemix_forward.10} parent=5 // pred_check_branch
      %235 = sbr.rel (%p232) target = $region12
    $region11: #{wavemix_forward.10} parent=5 // pred_region
      %s236 = ssub.s32 %s12, 1
      // Predicated region
      $region13: #{wavemix_forward.10} parent=11 // pred_check
        %p237 = pneg %p145
      $region14: #{wavemix_forward.10} parent=11 // pred_check_branch
        %239 = sbr.rel (%p237) target = $region16
      $region15: #{wavemix_forward.10} parent=11 // pred_region
        _
      $region16: #{wavemix_forward.10} parent=11 // pred_fallthru
        _
      // Predicated region
      $region17: #{wavemix_forward.10} parent=11 // pred_check
        %p240 = pneg %p166
      $region18: #{wavemix_forward.10} parent=11 // pred_check_branch
        %242 = sbr.rel (%p240) target = $region20
      $region19: #{wavemix_forward.10} parent=11 // pred_region
        _
      $region20: #{wavemix_forward.10} parent=11 // pred_fallthru
        _
    $region12: #{wavemix_forward.10} parent=5 // pred_fallthru
      _
    %p243 = scmp.lt.s32.totalorder %s12, 2
    // Predicated region
    $region21: #{wavemix_forward.10} parent=5 // pred_check
      %p244 = pneg %p243
    $region22: #{wavemix_forward.10} parent=5 // pred_check_branch
      %246 = sbr.rel (%p244) target = $region24
    $region23: #{wavemix_forward.10} parent=5 // pred_region
      // Predicated region
      $region25: #{wavemix_forward.10} parent=23 // pred_check
        %p247 = pneg %p46
      $region26: #{wavemix_forward.10} parent=23 // pred_check_branch
        %249 = sbr.rel (%p247) target = $region28
      $region27: #{wavemix_forward.10} parent=23 // pred_region
        %s250 = smul.u32 8, %s19
        %p251 = scmp.lt.s32.totalorder %s20, 1
        %s252 = scalar_select %p251, %s20, 1
        %p253 = scmp.lt.s32.totalorder %s250, 7
        %s254 = scalar_select %p253, %s250, 7
        %s255 = smul.addr %s252, 8
        %s256 = sadd.s32 %s254, %s255
        %s257 = smul.addr %s256, 4
        %s258 = scalar_lea.vmem %s0, %s257
        %s259 = smul.u32 8, %s19
      $region28: #{wavemix_forward.10} parent=23 // pred_fallthru
        _
      // Predicated region
      $region29: #{wavemix_forward.10} parent=23 // pred_check
        %p260 = pneg %p82
      $region30: #{wavemix_forward.10} parent=23 // pred_check_branch
        %262 = sbr.rel (%p260) target = $region32
      $region31: #{wavemix_forward.10} parent=23 // pred_region
        %s263 = smul.u32 %s19, 8
        %s264 = ssub.s32 %s263, 1
        %p265 = scmp.gt.s32.totalorder %s264, 0
        %s266 = scalar_select %p265, %s264, 0
        %p267 = scmp.lt.s32.totalorder %s20, 1
        %s268 = scalar_select %p267, %s20, 1
        %p269 = scmp.lt.s32.totalorder %s266, 7
        %s270 = scalar_select %p269, %s266, 7
        %s271 = smul.addr %s268, 8
        %s272 = sadd.s32 %s270, %s271
        %s273 = smul.addr %s272, 4
        %s274 = scalar_lea.vmem %s1, %s273
        %s275 = smul.u32 %s19, 8
        %s276 = ssub.s32 %s275, 1
        %p277 = scmp.gt.s32.totalorder %s276, 0
        %s278 = scalar_select %p277, %s276, 0
      $region32: #{wavemix_forward.10} parent=23 // pred_fallthru
        _
      // Predicated region
      $region33: #{wavemix_forward.10} parent=23 // pred_check
        %p279 = pneg %p118
      $region34: #{wavemix_forward.10} parent=23 // pred_check_branch
        %281 = sbr.rel (%p279) target = $region36
      $region35: #{wavemix_forward.10} parent=23 // pred_region
        %s282 = smul.u32 %s19, 8
        %s283 = sadd.s32 %s282, 8
        %p284 = scmp.lt.s32.totalorder %s283, 7
        %s285 = scalar_select %p284, %s283, 7
        %p286 = scmp.lt.s32.totalorder %s20, 1
        %s287 = scalar_select %p286, %s20, 1
        %p288 = scmp.lt.s32.totalorder %s285, 7
        %s289 = scalar_select %p288, %s285, 7
        %s290 = smul.addr %s287, 8
        %s291 = sadd.s32 %s289, %s290
        %s292 = smul.addr %s291, 4
        %s293 = scalar_lea.vmem %s2, %s292
        %s294 = smul.u32 %s19, 8
        %s295 = sadd.s32 %s294, 8
        %p296 = scmp.lt.s32.totalorder %s295, 7
        %s297 = scalar_select %p296, %s295, 7
      $region36: #{wavemix_forward.10} parent=23 // pred_fallthru
        _
      // Predicated region
      $region37: #{wavemix_forward.10} parent=23 // pred_check
        %p298 = pneg %p188
      $region38: #{wavemix_forward.10} parent=23 // pred_check_branch
        %300 = sbr.rel (%p298) target = $region40
      $region39: #{wavemix_forward.10} parent=23 // pred_region
        %s301 = smul.u32 8, %s19
        %p302 = scmp.lt.s32.totalorder %s20, 1
        %s303 = scalar_select %p302, %s20, 1
        %p304 = scmp.lt.s32.totalorder %s301, 7
        %s305 = scalar_select %p304, %s301, 7
        %s306 = smul.addr %s303, 8
        %s307 = sadd.s32 %s305, %s306
        %s308 = smul.addr %s307, 4
        %s309 = scalar_lea.vmem %s5, %s308
        %s310 = smul.u32 8, %s19
      $region40: #{wavemix_forward.10} parent=23 // pred_fallthru
        _
    $region24: #{wavemix_forward.10} parent=5 // pred_fallthru
      _
    %p311 = scmp.le.s32.totalorder 1, %s12
    %p312 = scmp.lt.s32.totalorder %s12, 3
    %p313 = pnand %p311, %p312
    %p314 = pneg %p313
    // Predicated region
    $region41: #{wavemix_forward.10} parent=5 // pred_check
      _
    $region42: #{wavemix_forward.10} parent=5 // pred_check_branch
      %316 = sbr.rel (%p313) target = $region44
    $region43: #{wavemix_forward.10} parent=5 // pred_region
      %s317 = ssub.s32 %s12, 1
      %s318 = smul.u32 8, %s21
      %p319 = scmp.lt.s32.totalorder %s22, 1
      %s320 = scalar_select %p319, %s22, 1
      %p321 = scmp.lt.s32.totalorder %s318, 7
      %s322 = scalar_select %p321, %s318, 7
      %s323 = smul.addr %s320, 8
      %s324 = sadd.s32 %s322, %s323
      %s325 = smul.addr %s324, 4
      %s326 = scalar_lea.vmem %s0, %s325
      %p327 = pneg %p52
      %p328 = pneg %p49
      %s329 = smul.u32 %s21, 8
      %s330 = ssub.s32 %s329, 1
      %p331 = scmp.gt.s32.totalorder %s330, 0
      %s332 = scalar_select %p331, %s330, 0
      %p333 = scmp.lt.s32.totalorder %s22, 1
      %s334 = scalar_select %p333, %s22, 1
      %p335 = scmp.lt.s32.totalorder %s332, 7
      %s336 = scalar_select %p335, %s332, 7
      %s337 = smul.addr %s334, 8
      %s338 = sadd.s32 %s336, %s337
      %s339 = smul.addr %s338, 4
      %s340 = scalar_lea.vmem %s1, %s339
      %p341 = pneg %p88
      %p342 = pneg %p85
      %s343 = smul.u32 %s21, 8
      %s344 = sadd.s32 %s343, 8
      %p345 = scmp.lt.s32.totalorder %s344, 7
      %s346 = scalar_select %p345, %s344, 7
      %p347 = scmp.lt.s32.totalorder %s22, 1
      %s348 = scalar_select %p347, %s22, 1
      %p349 = scmp.lt.s32.totalorder %s346, 7
      %s350 = scalar_select %p349, %s346, 7
      %s351 = smul.addr %s348, 8
      %s352 = sadd.s32 %s350, %s351
      %s353 = smul.addr %s352, 4
      %s354 = scalar_lea.vmem %s2, %s353
      %p355 = pneg %p124
      %p356 = pneg %p121
      %p357 = pneg %p145
      %p358 = pneg %p142
      %p359 = pneg %p166
      %p360 = pneg %p163
      %s361 = smul.u32 8, %s21
      %p362 = scmp.lt.s32.totalorder %s22, 1
      %s363 = scalar_select %p362, %s22, 1
      %p364 = scmp.lt.s32.totalorder %s361, 7
      %s365 = scalar_select %p364, %s361, 7
      %s366 = smul.addr %s363, 8
      %s367 = sadd.s32 %s365, %s366
      %s368 = smul.addr %s367, 4
      %s369 = scalar_lea.vmem %s5, %s368
      %p370 = pneg %p194
      %p371 = pneg %p191
      %p372 = pneg %p222
      %p373 = pneg %p219
      %s374 = smul.u32 8, %s21
      %p375 = scmp.lt.s32.totalorder %s22, 1
      %s376 = scalar_select %p375, %s22, 1
      %p377 = scmp.lt.s32.totalorder %s374, 7
      %s378 = scalar_select %p377, %s374, 7
      %s379 = smul.addr %s376, 8
      %s380 = sadd.s32 %s378, %s379
      %s381 = smul.addr %s380, 4
      %s382 = scalar_lea.vmem %s6, %s381
      %s383 = smul.u32 8, %s21
      %p384 = scmp.lt.s32.totalorder %s22, 1
      %s385 = scalar_select %p384, %s22, 1
      %p386 = scmp.lt.s32.totalorder %s383, 7
      %s387 = scalar_select %p386, %s383, 7
      %s388 = smul.addr %s385, 8
      %s389 = sadd.s32 %s387, %s388
      %s390 = smul.addr %s389, 4
      %s391 = scalar_lea.vmem %s0, %s390
      %s392 = smul.u32 8, %s21
      %s393 = smul.u32 %s21, 8
      %s394 = ssub.s32 %s393, 1
      %p395 = scmp.gt.s32.totalorder %s394, 0
      %s396 = scalar_select %p395, %s394, 0
      %p397 = scmp.lt.s32.totalorder %s22, 1
      %s398 = scalar_select %p397, %s22, 1
      %p399 = scmp.lt.s32.totalorder %s396, 7
      %s400 = scalar_select %p399, %s396, 7
      %s401 = smul.addr %s398, 8
      %s402 = sadd.s32 %s400, %s401
      %s403 = smul.addr %s402, 4
      %s404 = scalar_lea.vmem %s1, %s403
      %s405 = smul.u32 %s21, 8
      %s406 = ssub.s32 %s405, 1
      %p407 = scmp.gt.s32.totalorder %s406, 0
      %s408 = scalar_select %p407, %s406, 0
      %s409 = smul.u32 %s21, 8
      %s410 = sadd.s32 %s409, 8
      %p411 = scmp.lt.s32.totalorder %s410, 7
      %s412 = scalar_select %p411, %s410, 7
      %p413 = scmp.lt.s32.totalorder %s22, 1
      %s414 = scalar_select %p413, %s22, 1
      %p415 = scmp.lt.s32.totalorder %s412, 7
      %s416 = scalar_select %p415, %s412, 7
      %s417 = smul.addr %s414, 8
      %s418 = sadd.s32 %s416, %s417
      %s419 = smul.addr %s418, 4
      %s420 = scalar_lea.vmem %s2, %s419
      %s421 = smul.u32 %s21, 8
      %s422 = sadd.s32 %s421, 8
      %p423 = scmp.lt.s32.totalorder %s422, 7
      %s424 = scalar_select %p423, %s422, 7
      %s425 = smul.u32 8, %s21
      %p426 = scmp.lt.s32.totalorder %s22, 1
      %s427 = scalar_select %p426, %s22, 1
      %p428 = scmp.lt.s32.totalorder %s425, 7
      %s429 = scalar_select %p428, %s425, 7
      %s430 = smul.addr %s427, 8
      %s431 = sadd.s32 %s429, %s430
      %s432 = smul.addr %s431, 4
      %s433 = scalar_lea.vmem %s5, %s432
      %s434 = smul.u32 8, %s21
      %s435 = smul.u32 8, %s21
      %p436 = scmp.lt.s32.totalorder %s22, 1
      %s437 = scalar_select %p436, %s22, 1
      %p438 = scmp.lt.s32.totalorder %s435, 7
      %s439 = scalar_select %p438, %s435, 7
      %s440 = smul.addr %s437, 8
      %s441 = sadd.s32 %s439, %s440
      %s442 = smul.addr %s441, 4
      %s443 = scalar_lea.vmem %s6, %s442
      %s444 = smul.u32 8, %s21
      %p446 = scmp.gt.s32.totalorder %s21, 0
      %v447 = vld [vmem:[%s404] sm:$0xf]
      %s448 = scalar_select %p446, 1.0, 0.0
      %p450 = scmp.ne.f32.partialorder %s448, %s448
      %s451 = sshrl.u32 %s448, 16
      %s452 = sand.u32 %s451, 1
      %s453 = sadd.s32 32767, %s452
      %s454 = sadd.s32 %s448, %s453
      %s455 = sand.u32 %s454, 4294901760
      %s456 = scalar_select %p450, 2143289344, %s455
      %s458 = sshrl.u32 %s456, 16
      %s459 = sshll.u32 %s458, 16
      %s460 = sor.u32 %s458, %s459
      %v461 = vstv %s460
      %v463 = vmul.bf16 %v447, %v461
      %p464 = scmp.lt.s32.totalorder %s21, 0
      %v465 = vld [vmem:[%s420] sm:$0xf]
      %s466 = scalar_select %p464, 1.0, 0.0
      %p468 = scmp.ne.f32.partialorder %s466, %s466
      %s469 = sshrl.u32 %s466, 16
      %s470 = sand.u32 %s469, 1
      %s471 = sadd.s32 32767, %s470
      %s472 = sadd.s32 %s466, %s471
      %s473 = sand.u32 %s472, 4294901760
      %s474 = scalar_select %p468, 2143289344, %s473
      %s476 = sshrl.u32 %s474, 16
      %s477 = sshll.u32 %s476, 16
      %s478 = sor.u32 %s476, %s477
      %v479 = vstv %s478
      %v481 = vmul.bf16 %v465, %v479
      %v482 = vld [vmem:[%s391] sm:$0xf]
      %v483 = vld [vmem:[%s391 + $0x4] sm:$0xf]
      %v484 = vld [vmem:[%s391 + $0x8] sm:$0xf]
      %v485 = vld [vmem:[%s391 + $0xc] sm:$0xf]
      %v486 = vld [vmem:[%s391 + $0x10] sm:$0xf]
      %v487 = vld [vmem:[%s391 + $0x14] sm:$0xf]
      %v488 = vld [vmem:[%s391 + $0x18] sm:$0xf]
      %v489 = vld [vmem:[%s391 + $0x1c] sm:$0xf]
      %v500 = vunpack.c.l.b16 %v463
      %v501 = vunpack.c.l.b16 %v482
      %v502 = vunpack.c.l.b16 %v483
      %v503 = vunpack.c.l.b16 %v484
      %v504 = vunpack.c.l.b16 %v485
      %v505 = vunpack.c.l.b16 %v486
      %v506 = vunpack.c.l.b16 %v487
      %v507 = vunpack.c.l.b16 %v488
      %v508 = vunpack.c.l.b16 %v489
      %v509 = vunpack.c.l.b16 %v481
      %v510 = vpack.c.b16 %v500, %v500
      %v511 = vpack.c.b16 %v501, %v501
      %v512 = vpack.c.b16 %v502, %v502
      %v513 = vpack.c.b16 %v503, %v503
      %v514 = vpack.c.b16 %v504, %v504
      %v515 = vpack.c.b16 %v505, %v505
      %v516 = vpack.c.b16 %v506, %v506
      %v517 = vpack.c.b16 %v507, %v507
      %v518 = vpack.c.b16 %v508, %v508
      %v519 = vpack.c.b16 %v509, %v509
      %v521 = vshrl.u32 %v510, 16
      %v523 = vrot.slane %v521, 7
      %v524 = vshll.u32 %v510, 16
      %v526 = vor.u32 %v523, %v524
      %v528 = vshrl.u32 %v511, 16
      %v530 = vrot.slane %v528, 7
      %v531 = vshll.u32 %v511, 16
      %v533 = vor.u32 %v530, %v531
      %v535 = vshrl.u32 %v512, 16
      %v537 = vrot.slane %v535, 7
      %v538 = vshll.u32 %v512, 16
      %v540 = vor.u32 %v537, %v538
      %v542 = vshrl.u32 %v513, 16
      %v544 = vrot.slane %v542, 7
      %v545 = vshll.u32 %v513, 16
      %v547 = vor.u32 %v544, %v545
      %v549 = vshrl.u32 %v514, 16
      %v551 = vrot.slane %v549, 7
      %v552 = vshll.u32 %v514, 16
      %v554 = vor.u32 %v551, %v552
      %v556 = vshrl.u32 %v515, 16
      %v558 = vrot.slane %v556, 7
      %v559 = vshll.u32 %v515, 16
      %v561 = vor.u32 %v558, %v559
      %v563 = vshrl.u32 %v516, 16
      %v565 = vrot.slane %v563, 7
      %v566 = vshll.u32 %v516, 16
      %v568 = vor.u32 %v565, %v566
      %v570 = vshrl.u32 %v517, 16
      %v572 = vrot.slane %v570, 7
      %v573 = vshll.u32 %v517, 16
      %v575 = vor.u32 %v572, %v573
      %v577 = vshrl.u32 %v518, 16
      %v579 = vrot.slane %v577, 7
      %v580 = vshll.u32 %v518, 16
      %v582 = vor.u32 %v579, %v580
      %v584 = vshrl.u32 %v519, 16
      %v586 = vrot.slane %v584, 7
      %v587 = vshll.u32 %v519, 16
      %v589 = vor.u32 %v586, %v587
      %vm600 = vcmask 1040384
      %vm601 = vsmask.f32 256
      %vm602 = vmand %vm600, %vm601
      %v603 = vsel %vm602, 0, %v526
      %v604 = vsel %vm602, 0, %v533
      %v605 = vsel %vm602, 0, %v540
      %v606 = vsel %vm602, 0, %v547
      %v607 = vsel %vm602, 0, %v554
      %v608 = vsel %vm602, 0, %v561
      %v609 = vsel %vm602, 0, %v568
      %v610 = vsel %vm602, 0, %v575
      %v611 = vsel %vm602, 0, %v582
      %v612 = vsel %vm602, 0, %v589
      %vm613 = vcmask 1044480
      %vm614 = vsmask.f32 4352
      %vm615 = vmand %vm613, %vm614
      %v616 = vsel %vm615, %v603, 0
      %v617 = vsel %vm615, %v604, 0
      %v618 = vsel %vm615, %v605, 0
      %v619 = vsel %vm615, %v606, 0
      %v620 = vsel %vm615, %v607, 0
      %v621 = vsel %vm615, %v608, 0
      %v622 = vsel %vm615, %v609, 0
      %v623 = vsel %vm615, %v610, 0
      %v624 = vsel %vm615, %v611, 0
      %v625 = vsel %vm615, %v612, 0
      %v626 = vld [vmem:[%s3] sm:$0xf]
      %v627 = vld [vmem:[%s3 + $0x4] sm:$0xf]
      %v628 = vld [vmem:[%s3 + $0x8] sm:$0xf]
      %v629 = vld [vmem:[%s3 + $0xc] sm:$0xf]
      %v638 = vunpack.c.l.b16 %v616
      %v639 = vunpack.c.h.b16 %v616
      %v640 = vunpack.c.l.b16 %v617
      %v641 = vunpack.c.h.b16 %v617
      %v642 = vunpack.c.l.b16 %v618
      %v643 = vunpack.c.h.b16 %v618
      %v644 = vunpack.c.l.b16 %v619
      %v645 = vunpack.c.h.b16 %v619
      %v646 = vunpack.c.l.b16 %v620
      %v647 = vunpack.c.h.b16 %v620
      %v648 = vunpack.c.l.b16 %v621
      %v649 = vunpack.c.h.b16 %v621
      %v650 = vunpack.c.l.b16 %v622
      %v651 = vunpack.c.h.b16 %v622
      %v652 = vunpack.c.l.b16 %v623
      %v653 = vunpack.c.h.b16 %v623
      %v654 = vpack.c.b16 %v638, %v638
      %v655 = vpack.c.b16 %v639, %v639
      %v656 = vpack.c.b16 %v640, %v640
      %v657 = vpack.c.b16 %v641, %v641
      %v658 = vpack.c.b16 %v642, %v642
      %v659 = vpack.c.b16 %v643, %v643
      %v660 = vpack.c.b16 %v644, %v644
      %v661 = vpack.c.b16 %v645, %v645
      %v662 = vpack.c.b16 %v646, %v646
      %v663 = vpack.c.b16 %v647, %v647
      %v664 = vpack.c.b16 %v648, %v648
      %v665 = vpack.c.b16 %v649, %v649
      %v666 = vpack.c.b16 %v650, %v650
      %v667 = vpack.c.b16 %v651, %v651
      %v668 = vpack.c.b16 %v652, %v652
      %v669 = vpack.c.b16 %v653, %v653
      %vm670 = vsmask.f32 3328
      %vm671 = vsmask.f32 7440
      %vm672 = vmor %vm670, %vm671
      %v674 = vshrl.u32 %v654, 16
      %v676 = vrot.slane %v674, 4
      %v677 = vshll.u32 %v654, 16
      %v679 = vrot.slane %v677, 5
      %v680 = vor.u32 %v676, %v679
      %v681 = vrot.slane %v680, 4
      %v683 = vshll.u32 %v655, 16
      %v685 = vrot.slane %v683, 5
      %v686 = vsel %vm672, %v681, %v685
      %v688 = vshrl.u32 %v656, 16
      %v690 = vrot.slane %v688, 4
      %v691 = vshll.u32 %v656, 16
      %v693 = vrot.slane %v691, 5
      %v694 = vor.u32 %v690, %v693
      %v695 = vrot.slane %v694, 4
      %v697 = vshll.u32 %v657, 16
      %v699 = vrot.slane %v697, 5
      %v700 = vsel %vm672, %v695, %v699
      %v702 = vshrl.u32 %v658, 16
      %v704 = vrot.slane %v702, 4
      %v705 = vshll.u32 %v658, 16
      %v707 = vrot.slane %v705, 5
      %v708 = vor.u32 %v704, %v707
      %v709 = vrot.slane %v708, 4
      %v711 = vshll.u32 %v659, 16
      %v713 = vrot.slane %v711, 5
      %v714 = vsel %vm672, %v709, %v713
      %v716 = vshrl.u32 %v660, 16
      %v718 = vrot.slane %v716, 4
      %v719 = vshll.u32 %v660, 16
      %v721 = vrot.slane %v719, 5
      %v722 = vor.u32 %v718, %v721
      %v723 = vrot.slane %v722, 4
      %v725 = vshll.u32 %v661, 16
      %v727 = vrot.slane %v725, 5
      %v728 = vsel %vm672, %v723, %v727
      %v730 = vshrl.u32 %v662, 16
      %v732 = vrot.slane %v730, 4
      %v733 = vshll.u32 %v662, 16
      %v735 = vrot.slane %v733, 5
      %v736 = vor.u32 %v732, %v735
      %v737 = vrot.slane %v736, 4
      %v739 = vshll.u32 %v663, 16
      %v741 = vrot.slane %v739, 5
      %v742 = vsel %vm672, %v737, %v741
      %v744 = vshrl.u32 %v664, 16
      %v746 = vrot.slane %v744, 4
      %v747 = vshll.u32 %v664, 16
      %v749 = vrot.slane %v747, 5
      %v750 = vor.u32 %v746, %v749
      %v751 = vrot.slane %v750, 4
      %v753 = vshll.u32 %v665, 16
      %v755 = vrot.slane %v753, 5
      %v756 = vsel %vm672, %v751, %v755
      %v758 = vshrl.u32 %v666, 16
      %v760 = vrot.slane %v758, 4
      %v761 = vshll.u32 %v666, 16
      %v763 = vrot.slane %v761, 5
      %v764 = vor.u32 %v760, %v763
      %v765 = vrot.slane %v764, 4
      %v767 = vshll.u32 %v667, 16
      %v769 = vrot.slane %v767, 5
      %v770 = vsel %vm672, %v765, %v769
      %v772 = vshrl.u32 %v668, 16
      %v774 = vrot.slane %v772, 4
      %v775 = vshll.u32 %v668, 16
      %v777 = vrot.slane %v775, 5
      %v778 = vor.u32 %v774, %v777
      %v779 = vrot.slane %v778, 4
      %v781 = vshll.u32 %v669, 16
      %v783 = vrot.slane %v781, 5
      %v784 = vsel %vm672, %v779, %v783
      %s785 = scalar_lea.vmem %s3, 16
      %v786 = vld [vmem:[%s785] sm:$0xf]
      %v787 = vld [vmem:[%s785 + $0x4] sm:$0xf]
      %v788 = vld [vmem:[%s785 + $0x8] sm:$0xf]
      %v789 = vld [vmem:[%s785 + $0xc] sm:$0xf]
      %v790 = vunpack.c.l.b16 %v686
      %v791 = vunpack.c.l.b16 %v700
      %v792 = vunpack.c.l.b16 %v714
      %v793 = vunpack.c.l.b16 %v728
      %v794 = vunpack.c.l.b16 %v742
      %v795 = vunpack.c.l.b16 %v756
      %v796 = vunpack.c.l.b16 %v770
      %v797 = vunpack.c.l.b16 %v784
      %v798 = vpack.c.b16 %v791, %v790
      %v799 = vpack.c.b16 %v793, %v792
      %v800 = vpack.c.b16 %v795, %v794
      %v801 = vpack.c.b16 %v797, %v796
      %v806 = vunpack.c.l.b16 %v786
      %v807 = vunpack.c.l.b16 %v787
      %v808 = vunpack.c.l.b16 %v788
      %v809 = vunpack.c.l.b16 %v789
      %v810 = vpack.c.b16 %v807, %v806
      %v811 = vpack.c.b16 %v809, %v808
      %vm814 = vcmask 261120
      %v816 = vsel %vm814, %v798, 0
      %v819 = vsel %vm814, %v799, 0
      %v822 = vsel %vm814, %v800, 0
      %v825 = vsel %vm814, %v801, 0
      %827 = vmatprep.subr.bf16.mxu0 0
      %828 = vmatpush1.bf16.msra.mxu0 %v810
      %829 = vmatprep.subr.bf16.mxu0 0
      %830 = vmatpush1.bf16.msra.mxu0 %v811
      %831 = vmatprep.subr.bf16.mxu0 0
      %832 = vmatpush1.bf16.msra.mxu0 0
      %833 = vmatprep.subr.bf16.mxu0 0
      %834 = vmatpush1.bf16.msra.mxu0 0
      %835 = vmatprep.subr.bf16.mxu0 0
      %836 = vmatpush1.bf16.msra.mxu0 0
      %837 = vmatprep.subr.bf16.mxu0 0
      %838 = vmatpush1.bf16.msra.mxu0 0
      %839 = vmatprep.subr.bf16.mxu0 0
      %840 = vmatpush1.bf16.msra.mxu0 0
      %841 = vmatprep.subr.bf16.mxu0 0
      %842 = vmatpush1.bf16.msra.mxu0 0
      %843 = vmatprep.subr.bf16.mxu0 0
      %844 = vmatpush1.bf16.msra.mxu0 0
      %845 = vmatprep.subr.bf16.mxu0 0
      %846 = vmatpush1.bf16.msra.mxu0 0
      %847 = vmatprep.subr.bf16.mxu0 0
      %848 = vmatpush1.bf16.msra.mxu0 0
      %849 = vmatprep.subr.bf16.mxu0 0
      %850 = vmatpush1.bf16.msra.mxu0 0
      %851 = vmatprep.subr.bf16.mxu0 0
      %852 = vmatpush1.bf16.msra.mxu0 0
      %853 = vmatprep.subr.bf16.mxu0 0
      %854 = vmatpush1.bf16.msra.mxu0 0
      %855 = vmatprep.subr.bf16.mxu0 0
      %856 = vmatpush1.bf16.msra.mxu0 0
      %857 = vmatprep.subr.bf16.mxu0 0
      %858 = vmatpush1.bf16.msra.mxu0 0
      %859 = vmatprep.mubr.bf16.mxu0 0
      %860 = vmatmul.mubr.bf16.gmra.mrb[0].mxu0 %v816
      %v861 = vpop.f32.mrb[0].mxu0
      %v862 = vadd.f32 0.0, %v861
      %v863 = vpop.f32.mrb[0].mxu0
      %v864 = vpop.f32.mrb[0].mxu0
      %v865 = vadd.f32 0.0, %v864
      %v866 = vpop.f32.mrb[0].mxu0
      %867 = vmatprep.mubr.bf16.mxu0 0
      %868 = vmatmul.mubr.bf16.gmra.mrb[0].mxu0 %v819
      %v869 = vpop.f32.mrb[0].mxu0
      %v870 = vadd.f32 0.0, %v869
      %v871 = vpop.f32.mrb[0].mxu0
      %v872 = vpop.f32.mrb[0].mxu0
      %v873 = vadd.f32 0.0, %v872
      %v874 = vpop.f32.mrb[0].mxu0
      %875 = vmatprep.mubr.bf16.mxu0 0
      %876 = vmatmul.mubr.bf16.gmra.mrb[0].mxu0 %v822
      %v877 = vpop.f32.mrb[0].mxu0
      %v878 = vadd.f32 0.0, %v877
      %v879 = vpop.f32.mrb[0].mxu0
      %v880 = vpop.f32.mrb[0].mxu0
      %v881 = vadd.f32 0.0, %v880
      %v882 = vpop.f32.mrb[0].mxu0
      %883 = vmatprep.mubr.bf16.mxu0 0
      %884 = vmatmul.mubr.bf16.gmra.mrb[0].mxu0 %v825
      %v885 = vpop.f32.mrb[0].mxu0
      %v886 = vadd.f32 0.0, %v885
      %v887 = vpop.f32.mrb[0].mxu0
      %v888 = vpop.f32.mrb[0].mxu0
      %v889 = vadd.f32 0.0, %v888
      %v890 = vpop.f32.mrb[0].mxu0
      %891 = vdwg.mxu0
      %v892 = vpack.c.b16 %v640, %v638
      %v893 = vpack.c.b16 %v644, %v642
      %v894 = vpack.c.b16 %v648, %v646
      %v895 = vpack.c.b16 %v652, %v650
      %v900 = vunpack.c.l.b16 %v626
      %v901 = vunpack.c.l.b16 %v627
      %v902 = vunpack.c.l.b16 %v628
      %v903 = vunpack.c.l.b16 %v629
      %v904 = vpack.c.b16 %v901, %v900
      %v905 = vpack.c.b16 %v903, %v902
      %v909 = vsel %vm814, %v892, 0
      %v912 = vsel %vm814, %v893, 0
      %v915 = vsel %vm814, %v894, 0
      %v918 = vsel %vm814, %v895, 0
      %920 = vmatprep.subr.bf16.mxu0 0
      %921 = vmatpush1.bf16.msra.mxu0 %v904
      %922 = vmatprep.subr.bf16.mxu0 0
      %923 = vmatpush1.bf16.msra.mxu0 %v905
      %924 = vmatprep.subr.bf16.mxu0 0
      %925 = vmatpush1.bf16.msra.mxu0 0
      %926 = vmatprep.subr.bf16.mxu0 0
      %927 = vmatpush1.bf16.msra.mxu0 0
      %928 = vmatprep.subr.bf16.mxu0 0
      %929 = vmatpush1.bf16.msra.mxu0 0
      %930 = vmatprep.subr.bf16.mxu0 0
      %931 = vmatpush1.bf16.msra.mxu0 0
      %932 = vmatprep.subr.bf16.mxu0 0
      %933 = vmatpush1.bf16.msra.mxu0 0
      %934 = vmatprep.subr.bf16.mxu0 0
      %935 = vmatpush1.bf16.msra.mxu0 0
      %936 = vmatprep.subr.bf16.mxu0 0
      %937 = vmatpush1.bf16.msra.mxu0 0
      %938 = vmatprep.subr.bf16.mxu0 0
      %939 = vmatpush1.bf16.msra.mxu0 0
      %940 = vmatprep.subr.bf16.mxu0 0
      %941 = vmatpush1.bf16.msra.mxu0 0
      %942 = vmatprep.subr.bf16.mxu0 0
      %943 = vmatpush1.bf16.msra.mxu0 0
      %944 = vmatprep.subr.bf16.mxu0 0
      %945 = vmatpush1.bf16.msra.mxu0 0
      %946 = vmatprep.subr.bf16.mxu0 0
      %947 = vmatpush1.bf16.msra.mxu0 0
      %948 = vmatprep.subr.bf16.mxu0 0
      %949 = vmatpush1.bf16.msra.mxu0 0
      %950 = vmatprep.subr.bf16.mxu0 0
      %951 = vmatpush1.bf16.msra.mxu0 0
      %952 = vmatprep.mubr.bf16.mxu0 0
      %953 = vmatmul.mubr.bf16.gmra.mrb[0].mxu0 %v909
      %v954 = vpop.f32.mrb[0].mxu0
      %v955 = vadd.f32 %v862, %v954
      %v956 = vpop.f32.mrb[0].mxu0
      %v957 = vpop.f32.mrb[0].mxu0
      %v958 = vadd.f32 %v865, %v957
      %v959 = vpop.f32.mrb[0].mxu0
      %960 = vmatprep.mubr.bf16.mxu0 0
      %961 = vmatmul.mubr.bf16.gmra.mrb[0].mxu0 %v912
      %v962 = vpop.f32.mrb[0].mxu0
      %v963 = vadd.f32 %v870, %v962
      %v964 = vpop.f32.mrb[0].mxu0
      %v965 = vpop.f32.mrb[0].mxu0
      %v966 = vadd.f32 %v873, %v965
      %v967 = vpop.f32.mrb[0].mxu0
      %968 = vmatprep.mubr.bf16.mxu0 0
      %969 = vmatmul.mubr.bf16.gmra.mrb[0].mxu0 %v915
      %v970 = vpop.f32.mrb[0].mxu0
      %v971 = vadd.f32 %v878, %v970
      %v972 = vpop.f32.mrb[0].mxu0
      %v973 = vpop.f32.mrb[0].mxu0
      %v974 = vadd.f32 %v881, %v973
      %v975 = vpop.f32.mrb[0].mxu0
      %976 = vmatprep.mubr.bf16.mxu0 0
      %977 = vmatmul.mubr.bf16.gmra.mrb[0].mxu0 %v918
      %v978 = vpop.f32.mrb[0].mxu0
      %v979 = vadd.f32 %v886, %v978
      %v980 = vpop.f32.mrb[0].mxu0
      %v981 = vpop.f32.mrb[0].mxu0
      %v982 = vadd.f32 %v889, %v981
      %v983 = vpop.f32.mrb[0].mxu0
      %984 = vdwg.mxu0
      %s985 = scalar_lea.vmem %s3, 32
      %v986 = vld [vmem:[%s985] sm:$0xf]
      %v987 = vld [vmem:[%s985 + $0x4] sm:$0xf]
      %v988 = vld [vmem:[%s985 + $0x8] sm:$0xf]
      %v989 = vld [vmem:[%s985 + $0xc] sm:$0xf]
      %v991 = vunpack.c.l.b16 %v624
      %v992 = vpack.c.b16 %v642, %v640
      %v993 = vpack.c.b16 %v646, %v644
      %v994 = vpack.c.b16 %v650, %v648
      %v995 = vpack.c.b16 %v991, %v652
      %v1000 = vunpack.c.l.b16 %v986
      %v1001 = vunpack.c.l.b16 %v987
      %v1002 = vunpack.c.l.b16 %v988
      %v1003 = vunpack.c.l.b16 %v989
      %v1004 = vpack.c.b16 %v1001, %v1000
      %v1005 = vpack.c.b16 %v1003, %v1002
      %v1009 = vsel %vm814, %v992, 0
      %v1012 = vsel %vm814, %v993, 0
      %v1015 = vsel %vm814, %v994, 0
      %v1018 = vsel %vm814, %v995, 0
      %1020 = vmatprep.subr.bf16.mxu0 0
      %1021 = vmatpush1.bf16.msra.mxu0 %v1004
      %1022 = vmatprep.subr.bf16.mxu0 0
      %1023 = vmatpush1.bf16.msra.mxu0 %v1005
      %1024 = vmatprep.subr.bf16.mxu0 0
      %1025 = vmatpush1.bf16.msra.mxu0 0
      %1026 = vmatprep.subr.bf16.mxu0 0
      %1027 = vmatpush1.bf16.msra.mxu0 0
      %1028 = vmatprep.subr.bf16.mxu0 0
      %1029 = vmatpush1.bf16.msra.mxu0 0
      %1030 = vmatprep.subr.bf16.mxu0 0
      %1031 = vmatpush1.bf16.msra.mxu0 0
      %1032 = vmatprep.subr.bf16.mxu0 0
      %1033 = vmatpush1.bf16.msra.mxu0 0
      %1034 = vmatprep.subr.bf16.mxu0 0
      %1035 = vmatpush1.bf16.msra.mxu0 0
      %1036 = vmatprep.subr.bf16.mxu0 0
      %1037 = vmatpush1.bf16.msra.mxu0 0
      %1038 = vmatprep.subr.bf16.mxu0 0
      %1039 = vmatpush1.bf16.msra.mxu0 0
      %1040 = vmatprep.subr.bf16.mxu0 0
      %1041 = vmatpush1.bf16.msra.mxu0 0
      %1042 = vmatprep.subr.bf16.mxu0 0
      %1043 = vmatpush1.bf16.msra.mxu0 0
      %1044 = vmatprep.subr.bf16.mxu0 0
      %1045 = vmatpush1.bf16.msra.mxu0 0
      %1046 = vmatprep.subr.bf16.mxu0 0
      %1047 = vmatpush1.bf16.msra.mxu0 0
      %1048 = vmatprep.subr.bf16.mxu0 0
      %1049 = vmatpush1.bf16.msra.mxu0 0
      %1050 = vmatprep.subr.bf16.mxu0 0
      %1051 = vmatpush1.bf16.msra.mxu0 0
      %1052 = vmatprep.mubr.bf16.mxu0 0
      %1053 = vmatmul.mubr.bf16.gmra.mrb[0].mxu0 %v1009
      %v1054 = vpop.f32.mrb[0].mxu0
      %v1055 = vadd.f32 0.0, %v1054
      %v1056 = vpop.f32.mrb[0].mxu0
      %v1057 = vpop.f32.mrb[0].mxu0
      %v1058 = vadd.f32 0.0, %v1057
      %v1059 = vpop.f32.mrb[0].mxu0
      %1060 = vmatprep.mubr.bf16.mxu0 0
      %1061 = vmatmul.mubr.bf16.gmra.mrb[0].mxu0 %v1012
      %v1062 = vpop.f32.mrb[0].mxu0
      %v1063 = vadd.f32 0.0, %v1062
      %v1064 = vpop.f32.mrb[0].mxu0
      %v1065 = vpop.f32.mrb[0].mxu0
      %v1066 = vadd.f32 0.0, %v1065
      %v1067 = vpop.f32.mrb[0].mxu0
      %1068 = vmatprep.mubr.bf16.mxu0 0
      %1069 = vmatmul.mubr.bf16.gmra.mrb[0].mxu0 %v1015
      %v1070 = vpop.f32.mrb[0].mxu0
      %v1071 = vadd.f32 0.0, %v1070
      %v1072 = vpop.f32.mrb[0].mxu0
      %v1073 = vpop.f32.mrb[0].mxu0
      %v1074 = vadd.f32 0.0, %v1073
      %v1075 = vpop.f32.mrb[0].mxu0
      %1076 = vmatprep.mubr.bf16.mxu0 0
      %1077 = vmatmul.mubr.bf16.gmra.mrb[0].mxu0 %v1018
      %v1078 = vpop.f32.mrb[0].mxu0
      %v1079 = vadd.f32 0.0, %v1078
      %v1080 = vpop.f32.mrb[0].mxu0
      %v1081 = vpop.f32.mrb[0].mxu0
      %v1082 = vadd.f32 0.0, %v1081
      %v1083 = vpop.f32.mrb[0].mxu0
      %1084 = vdwg.mxu0
      %v1085 = vadd.f32 %v955, %v1055
      %v1086 = vadd.f32 %v958, %v1058
      %v1087 = vadd.f32 %v963, %v1063
      %v1088 = vadd.f32 %v966, %v1066
      %v1089 = vadd.f32 %v971, %v1071
      %v1090 = vadd.f32 %v974, %v1074
      %v1091 = vadd.f32 %v979, %v1079
      %v1092 = vadd.f32 %v982, %v1082
      %v1093 = vunpack.c.h.b16 %v624
      %v1094 = vpack.c.b16 %v991, %v991
      %v1095 = vpack.c.b16 %v1093, %v1093
      %v1097 = vshrl.u32 %v1094, 16
      %v1099 = vrot.slane %v1097, 4
      %v1100 = vshll.u32 %v1094, 16
      %v1102 = vrot.slane %v1100, 5
      %v1103 = vor.u32 %v1099, %v1102
      %v1104 = vrot.slane %v1103, 4
      %v1106 = vshll.u32 %v1095, 16
      %v1108 = vrot.slane %v1106, 5
      %v1109 = vsel %vm672, %v1104, %v1108
      %s1110 = scalar_lea.vmem %s3, 48
      %v1111 = vld [vmem:[%s1110] sm:$0xf]
      %v1112 = vld [vmem:[%s1110 + $0x4] sm:$0xf]
      %v1113 = vld [vmem:[%s1110 + $0x8] sm:$0xf]
      %v1114 = vld [vmem:[%s1110 + $0xc] sm:$0xf]
      %v1115 = vunpack.c.l.b16 %v1109
      %v1116 = vpack.c.b16 %v792, %v791
      %v1117 = vpack.c.b16 %v794, %v793
      %v1118 = vpack.c.b16 %v796, %v795
      %v1119 = vpack.c.b16 %v1115, %v797
      %v1124 = vunpack.c.l.b16 %v1111
      %v1125 = vunpack.c.l.b16 %v1112
      %v1126 = vunpack.c.l.b16 %v1113
      %v1127 = vunpack.c.l.b16 %v1114
      %v1128 = vpack.c.b16 %v1125, %v1124
      %v1129 = vpack.c.b16 %v1127, %v1126
      %v1133 = vsel %vm814, %v1116, 0
      %v1136 = vsel %vm814, %v1117, 0
      %v1139 = vsel %vm814, %v1118, 0
      %v1142 = vsel %vm814, %v1119, 0
      %1144 = vmatprep.subr.bf16.mxu0 0
      %1145 = vmatpush1.bf16.msra.mxu0 %v1128
      %1146 = vmatprep.subr.bf16.mxu0 0
      %1147 = vmatpush1.bf16.msra.mxu0 %v1129
      %1148 = vmatprep.subr.bf16.mxu0 0
      %1149 = vmatpush1.bf16.msra.mxu0 0
      %1150 = vmatprep.subr.bf16.mxu0 0
      %1151 = vmatpush1.bf16.msra.mxu0 0
      %1152 = vmatprep.subr.bf16.mxu0 0
      %1153 = vmatpush1.bf16.msra.mxu0 0
      %1154 = vmatprep.subr.bf16.mxu0 0
      %1155 = vmatpush1.bf16.msra.mxu0 0
      %1156 = vmatprep.subr.bf16.mxu0 0
      %1157 = vmatpush1.bf16.msra.mxu0 0
      %1158 = vmatprep.subr.bf16.mxu0 0
      %1159 = vmatpush1.bf16.msra.mxu0 0
      %1160 = vmatprep.subr.bf16.mxu0 0
      %1161 = vmatpush1.bf16.msra.mxu0 0
      %1162 = vmatprep.subr.bf16.mxu0 0
      %1163 = vmatpush1.bf16.msra.mxu0 0
      %1164 = vmatprep.subr.bf16.mxu0 0
      %1165 = vmatpush1.bf16.msra.mxu0 0
      %1166 = vmatprep.subr.bf16.mxu0 0
      %1167 = vmatpush1.bf16.msra.mxu0 0
      %1168 = vmatprep.subr.bf16.mxu0 0
      %1169 = vmatpush1.bf16.msra.mxu0 0
      %1170 = vmatprep.subr.bf16.mxu0 0
      %1171 = vmatpush1.bf16.msra.mxu0 0
      %1172 = vmatprep.subr.bf16.mxu0 0
      %1173 = vmatpush1.bf16.msra.mxu0 0
      %1174 = vmatprep.subr.bf16.mxu0 0
      %1175 = vmatpush1.bf16.msra.mxu0 0
      %1176 = vmatprep.mubr.bf16.mxu0 0
      %1177 = vmatmul.mubr.bf16.gmra.mrb[0].mxu0 %v1133
      %v1178 = vpop.f32.mrb[0].mxu0
      %v1179 = vadd.f32 0.0, %v1178
      %v1180 = vpop.f32.mrb[0].mxu0
      %v1181 = vpop.f32.mrb[0].mxu0
      %v1182 = vadd.f32 0.0, %v1181
      %v1183 = vpop.f32.mrb[0].mxu0
      %1184 = vmatprep.mubr.bf16.mxu0 0
      %1185 = vmatmul.mubr.bf16.gmra.mrb[0].mxu0 %v1136
      %v1186 = vpop.f32.mrb[0].mxu0
      %v1187 = vadd.f32 0.0, %v1186
      %v1188 = vpop.f32.mrb[0].mxu0
      %v1189 = vpop.f32.mrb[0].mxu0
      %v1190 = vadd.f32 0.0, %v1189
      %v1191 = vpop.f32.mrb[0].mxu0
      %1192 = vmatprep.mubr.bf16.mxu0 0
      %1193 = vmatmul.mubr.bf16.gmra.mrb[0].mxu0 %v1139
      %v1194 = vpop.f32.mrb[0].mxu0
      %v1195 = vadd.f32 0.0, %v1194
      %v1196 = vpop.f32.mrb[0].mxu0
      %v1197 = vpop.f32.mrb[0].mxu0
      %v1198 = vadd.f32 0.0, %v1197
      %v1199 = vpop.f32.mrb[0].mxu0
      %1200 = vmatprep.mubr.bf16.mxu0 0
      %1201 = vmatmul.mubr.bf16.gmra.mrb[0].mxu0 %v1142
      %v1202 = vpop.f32.mrb[0].mxu0
      %v1203 = vadd.f32 0.0, %v1202
      %v1204 = vpop.f32.mrb[0].mxu0
      %v1205 = vpop.f32.mrb[0].mxu0
      %v1206 = vadd.f32 0.0, %v1205
      %v1207 = vpop.f32.mrb[0].mxu0
      %1208 = vdwg.mxu0
      %v1209 = vadd.f32 %v1085, %v1179
      %v1210 = vadd.f32 %v1086, %v1182
      %v1211 = vadd.f32 %v1087, %v1187
      %v1212 = vadd.f32 %v1088, %v1190
      %v1213 = vadd.f32 %v1089, %v1195
      %v1214 = vadd.f32 %v1090, %v1198
      %v1215 = vadd.f32 %v1091, %v1203
      %v1216 = vadd.f32 %v1092, %v1206
      %s1217 = scalar_lea.vmem %s3, 64
      %v1218 = vld [vmem:[%s1217] sm:$0xf]
      %v1219 = vld [vmem:[%s1217 + $0x4] sm:$0xf]
      %v1220 = vld [vmem:[%s1217 + $0x8] sm:$0xf]
      %v1221 = vld [vmem:[%s1217 + $0xc] sm:$0xf]
      %vm1222 = vcmask 1042432
      %vm1223 = vcmask 1046532
      %vm1224 = vmor %vm1222, %vm1223
      %v1225 = vrot.slane %v654, 5
      %v1226 = vrot.slane %v1225, 4
      %v1227 = vrot.slane %v655, 5
      %v1228 = vsel %vm1224, %v1226, %v1227
      %v1229 = vrot.slane %v656, 5
      %v1230 = vrot.slane %v1229, 4
      %v1231 = vrot.slane %v657, 5
      %v1232 = vsel %vm1224, %v1230, %v1231
      %v1233 = vrot.slane %v658, 5
      %v1234 = vrot.slane %v1233, 4
      %v1235 = vrot.slane %v659, 5
      %v1236 = vsel %vm1224, %v1234, %v1235
      %v1237 = vrot.slane %v660, 5
      %v1238 = vrot.slane %v1237, 4
      %v1239 = vrot.slane %v661, 5
      %v1240 = vsel %vm1224, %v1238, %v1239
      %v1241 = vrot.slane %v662, 5
      %v1242 = vrot.slane %v1241, 4
      %v1243 = vrot.slane %v663, 5
      %v1244 = vsel %vm1224, %v1242, %v1243
      %v1245 = vrot.slane %v664, 5
      %v1246 = vrot.slane %v1245, 4
      %v1247 = vrot.slane %v665, 5
      %v1248 = vsel %vm1224, %v1246, %v1247
      %v1249 = vrot.slane %v666, 5
      %v1250 = vrot.slane %v1249, 4
      %v1251 = vrot.slane %v667, 5
      %v1252 = vsel %vm1224, %v1250, %v1251
      %v1253 = vrot.slane %v668, 5
      %v1254 = vrot.slane %v1253, 4
      %v1255 = vrot.slane %v669, 5
      %v1256 = vsel %vm1224, %v1254, %v1255
      %s1257 = scalar_lea.vmem %s3, 80
      %v1258 = vld [vmem:[%s1257] sm:$0xf]
      %v1259 = vld [vmem:[%s1257 + $0x4] sm:$0xf]
      %v1260 = vld [vmem:[%s1257 + $0x8] sm:$0xf]
      %v1261 = vld [vmem:[%s1257 + $0xc] sm:$0xf]
      %v1262 = vunpack.c.l.b16 %v1228
      %v1263 = vunpack.c.l.b16 %v1232
      %v1264 = vunpack.c.l.b16 %v1236
      %v1265 = vunpack.c.l.b16 %v1240
      %v1266 = vunpack.c.l.b16 %v1244
      %v1267 = vunpack.c.l.b16 %v1248
      %v1268 = vunpack.c.l.b16 %v1252
      %v1269 = vunpack.c.l.b16 %v1256
      %v1270 = vpack.c.b16 %v1263, %v1262
      %v1271 = vpack.c.b16 %v1265, %v1264
      %v1272 = vpack.c.b16 %v1267, %v1266
      %v1273 = vpack.c.b16 %v1269, %v1268
      %v1278 = vunpack.c.l.b16 %v1258
      %v1279 = vunpack.c.l.b16 %v1259
      %v1280 = vunpack.c.l.b16 %v1260
      %v1281 = vunpack.c.l.b16 %v1261
      %v1282 = vpack.c.b16 %v1279, %v1278
      %v1283 = vpack.c.b16 %v1281, %v1280
      %v1287 = vsel %vm814, %v1270, 0
      %v1290 = vsel %vm814, %v1271, 0
      %v1293 = vsel %vm814, %v1272, 0
      %v1296 = vsel %vm814, %v1273, 0
      %1298 = vmatprep.subr.bf16.mxu0 0
      %1299 = vmatpush1.bf16.msra.mxu0 %v1282
      %1300 = vmatprep.subr.bf16.mxu0 0
      %1301 = vmatpush1.bf16.msra.mxu0 %v1283
      %1302 = vmatprep.subr.bf16.mxu0 0
      %1303 = vmatpush1.bf16.msra.mxu0 0
      %1304 = vmatprep.subr.bf16.mxu0 0
      %1305 = vmatpush1.bf16.msra.mxu0 0
      %1306 = vmatprep.subr.bf16.mxu0 0
      %1307 = vmatpush1.bf16.msra.mxu0 0
      %1308 = vmatprep.subr.bf16.mxu0 0
      %1309 = vmatpush1.bf16.msra.mxu0 0
      %1310 = vmatprep.subr.bf16.mxu0 0
      %1311 = vmatpush1.bf16.msra.mxu0 0
      %1312 = vmatprep.subr.bf16.mxu0 0
      %1313 = vmatpush1.bf16.msra.mxu0 0
      %1314 = vmatprep.subr.bf16.mxu0 0
      %1315 = vmatpush1.bf16.msra.mxu0 0
      %1316 = vmatprep.subr.bf16.mxu0 0
      %1317 = vmatpush1.bf16.msra.mxu0 0
      %1318 = vmatprep.subr.bf16.mxu0 0
      %1319 = vmatpush1.bf16.msra.mxu0 0
      %1320 = vmatprep.subr.bf16.mxu0 0
      %1321 = vmatpush1.bf16.msra.mxu0 0
      %1322 = vmatprep.subr.bf16.mxu0 0
      %1323 = vmatpush1.bf16.msra.mxu0 0
      %1324 = vmatprep.subr.bf16.mxu0 0
      %1325 = vmatpush1.bf16.msra.mxu0 0
      %1326 = vmatprep.subr.bf16.mxu0 0
      %1327 = vmatpush1.bf16.msra.mxu0 0
      %1328 = vmatprep.subr.bf16.mxu0 0
      %1329 = vmatpush1.bf16.msra.mxu0 0
      %1330 = vmatprep.mubr.bf16.mxu0 0
      %1331 = vmatmul.mubr.bf16.gmra.mrb[0].mxu0 %v1287
      %v1332 = vpop.f32.mrb[0].mxu0
      %v1333 = vadd.f32 0.0, %v1332
      %v1334 = vpop.f32.mrb[0].mxu0
      %v1335 = vpop.f32.mrb[0].mxu0
      %v1336 = vadd.f32 0.0, %v1335
      %v1337 = vpop.f32.mrb[0].mxu0
      %1338 = vmatprep.mubr.bf16.mxu0 0
      %1339 = vmatmul.mubr.bf16.gmra.mrb[0].mxu0 %v1290
      %v1340 = vpop.f32.mrb[0].mxu0
      %v1341 = vadd.f32 0.0, %v1340
      %v1342 = vpop.f32.mrb[0].mxu0
      %v1343 = vpop.f32.mrb[0].mxu0
      %v1344 = vadd.f32 0.0, %v1343
      %v1345 = vpop.f32.mrb[0].mxu0
      %1346 = vmatprep.mubr.bf16.mxu0 0
      %1347 = vmatmul.mubr.bf16.gmra.mrb[0].mxu0 %v1293
      %v1348 = vpop.f32.mrb[0].mxu0
      %v1349 = vadd.f32 0.0, %v1348
      %v1350 = vpop.f32.mrb[0].mxu0
      %v1351 = vpop.f32.mrb[0].mxu0
      %v1352 = vadd.f32 0.0, %v1351
      %v1353 = vpop.f32.mrb[0].mxu0
      %1354 = vmatprep.mubr.bf16.mxu0 0
      %1355 = vmatmul.mubr.bf16.gmra.mrb[0].mxu0 %v1296
      %v1356 = vpop.f32.mrb[0].mxu0
      %v1357 = vadd.f32 0.0, %v1356
      %v1358 = vpop.f32.mrb[0].mxu0
      %v1359 = vpop.f32.mrb[0].mxu0
      %v1360 = vadd.f32 0.0, %v1359
      %v1361 = vpop.f32.mrb[0].mxu0
      %1362 = vdwg.mxu0
      %v1367 = vunpack.c.l.b16 %v1218
      %v1368 = vunpack.c.l.b16 %v1219
      %v1369 = vunpack.c.l.b16 %v1220
      %v1370 = vunpack.c.l.b16 %v1221
      %v1371 = vpack.c.b16 %v1368, %v1367
      %v1372 = vpack.c.b16 %v1370, %v1369
      %1375 = vmatprep.subr.bf16.mxu0 0
      %1376 = vmatpush1.bf16.msra.mxu0 %v1371
      %1377 = vmatprep.subr.bf16.mxu0 0
      %1378 = vmatpush1.bf16.msra.mxu0 %v1372
      %1379 = vmatprep.subr.bf16.mxu0 0
      %1380 = vmatpush1.bf16.msra.mxu0 0
      %1381 = vmatprep.subr.bf16.mxu0 0
      %1382 = vmatpush1.bf16.msra.mxu0 0
      %1383 = vmatprep.subr.bf16.mxu0 0
      %1384 = vmatpush1.bf16.msra.mxu0 0
      %1385 = vmatprep.subr.bf16.mxu0 0
      %1386 = vmatpush1.bf16.msra.mxu0 0
      %1387 = vmatprep.subr.bf16.mxu0 0
      %1388 = vmatpush1.bf16.msra.mxu0 0
      %1389 = vmatprep.subr.bf16.mxu0 0
      %1390 = vmatpush1.bf16.msra.mxu0 0
      %1391 = vmatprep.subr.bf16.mxu0 0
      %1392 = vmatpush1.bf16.msra.mxu0 0
      %1393 = vmatprep.subr.bf16.mxu0 0
      %1394 = vmatpush1.bf16.msra.mxu0 0
      %1395 = vmatprep.subr.bf16.mxu0 0
      %1396 = vmatpush1.bf16.msra.mxu0 0
      %1397 = vmatprep.subr.bf16.mxu0 0
      %1398 = vmatpush1.bf16.msra.mxu0 0
      %1399 = vmatprep.subr.bf16.mxu0 0
      %1400 = vmatpush1.bf16.msra.mxu0 0
      %1401 = vmatprep.subr.bf16.mxu0 0
      %1402 = vmatpush1.bf16.msra.mxu0 0
      %1403 = vmatprep.subr.bf16.mxu0 0
      %1404 = vmatpush1.bf16.msra.mxu0 0
      %1405 = vmatprep.subr.bf16.mxu0 0
      %1406 = vmatpush1.bf16.msra.mxu0 0
      %1407 = vmatprep.mubr.bf16.mxu0 0
      %1408 = vmatmul.mubr.bf16.gmra.mrb[0].mxu0 %v816
      %v1409 = vpop.f32.mrb[0].mxu0
      %v1410 = vadd.f32 %v1333, %v1409
      %v1411 = vpop.f32.mrb[0].mxu0
      %v1412 = vpop.f32.mrb[0].mxu0
      %v1413 = vadd.f32 %v1336, %v1412
      %v1414 = vpop.f32.mrb[0].mxu0
      %1415 = vmatprep.mubr.bf16.mxu0 0
      %1416 = vmatmul.mubr.bf16.gmra.mrb[0].mxu0 %v819
      %v1417 = vpop.f32.mrb[0].mxu0
      %v1418 = vadd.f32 %v1341, %v1417
      %v1419 = vpop.f32.mrb[0].mxu0
      %v1420 = vpop.f32.mrb[0].mxu0
      %v1421 = vadd.f32 %v1344, %v1420
      %v1422 = vpop.f32.mrb[0].mxu0
      %1423 = vmatprep.mubr.bf16.mxu0 0
      %1424 = vmatmul.mubr.bf16.gmra.mrb[0].mxu0 %v822
      %v1425 = vpop.f32.mrb[0].mxu0
      %v1426 = vadd.f32 %v1349, %v1425
      %v1427 = vpop.f32.mrb[0].mxu0
      %v1428 = vpop.f32.mrb[0].mxu0
      %v1429 = vadd.f32 %v1352, %v1428
      %v1430 = vpop.f32.mrb[0].mxu0
      %1431 = vmatprep.mubr.bf16.mxu0 0
      %1432 = vmatmul.mubr.bf16.gmra.mrb[0].mxu0 %v825
      %v1433 = vpop.f32.mrb[0].mxu0
      %v1434 = vadd.f32 %v1357, %v1433
      %v1435 = vpop.f32.mrb[0].mxu0
      %v1436 = vpop.f32.mrb[0].mxu0
      %v1437 = vadd.f32 %v1360, %v1436
      %v1438 = vpop.f32.mrb[0].mxu0
      %1439 = vdwg.mxu0
      %s1440 = scalar_lea.vmem %s3, 96
      %v1441 = vld [vmem:[%s1440] sm:$0xf]
      %v1442 = vld [vmem:[%s1440 + $0x4] sm:$0xf]
      %v1443 = vld [vmem:[%s1440 + $0x8] sm:$0xf]
      %v1444 = vld [vmem:[%s1440 + $0xc] sm:$0xf]
      %v1449 = vunpack.c.l.b16 %v1441
      %v1450 = vunpack.c.l.b16 %v1442
      %v1451 = vunpack.c.l.b16 %v1443
      %v1452 = vunpack.c.l.b16 %v1444
      %v1453 = vpack.c.b16 %v1450, %v1449
      %v1454 = vpack.c.b16 %v1452, %v1451
      %1457 = vmatprep.subr.bf16.mxu0 0
      %1458 = vmatpush1.bf16.msra.mxu0 %v1453
      %1459 = vmatprep.subr.bf16.mxu0 0
      %1460 = vmatpush1.bf16.msra.mxu0 %v1454
      %1461 = vmatprep.subr.bf16.mxu0 0
      %1462 = vmatpush1.bf16.msra.mxu0 0
      %1463 = vmatprep.subr.bf16.mxu0 0
      %1464 = vmatpush1.bf16.msra.mxu0 0
      %1465 = vmatprep.subr.bf16.mxu0 0
      %1466 = vmatpush1.bf16.msra.mxu0 0
      %1467 = vmatprep.subr.bf16.mxu0 0
      %1468 = vmatpush1.bf16.msra.mxu0 0
      %1469 = vmatprep.subr.bf16.mxu0 0
      %1470 = vmatpush1.bf16.msra.mxu0 0
      %1471 = vmatprep.subr.bf16.mxu0 0
      %1472 = vmatpush1.bf16.msra.mxu0 0
      %1473 = vmatprep.subr.bf16.mxu0 0
      %1474 = vmatpush1.bf16.msra.mxu0 0
      %1475 = vmatprep.subr.bf16.mxu0 0
      %1476 = vmatpush1.bf16.msra.mxu0 0
      %1477 = vmatprep.subr.bf16.mxu0 0
      %1478 = vmatpush1.bf16.msra.mxu0 0
      %1479 = vmatprep.subr.bf16.mxu0 0
      %1480 = vmatpush1.bf16.msra.mxu0 0
      %1481 = vmatprep.subr.bf16.mxu0 0
      %1482 = vmatpush1.bf16.msra.mxu0 0
      %1483 = vmatprep.subr.bf16.mxu0 0
      %1484 = vmatpush1.bf16.msra.mxu0 0
      %1485 = vmatprep.subr.bf16.mxu0 0
      %1486 = vmatpush1.bf16.msra.mxu0 0
      %1487 = vmatprep.subr.bf16.mxu0 0
      %1488 = vmatpush1.bf16.msra.mxu0 0
      %1489 = vmatprep.mubr.bf16.mxu0 0
      %1490 = vmatmul.mubr.bf16.gmra.mrb[0].mxu0 %v1133
      %v1491 = vpop.f32.mrb[0].mxu0
      %v1492 = vadd.f32 0.0, %v1491
      %v1493 = vpop.f32.mrb[0].mxu0
      %v1494 = vpop.f32.mrb[0].mxu0
      %v1495 = vadd.f32 0.0, %v1494
      %v1496 = vpop.f32.mrb[0].mxu0
      %1497 = vmatprep.mubr.bf16.mxu0 0
      %1498 = vmatmul.mubr.bf16.gmra.mrb[0].mxu0 %v1136
      %v1499 = vpop.f32.mrb[0].mxu0
      %v1500 = vadd.f32 0.0, %v1499
      %v1501 = vpop.f32.mrb[0].mxu0
      %v1502 = vpop.f32.mrb[0].mxu0
      %v1503 = vadd.f32 0.0, %v1502
      %v1504 = vpop.f32.mrb[0].mxu0
      %1505 = vmatprep.mubr.bf16.mxu0 0
      %1506 = vmatmul.mubr.bf16.gmra.mrb[0].mxu0 %v1139
      %v1507 = vpop.f32.mrb[0].mxu0
      %v1508 = vadd.f32 0.0, %v1507
      %v1509 = vpop.f32.mrb[0].mxu0
      %v1510 = vpop.f32.mrb[0].mxu0
      %v1511 = vadd.f32 0.0, %v1510
      %v1512 = vpop.f32.mrb[0].mxu0
      %1513 = vmatprep.mubr.bf16.mxu0 0
      %1514 = vmatmul.mubr.bf16.gmra.mrb[0].mxu0 %v1142
      %v1515 = vpop.f32.mrb[0].mxu0
      %v1516 = vadd.f32 0.0, %v1515
      %v1517 = vpop.f32.mrb[0].mxu0
      %v1518 = vpop.f32.mrb[0].mxu0
      %v1519 = vadd.f32 0.0, %v1518
      %v1520 = vpop.f32.mrb[0].mxu0
      %1521 = vdwg.mxu0
      %v1522 = vadd.f32 %v1410, %v1492
      %v1523 = vadd.f32 %v1413, %v1495
      %v1524 = vadd.f32 %v1418, %v1500
      %v1525 = vadd.f32 %v1421, %v1503
      %v1526 = vadd.f32 %v1426, %v1508
      %v1527 = vadd.f32 %v1429, %v1511
      %v1528 = vadd.f32 %v1434, %v1516
      %v1529 = vadd.f32 %v1437, %v1519
      %v1530 = vrot.slane %v1094, 5
      %v1531 = vrot.slane %v1530, 4
      %v1532 = vrot.slane %v1095, 5
      %v1533 = vsel %vm1224, %v1531, %v1532
      %s1534 = scalar_lea.vmem %s3, 112
      %v1535 = vld [vmem:[%s1534] sm:$0xf]
      %v1536 = vld [vmem:[%s1534 + $0x4] sm:$0xf]
      %v1537 = vld [vmem:[%s1534 + $0x8] sm:$0xf]
      %v1538 = vld [vmem:[%s1534 + $0xc] sm:$0xf]
      %v1539 = vunpack.c.l.b16 %v1533
      %v1540 = vpack.c.b16 %v1264, %v1263
      %v1541 = vpack.c.b16 %v1266, %v1265
      %v1542 = vpack.c.b16 %v1268, %v1267
      %v1543 = vpack.c.b16 %v1539, %v1269
      %v1548 = vunpack.c.l.b16 %v1535
      %v1549 = vunpack.c.l.b16 %v1536
      %v1550 = vunpack.c.l.b16 %v1537
      %v1551 = vunpack.c.l.b16 %v1538
      %v1552 = vpack.c.b16 %v1549, %v1548
      %v1553 = vpack.c.b16 %v1551, %v1550
      %v1557 = vsel %vm814, %v1540, 0
      %v1560 = vsel %vm814, %v1541, 0
      %v1563 = vsel %vm814, %v1542, 0
      %v1566 = vsel %vm814, %v1543, 0
      %1568 = vmatprep.subr.bf16.mxu0 0
      %1569 = vmatpush1.bf16.msra.mxu0 %v1552
      %1570 = vmatprep.subr.bf16.mxu0 0
      %1571 = vmatpush1.bf16.msra.mxu0 %v1553
      %1572 = vmatprep.subr.bf16.mxu0 0
      %1573 = vmatpush1.bf16.msra.mxu0 0
      %1574 = vmatprep.subr.bf16.mxu0 0
      %1575 = vmatpush1.bf16.msra.mxu0 0
      %1576 = vmatprep.subr.bf16.mxu0 0
      %1577 = vmatpush1.bf16.msra.mxu0 0
      %1578 = vmatprep.subr.bf16.mxu0 0
      %1579 = vmatpush1.bf16.msra.mxu0 0
      %1580 = vmatprep.subr.bf16.mxu0 0
      %1581 = vmatpush1.bf16.msra.mxu0 0
      %1582 = vmatprep.subr.bf16.mxu0 0
      %1583 = vmatpush1.bf16.msra.mxu0 0
      %1584 = vmatprep.subr.bf16.mxu0 0
      %1585 = vmatpush1.bf16.msra.mxu0 0
      %1586 = vmatprep.subr.bf16.mxu0 0
      %1587 = vmatpush1.bf16.msra.mxu0 0
      %1588 = vmatprep.subr.bf16.mxu0 0
      %1589 = vmatpush1.bf16.msra.mxu0 0
      %1590 = vmatprep.subr.bf16.mxu0 0
      %1591 = vmatpush1.bf16.msra.mxu0 0
      %1592 = vmatprep.subr.bf16.mxu0 0
      %1593 = vmatpush1.bf16.msra.mxu0 0
      %1594 = vmatprep.subr.bf16.mxu0 0
      %1595 = vmatpush1.bf16.msra.mxu0 0
      %1596 = vmatprep.subr.bf16.mxu0 0
      %1597 = vmatpush1.bf16.msra.mxu0 0
      %1598 = vmatprep.subr.bf16.mxu0 0
      %1599 = vmatpush1.bf16.msra.mxu0 0
      %1600 = vmatprep.mubr.bf16.mxu0 0
      %1601 = vmatmul.mubr.bf16.gmra.mrb[0].mxu0 %v1557
      %v1602 = vpop.f32.mrb[0].mxu0
      %v1603 = vadd.f32 0.0, %v1602
      %v1604 = vpop.f32.mrb[0].mxu0
      %v1605 = vpop.f32.mrb[0].mxu0
      %v1606 = vadd.f32 0.0, %v1605
      %v1607 = vpop.f32.mrb[0].mxu0
      %1608 = vmatprep.mubr.bf16.mxu0 0
      %1609 = vmatmul.mubr.bf16.gmra.mrb[0].mxu0 %v1560
      %v1610 = vpop.f32.mrb[0].mxu0
      %v1611 = vadd.f32 0.0, %v1610
      %v1612 = vpop.f32.mrb[0].mxu0
      %v1613 = vpop.f32.mrb[0].mxu0
      %v1614 = vadd.f32 0.0, %v1613
      %v1615 = vpop.f32.mrb[0].mxu0
      %1616 = vmatprep.mubr.bf16.mxu0 0
      %1617 = vmatmul.mubr.bf16.gmra.mrb[0].mxu0 %v1563
      %v1618 = vpop.f32.mrb[0].mxu0
      %v1619 = vadd.f32 0.0, %v1618
      %v1620 = vpop.f32.mrb[0].mxu0
      %v1621 = vpop.f32.mrb[0].mxu0
      %v1622 = vadd.f32 0.0, %v1621
      %v1623 = vpop.f32.mrb[0].mxu0
      %1624 = vmatprep.mubr.bf16.mxu0 0
      %1625 = vmatmul.mubr.bf16.gmra.mrb[0].mxu0 %v1566
      %v1626 = vpop.f32.mrb[0].mxu0
      %v1627 = vadd.f32 0.0, %v1626
      %v1628 = vpop.f32.mrb[0].mxu0
      %v1629 = vpop.f32.mrb[0].mxu0
      %v1630 = vadd.f32 0.0, %v1629
      %v1631 = vpop.f32.mrb[0].mxu0
      %1632 = vdwg.mxu0
      %v1633 = vadd.f32 %v1522, %v1603
      %v1634 = vadd.f32 %v1523, %v1606
      %v1635 = vadd.f32 %v1524, %v1611
      %v1636 = vadd.f32 %v1525, %v1614
      %v1637 = vadd.f32 %v1526, %v1619
      %v1638 = vadd.f32 %v1527, %v1622
      %v1639 = vadd.f32 %v1528, %v1627
      %v1640 = vadd.f32 %v1529, %v1630
      %s1641 = scalar_lea.vmem %s3, 128
      %v1642 = vld [vmem:[%s1641] sm:$0xf]
      %v1643 = vld [vmem:[%s1641 + $0x4] sm:$0xf]
      %v1644 = vld [vmem:[%s1641 + $0x8] sm:$0xf]
      %v1645 = vld [vmem:[%s1641 + $0xc] sm:$0xf]
      %s1646 = scalar_lea.vmem %s3, 144
      %v1647 = vld [vmem:[%s1646] sm:$0xf]
      %v1648 = vld [vmem:[%s1646 + $0x4] sm:$0xf]
      %v1649 = vld [vmem:[%s1646 + $0x8] sm:$0xf]
      %v1650 = vld [vmem:[%s1646 + $0xc] sm:$0xf]
      %v1655 = vunpack.c.l.b16 %v1647
      %v1656 = vunpack.c.l.b16 %v1648
      %v1657 = vunpack.c.l.b16 %v1649
      %v1658 = vunpack.c.l.b16 %v1650
      %v1659 = vpack.c.b16 %v1656, %v1655
      %v1660 = vpack.c.b16 %v1658, %v1657
      %1663 = vmatprep.subr.bf16.mxu0 0
      %1664 = vmatpush1.bf16.msra.mxu0 %v1659
      %1665 = vmatprep.subr.bf16.mxu0 0
      %1666 = vmatpush1.bf16.msra.mxu0 %v1660
      %1667 = vmatprep.subr.bf16.mxu0 0
      %1668 = vmatpush1.bf16.msra.mxu0 0
      %1669 = vmatprep.subr.bf16.mxu0 0
      %1670 = vmatpush1.bf16.msra.mxu0 0
      %1671 = vmatprep.subr.bf16.mxu0 0
      %1672 = vmatpush1.bf16.msra.mxu0 0
      %1673 = vmatprep.subr.bf16.mxu0 0
      %1674 = vmatpush1.bf16.msra.mxu0 0
      %1675 = vmatprep.subr.bf16.mxu0 0
      %1676 = vmatpush1.bf16.msra.mxu0 0
      %1677 = vmatprep.subr.bf16.mxu0 0
      %1678 = vmatpush1.bf16.msra.mxu0 0
      %1679 = vmatprep.subr.bf16.mxu0 0
      %1680 = vmatpush1.bf16.msra.mxu0 0
      %1681 = vmatprep.subr.bf16.mxu0 0
      %1682 = vmatpush1.bf16.msra.mxu0 0
      %1683 = vmatprep.subr.bf16.mxu0 0
      %1684 = vmatpush1.bf16.msra.mxu0 0
      %1685 = vmatprep.subr.bf16.mxu0 0
      %1686 = vmatpush1.bf16.msra.mxu0 0
      %1687 = vmatprep.subr.bf16.mxu0 0
      %1688 = vmatpush1.bf16.msra.mxu0 0
      %1689 = vmatprep.subr.bf16.mxu0 0
      %1690 = vmatpush1.bf16.msra.mxu0 0
      %1691 = vmatprep.subr.bf16.mxu0 0
      %1692 = vmatpush1.bf16.msra.mxu0 0
      %1693 = vmatprep.subr.bf16.mxu0 0
      %1694 = vmatpush1.bf16.msra.mxu0 0
      %1695 = vmatprep.mubr.bf16.mxu0 0
      %1696 = vmatmul.mubr.bf16.gmra.mrb[0].mxu0 %v1133
      %v1697 = vpop.f32.mrb[0].mxu0
      %v1698 = vadd.f32 0.0, %v1697
      %v1699 = vpop.f32.mrb[0].mxu0
      %v1700 = vpop.f32.mrb[0].mxu0
      %v1701 = vadd.f32 0.0, %v1700
      %v1702 = vpop.f32.mrb[0].mxu0
      %1703 = vmatprep.mubr.bf16.mxu0 0
      %1704 = vmatmul.mubr.bf16.gmra.mrb[0].mxu0 %v1136
      %v1705 = vpop.f32.mrb[0].mxu0
      %v1706 = vadd.f32 0.0, %v1705
      %v1707 = vpop.f32.mrb[0].mxu0
      %v1708 = vpop.f32.mrb[0].mxu0
      %v1709 = vadd.f32 0.0, %v1708
      %v1710 = vpop.f32.mrb[0].mxu0
      %1711 = vmatprep.mubr.bf16.mxu0 0
      %1712 = vmatmul.mubr.bf16.gmra.mrb[0].mxu0 %v1139
      %v1713 = vpop.f32.mrb[0].mxu0
      %v1714 = vadd.f32 0.0, %v1713
      %v1715 = vpop.f32.mrb[0].mxu0
      %v1716 = vpop.f32.mrb[0].mxu0
      %v1717 = vadd.f32 0.0, %v1716
      %v1718 = vpop.f32.mrb[0].mxu0
      %1719 = vmatprep.mubr.bf16.mxu0 0
      %1720 = vmatmul.mubr.bf16.gmra.mrb[0].mxu0 %v1142
      %v1721 = vpop.f32.mrb[0].mxu0
      %v1722 = vadd.f32 0.0, %v1721
      %v1723 = vpop.f32.mrb[0].mxu0
      %v1724 = vpop.f32.mrb[0].mxu0
      %v1725 = vadd.f32 0.0, %v1724
      %v1726 = vpop.f32.mrb[0].mxu0
      %1727 = vdwg.mxu0
      %v1732 = vunpack.c.l.b16 %v1642
      %v1733 = vunpack.c.l.b16 %v1643
      %v1734 = vunpack.c.l.b16 %v1644
      %v1735 = vunpack.c.l.b16 %v1645
      %v1736 = vpack.c.b16 %v1733, %v1732
      %v1737 = vpack.c.b16 %v1735, %v1734
      %1740 = vmatprep.subr.bf16.mxu0 0
      %1741 = vmatpush1.bf16.msra.mxu0 %v1736
      %1742 = vmatprep.subr.bf16.mxu0 0
      %1743 = vmatpush1.bf16.msra.mxu0 %v1737
      %1744 = vmatprep.subr.bf16.mxu0 0
      %1745 = vmatpush1.bf16.msra.mxu0 0
      %1746 = vmatprep.subr.bf16.mxu0 0
      %1747 = vmatpush1.bf16.msra.mxu0 0
      %1748 = vmatprep.subr.bf16.mxu0 0
      %1749 = vmatpush1.bf16.msra.mxu0 0
      %1750 = vmatprep.subr.bf16.mxu0 0
      %1751 = vmatpush1.bf16.msra.mxu0 0
      %1752 = vmatprep.subr.bf16.mxu0 0
      %1753 = vmatpush1.bf16.msra.mxu0 0
      %1754 = vmatprep.subr.bf16.mxu0 0
      %1755 = vmatpush1.bf16.msra.mxu0 0
      %1756 = vmatprep.subr.bf16.mxu0 0
      %1757 = vmatpush1.bf16.msra.mxu0 0
      %1758 = vmatprep.subr.bf16.mxu0 0
      %1759 = vmatpush1.bf16.msra.mxu0 0
      %1760 = vmatprep.subr.bf16.mxu0 0
      %1761 = vmatpush1.bf16.msra.mxu0 0
      %1762 = vmatprep.subr.bf16.mxu0 0
      %1763 = vmatpush1.bf16.msra.mxu0 0
      %1764 = vmatprep.subr.bf16.mxu0 0
      %1765 = vmatpush1.bf16.msra.mxu0 0
      %1766 = vmatprep.subr.bf16.mxu0 0
      %1767 = vmatpush1.bf16.msra.mxu0 0
      %1768 = vmatprep.subr.bf16.mxu0 0
      %1769 = vmatpush1.bf16.msra.mxu0 0
      %1770 = vmatprep.subr.bf16.mxu0 0
      %1771 = vmatpush1.bf16.msra.mxu0 0
      %1772 = vmatprep.mubr.bf16.mxu0 0
      %1773 = vmatmul.mubr.bf16.gmra.mrb[0].mxu0 %v1009
      %v1774 = vpop.f32.mrb[0].mxu0
      %v1775 = vadd.f32 %v1698, %v1774
      %v1776 = vpop.f32.mrb[0].mxu0
      %v1777 = vpop.f32.mrb[0].mxu0
      %v1778 = vadd.f32 %v1701, %v1777
      %v1779 = vpop.f32.mrb[0].mxu0
      %1780 = vmatprep.mubr.bf16.mxu0 0
      %1781 = vmatmul.mubr.bf16.gmra.mrb[0].mxu0 %v1012
      %v1782 = vpop.f32.mrb[0].mxu0
      %v1783 = vadd.f32 %v1706, %v1782
      %v1784 = vpop.f32.mrb[0].mxu0
      %v1785 = vpop.f32.mrb[0].mxu0
      %v1786 = vadd.f32 %v1709, %v1785
      %v1787 = vpop.f32.mrb[0].mxu0
      %1788 = vmatprep.mubr.bf16.mxu0 0
      %1789 = vmatmul.mubr.bf16.gmra.mrb[0].mxu0 %v1015
      %v1790 = vpop.f32.mrb[0].mxu0
      %v1791 = vadd.f32 %v1714, %v1790
      %v1792 = vpop.f32.mrb[0].mxu0
      %v1793 = vpop.f32.mrb[0].mxu0
      %v1794 = vadd.f32 %v1717, %v1793
      %v1795 = vpop.f32.mrb[0].mxu0
      %1796 = vmatprep.mubr.bf16.mxu0 0
      %1797 = vmatmul.mubr.bf16.gmra.mrb[0].mxu0 %v1018
      %v1798 = vpop.f32.mrb[0].mxu0
      %v1799 = vadd.f32 %v1722, %v1798
      %v1800 = vpop.f32.mrb[0].mxu0
      %v1801 = vpop.f32.mrb[0].mxu0
      %v1802 = vadd.f32 %v1725, %v1801
      %v1803 = vpop.f32.mrb[0].mxu0
      %1804 = vdwg.mxu0
      %s1805 = scalar_lea.vmem %s3, 160
      %v1806 = vld [vmem:[%s1805] sm:$0xf]
      %v1807 = vld [vmem:[%s1805 + $0x4] sm:$0xf]
      %v1808 = vld [vmem:[%s1805 + $0x8] sm:$0xf]
      %v1809 = vld [vmem:[%s1805 + $0xc] sm:$0xf]
      %v1811 = vunpack.c.l.b16 %v625
      %v1812 = vpack.c.b16 %v1811, %v991
      %v1817 = vunpack.c.l.b16 %v1806
      %v1818 = vunpack.c.l.b16 %v1807
      %v1819 = vunpack.c.l.b16 %v1808
      %v1820 = vunpack.c.l.b16 %v1809
      %v1821 = vpack.c.b16 %v1818, %v1817
      %v1822 = vpack.c.b16 %v1820, %v1819
      %v1826 = vsel %vm814, %v1812, 0
      %1828 = vmatprep.subr.bf16.mxu0 0
      %1829 = vmatpush1.bf16.msra.mxu0 %v1821
      %1830 = vmatprep.subr.bf16.mxu0 0
      %1831 = vmatpush1.bf16.msra.mxu0 %v1822
      %1832 = vmatprep.subr.bf16.mxu0 0
      %1833 = vmatpush1.bf16.msra.mxu0 0
      %1834 = vmatprep.subr.bf16.mxu0 0
      %1835 = vmatpush1.bf16.msra.mxu0 0
      %1836 = vmatprep.subr.bf16.mxu0 0
      %1837 = vmatpush1.bf16.msra.mxu0 0
      %1838 = vmatprep.subr.bf16.mxu0 0
      %1839 = vmatpush1.bf16.msra.mxu0 0
      %1840 = vmatprep.subr.bf16.mxu0 0
      %1841 = vmatpush1.bf16.msra.mxu0 0
      %1842 = vmatprep.subr.bf16.mxu0 0
      %1843 = vmatpush1.bf16.msra.mxu0 0
      %1844 = vmatprep.subr.bf16.mxu0 0
      %1845 = vmatpush1.bf16.msra.mxu0 0
      %1846 = vmatprep.subr.bf16.mxu0 0
      %1847 = vmatpush1.bf16.msra.mxu0 0
      %1848 = vmatprep.subr.bf16.mxu0 0
      %1849 = vmatpush1.bf16.msra.mxu0 0
      %1850 = vmatprep.subr.bf16.mxu0 0
      %1851 = vmatpush1.bf16.msra.mxu0 0
      %1852 = vmatprep.subr.bf16.mxu0 0
      %1853 = vmatpush1.bf16.msra.mxu0 0
      %1854 = vmatprep.subr.bf16.mxu0 0
      %1855 = vmatpush1.bf16.msra.mxu0 0
      %1856 = vmatprep.subr.bf16.mxu0 0
      %1857 = vmatpush1.bf16.msra.mxu0 0
      %1858 = vmatprep.subr.bf16.mxu0 0
      %1859 = vmatpush1.bf16.msra.mxu0 0
      %1860 = vmatprep.mubr.bf16.mxu0 0
      %1861 = vmatmul.mubr.bf16.gmra.mrb[0].mxu0 %v912
      %v1862 = vpop.f32.mrb[0].mxu0
      %v1863 = vadd.f32 0.0, %v1862
      %v1864 = vpop.f32.mrb[0].mxu0
      %v1865 = vpop.f32.mrb[0].mxu0
      %v1866 = vadd.f32 0.0, %v1865
      %v1867 = vpop.f32.mrb[0].mxu0
      %1868 = vmatprep.mubr.bf16.mxu0 0
      %1869 = vmatmul.mubr.bf16.gmra.mrb[0].mxu0 %v915
      %v1870 = vpop.f32.mrb[0].mxu0
      %v1871 = vadd.f32 0.0, %v1870
      %v1872 = vpop.f32.mrb[0].mxu0
      %v1873 = vpop.f32.mrb[0].mxu0
      %v1874 = vadd.f32 0.0, %v1873
      %v1875 = vpop.f32.mrb[0].mxu0
      %1876 = vmatprep.mubr.bf16.mxu0 0
      %1877 = vmatmul.mubr.bf16.gmra.mrb[0].mxu0 %v918
      %v1878 = vpop.f32.mrb[0].mxu0
      %v1879 = vadd.f32 0.0, %v1878
      %v1880 = vpop.f32.mrb[0].mxu0
      %v1881 = vpop.f32.mrb[0].mxu0
      %v1882 = vadd.f32 0.0, %v1881
      %v1883 = vpop.f32.mrb[0].mxu0
      %1884 = vmatprep.mubr.bf16.mxu0 0
      %1885 = vmatmul.mubr.bf16.gmra.mrb[0].mxu0 %v1826
      %v1886 = vpop.f32.mrb[0].mxu0
      %v1887 = vadd.f32 0.0, %v1886
      %v1888 = vpop.f32.mrb[0].mxu0
      %v1889 = vpop.f32.mrb[0].mxu0
      %v1890 = vadd.f32 0.0, %v1889
      %v1891 = vpop.f32.mrb[0].mxu0
      %1892 = vdwg.mxu0
      %v1893 = vadd.f32 %v1775, %v1863
      %v1894 = vadd.f32 %v1778, %v1866
      %v1895 = vadd.f32 %v1783, %v1871
      %v1896 = vadd.f32 %v1786, %v1874
      %v1897 = vadd.f32 %v1791, %v1879
      %v1898 = vadd.f32 %v1794, %v1882
      %v1899 = vadd.f32 %v1799, %v1887
      %v1900 = vadd.f32 %v1802, %v1890
      %v1901 = vunpack.c.h.b16 %v625
      %v1902 = vpack.c.b16 %v1811, %v1811
      %v1903 = vpack.c.b16 %v1901, %v1901
      %v1905 = vshrl.u32 %v1902, 16
      %v1907 = vrot.slane %v1905, 4
      %v1908 = vshll.u32 %v1902, 16
      %v1910 = vrot.slane %v1908, 5
      %v1911 = vor.u32 %v1907, %v1910
      %v1912 = vrot.slane %v1911, 4
      %v1914 = vshll.u32 %v1903, 16
      %v1916 = vrot.slane %v1914, 5
      %v1917 = vsel %vm672, %v1912, %v1916
      %s1918 = scalar_lea.vmem %s3, 176
      %v1919 = vld [vmem:[%s1918] sm:$0xf]
      %v1920 = vld [vmem:[%s1918 + $0x4] sm:$0xf]
      %v1921 = vld [vmem:[%s1918 + $0x8] sm:$0xf]
      %v1922 = vld [vmem:[%s1918 + $0xc] sm:$0xf]
      %v1923 = vunpack.c.l.b16 %v1917
      %v1924 = vpack.c.b16 %v1923, %v1115
      %v1929 = vunpack.c.l.b16 %v1919
      %v1930 = vunpack.c.l.b16 %v1920
      %v1931 = vunpack.c.l.b16 %v1921
      %v1932 = vunpack.c.l.b16 %v1922
      %v1933 = vpack.c.b16 %v1930, %v1929
      %v1934 = vpack.c.b16 %v1932, %v1931
      %v1938 = vsel %vm814, %v1924, 0
      %1940 = vmatprep.subr.bf16.mxu0 0
      %1941 = vmatpush1.bf16.msra.mxu0 %v1933
      %1942 = vmatprep.subr.bf16.mxu0 0
      %1943 = vmatpush1.bf16.msra.mxu0 %v1934
      %1944 = vmatprep.subr.bf16.mxu0 0
      %1945 = vmatpush1.bf16.msra.mxu0 0
      %1946 = vmatprep.subr.bf16.mxu0 0
      %1947 = vmatpush1.bf16.msra.mxu0 0
      %1948 = vmatprep.subr.bf16.mxu0 0
      %1949 = vmatpush1.bf16.msra.mxu0 0
      %1950 = vmatprep.subr.bf16.mxu0 0
      %1951 = vmatpush1.bf16.msra.mxu0 0
      %1952 = vmatprep.subr.bf16.mxu0 0
      %1953 = vmatpush1.bf16.msra.mxu0 0
      %1954 = vmatprep.subr.bf16.mxu0 0
      %1955 = vmatpush1.bf16.msra.mxu0 0
      %1956 = vmatprep.subr.bf16.mxu0 0
      %1957 = vmatpush1.bf16.msra.mxu0 0
      %1958 = vmatprep.subr.bf16.mxu0 0
      %1959 = vmatpush1.bf16.msra.mxu0 0
      %1960 = vmatprep.subr.bf16.mxu0 0
      %1961 = vmatpush1.bf16.msra.mxu0 0
      %1962 = vmatprep.subr.bf16.mxu0 0
      %1963 = vmatpush1.bf16.msra.mxu0 0
      %1964 = vmatprep.subr.bf16.mxu0 0
      %1965 = vmatpush1.bf16.msra.mxu0 0
      %1966 = vmatprep.subr.bf16.mxu0 0
      %1967 = vmatpush1.bf16.msra.mxu0 0
      %1968 = vmatprep.subr.bf16.mxu0 0
      %1969 = vmatpush1.bf16.msra.mxu0 0
      %1970 = vmatprep.subr.bf16.mxu0 0
      %1971 = vmatpush1.bf16.msra.mxu0 0
      %1972 = vmatprep.mubr.bf16.mxu0 0
      %1973 = vmatmul.mubr.bf16.gmra.mrb[0].mxu0 %v819
      %v1974 = vpop.f32.mrb[0].mxu0
      %v1975 = vadd.f32 0.0, %v1974
      %v1976 = vpop.f32.mrb[0].mxu0
      %v1977 = vpop.f32.mrb[0].mxu0
      %v1978 = vadd.f32 0.0, %v1977
      %v1979 = vpop.f32.mrb[0].mxu0
      %1980 = vmatprep.mubr.bf16.mxu0 0
      %1981 = vmatmul.mubr.bf16.gmra.mrb[0].mxu0 %v822
      %v1982 = vpop.f32.mrb[0].mxu0
      %v1983 = vadd.f32 0.0, %v1982
      %v1984 = vpop.f32.mrb[0].mxu0
      %v1985 = vpop.f32.mrb[0].mxu0
      %v1986 = vadd.f32 0.0, %v1985
      %v1987 = vpop.f32.mrb[0].mxu0
      %1988 = vmatprep.mubr.bf16.mxu0 0
      %1989 = vmatmul.mubr.bf16.gmra.mrb[0].mxu0 %v825
      %v1990 = vpop.f32.mrb[0].mxu0
      %v1991 = vadd.f32 0.0, %v1990
      %v1992 = vpop.f32.mrb[0].mxu0
      %v1993 = vpop.f32.mrb[0].mxu0
      %v1994 = vadd.f32 0.0, %v1993
      %v1995 = vpop.f32.mrb[0].mxu0
      %1996 = vmatprep.mubr.bf16.mxu0 0
      %1997 = vmatmul.mubr.bf16.gmra.mrb[0].mxu0 %v1938
      %v1998 = vpop.f32.mrb[0].mxu0
      %v1999 = vadd.f32 0.0, %v1998
      %v2000 = vpop.f32.mrb[0].mxu0
      %v2001 = vpop.f32.mrb[0].mxu0
      %v2002 = vadd.f32 0.0, %v2001
      %v2003 = vpop.f32.mrb[0].mxu0
      %2004 = vdwg.mxu0
      %v2005 = vadd.f32 %v1893, %v1975
      %v2006 = vadd.f32 %v1894, %v1978
      %v2007 = vadd.f32 %v1895, %v1983
      %v2008 = vadd.f32 %v1896, %v1986
      %v2009 = vadd.f32 %v1897, %v1991
      %v2010 = vadd.f32 %v1898, %v1994
      %v2011 = vadd.f32 %v1899, %v1999
      %v2012 = vadd.f32 %v1900, %v2002
      %s2013 = scalar_lea.vmem %s3, 192
      %v2014 = vld [vmem:[%s2013] sm:$0xf]
      %v2015 = vld [vmem:[%s2013 + $0x4] sm:$0xf]
      %v2016 = vld [vmem:[%s2013 + $0x8] sm:$0xf]
      %v2017 = vld [vmem:[%s2013 + $0xc] sm:$0xf]
      %s2018 = scalar_lea.vmem %s3, 208
      %v2019 = vld [vmem:[%s2018] sm:$0xf]
      %v2020 = vld [vmem:[%s2018 + $0x4] sm:$0xf]
      %v2021 = vld [vmem:[%s2018 + $0x8] sm:$0xf]
      %v2022 = vld [vmem:[%s2018 + $0xc] sm:$0xf]
      %v2027 = vunpack.c.l.b16 %v2019
      %v2028 = vunpack.c.l.b16 %v2020
      %v2029 = vunpack.c.l.b16 %v2021
      %v2030 = vunpack.c.l.b16 %v2022
      %v2031 = vpack.c.b16 %v2028, %v2027
      %v2032 = vpack.c.b16 %v2030, %v2029
      %2035 = vmatprep.subr.bf16.mxu0 0
      %2036 = vmatpush1.bf16.msra.mxu0 %v2031
      %2037 = vmatprep.subr.bf16.mxu0 0
      %2038 = vmatpush1.bf16.msra.mxu0 %v2032
      %2039 = vmatprep.subr.bf16.mxu0 0
      %2040 = vmatpush1.bf16.msra.mxu0 0
      %2041 = vmatprep.subr.bf16.mxu0 0
      %2042 = vmatpush1.bf16.msra.mxu0 0
      %2043 = vmatprep.subr.bf16.mxu0 0
      %2044 = vmatpush1.bf16.msra.mxu0 0
      %2045 = vmatprep.subr.bf16.mxu0 0
      %2046 = vmatpush1.bf16.msra.mxu0 0
      %2047 = vmatprep.subr.bf16.mxu0 0
      %2048 = vmatpush1.bf16.msra.mxu0 0
      %2049 = vmatprep.subr.bf16.mxu0 0
      %2050 = vmatpush1.bf16.msra.mxu0 0
      %2051 = vmatprep.subr.bf16.mxu0 0
      %2052 = vmatpush1.bf16.msra.mxu0 0
      %2053 = vmatprep.subr.bf16.mxu0 0
      %2054 = vmatpush1.bf16.msra.mxu0 0
      %2055 = vmatprep.subr.bf16.mxu0 0
      %2056 = vmatpush1.bf16.msra.mxu0 0
      %2057 = vmatprep.subr.bf16.mxu0 0
      %2058 = vmatpush1.bf16.msra.mxu0 0
      %2059 = vmatprep.subr.bf16.mxu0 0
      %2060 = vmatpush1.bf16.msra.mxu0 0
      %2061 = vmatprep.subr.bf16.mxu0 0
      %2062 = vmatpush1.bf16.msra.mxu0 0
      %2063 = vmatprep.subr.bf16.mxu0 0
      %2064 = vmatpush1.bf16.msra.mxu0 0
      %2065 = vmatprep.subr.bf16.mxu0 0
      %2066 = vmatpush1.bf16.msra.mxu0 0
      %2067 = vmatprep.mubr.bf16.mxu0 0
      %2068 = vmatmul.mubr.bf16.gmra.mrb[0].mxu0 %v1557
      %v2069 = vpop.f32.mrb[0].mxu0
      %v2070 = vadd.f32 0.0, %v2069
      %v2071 = vpop.f32.mrb[0].mxu0
      %v2072 = vpop.f32.mrb[0].mxu0
      %v2073 = vadd.f32 0.0, %v2072
      %v2074 = vpop.f32.mrb[0].mxu0
      %2075 = vmatprep.mubr.bf16.mxu0 0
      %2076 = vmatmul.mubr.bf16.gmra.mrb[0].mxu0 %v1560
      %v2077 = vpop.f32.mrb[0].mxu0
      %v2078 = vadd.f32 0.0, %v2077
      %v2079 = vpop.f32.mrb[0].mxu0
      %v2080 = vpop.f32.mrb[0].mxu0
      %v2081 = vadd.f32 0.0, %v2080
      %v2082 = vpop.f32.mrb[0].mxu0
      %2083 = vmatprep.mubr.bf16.mxu0 0
      %2084 = vmatmul.mubr.bf16.gmra.mrb[0].mxu0 %v1563
      %v2085 = vpop.f32.mrb[0].mxu0
      %v2086 = vadd.f32 0.0, %v2085
      %v2087 = vpop.f32.mrb[0].mxu0
      %v2088 = vpop.f32.mrb[0].mxu0
      %v2089 = vadd.f32 0.0, %v2088
      %v2090 = vpop.f32.mrb[0].mxu0
      %2091 = vmatprep.mubr.bf16.mxu0 0
      %2092 = vmatmul.mubr.bf16.gmra.mrb[0].mxu0 %v1566
      %v2093 = vpop.f32.mrb[0].mxu0
      %v2094 = vadd.f32 0.0, %v2093
      %v2095 = vpop.f32.mrb[0].mxu0
      %v2096 = vpop.f32.mrb[0].mxu0
      %v2097 = vadd.f32 0.0, %v2096
      %v2098 = vpop.f32.mrb[0].mxu0
      %2099 = vdwg.mxu0
      %v2104 = vunpack.c.l.b16 %v2014
      %v2105 = vunpack.c.l.b16 %v2015
      %v2106 = vunpack.c.l.b16 %v2016
      %v2107 = vunpack.c.l.b16 %v2017
      %v2108 = vpack.c.b16 %v2105, %v2104
      %v2109 = vpack.c.b16 %v2107, %v2106
      %2112 = vmatprep.subr.bf16.mxu0 0
      %2113 = vmatpush1.bf16.msra.mxu0 %v2108
      %2114 = vmatprep.subr.bf16.mxu0 0
      %2115 = vmatpush1.bf16.msra.mxu0 %v2109
      %2116 = vmatprep.subr.bf16.mxu0 0
      %2117 = vmatpush1.bf16.msra.mxu0 0
      %2118 = vmatprep.subr.bf16.mxu0 0
      %2119 = vmatpush1.bf16.msra.mxu0 0
      %2120 = vmatprep.subr.bf16.mxu0 0
      %2121 = vmatpush1.bf16.msra.mxu0 0
      %2122 = vmatprep.subr.bf16.mxu0 0
      %2123 = vmatpush1.bf16.msra.mxu0 0
      %2124 = vmatprep.subr.bf16.mxu0 0
      %2125 = vmatpush1.bf16.msra.mxu0 0
      %2126 = vmatprep.subr.bf16.mxu0 0
      %2127 = vmatpush1.bf16.msra.mxu0 0
      %2128 = vmatprep.subr.bf16.mxu0 0
      %2129 = vmatpush1.bf16.msra.mxu0 0
      %2130 = vmatprep.subr.bf16.mxu0 0
      %2131 = vmatpush1.bf16.msra.mxu0 0
      %2132 = vmatprep.subr.bf16.mxu0 0
      %2133 = vmatpush1.bf16.msra.mxu0 0
      %2134 = vmatprep.subr.bf16.mxu0 0
      %2135 = vmatpush1.bf16.msra.mxu0 0
      %2136 = vmatprep.subr.bf16.mxu0 0
      %2137 = vmatpush1.bf16.msra.mxu0 0
      %2138 = vmatprep.subr.bf16.mxu0 0
      %2139 = vmatpush1.bf16.msra.mxu0 0
      %2140 = vmatprep.subr.bf16.mxu0 0
      %2141 = vmatpush1.bf16.msra.mxu0 0
      %2142 = vmatprep.subr.bf16.mxu0 0
      %2143 = vmatpush1.bf16.msra.mxu0 0
      %2144 = vmatprep.mubr.bf16.mxu0 0
      %2145 = vmatmul.mubr.bf16.gmra.mrb[0].mxu0 %v1133
      %v2146 = vpop.f32.mrb[0].mxu0
      %v2147 = vadd.f32 %v2070, %v2146
      %v2148 = vpop.f32.mrb[0].mxu0
      %v2149 = vpop.f32.mrb[0].mxu0
      %v2150 = vadd.f32 %v2073, %v2149
      %v2151 = vpop.f32.mrb[0].mxu0
      %2152 = vmatprep.mubr.bf16.mxu0 0
      %2153 = vmatmul.mubr.bf16.gmra.mrb[0].mxu0 %v1136
      %v2154 = vpop.f32.mrb[0].mxu0
      %v2155 = vadd.f32 %v2078, %v2154
      %v2156 = vpop.f32.mrb[0].mxu0
      %v2157 = vpop.f32.mrb[0].mxu0
      %v2158 = vadd.f32 %v2081, %v2157
      %v2159 = vpop.f32.mrb[0].mxu0
      %2160 = vmatprep.mubr.bf16.mxu0 0
      %2161 = vmatmul.mubr.bf16.gmra.mrb[0].mxu0 %v1139
      %v2162 = vpop.f32.mrb[0].mxu0
      %v2163 = vadd.f32 %v2086, %v2162
      %v2164 = vpop.f32.mrb[0].mxu0
      %v2165 = vpop.f32.mrb[0].mxu0
      %v2166 = vadd.f32 %v2089, %v2165
      %v2167 = vpop.f32.mrb[0].mxu0
      %2168 = vmatprep.mubr.bf16.mxu0 0
      %2169 = vmatmul.mubr.bf16.gmra.mrb[0].mxu0 %v1142
      %v2170 = vpop.f32.mrb[0].mxu0
      %v2171 = vadd.f32 %v2094, %v2170
      %v2172 = vpop.f32.mrb[0].mxu0
      %v2173 = vpop.f32.mrb[0].mxu0
      %v2174 = vadd.f32 %v2097, %v2173
      %v2175 = vpop.f32.mrb[0].mxu0
      %2176 = vdwg.mxu0
      %s2177 = scalar_lea.vmem %s3, 224
      %v2178 = vld [vmem:[%s2177] sm:$0xf]
      %v2179 = vld [vmem:[%s2177 + $0x4] sm:$0xf]
      %v2180 = vld [vmem:[%s2177 + $0x8] sm:$0xf]
      %v2181 = vld [vmem:[%s2177 + $0xc] sm:$0xf]
      %v2186 = vunpack.c.l.b16 %v2178
      %v2187 = vunpack.c.l.b16 %v2179
      %v2188 = vunpack.c.l.b16 %v2180
      %v2189 = vunpack.c.l.b16 %v2181
      %v2190 = vpack.c.b16 %v2187, %v2186
      %v2191 = vpack.c.b16 %v2189, %v2188
      %2194 = vmatprep.subr.bf16.mxu0 0
      %2195 = vmatpush1.bf16.msra.mxu0 %v2190
      %2196 = vmatprep.subr.bf16.mxu0 0
      %2197 = vmatpush1.bf16.msra.mxu0 %v2191
      %2198 = vmatprep.subr.bf16.mxu0 0
      %2199 = vmatpush1.bf16.msra.mxu0 0
      %2200 = vmatprep.subr.bf16.mxu0 0
      %2201 = vmatpush1.bf16.msra.mxu0 0
      %2202 = vmatprep.subr.bf16.mxu0 0
      %2203 = vmatpush1.bf16.msra.mxu0 0
      %2204 = vmatprep.subr.bf16.mxu0 0
      %2205 = vmatpush1.bf16.msra.mxu0 0
      %2206 = vmatprep.subr.bf16.mxu0 0
      %2207 = vmatpush1.bf16.msra.mxu0 0
      %2208 = vmatprep.subr.bf16.mxu0 0
      %2209 = vmatpush1.bf16.msra.mxu0 0
      %2210 = vmatprep.subr.bf16.mxu0 0
      %2211 = vmatpush1.bf16.msra.mxu0 0
      %2212 = vmatprep.subr.bf16.mxu0 0
      %2213 = vmatpush1.bf16.msra.mxu0 0
      %2214 = vmatprep.subr.bf16.mxu0 0
      %2215 = vmatpush1.bf16.msra.mxu0 0
      %2216 = vmatprep.subr.bf16.mxu0 0
      %2217 = vmatpush1.bf16.msra.mxu0 0
      %2218 = vmatprep.subr.bf16.mxu0 0
      %2219 = vmatpush1.bf16.msra.mxu0 0
      %2220 = vmatprep.subr.bf16.mxu0 0
      %2221 = vmatpush1.bf16.msra.mxu0 0
      %2222 = vmatprep.subr.bf16.mxu0 0
      %2223 = vmatpush1.bf16.msra.mxu0 0
      %2224 = vmatprep.subr.bf16.mxu0 0
      %2225 = vmatpush1.bf16.msra.mxu0 0
      %2226 = vmatprep.mubr.bf16.mxu0 0
      %2227 = vmatmul.mubr.bf16.gmra.mrb[0].mxu0 %v819
      %v2228 = vpop.f32.mrb[0].mxu0
      %v2229 = vadd.f32 0.0, %v2228
      %v2230 = vpop.f32.mrb[0].mxu0
      %v2231 = vpop.f32.mrb[0].mxu0
      %v2232 = vadd.f32 0.0, %v2231
      %v2233 = vpop.f32.mrb[0].mxu0
      %2234 = vmatprep.mubr.bf16.mxu0 0
      %2235 = vmatmul.mubr.bf16.gmra.mrb[0].mxu0 %v822
      %v2236 = vpop.f32.mrb[0].mxu0
      %v2237 = vadd.f32 0.0, %v2236
      %v2238 = vpop.f32.mrb[0].mxu0
      %v2239 = vpop.f32.mrb[0].mxu0
      %v2240 = vadd.f32 0.0, %v2239
      %v2241 = vpop.f32.mrb[0].mxu0
      %2242 = vmatprep.mubr.bf16.mxu0 0
      %2243 = vmatmul.mubr.bf16.gmra.mrb[0].mxu0 %v825
      %v2244 = vpop.f32.mrb[0].mxu0
      %v2245 = vadd.f32 0.0, %v2244
      %v2246 = vpop.f32.mrb[0].mxu0
      %v2247 = vpop.f32.mrb[0].mxu0
      %v2248 = vadd.f32 0.0, %v2247
      %v2249 = vpop.f32.mrb[0].mxu0
      %2250 = vmatprep.mubr.bf16.mxu0 0
      %2251 = vmatmul.mubr.bf16.gmra.mrb[0].mxu0 %v1938
      %v2252 = vpop.f32.mrb[0].mxu0
      %v2253 = vadd.f32 0.0, %v2252
      %v2254 = vpop.f32.mrb[0].mxu0
      %v2255 = vpop.f32.mrb[0].mxu0
      %v2256 = vadd.f32 0.0, %v2255
      %v2257 = vpop.f32.mrb[0].mxu0
      %2258 = vdwg.mxu0
      %v2259 = vadd.f32 %v2147, %v2229
      %v2260 = vadd.f32 %v2150, %v2232
      %v2261 = vadd.f32 %v2155, %v2237
      %v2262 = vadd.f32 %v2158, %v2240
      %v2263 = vadd.f32 %v2163, %v2245
      %v2264 = vadd.f32 %v2166, %v2248
      %v2265 = vadd.f32 %v2171, %v2253
      %v2266 = vadd.f32 %v2174, %v2256
      %v2267 = vrot.slane %v1902, 5
      %v2268 = vrot.slane %v2267, 4
      %v2269 = vrot.slane %v1903, 5
      %v2270 = vsel %vm1224, %v2268, %v2269
      %s2271 = scalar_lea.vmem %s3, 240
      %v2272 = vld [vmem:[%s2271] sm:$0xf]
      %v2273 = vld [vmem:[%s2271 + $0x4] sm:$0xf]
      %v2274 = vld [vmem:[%s2271 + $0x8] sm:$0xf]
      %v2275 = vld [vmem:[%s2271 + $0xc] sm:$0xf]
      %v2276 = vunpack.c.l.b16 %v2270
      %v2277 = vpack.c.b16 %v2276, %v1539
      %v2282 = vunpack.c.l.b16 %v2272
      %v2283 = vunpack.c.l.b16 %v2273
      %v2284 = vunpack.c.l.b16 %v2274
      %v2285 = vunpack.c.l.b16 %v2275
      %v2286 = vpack.c.b16 %v2283, %v2282
      %v2287 = vpack.c.b16 %v2285, %v2284
      %v2291 = vsel %vm814, %v2277, 0
      %2293 = vmatprep.subr.bf16.mxu0 0
      %2294 = vmatpush1.bf16.msra.mxu0 %v2286
      %2295 = vmatprep.subr.bf16.mxu0 0
      %2296 = vmatpush1.bf16.msra.mxu0 %v2287
      %2297 = vmatprep.subr.bf16.mxu0 0
      %2298 = vmatpush1.bf16.msra.mxu0 0
      %2299 = vmatprep.subr.bf16.mxu0 0
      %2300 = vmatpush1.bf16.msra.mxu0 0
      %2301 = vmatprep.subr.bf16.mxu0 0
      %2302 = vmatpush1.bf16.msra.mxu0 0
      %2303 = vmatprep.subr.bf16.mxu0 0
      %2304 = vmatpush1.bf16.msra.mxu0 0
      %2305 = vmatprep.subr.bf16.mxu0 0
      %2306 = vmatpush1.bf16.msra.mxu0 0
      %2307 = vmatprep.subr.bf16.mxu0 0
      %2308 = vmatpush1.bf16.msra.mxu0 0
      %2309 = vmatprep.subr.bf16.mxu0 0
      %2310 = vmatpush1.bf16.msra.mxu0 0
      %2311 = vmatprep.subr.bf16.mxu0 0
      %2312 = vmatpush1.bf16.msra.mxu0 0
      %2313 = vmatprep.subr.bf16.mxu0 0
      %2314 = vmatpush1.bf16.msra.mxu0 0
      %2315 = vmatprep.subr.bf16.mxu0 0
      %2316 = vmatpush1.bf16.msra.mxu0 0
      %2317 = vmatprep.subr.bf16.mxu0 0
      %2318 = vmatpush1.bf16.msra.mxu0 0
      %2319 = vmatprep.subr.bf16.mxu0 0
      %2320 = vmatpush1.bf16.msra.mxu0 0
      %2321 = vmatprep.subr.bf16.mxu0 0
      %2322 = vmatpush1.bf16.msra.mxu0 0
      %2323 = vmatprep.subr.bf16.mxu0 0
      %2324 = vmatpush1.bf16.msra.mxu0 0
      %2325 = vmatprep.mubr.bf16.mxu0 0
      %2326 = vmatmul.mubr.bf16.gmra.mrb[0].mxu0 %v1290
      %v2327 = vpop.f32.mrb[0].mxu0
      %v2328 = vadd.f32 0.0, %v2327
      %v2329 = vpop.f32.mrb[0].mxu0
      %v2330 = vpop.f32.mrb[0].mxu0
      %v2331 = vadd.f32 0.0, %v2330
      %v2332 = vpop.f32.mrb[0].mxu0
      %2333 = vmatprep.mubr.bf16.mxu0 0
      %2334 = vmatmul.mubr.bf16.gmra.mrb[0].mxu0 %v1293
      %v2335 = vpop.f32.mrb[0].mxu0
      %v2336 = vadd.f32 0.0, %v2335
      %v2337 = vpop.f32.mrb[0].mxu0
      %v2338 = vpop.f32.mrb[0].mxu0
      %v2339 = vadd.f32 0.0, %v2338
      %v2340 = vpop.f32.mrb[0].mxu0
      %2341 = vmatprep.mubr.bf16.mxu0 0
      %2342 = vmatmul.mubr.bf16.gmra.mrb[0].mxu0 %v1296
      %v2343 = vpop.f32.mrb[0].mxu0
      %v2344 = vadd.f32 0.0, %v2343
      %v2345 = vpop.f32.mrb[0].mxu0
      %v2346 = vpop.f32.mrb[0].mxu0
      %v2347 = vadd.f32 0.0, %v2346
      %v2348 = vpop.f32.mrb[0].mxu0
      %2349 = vmatprep.mubr.bf16.mxu0 0
      %2350 = vmatmul.mubr.bf16.gmra.mrb[0].mxu0 %v2291
      %v2351 = vpop.f32.mrb[0].mxu0
      %v2352 = vadd.f32 0.0, %v2351
      %v2353 = vpop.f32.mrb[0].mxu0
      %v2354 = vpop.f32.mrb[0].mxu0
      %v2355 = vadd.f32 0.0, %v2354
      %v2356 = vpop.f32.mrb[0].mxu0
      %2357 = vdwg.mxu0
      %v2358 = vadd.f32 %v2259, %v2328
      %v2359 = vadd.f32 %v2260, %v2331
      %v2360 = vadd.f32 %v2261, %v2336
      %v2361 = vadd.f32 %v2262, %v2339
      %v2362 = vadd.f32 %v2263, %v2344
      %v2363 = vadd.f32 %v2264, %v2347
      %v2364 = vadd.f32 %v2265, %v2352
      %v2365 = vadd.f32 %v2266, %v2355
      %2374 = vrot.lane.b32.xlu0 %v1633, 16
      %v2375 = vpop.permute.xlu0 %2374
      %2376 = vrot.lane.b32.xlu0 %v1634, 16
      %v2377 = vpop.permute.xlu0 %2376
      %2378 = vrot.lane.b32.xlu0 %v1635, 16
      %v2379 = vpop.permute.xlu0 %2378
      %2380 = vrot.lane.b32.xlu0 %v1636, 16
      %v2381 = vpop.permute.xlu0 %2380
      %2382 = vrot.lane.b32.xlu0 %v1637, 16
      %v2383 = vpop.permute.xlu0 %2382
      %2384 = vrot.lane.b32.xlu0 %v1638, 16
      %v2385 = vpop.permute.xlu0 %2384
      %2386 = vrot.lane.b32.xlu0 %v1639, 16
      %v2387 = vpop.permute.xlu0 %2386
      %2388 = vrot.lane.b32.xlu0 %v1640, 16
      %v2389 = vpop.permute.xlu0 %2388
      %2406 = vrot.lane.b32.xlu0 %v2005, 32
      %v2407 = vpop.permute.xlu0 %2406
      %2408 = vrot.lane.b32.xlu0 %v2006, 32
      %v2409 = vpop.permute.xlu0 %2408
      %2410 = vrot.lane.b32.xlu0 %v2007, 32
      %v2411 = vpop.permute.xlu0 %2410
      %2412 = vrot.lane.b32.xlu0 %v2008, 32
      %v2413 = vpop.permute.xlu0 %2412
      %2414 = vrot.lane.b32.xlu0 %v2009, 32
      %v2415 = vpop.permute.xlu0 %2414
      %2416 = vrot.lane.b32.xlu0 %v2010, 32
      %v2417 = vpop.permute.xlu0 %2416
      %2418 = vrot.lane.b32.xlu0 %v2011, 32
      %v2419 = vpop.permute.xlu0 %2418
      %2420 = vrot.lane.b32.xlu0 %v2012, 32
      %v2421 = vpop.permute.xlu0 %2420
      %2438 = vrot.lane.b32.xlu0 %v2358, 48
      %v2439 = vpop.permute.xlu0 %2438
      %2440 = vrot.lane.b32.xlu0 %v2359, 48
      %v2441 = vpop.permute.xlu0 %2440
      %2442 = vrot.lane.b32.xlu0 %v2360, 48
      %v2443 = vpop.permute.xlu0 %2442
      %2444 = vrot.lane.b32.xlu0 %v2361, 48
      %v2445 = vpop.permute.xlu0 %2444
      %2446 = vrot.lane.b32.xlu0 %v2362, 48
      %v2447 = vpop.permute.xlu0 %2446
      %2448 = vrot.lane.b32.xlu0 %v2363, 48
      %v2449 = vpop.permute.xlu0 %2448
      %2450 = vrot.lane.b32.xlu0 %v2364, 48
      %v2451 = vpop.permute.xlu0 %2450
      %2452 = vrot.lane.b32.xlu0 %v2365, 48
      %v2453 = vpop.permute.xlu0 %2452
      %vm2462 = vcmask 130048
      %v2463 = vsel %vm2462, %v1209, %v2375
      %v2464 = vsel %vm2462, %v1210, %v2377
      %v2465 = vsel %vm2462, %v1211, %v2379
      %v2466 = vsel %vm2462, %v1212, %v2381
      %v2467 = vsel %vm2462, %v1213, %v2383
      %v2468 = vsel %vm2462, %v1214, %v2385
      %v2469 = vsel %vm2462, %v1215, %v2387
      %v2470 = vsel %vm2462, %v1216, %v2389
      %v2471 = vsel %vm814, %v2463, %v2407
      %v2472 = vsel %vm814, %v2464, %v2409
      %v2473 = vsel %vm814, %v2465, %v2411
      %v2474 = vsel %vm814, %v2466, %v2413
      %v2475 = vsel %vm814, %v2467, %v2415
      %v2476 = vsel %vm814, %v2468, %v2417
      %v2477 = vsel %vm814, %v2469, %v2419
      %v2478 = vsel %vm814, %v2470, %v2421
      %vm2479 = vcmask 392192
      %v2480 = vsel %vm2479, %v2471, %v2439
      %v2481 = vsel %vm2479, %v2472, %v2441
      %v2482 = vsel %vm2479, %v2473, %v2443
      %v2483 = vsel %vm2479, %v2474, %v2445
      %v2484 = vsel %vm2479, %v2475, %v2447
      %v2485 = vsel %vm2479, %v2476, %v2449
      %v2486 = vsel %vm2479, %v2477, %v2451
      %v2487 = vsel %vm2479, %v2478, %v2453
      %v2488 = vld [vmem:[%s4] sm:$0x1]
      %v2490 = vlaneseq
      %v2491 = vshrl.u32 %v2490, 7
      %v2492 = vsub.s32 0, %v2491
      %v2493 = vrot.slane %v2488, %v2492
      %v2495 = vadd.f32 %v2480, %v2493
      %v2496 = vadd.f32 %v2481, %v2493
      %v2497 = vadd.f32 %v2482, %v2493
      %v2498 = vadd.f32 %v2483, %v2493
      %v2499 = vadd.f32 %v2484, %v2493
      %v2500 = vadd.f32 %v2485, %v2493
      %v2501 = vadd.f32 %v2486, %v2493
      %v2502 = vadd.f32 %v2487, %v2493
      %v2503 = vld [vmem:[%s433] sm:$0xf]
      %v2504 = vld [vmem:[%s433 + $0x4] sm:$0xf]
      %v2505 = vld [vmem:[%s433 + $0x8] sm:$0xf]
      %v2506 = vld [vmem:[%s433 + $0xc] sm:$0xf]
      %v2507 = vld [vmem:[%s433 + $0x10] sm:$0xf]
      %v2508 = vld [vmem:[%s433 + $0x14] sm:$0xf]
      %v2509 = vld [vmem:[%s433 + $0x18] sm:$0xf]
      %v2510 = vld [vmem:[%s433 + $0x1c] sm:$0xf]
      %v2511 = vunpack.c.l.bf16 %v2503
      %v2512 = vunpack.c.l.bf16 %v2504
      %v2513 = vunpack.c.l.bf16 %v2505
      %v2514 = vunpack.c.l.bf16 %v2506
      %v2515 = vunpack.c.l.bf16 %v2507
      %v2516 = vunpack.c.l.bf16 %v2508
      %v2517 = vunpack.c.l.bf16 %v2509
      %v2518 = vunpack.c.l.bf16 %v2510
      %v2519 = vadd.f32 %v2495, %v2511
      %v2520 = vadd.f32 %v2496, %v2512
      %v2521 = vadd.f32 %v2497, %v2513
      %v2522 = vadd.f32 %v2498, %v2514
      %v2523 = vadd.f32 %v2499, %v2515
      %v2524 = vadd.f32 %v2500, %v2516
      %v2525 = vadd.f32 %v2501, %v2517
      %v2526 = vadd.f32 %v2502, %v2518
      %v2527 = vpack.c.bf16 %v2519, %v2519
      %v2528 = vpack.c.bf16 %v2520, %v2520
      %v2529 = vpack.c.bf16 %v2521, %v2521
      %v2530 = vpack.c.bf16 %v2522, %v2522
      %v2531 = vpack.c.bf16 %v2523, %v2523
      %v2532 = vpack.c.bf16 %v2524, %v2524
      %v2533 = vpack.c.bf16 %v2525, %v2525
      %v2534 = vpack.c.bf16 %v2526, %v2526
      %vm2535 = vcmask 519168
      %2536 = vst.msk [vmem:[%s443] sm:$0xf] %vm2535, %v2527
      %2537 = vst.msk [vmem:[%s443 + $0x4] sm:$0xf] %vm2535, %v2528
      %2538 = vst.msk [vmem:[%s443 + $0x8] sm:$0xf] %vm2535, %v2529
      %2539 = vst.msk [vmem:[%s443 + $0xc] sm:$0xf] %vm2535, %v2530
      %2540 = vst.msk [vmem:[%s443 + $0x10] sm:$0xf] %vm2535, %v2531
      %2541 = vst.msk [vmem:[%s443 + $0x14] sm:$0xf] %vm2535, %v2532
      %2542 = vst.msk [vmem:[%s443 + $0x18] sm:$0xf] %vm2535, %v2533
      %2543 = vst.msk [vmem:[%s443 + $0x1c] sm:$0xf] %vm2535, %v2534
      %s2544 = smul.u32 8, %s21
      %p2545 = scmp.lt.s32.totalorder %s22, 1
      %s2546 = scalar_select %p2545, %s22, 1
      %p2547 = scmp.lt.s32.totalorder %s2544, 7
      %s2548 = scalar_select %p2547, %s2544, 7
      %s2549 = smul.addr %s2546, 8
      %s2550 = sadd.s32 %s2548, %s2549
      %s2551 = smul.addr %s2550, 4
      %s2552 = scalar_lea.vmem %s6, %s2551
      // Predicated region
      $region45: #{wavemix_forward.10} parent=43 // pred_check
        %p2553 = pneg %p219
      $region46: #{wavemix_forward.10} parent=43 // pred_check_branch
        %2555 = sbr.rel (%p2553) target = $region48
      $region47: #{wavemix_forward.10} parent=43 // pred_region
        %s2556 = smul.u32 8, %s21
      $region48: #{wavemix_forward.10} parent=43 // pred_fallthru
        _
    $region44: #{wavemix_forward.10} parent=5 // pred_fallthru
      _
    %p2557 = scmp.le.s32.totalorder 2, %s12
    // Predicated region
    $region49: #{wavemix_forward.10} parent=5 // pred_check
      %p2558 = pneg %p2557
    $region50: #{wavemix_forward.10} parent=5 // pred_check_branch
      %2560 = sbr.rel (%p2558) target = $region52
    $region51: #{wavemix_forward.10} parent=5 // pred_region
      %s2561 = ssub.s32 %s12, 2
      // Predicated region
      $region53: #{wavemix_forward.10} parent=51 // pred_check
        %p2562 = pneg %p225
      $region54: #{wavemix_forward.10} parent=51 // pred_check_branch
        %2564 = sbr.rel (%p2562) target = $region56
      $region55: #{wavemix_forward.10} parent=51 // pred_region
        %s2565 = smul.u32 8, %s23
        %p2566 = scmp.lt.s32.totalorder %s24, 1
        %s2567 = scalar_select %p2566, %s24, 1
        %p2568 = scmp.lt.s32.totalorder %s2565, 7
        %s2569 = scalar_select %p2568, %s2565, 7
        %s2570 = smul.addr %s2567, 8
        %s2571 = sadd.s32 %s2569, %s2570
        %s2572 = smul.addr %s2571, 4
        %s2573 = scalar_lea.vmem %s6, %s2572
      $region56: #{wavemix_forward.10} parent=51 // pred_fallthru
        _
    $region52: #{wavemix_forward.10} parent=5 // pred_fallthru
      _
  $region6: #{wavemix_forward.10} parent=0 // loop_footer
    %s16 = sadd.s32 1, %s12
  $region7: #{wavemix_forward.10} parent=0 // loop_footer_branch
    %11 = sbr.rel target = $region3
  $region8: #{wavemix_forward.10} parent=0 // loop_exit
    _

// kernel: wavemix_forward.13
$region0: #{wavemix_forward.13}
  #allocation0 [shape = 'u32[]', space=smem, size = 0x4, offset = 0x4, fixed_abs, tag = 'smem constant byte address 0x4 - core index']
  #allocation1 [shape = 'u32[144,128]{1,0:T(1,128)}', space=vmem, size = 0x12000, scoped, tag = 'internal scratch']
  %s0 = inlined_call_operand.vmem [shape: bf16[2,16,16,16], index: 0, kind: input, shape index: {}, may-alias: {0,1,2}]
  %s1 = inlined_call_operand.vmem [shape: bf16[2,16,16,16], index: 1, kind: input, shape index: {}, may-alias: {0,1,2}]
  %s2 = inlined_call_operand.vmem [shape: bf16[2,16,16,16], index: 2, kind: input, shape index: {}, may-alias: {0,1,2}]
  %s3 = inlined_call_operand.vmem [shape: bf16[4,2,2,16,3], index: 3, kind: input, shape index: {}]
  %s4 = inlined_call_operand.vmem [shape: f32[1,12], index: 4, kind: input, shape index: {}]
  %s5 = inlined_call_operand.vmem [shape: f32[2,16,16,12], index: 5, kind: output, shape index: {}]
  %s6 = sld [smem:[#allocation0]]
  $region53: #{wavemix_forward.13} parent=0
    _
  %s8 = ssub.s32 1, %s6
  %s9 = scalar_select 0, %s8, %s6
  loop: start=0, step=1, limit=6
  $region2: #{wavemix_forward.13} parent=0 // loop_pre_header
    _
  $region3: #{wavemix_forward.13} parent=0 // loop_header
    %s11 = sphi 0, %s15
    %p12 = scmp.ge.s32.totalorder %s11, 6
    %s18 = sphi 0, %s30
    %s19 = sphi 0, %s26
    %s20 = sphi 0, %s18
    %s21 = sphi 0, %s19
    %s22 = sphi 0, %s20
    %s23 = sphi 0, %s21
    %s35 = sphi 0, %s37
    %s38 = sphi 0, %s35
    %s39 = sphi 0, %s38
    %s55 = sphi 0, %s39
    %s71 = sphi 0, %s73
    %s74 = sphi 0, %s71
    %s75 = sphi 0, %s74
    %s91 = sphi 0, %s75
    %s107 = sphi 0, %s109
    %s110 = sphi 0, %s107
    %s111 = sphi 0, %s110
    %s127 = sphi 0, %s111
    %s131 = sphi 0, %s131
    %s133 = sphi 0, %s131
    %s134 = sphi 0, %s133
    %s148 = sphi 0, %s134
    %s152 = sphi 0, %s152
    %s154 = sphi 0, %s152
    %s155 = sphi 0, %s154
    %s169 = sphi 0, %s155
    %s177 = sphi 0, %s179
    %s180 = sphi 0, %s177
    %s181 = sphi 0, %s180
    %s197 = sphi 0, %s181
  $region4: #{wavemix_forward.13} parent=0 // loop_header_branch
    %14 = sbr.rel (%p12) target = $region8
  $region5: #{wavemix_forward.13} parent=0 // loop_body
    %s16 = ssub.s32 %s11, 1
    %s17 = ssub.s32 %s11, 2
    %s24 = sadd.s32 1, %s19
    %p25 = scmp.ge.s32.totalorder %s24, 2
    %s26 = scalar_select %p25, 0, %s24
    %s27 = sadd.s32 1, %s18
    %s28 = scalar_select %p25, %s27, %s18
    %p29 = scmp.ge.s32.totalorder %s28, 2
    %s30 = scalar_select %p29, 0, %s28
    %s31 = ssub.s32 %s19, %s26
    %s32 = ssub.s32 %s18, %s30
    %s33 = sor.u32 %s31, %s32
    %p34 = scmp.eq.s32.totalorder %s33, 0
    %s36 = sadd.s32 %s35, 1
    %s37 = scalar_select %p34, %s35, %s36
    %p40 = pneg %p34
    %p41 = scmp.eq.s32.totalorder %s11, 3
    %p42 = por %p40, %p41
    %p43 = scmp.ne.s32.totalorder %s35, %s38
    %p44 = scmp.eq.s32.totalorder %s11, 0
    %p45 = por %p43, %p44
    %p46 = scmp.ne.s32.totalorder %s35, %s38
    %p47 = scmp.eq.s32.totalorder %s16, 3
    %p48 = por %p46, %p47
    %p49 = scmp.ne.s32.totalorder %s38, %s39
    %p50 = scmp.eq.s32.totalorder %s16, 0
    %p51 = por %p49, %p50
    %p52 = scmp.ne.s32.totalorder %s38, %s39
    %p53 = scmp.eq.s32.totalorder %s17, 3
    %p54 = por %p52, %p53
    %p56 = scmp.ne.s32.totalorder %s39, %s55
    %p57 = scmp.eq.s32.totalorder %s17, 0
    %p58 = por %p56, %p57
    %s59 = smul.u32 %s18, 8
    %s60 = ssub.s32 %s59, 1
    %p61 = scmp.gt.s32.totalorder %s60, 0
    %s62 = scalar_select %p61, %s60, 0
    %s63 = smul.u32 %s30, 8
    %s64 = ssub.s32 %s63, 1
    %p65 = scmp.gt.s32.totalorder %s64, 0
    %s66 = scalar_select %p65, %s64, 0
    %s67 = ssub.s32 %s19, %s26
    %s68 = ssub.s32 %s62, %s66
    %s69 = sor.u32 %s67, %s68
    %p70 = scmp.eq.s32.totalorder %s69, 0
    %s72 = sadd.s32 %s71, 1
    %s73 = scalar_select %p70, %s71, %s72
    %p76 = pneg %p70
    %p77 = scmp.eq.s32.totalorder %s11, 3
    %p78 = por %p76, %p77
    %p79 = scmp.ne.s32.totalorder %s71, %s74
    %p80 = scmp.eq.s32.totalorder %s11, 0
    %p81 = por %p79, %p80
    %p82 = scmp.ne.s32.totalorder %s71, %s74
    %p83 = scmp.eq.s32.totalorder %s16, 3
    %p84 = por %p82, %p83
    %p85 = scmp.ne.s32.totalorder %s74, %s75
    %p86 = scmp.eq.s32.totalorder %s16, 0
    %p87 = por %p85, %p86
    %p88 = scmp.ne.s32.totalorder %s74, %s75
    %p89 = scmp.eq.s32.totalorder %s17, 3
    %p90 = por %p88, %p89
    %p92 = scmp.ne.s32.totalorder %s75, %s91
    %p93 = scmp.eq.s32.totalorder %s17, 0
    %p94 = por %p92, %p93
    %s95 = smul.u32 %s18, 8
    %s96 = sadd.s32 %s95, 8
    %p97 = scmp.lt.s32.totalorder %s96, 15
    %s98 = scalar_select %p97, %s96, 15
    %s99 = smul.u32 %s30, 8
    %s100 = sadd.s32 %s99, 8
    %p101 = scmp.lt.s32.totalorder %s100, 15
    %s102 = scalar_select %p101, %s100, 15
    %s103 = ssub.s32 %s19, %s26
    %s104 = ssub.s32 %s98, %s102
    %s105 = sor.u32 %s103, %s104
    %p106 = scmp.eq.s32.totalorder %s105, 0
    %s108 = sadd.s32 %s107, 1
    %s109 = scalar_select %p106, %s107, %s108
    %p112 = pneg %p106
    %p113 = scmp.eq.s32.totalorder %s11, 3
    %p114 = por %p112, %p113
    %p115 = scmp.ne.s32.totalorder %s107, %s110
    %p116 = scmp.eq.s32.totalorder %s11, 0
    %p117 = por %p115, %p116
    %p118 = scmp.ne.s32.totalorder %s107, %s110
    %p119 = scmp.eq.s32.totalorder %s16, 3
    %p120 = por %p118, %p119
    %p121 = scmp.ne.s32.totalorder %s110, %s111
    %p122 = scmp.eq.s32.totalorder %s16, 0
    %p123 = por %p121, %p122
    %p124 = scmp.ne.s32.totalorder %s110, %s111
    %p125 = scmp.eq.s32.totalorder %s17, 3
    %p126 = por %p124, %p125
    %p128 = scmp.ne.s32.totalorder %s111, %s127
    %p129 = scmp.eq.s32.totalorder %s17, 0
    %p130 = por %p128, %p129
    %s132 = sadd.s32 %s131, 1
    %p135 = scmp.eq.s32.totalorder %s11, 3
    %p136 = scmp.ne.s32.totalorder %s131, %s133
    %p137 = scmp.eq.s32.totalorder %s11, 0
    %p138 = por %p136, %p137
    %p139 = scmp.ne.s32.totalorder %s131, %s133
    %p140 = scmp.eq.s32.totalorder %s16, 3
    %p141 = por %p139, %p140
    %p142 = scmp.ne.s32.totalorder %s133, %s134
    %p143 = scmp.eq.s32.totalorder %s16, 0
    %p144 = por %p142, %p143
    %p145 = scmp.ne.s32.totalorder %s133, %s134
    %p146 = scmp.eq.s32.totalorder %s17, 3
    %p147 = por %p145, %p146
    %p149 = scmp.ne.s32.totalorder %s134, %s148
    %p150 = scmp.eq.s32.totalorder %s17, 0
    %p151 = por %p149, %p150
    %s153 = sadd.s32 %s152, 1
    %p156 = scmp.eq.s32.totalorder %s11, 3
    %p157 = scmp.ne.s32.totalorder %s152, %s154
    %p158 = scmp.eq.s32.totalorder %s11, 0
    %p159 = por %p157, %p158
    %p160 = scmp.ne.s32.totalorder %s152, %s154
    %p161 = scmp.eq.s32.totalorder %s16, 3
    %p162 = por %p160, %p161
    %p163 = scmp.ne.s32.totalorder %s154, %s155
    %p164 = scmp.eq.s32.totalorder %s16, 0
    %p165 = por %p163, %p164
    %p166 = scmp.ne.s32.totalorder %s154, %s155
    %p167 = scmp.eq.s32.totalorder %s17, 3
    %p168 = por %p166, %p167
    %p170 = scmp.ne.s32.totalorder %s155, %s169
    %p171 = scmp.eq.s32.totalorder %s17, 0
    %p172 = por %p170, %p171
    %s173 = ssub.s32 %s19, %s26
    %s174 = ssub.s32 %s18, %s30
    %s175 = sor.u32 %s173, %s174
    %p176 = scmp.eq.s32.totalorder %s175, 0
    %s178 = sadd.s32 %s177, 1
    %s179 = scalar_select %p176, %s177, %s178
    %p182 = pneg %p176
    %p183 = scmp.eq.s32.totalorder %s11, 3
    %p184 = por %p182, %p183
    %p185 = scmp.ne.s32.totalorder %s177, %s180
    %p186 = scmp.eq.s32.totalorder %s11, 0
    %p187 = por %p185, %p186
    %p188 = scmp.ne.s32.totalorder %s177, %s180
    %p189 = scmp.eq.s32.totalorder %s16, 3
    %p190 = por %p188, %p189
    %p191 = scmp.ne.s32.totalorder %s180, %s181
    %p192 = scmp.eq.s32.totalorder %s16, 0
    %p193 = por %p191, %p192
    %p194 = scmp.ne.s32.totalorder %s180, %s181
    %p195 = scmp.eq.s32.totalorder %s17, 3
    %p196 = por %p194, %p195
    %p198 = scmp.ne.s32.totalorder %s181, %s197
    %p199 = scmp.eq.s32.totalorder %s17, 0
    %p200 = por %p198, %p199
    %p201 = scmp.le.s32.totalorder 1, %s11
    %p202 = scmp.lt.s32.totalorder %s11, 5
    %p203 = pnand %p201, %p202
    %p204 = pneg %p203
    // Predicated region
    $region9: #{wavemix_forward.13} parent=5 // pred_check
      _
    $region10: #{wavemix_forward.13} parent=5 // pred_check_branch
      %206 = sbr.rel (%p203) target = $region12
    $region11: #{wavemix_forward.13} parent=5 // pred_region
      %s207 = ssub.s32 %s11, 1
      // Predicated region
      $region13: #{wavemix_forward.13} parent=11 // pred_check
        %p208 = pneg %p144
      $region14: #{wavemix_forward.13} parent=11 // pred_check_branch
        %210 = sbr.rel (%p208) target = $region16
      $region15: #{wavemix_forward.13} parent=11 // pred_region
        _
      $region16: #{wavemix_forward.13} parent=11 // pred_fallthru
        _
      // Predicated region
      $region17: #{wavemix_forward.13} parent=11 // pred_check
        %p211 = pneg %p165
      $region18: #{wavemix_forward.13} parent=11 // pred_check_branch
        %213 = sbr.rel (%p211) target = $region20
      $region19: #{wavemix_forward.13} parent=11 // pred_region
        _
      $region20: #{wavemix_forward.13} parent=11 // pred_fallthru
        _
    $region12: #{wavemix_forward.13} parent=5 // pred_fallthru
      _
    %p214 = scmp.lt.s32.totalorder %s11, 4
    // Predicated region
    $region21: #{wavemix_forward.13} parent=5 // pred_check
      %p215 = pneg %p214
    $region22: #{wavemix_forward.13} parent=5 // pred_check_branch
      %217 = sbr.rel (%p215) target = $region24
    $region23: #{wavemix_forward.13} parent=5 // pred_region
      // Predicated region
      $region25: #{wavemix_forward.13} parent=23 // pred_check
        %p218 = pneg %p45
      $region26: #{wavemix_forward.13} parent=23 // pred_check_branch
        %220 = sbr.rel (%p218) target = $region28
      $region27: #{wavemix_forward.13} parent=23 // pred_region
        %s221 = smul.u32 8, %s18
        %p222 = scmp.lt.s32.totalorder %s19, 1
        %s223 = scalar_select %p222, %s19, 1
        %p224 = scmp.lt.s32.totalorder %s221, 15
        %s225 = scalar_select %p224, %s221, 15
        %s226 = smul.addr %s225, 2
        %s227 = smul.addr %s223, 32
        %s228 = sadd.s32 %s226, %s227
        %s229 = smul.addr %s228, 4
        %s230 = scalar_lea.vmem %s0, %s229
        %s231 = smul.u32 8, %s18
      $region28: #{wavemix_forward.13} parent=23 // pred_fallthru
        _
      // Predicated region
      $region29: #{wavemix_forward.13} parent=23 // pred_check
        %p232 = pneg %p81
      $region30: #{wavemix_forward.13} parent=23 // pred_check_branch
        %234 = sbr.rel (%p232) target = $region32
      $region31: #{wavemix_forward.13} parent=23 // pred_region
        %s235 = smul.u32 %s18, 8
        %s236 = ssub.s32 %s235, 1
        %p237 = scmp.gt.s32.totalorder %s236, 0
        %s238 = scalar_select %p237, %s236, 0
        %p239 = scmp.lt.s32.totalorder %s19, 1
        %s240 = scalar_select %p239, %s19, 1
        %p241 = scmp.lt.s32.totalorder %s238, 15
        %s242 = scalar_select %p241, %s238, 15
        %s243 = smul.addr %s242, 2
        %s244 = smul.addr %s240, 32
        %s245 = sadd.s32 %s243, %s244
        %s246 = smul.addr %s245, 4
        %s247 = scalar_lea.vmem %s1, %s246
        %s248 = smul.u32 %s18, 8
        %s249 = ssub.s32 %s248, 1
        %p250 = scmp.gt.s32.totalorder %s249, 0
        %s251 = scalar_select %p250, %s249, 0
      $region32: #{wavemix_forward.13} parent=23 // pred_fallthru
        _
      // Predicated region
      $region33: #{wavemix_forward.13} parent=23 // pred_check
        %p252 = pneg %p117
      $region34: #{wavemix_forward.13} parent=23 // pred_check_branch
        %254 = sbr.rel (%p252) target = $region36
      $region35: #{wavemix_forward.13} parent=23 // pred_region
        %s255 = smul.u32 %s18, 8
        %s256 = sadd.s32 %s255, 8
        %p257 = scmp.lt.s32.totalorder %s256, 15
        %s258 = scalar_select %p257, %s256, 15
        %p259 = scmp.lt.s32.totalorder %s19, 1
        %s260 = scalar_select %p259, %s19, 1
        %p261 = scmp.lt.s32.totalorder %s258, 15
        %s262 = scalar_select %p261, %s258, 15
        %s263 = smul.addr %s262, 2
        %s264 = smul.addr %s260, 32
        %s265 = sadd.s32 %s263, %s264
        %s266 = smul.addr %s265, 4
        %s267 = scalar_lea.vmem %s2, %s266
        %s268 = smul.u32 %s18, 8
        %s269 = sadd.s32 %s268, 8
        %p270 = scmp.lt.s32.totalorder %s269, 15
        %s271 = scalar_select %p270, %s269, 15
      $region36: #{wavemix_forward.13} parent=23 // pred_fallthru
        _
    $region24: #{wavemix_forward.13} parent=5 // pred_fallthru
      _
    %p272 = scmp.le.s32.totalorder 1, %s11
    %p273 = scmp.lt.s32.totalorder %s11, 5
    %p274 = pnand %p272, %p273
    %p275 = pneg %p274
    // Predicated region
    $region37: #{wavemix_forward.13} parent=5 // pred_check
      _
    $region38: #{wavemix_forward.13} parent=5 // pred_check_branch
      %277 = sbr.rel (%p274) target = $region40
    $region39: #{wavemix_forward.13} parent=5 // pred_region
      %s278 = ssub.s32 %s11, 1
      %s279 = smul.u32 8, %s20
      %p280 = scmp.lt.s32.totalorder %s21, 1
      %s281 = scalar_select %p280, %s21, 1
      %p282 = scmp.lt.s32.totalorder %s279, 15
      %s283 = scalar_select %p282, %s279, 15
      %s284 = smul.addr %s283, 2
      %s285 = smul.addr %s281, 32
      %s286 = sadd.s32 %s284, %s285
      %s287 = smul.addr %s286, 4
      %s288 = scalar_lea.vmem %s0, %s287
      %p289 = pneg %p51
      %p290 = pneg %p48
      %s291 = smul.u32 %s20, 8
      %s292 = ssub.s32 %s291, 1
      %p293 = scmp.gt.s32.totalorder %s292, 0
      %s294 = scalar_select %p293, %s292, 0
      %p295 = scmp.lt.s32.totalorder %s21, 1
      %s296 = scalar_select %p295, %s21, 1
      %p297 = scmp.lt.s32.totalorder %s294, 15
      %s298 = scalar_select %p297, %s294, 15
      %s299 = smul.addr %s298, 2
      %s300 = smul.addr %s296, 32
      %s301 = sadd.s32 %s299, %s300
      %s302 = smul.addr %s301, 4
      %s303 = scalar_lea.vmem %s1, %s302
      %p304 = pneg %p87
      %p305 = pneg %p84
      %s306 = smul.u32 %s20, 8
      %s307 = sadd.s32 %s306, 8
      %p308 = scmp.lt.s32.totalorder %s307, 15
      %s309 = scalar_select %p308, %s307, 15
      %p310 = scmp.lt.s32.totalorder %s21, 1
      %s311 = scalar_select %p310, %s21, 1
      %p312 = scmp.lt.s32.totalorder %s309, 15
      %s313 = scalar_select %p312, %s309, 15
      %s314 = smul.addr %s313, 2
      %s315 = smul.addr %s311, 32
      %s316 = sadd.s32 %s314, %s315
      %s317 = smul.addr %s316, 4
      %s318 = scalar_lea.vmem %s2, %s317
      %p319 = pneg %p123
      %p320 = pneg %p120
      %p321 = pneg %p144
      %p322 = pneg %p141
      %p323 = pneg %p165
      %p324 = pneg %p162
      %p325 = pneg %p193
      %p326 = pneg %p190
      %s327 = smul.u32 8, %s20
      %p328 = scmp.lt.s32.totalorder %s21, 1
      %s329 = scalar_select %p328, %s21, 1
      %p330 = scmp.lt.s32.totalorder %s327, 15
      %s331 = scalar_select %p330, %s327, 15
      %s332 = smul.addr %s331, 2
      %s333 = smul.addr %s329, 32
      %s334 = sadd.s32 %s332, %s333
      %s335 = smul.addr %s334, 8
      %s336 = scalar_lea.vmem %s5, %s335
      %s337 = smul.u32 8, %s20
      %p338 = scmp.lt.s32.totalorder %s21, 1
      %s339 = scalar_select %p338, %s21, 1
      %p340 = scmp.lt.s32.totalorder %s337, 15
      %s341 = scalar_select %p340, %s337, 15
      %s342 = smul.addr %s341, 2
      %s343 = smul.addr %s339, 32
      %s344 = sadd.s32 %s342, %s343
      %s345 = smul.addr %s344, 4
      %s346 = scalar_lea.vmem %s0, %s345
      %s347 = smul.u32 8, %s20
      %s348 = smul.u32 %s20, 8
      %s349 = ssub.s32 %s348, 1
      %p350 = scmp.gt.s32.totalorder %s349, 0
      %s351 = scalar_select %p350, %s349, 0
      %p352 = scmp.lt.s32.totalorder %s21, 1
      %s353 = scalar_select %p352, %s21, 1
      %p354 = scmp.lt.s32.totalorder %s351, 15
      %s355 = scalar_select %p354, %s351, 15
      %s356 = smul.addr %s355, 2
      %s357 = smul.addr %s353, 32
      %s358 = sadd.s32 %s356, %s357
      %s359 = smul.addr %s358, 4
      %s360 = scalar_lea.vmem %s1, %s359
      %s361 = smul.u32 %s20, 8
      %s362 = ssub.s32 %s361, 1
      %p363 = scmp.gt.s32.totalorder %s362, 0
      %s364 = scalar_select %p363, %s362, 0
      %s365 = smul.u32 %s20, 8
      %s366 = sadd.s32 %s365, 8
      %p367 = scmp.lt.s32.totalorder %s366, 15
      %s368 = scalar_select %p367, %s366, 15
      %p369 = scmp.lt.s32.totalorder %s21, 1
      %s370 = scalar_select %p369, %s21, 1
      %p371 = scmp.lt.s32.totalorder %s368, 15
      %s372 = scalar_select %p371, %s368, 15
      %s373 = smul.addr %s372, 2
      %s374 = smul.addr %s370, 32
      %s375 = sadd.s32 %s373, %s374
      %s376 = smul.addr %s375, 4
      %s377 = scalar_lea.vmem %s2, %s376
      %s378 = smul.u32 %s20, 8
      %s379 = sadd.s32 %s378, 8
      %p380 = scmp.lt.s32.totalorder %s379, 15
      %s381 = scalar_select %p380, %s379, 15
      %s382 = smul.u32 8, %s20
      %p383 = scmp.lt.s32.totalorder %s21, 1
      %s384 = scalar_select %p383, %s21, 1
      %p385 = scmp.lt.s32.totalorder %s382, 15
      %s386 = scalar_select %p385, %s382, 15
      %s387 = smul.addr %s386, 2
      %s388 = smul.addr %s384, 32
      %s389 = sadd.s32 %s387, %s388
      %s390 = smul.addr %s389, 8
      %s391 = scalar_lea.vmem %s5, %s390
      %s392 = smul.u32 8, %s20
      %p394 = scmp.gt.s32.totalorder %s20, 0
      %v395 = vld [vmem:[%s360] sm:$0xf]
      %v396 = vld [vmem:[%s360 + $0x4] sm:$0xf]
      %s397 = scalar_select %p394, 1.0, 0.0
      %p399 = scmp.ne.f32.partialorder %s397, %s397
      %s400 = sshrl.u32 %s397, 16
      %s401 = sand.u32 %s400, 1
      %s402 = sadd.s32 32767, %s401
      %s403 = sadd.s32 %s397, %s402
      %s404 = sand.u32 %s403, 4294901760
      %s405 = scalar_select %p399, 2143289344, %s404
      %s407 = sshrl.u32 %s405, 16
      %s408 = sshll.u32 %s407, 16
      %s409 = sor.u32 %s407, %s408
      %v410 = vstv %s409
      %v412 = vmul.bf16 %v395, %v410
      %v413 = vmul.bf16 %v396, %v410
      %p414 = scmp.lt.s32.totalorder %s20, 1
      %v415 = vld [vmem:[%s377] sm:$0xf]
      %v416 = vld [vmem:[%s377 + $0x4] sm:$0xf]
      %s417 = scalar_select %p414, 1.0, 0.0
      %p419 = scmp.ne.f32.partialorder %s417, %s417
      %s420 = sshrl.u32 %s417, 16
      %s421 = sand.u32 %s420, 1
      %s422 = sadd.s32 32767, %s421
      %s423 = sadd.s32 %s417, %s422
      %s424 = sand.u32 %s423, 4294901760
      %s425 = scalar_select %p419, 2143289344, %s424
      %s427 = sshrl.u32 %s425, 16
      %s428 = sshll.u32 %s427, 16
      %s429 = sor.u32 %s427, %s428
      %v430 = vstv %s429
      %v432 = vmul.bf16 %v415, %v430
      %v433 = vmul.bf16 %v416, %v430
      %v434 = vld [vmem:[%s346] sm:$0xf]
      %v435 = vld [vmem:[%s346 + $0x4] sm:$0xf]
      %v436 = vld [vmem:[%s346 + $0x8] sm:$0xf]
      %v437 = vld [vmem:[%s346 + $0xc] sm:$0xf]
      %v438 = vld [vmem:[%s346 + $0x10] sm:$0xf]
      %v439 = vld [vmem:[%s346 + $0x14] sm:$0xf]
      %v440 = vld [vmem:[%s346 + $0x18] sm:$0xf]
      %v441 = vld [vmem:[%s346 + $0x1c] sm:$0xf]
      %v442 = vld [vmem:[%s346 + $0x20] sm:$0xf]
      %v443 = vld [vmem:[%s346 + $0x24] sm:$0xf]
      %v444 = vld [vmem:[%s346 + $0x28] sm:$0xf]
      %v445 = vld [vmem:[%s346 + $0x2c] sm:$0xf]
      %v446 = vld [vmem:[%s346 + $0x30] sm:$0xf]
      %v447 = vld [vmem:[%s346 + $0x34] sm:$0xf]
      %v448 = vld [vmem:[%s346 + $0x38] sm:$0xf]
      %v449 = vld [vmem:[%s346 + $0x3c] sm:$0xf]
      %v470 = vunpack.c.l.b16 %v412
      %v471 = vunpack.c.l.b16 %v413
      %v472 = vunpack.c.l.b16 %v434
      %v473 = vunpack.c.l.b16 %v435
      %v474 = vunpack.c.l.b16 %v436
      %v475 = vunpack.c.l.b16 %v437
      %v476 = vunpack.c.l.b16 %v438
      %v477 = vunpack.c.l.b16 %v439
      %v478 = vunpack.c.l.b16 %v440
      %v479 = vunpack.c.l.b16 %v441
      %v480 = vunpack.c.l.b16 %v442
      %v481 = vunpack.c.l.b16 %v443
      %v482 = vunpack.c.l.b16 %v444
      %v483 = vunpack.c.l.b16 %v445
      %v484 = vunpack.c.l.b16 %v446
      %v485 = vunpack.c.l.b16 %v447
      %v486 = vunpack.c.l.b16 %v448
      %v487 = vunpack.c.l.b16 %v449
      %v488 = vunpack.c.l.b16 %v432
      %v489 = vunpack.c.l.b16 %v433
      %v490 = vpack.c.b16 %v471, %v470
      %v491 = vpack.c.b16 %v473, %v472
      %v492 = vpack.c.b16 %v475, %v474
      %v493 = vpack.c.b16 %v477, %v476
      %v494 = vpack.c.b16 %v479, %v478
      %v495 = vpack.c.b16 %v481, %v480
      %v496 = vpack.c.b16 %v483, %v482
      %v497 = vpack.c.b16 %v485, %v484
      %v498 = vpack.c.b16 %v487, %v486
      %v499 = vpack.c.b16 %v489, %v488
      %v501 = vshrl.u32 %v490, 16
      %v503 = vrot.slane %v501, 7
      %v504 = vshll.u32 %v490, 16
      %v506 = vor.u32 %v503, %v504
      %v508 = vshrl.u32 %v491, 16
      %v510 = vrot.slane %v508, 7
      %v511 = vshll.u32 %v491, 16
      %v513 = vor.u32 %v510, %v511
      %v515 = vshrl.u32 %v492, 16
      %v517 = vrot.slane %v515, 7
      %v518 = vshll.u32 %v492, 16
      %v520 = vor.u32 %v517, %v518
      %v522 = vshrl.u32 %v493, 16
      %v524 = vrot.slane %v522, 7
      %v525 = vshll.u32 %v493, 16
      %v527 = vor.u32 %v524, %v525
      %v529 = vshrl.u32 %v494, 16
      %v531 = vrot.slane %v529, 7
      %v532 = vshll.u32 %v494, 16
      %v534 = vor.u32 %v531, %v532
      %v536 = vshrl.u32 %v495, 16
      %v538 = vrot.slane %v536, 7
      %v539 = vshll.u32 %v495, 16
      %v541 = vor.u32 %v538, %v539
      %v543 = vshrl.u32 %v496, 16
      %v545 = vrot.slane %v543, 7
      %v546 = vshll.u32 %v496, 16
      %v548 = vor.u32 %v545, %v546
      %v550 = vshrl.u32 %v497, 16
      %v552 = vrot.slane %v550, 7
      %v553 = vshll.u32 %v497, 16
      %v555 = vor.u32 %v552, %v553
      %v557 = vshrl.u32 %v498, 16
      %v559 = vrot.slane %v557, 7
      %v560 = vshll.u32 %v498, 16
      %v562 = vor.u32 %v559, %v560
      %v564 = vshrl.u32 %v499, 16
      %v566 = vrot.slane %v564, 7
      %v567 = vshll.u32 %v499, 16
      %v569 = vor.u32 %v566, %v567
      %vm590 = vcmask 1040384
      %vm591 = vsmask.f32 256
      %vm592 = vmand %vm590, %vm591
      %v593 = vsel %vm592, 0, %v506
      %v594 = vsel %vm592, 0, %v513
      %v595 = vsel %vm592, 0, %v520
      %v596 = vsel %vm592, 0, %v527
      %v597 = vsel %vm592, 0, %v534
      %v598 = vsel %vm592, 0, %v541
      %v599 = vsel %vm592, 0, %v548
      %v600 = vsel %vm592, 0, %v555
      %v601 = vsel %vm592, 0, %v562
      %v602 = vsel %vm592, 0, %v569
      %v603 = vsel %vm592, %v503, 0
      %v604 = vsel %vm592, %v510, 0
      %v605 = vsel %vm592, %v517, 0
      %v606 = vsel %vm592, %v524, 0
      %v607 = vsel %vm592, %v531, 0
      %v608 = vsel %vm592, %v538, 0
      %v609 = vsel %vm592, %v545, 0
      %v610 = vsel %vm592, %v552, 0
      %v611 = vsel %vm592, %v559, 0
      %v612 = vsel %vm592, %v566, 0
      %v613 = vld [vmem:[%s3] sm:$0xf]
      %v614 = vld [vmem:[%s3 + $0x4] sm:$0xf]
      %vm615 = vsmask.f32 7424
      %v617 = vshrl.u32 %v593, 16
      %v619 = vshll.u32 %v593, 16
      %v621 = vrot.slane %v619, 1
      %v622 = vor.u32 %v617, %v621
      %v624 = vshll.u32 %v603, 16
      %v626 = vrot.slane %v624, 1
      %v627 = vsel %vm615, %v622, %v626
      %v629 = vshrl.u32 %v594, 16
      %v631 = vshll.u32 %v594, 16
      %v633 = vrot.slane %v631, 1
      %v634 = vor.u32 %v629, %v633
      %v636 = vshll.u32 %v604, 16
      %v638 = vrot.slane %v636, 1
      %v639 = vsel %vm615, %v634, %v638
      %v641 = vshrl.u32 %v595, 16
      %v643 = vshll.u32 %v595, 16
      %v645 = vrot.slane %v643, 1
      %v646 = vor.u32 %v641, %v645
      %v648 = vshll.u32 %v605, 16
      %v650 = vrot.slane %v648, 1
      %v651 = vsel %vm615, %v646, %v650
      %v653 = vshrl.u32 %v596, 16
      %v655 = vshll.u32 %v596, 16
      %v657 = vrot.slane %v655, 1
      %v658 = vor.u32 %v653, %v657
      %v660 = vshll.u32 %v606, 16
      %v662 = vrot.slane %v660, 1
      %v663 = vsel %vm615, %v658, %v662
      %v665 = vshrl.u32 %v597, 16
      %v667 = vshll.u32 %v597, 16
      %v669 = vrot.slane %v667, 1
      %v670 = vor.u32 %v665, %v669
      %v672 = vshll.u32 %v607, 16
      %v674 = vrot.slane %v672, 1
      %v675 = vsel %vm615, %v670, %v674
      %v677 = vshrl.u32 %v598, 16
      %v679 = vshll.u32 %v598, 16
      %v681 = vrot.slane %v679, 1
      %v682 = vor.u32 %v677, %v681
      %v684 = vshll.u32 %v608, 16
      %v686 = vrot.slane %v684, 1
      %v687 = vsel %vm615, %v682, %v686
      %v689 = vshrl.u32 %v599, 16
      %v691 = vshll.u32 %v599, 16
      %v693 = vrot.slane %v691, 1
      %v694 = vor.u32 %v689, %v693
      %v696 = vshll.u32 %v609, 16
      %v698 = vrot.slane %v696, 1
      %v699 = vsel %vm615, %v694, %v698
      %v701 = vshrl.u32 %v600, 16
      %v703 = vshll.u32 %v600, 16
      %v705 = vrot.slane %v703, 1
      %v706 = vor.u32 %v701, %v705
      %v708 = vshll.u32 %v610, 16
      %v710 = vrot.slane %v708, 1
      %v711 = vsel %vm615, %v706, %v710
      %s712 = scalar_lea.vmem %s3, 8
      %v713 = vld [vmem:[%s712] sm:$0xf]
      %v714 = vld [vmem:[%s712 + $0x4] sm:$0xf]
      %v717 = vunpack.c.l.b16 %v713
      %v718 = vunpack.c.l.b16 %v714
      %v719 = vpack.c.b16 %v718, %v717
      %vm721 = vcmask 130048
      %v723 = vsel %vm721, %v627, 0
      %v726 = vsel %vm721, %v639, 0
      %v729 = vsel %vm721, %v651, 0
      %v732 = vsel %vm721, %v663, 0
      %v735 = vsel %vm721, %v675, 0
      %v738 = vsel %vm721, %v687, 0
      %v741 = vsel %vm721, %v699, 0
      %v744 = vsel %vm721, %v711, 0
      %746 = vmatprep.subr.bf16.mxu0 0
      %747 = vmatpush1.bf16.msra.mxu0 %v719
      %748 = vmatprep.subr.bf16.mxu0 0
      %749 = vmatpush1.bf16.msra.mxu0 0
      %750 = vmatprep.subr.bf16.mxu0 0
      %751 = vmatpush1.bf16.msra.mxu0 0
      %752 = vmatprep.subr.bf16.mxu0 0
      %753 = vmatpush1.bf16.msra.mxu0 0
      %754 = vmatprep.subr.bf16.mxu0 0
      %755 = vmatpush1.bf16.msra.mxu0 0
      %756 = vmatprep.subr.bf16.mxu0 0
      %757 = vmatpush1.bf16.msra.mxu0 0
      %758 = vmatprep.subr.bf16.mxu0 0
      %759 = vmatpush1.bf16.msra.mxu0 0
      %760 = vmatprep.subr.bf16.mxu0 0
      %761 = vmatpush1.bf16.msra.mxu0 0
      %762 = vmatprep.subr.bf16.mxu0 0
      %763 = vmatpush1.bf16.msra.mxu0 0
      %764 = vmatprep.subr.bf16.mxu0 0
      %765 = vmatpush1.bf16.msra.mxu0 0
      %766 = vmatprep.subr.bf16.mxu0 0
      %767 = vmatpush1.bf16.msra.mxu0 0
      %768 = vmatprep.subr.bf16.mxu0 0
      %769 = vmatpush1.bf16.msra.mxu0 0
      %770 = vmatprep.subr.bf16.mxu0 0
      %771 = vmatpush1.bf16.msra.mxu0 0
      %772 = vmatprep.subr.bf16.mxu0 0
      %773 = vmatpush1.bf16.msra.mxu0 0
      %774 = vmatprep.subr.bf16.mxu0 0
      %775 = vmatpush1.bf16.msra.mxu0 0
      %776 = vmatprep.subr.bf16.mxu0 0
      %777 = vmatpush1.bf16.msra.mxu0 0
      %778 = vmatprep.mubr.bf16.mxu0 0
      %779 = vmatmul.mubr.bf16.gmra.mrb[0].mxu0 %v723
      %v780 = vpop.f32.mrb[0].mxu0
      %v781 = vadd.f32 0.0, %v780
      %v782 = vpop.f32.mrb[0].mxu0
      %v783 = vpop.f32.mrb[0].mxu0
      %v784 = vadd.f32 0.0, %v783
      %v785 = vpop.f32.mrb[0].mxu0
      %786 = vmatprep.mubr.bf16.mxu0 0
      %787 = vmatmul.mubr.bf16.gmra.mrb[0].mxu0 %v726
      %v788 = vpop.f32.mrb[0].mxu0
      %v789 = vadd.f32 0.0, %v788
      %v790 = vpop.f32.mrb[0].mxu0
      %v791 = vpop.f32.mrb[0].mxu0
      %v792 = vadd.f32 0.0, %v791
      %v793 = vpop.f32.mrb[0].mxu0
      %794 = vmatprep.mubr.bf16.mxu0 0
      %795 = vmatmul.mubr.bf16.gmra.mrb[0].mxu0 %v729
      %v796 = vpop.f32.mrb[0].mxu0
      %v797 = vadd.f32 0.0, %v796
      %v798 = vpop.f32.mrb[0].mxu0
      %v799 = vpop.f32.mrb[0].mxu0
      %v800 = vadd.f32 0.0, %v799
      %v801 = vpop.f32.mrb[0].mxu0
      %802 = vmatprep.mubr.bf16.mxu0 0
      %803 = vmatmul.mubr.bf16.gmra.mrb[0].mxu0 %v732
      %v804 = vpop.f32.mrb[0].mxu0
      %v805 = vadd.f32 0.0, %v804
      %v806 = vpop.f32.mrb[0].mxu0
      %v807 = vpop.f32.mrb[0].mxu0
      %v808 = vadd.f32 0.0, %v807
      %v809 = vpop.f32.mrb[0].mxu0
      %810 = vmatprep.mubr.bf16.mxu0 0
      %811 = vmatmul.mubr.bf16.gmra.mrb[0].mxu0 %v735
      %v812 = vpop.f32.mrb[0].mxu0
      %v813 = vadd.f32 0.0, %v812
      %v814 = vpop.f32.mrb[0].mxu0
      %v815 = vpop.f32.mrb[0].mxu0
      %v816 = vadd.f32 0.0, %v815
      %v817 = vpop.f32.mrb[0].mxu0
      %818 = vmatprep.mubr.bf16.mxu0 0
      %819 = vmatmul.mubr.bf16.gmra.mrb[0].mxu0 %v738
      %v820 = vpop.f32.mrb[0].mxu0
      %v821 = vadd.f32 0.0, %v820
      %v822 = vpop.f32.mrb[0].mxu0
      %v823 = vpop.f32.mrb[0].mxu0
      %v824 = vadd.f32 0.0, %v823
      %v825 = vpop.f32.mrb[0].mxu0
      %826 = vmatprep.mubr.bf16.mxu0 0
      %827 = vmatmul.mubr.bf16.gmra.mrb[0].mxu0 %v741
      %v828 = vpop.f32.mrb[0].mxu0
      %v829 = vadd.f32 0.0, %v828
      %v830 = vpop.f32.mrb[0].mxu0
      %v831 = vpop.f32.mrb[0].mxu0
      %v832 = vadd.f32 0.0, %v831
      %v833 = vpop.f32.mrb[0].mxu0
      %834 = vmatprep.mubr.bf16.mxu0 0
      %835 = vmatmul.mubr.bf16.gmra.mrb[0].mxu0 %v744
      %v836 = vpop.f32.mrb[0].mxu0
      %v837 = vadd.f32 0.0, %v836
      %v838 = vpop.f32.mrb[0].mxu0
      %v839 = vpop.f32.mrb[0].mxu0
      %v840 = vadd.f32 0.0, %v839
      %v841 = vpop.f32.mrb[0].mxu0
      %842 = vdwg.mxu0
      %v845 = vunpack.c.l.b16 %v613
      %v846 = vunpack.c.l.b16 %v614
      %v847 = vpack.c.b16 %v846, %v845
      %v849 = vsel %vm721, %v593, 0
      %v851 = vsel %vm721, %v594, 0
      %v853 = vsel %vm721, %v595, 0
      %v855 = vsel %vm721, %v596, 0
      %v857 = vsel %vm721, %v597, 0
      %v859 = vsel %vm721, %v598, 0
      %v861 = vsel %vm721, %v599, 0
      %v863 = vsel %vm721, %v600, 0
      %865 = vmatprep.subr.bf16.mxu0 0
      %866 = vmatpush1.bf16.msra.mxu0 %v847
      %867 = vmatprep.subr.bf16.mxu0 0
      %868 = vmatpush1.bf16.msra.mxu0 0
      %869 = vmatprep.subr.bf16.mxu0 0
      %870 = vmatpush1.bf16.msra.mxu0 0
      %871 = vmatprep.subr.bf16.mxu0 0
      %872 = vmatpush1.bf16.msra.mxu0 0
      %873 = vmatprep.subr.bf16.mxu0 0
      %874 = vmatpush1.bf16.msra.mxu0 0
      %875 = vmatprep.subr.bf16.mxu0 0
      %876 = vmatpush1.bf16.msra.mxu0 0
      %877 = vmatprep.subr.bf16.mxu0 0
      %878 = vmatpush1.bf16.msra.mxu0 0
      %879 = vmatprep.subr.bf16.mxu0 0
      %880 = vmatpush1.bf16.msra.mxu0 0
      %881 = vmatprep.subr.bf16.mxu0 0
      %882 = vmatpush1.bf16.msra.mxu0 0
      %883 = vmatprep.subr.bf16.mxu0 0
      %884 = vmatpush1.bf16.msra.mxu0 0
      %885 = vmatprep.subr.bf16.mxu0 0
      %886 = vmatpush1.bf16.msra.mxu0 0
      %887 = vmatprep.subr.bf16.mxu0 0
      %888 = vmatpush1.bf16.msra.mxu0 0
      %889 = vmatprep.subr.bf16.mxu0 0
      %890 = vmatpush1.bf16.msra.mxu0 0
      %891 = vmatprep.subr.bf16.mxu0 0
      %892 = vmatpush1.bf16.msra.mxu0 0
      %893 = vmatprep.subr.bf16.mxu0 0
      %894 = vmatpush1.bf16.msra.mxu0 0
      %895 = vmatprep.subr.bf16.mxu0 0
      %896 = vmatpush1.bf16.msra.mxu0 0
      %897 = vmatprep.mubr.bf16.mxu0 0
      %898 = vmatmul.mubr.bf16.gmra.mrb[0].mxu0 %v849
      %v899 = vpop.f32.mrb[0].mxu0
      %v900 = vadd.f32 %v781, %v899
      %v901 = vpop.f32.mrb[0].mxu0
      %v902 = vpop.f32.mrb[0].mxu0
      %v903 = vadd.f32 %v784, %v902
      %v904 = vpop.f32.mrb[0].mxu0
      %905 = vmatprep.mubr.bf16.mxu0 0
      %906 = vmatmul.mubr.bf16.gmra.mrb[0].mxu0 %v851
      %v907 = vpop.f32.mrb[0].mxu0
      %v908 = vadd.f32 %v789, %v907
      %v909 = vpop.f32.mrb[0].mxu0
      %v910 = vpop.f32.mrb[0].mxu0
      %v911 = vadd.f32 %v792, %v910
      %v912 = vpop.f32.mrb[0].mxu0
      %913 = vmatprep.mubr.bf16.mxu0 0
      %914 = vmatmul.mubr.bf16.gmra.mrb[0].mxu0 %v853
      %v915 = vpop.f32.mrb[0].mxu0
      %v916 = vadd.f32 %v797, %v915
      %v917 = vpop.f32.mrb[0].mxu0
      %v918 = vpop.f32.mrb[0].mxu0
      %v919 = vadd.f32 %v800, %v918
      %v920 = vpop.f32.mrb[0].mxu0
      %921 = vmatprep.mubr.bf16.mxu0 0
      %922 = vmatmul.mubr.bf16.gmra.mrb[0].mxu0 %v855
      %v923 = vpop.f32.mrb[0].mxu0
      %v924 = vadd.f32 %v805, %v923
      %v925 = vpop.f32.mrb[0].mxu0
      %v926 = vpop.f32.mrb[0].mxu0
      %v927 = vadd.f32 %v808, %v926
      %v928 = vpop.f32.mrb[0].mxu0
      %929 = vmatprep.mubr.bf16.mxu0 0
      %930 = vmatmul.mubr.bf16.gmra.mrb[0].mxu0 %v857
      %v931 = vpop.f32.mrb[0].mxu0
      %v932 = vadd.f32 %v813, %v931
      %v933 = vpop.f32.mrb[0].mxu0
      %v934 = vpop.f32.mrb[0].mxu0
      %v935 = vadd.f32 %v816, %v934
      %v936 = vpop.f32.mrb[0].mxu0
      %937 = vmatprep.mubr.bf16.mxu0 0
      %938 = vmatmul.mubr.bf16.gmra.mrb[0].mxu0 %v859
      %v939 = vpop.f32.mrb[0].mxu0
      %v940 = vadd.f32 %v821, %v939
      %v941 = vpop.f32.mrb[0].mxu0
      %v942 = vpop.f32.mrb[0].mxu0
      %v943 = vadd.f32 %v824, %v942
      %v944 = vpop.f32.mrb[0].mxu0
      %945 = vmatprep.mubr.bf16.mxu0 0
      %946 = vmatmul.mubr.bf16.gmra.mrb[0].mxu0 %v861
      %v947 = vpop.f32.mrb[0].mxu0
      %v948 = vadd.f32 %v829, %v947
      %v949 = vpop.f32.mrb[0].mxu0
      %v950 = vpop.f32.mrb[0].mxu0
      %v951 = vadd.f32 %v832, %v950
      %v952 = vpop.f32.mrb[0].mxu0
      %953 = vmatprep.mubr.bf16.mxu0 0
      %954 = vmatmul.mubr.bf16.gmra.mrb[0].mxu0 %v863
      %v955 = vpop.f32.mrb[0].mxu0
      %v956 = vadd.f32 %v837, %v955
      %v957 = vpop.f32.mrb[0].mxu0
      %v958 = vpop.f32.mrb[0].mxu0
      %v959 = vadd.f32 %v840, %v958
      %v960 = vpop.f32.mrb[0].mxu0
      %961 = vdwg.mxu0
      %s962 = scalar_lea.vmem %s3, 16
      %v963 = vld [vmem:[%s962] sm:$0xf]
      %v964 = vld [vmem:[%s962 + $0x4] sm:$0xf]
      %v967 = vunpack.c.l.b16 %v963
      %v968 = vunpack.c.l.b16 %v964
      %v969 = vpack.c.b16 %v968, %v967
      %v972 = vsel %vm721, %v601, 0
      %974 = vmatprep.subr.bf16.mxu0 0
      %975 = vmatpush1.bf16.msra.mxu0 %v969
      %976 = vmatprep.subr.bf16.mxu0 0
      %977 = vmatpush1.bf16.msra.mxu0 0
      %978 = vmatprep.subr.bf16.mxu0 0
      %979 = vmatpush1.bf16.msra.mxu0 0
      %980 = vmatprep.subr.bf16.mxu0 0
      %981 = vmatpush1.bf16.msra.mxu0 0
      %982 = vmatprep.subr.bf16.mxu0 0
      %983 = vmatpush1.bf16.msra.mxu0 0
      %984 = vmatprep.subr.bf16.mxu0 0
      %985 = vmatpush1.bf16.msra.mxu0 0
      %986 = vmatprep.subr.bf16.mxu0 0
      %987 = vmatpush1.bf16.msra.mxu0 0
      %988 = vmatprep.subr.bf16.mxu0 0
      %989 = vmatpush1.bf16.msra.mxu0 0
      %990 = vmatprep.subr.bf16.mxu0 0
      %991 = vmatpush1.bf16.msra.mxu0 0
      %992 = vmatprep.subr.bf16.mxu0 0
      %993 = vmatpush1.bf16.msra.mxu0 0
      %994 = vmatprep.subr.bf16.mxu0 0
      %995 = vmatpush1.bf16.msra.mxu0 0
      %996 = vmatprep.subr.bf16.mxu0 0
      %997 = vmatpush1.bf16.msra.mxu0 0
      %998 = vmatprep.subr.bf16.mxu0 0
      %999 = vmatpush1.bf16.msra.mxu0 0
      %1000 = vmatprep.subr.bf16.mxu0 0
      %1001 = vmatpush1.bf16.msra.mxu0 0
      %1002 = vmatprep.subr.bf16.mxu0 0
      %1003 = vmatpush1.bf16.msra.mxu0 0
      %1004 = vmatprep.subr.bf16.mxu0 0
      %1005 = vmatpush1.bf16.msra.mxu0 0
      %1006 = vmatprep.mubr.bf16.mxu0 0
      %1007 = vmatmul.mubr.bf16.gmra.mrb[0].mxu0 %v851
      %v1008 = vpop.f32.mrb[0].mxu0
      %v1009 = vadd.f32 0.0, %v1008
      %v1010 = vpop.f32.mrb[0].mxu0
      %v1011 = vpop.f32.mrb[0].mxu0
      %v1012 = vadd.f32 0.0, %v1011
      %v1013 = vpop.f32.mrb[0].mxu0
      %1014 = vmatprep.mubr.bf16.mxu0 0
      %1015 = vmatmul.mubr.bf16.gmra.mrb[0].mxu0 %v853
      %v1016 = vpop.f32.mrb[0].mxu0
      %v1017 = vadd.f32 0.0, %v1016
      %v1018 = vpop.f32.mrb[0].mxu0
      %v1019 = vpop.f32.mrb[0].mxu0
      %v1020 = vadd.f32 0.0, %v1019
      %v1021 = vpop.f32.mrb[0].mxu0
      %1022 = vmatprep.mubr.bf16.mxu0 0
      %1023 = vmatmul.mubr.bf16.gmra.mrb[0].mxu0 %v855
      %v1024 = vpop.f32.mrb[0].mxu0
      %v1025 = vadd.f32 0.0, %v1024
      %v1026 = vpop.f32.mrb[0].mxu0
      %v1027 = vpop.f32.mrb[0].mxu0
      %v1028 = vadd.f32 0.0, %v1027
      %v1029 = vpop.f32.mrb[0].mxu0
      %1030 = vmatprep.mubr.bf16.mxu0 0
      %1031 = vmatmul.mubr.bf16.gmra.mrb[0].mxu0 %v857
      %v1032 = vpop.f32.mrb[0].mxu0
      %v1033 = vadd.f32 0.0, %v1032
      %v1034 = vpop.f32.mrb[0].mxu0
      %v1035 = vpop.f32.mrb[0].mxu0
      %v1036 = vadd.f32 0.0, %v1035
      %v1037 = vpop.f32.mrb[0].mxu0
      %1038 = vmatprep.mubr.bf16.mxu0 0
      %1039 = vmatmul.mubr.bf16.gmra.mrb[0].mxu0 %v859
      %v1040 = vpop.f32.mrb[0].mxu0
      %v1041 = vadd.f32 0.0, %v1040
      %v1042 = vpop.f32.mrb[0].mxu0
      %v1043 = vpop.f32.mrb[0].mxu0
      %v1044 = vadd.f32 0.0, %v1043
      %v1045 = vpop.f32.mrb[0].mxu0
      %1046 = vmatprep.mubr.bf16.mxu0 0
      %1047 = vmatmul.mubr.bf16.gmra.mrb[0].mxu0 %v861
      %v1048 = vpop.f32.mrb[0].mxu0
      %v1049 = vadd.f32 0.0, %v1048
      %v1050 = vpop.f32.mrb[0].mxu0
      %v1051 = vpop.f32.mrb[0].mxu0
      %v1052 = vadd.f32 0.0, %v1051
      %v1053 = vpop.f32.mrb[0].mxu0
      %1054 = vmatprep.mubr.bf16.mxu0 0
      %1055 = vmatmul.mubr.bf16.gmra.mrb[0].mxu0 %v863
      %v1056 = vpop.f32.mrb[0].mxu0
      %v1057 = vadd.f32 0.0, %v1056
      %v1058 = vpop.f32.mrb[0].mxu0
      %v1059 = vpop.f32.mrb[0].mxu0
      %v1060 = vadd.f32 0.0, %v1059
      %v1061 = vpop.f32.mrb[0].mxu0
      %1062 = vmatprep.mubr.bf16.mxu0 0
      %1063 = vmatmul.mubr.bf16.gmra.mrb[0].mxu0 %v972
      %v1064 = vpop.f32.mrb[0].mxu0
      %v1065 = vadd.f32 0.0, %v1064
      %v1066 = vpop.f32.mrb[0].mxu0
      %v1067 = vpop.f32.mrb[0].mxu0
      %v1068 = vadd.f32 0.0, %v1067
      %v1069 = vpop.f32.mrb[0].mxu0
      %1070 = vdwg.mxu0
      %v1071 = vadd.f32 %v900, %v1009
      %v1072 = vadd.f32 %v903, %v1012
      %v1073 = vadd.f32 %v908, %v1017
      %v1074 = vadd.f32 %v911, %v1020
      %v1075 = vadd.f32 %v916, %v1025
      %v1076 = vadd.f32 %v919, %v1028
      %v1077 = vadd.f32 %v924, %v1033
      %v1078 = vadd.f32 %v927, %v1036
      %v1079 = vadd.f32 %v932, %v1041
      %v1080 = vadd.f32 %v935, %v1044
      %v1081 = vadd.f32 %v940, %v1049
      %v1082 = vadd.f32 %v943, %v1052
      %v1083 = vadd.f32 %v948, %v1057
      %v1084 = vadd.f32 %v951, %v1060
      %v1085 = vadd.f32 %v956, %v1065
      %v1086 = vadd.f32 %v959, %v1068
      %v1087 = vshrl.u32 %v601, 16
      %v1089 = vshll.u32 %v601, 16
      %v1091 = vrot.slane %v1089, 1
      %v1092 = vor.u32 %v1087, %v1091
      %v1094 = vshll.u32 %v611, 16
      %v1096 = vrot.slane %v1094, 1
      %v1097 = vsel %vm615, %v1092, %v1096
      %s1098 = scalar_lea.vmem %s3, 24
      %v1099 = vld [vmem:[%s1098] sm:$0xf]
      %v1100 = vld [vmem:[%s1098 + $0x4] sm:$0xf]
      %v1103 = vunpack.c.l.b16 %v1099
      %v1104 = vunpack.c.l.b16 %v1100
      %v1105 = vpack.c.b16 %v1104, %v1103
      %v1108 = vsel %vm721, %v1097, 0
      %1110 = vmatprep.subr.bf16.mxu0 0
      %1111 = vmatpush1.bf16.msra.mxu0 %v1105
      %1112 = vmatprep.subr.bf16.mxu0 0
      %1113 = vmatpush1.bf16.msra.mxu0 0
      %1114 = vmatprep.subr.bf16.mxu0 0
      %1115 = vmatpush1.bf16.msra.mxu0 0
      %1116 = vmatprep.subr.bf16.mxu0 0
      %1117 = vmatpush1.bf16.msra.mxu0 0
      %1118 = vmatprep.subr.bf16.mxu0 0
      %1119 = vmatpush1.bf16.msra.mxu0 0
      %1120 = vmatprep.subr.bf16.mxu0 0
      %1121 = vmatpush1.bf16.msra.mxu0 0
      %1122 = vmatprep.subr.bf16.mxu0 0
      %1123 = vmatpush1.bf16.msra.mxu0 0
      %1124 = vmatprep.subr.bf16.mxu0 0
      %1125 = vmatpush1.bf16.msra.mxu0 0
      %1126 = vmatprep.subr.bf16.mxu0 0
      %1127 = vmatpush1.bf16.msra.mxu0 0
      %1128 = vmatprep.subr.bf16.mxu0 0
      %1129 = vmatpush1.bf16.msra.mxu0 0
      %1130 = vmatprep.subr.bf16.mxu0 0
      %1131 = vmatpush1.bf16.msra.mxu0 0
      %1132 = vmatprep.subr.bf16.mxu0 0
      %1133 = vmatpush1.bf16.msra.mxu0 0
      %1134 = vmatprep.subr.bf16.mxu0 0
      %1135 = vmatpush1.bf16.msra.mxu0 0
      %1136 = vmatprep.subr.bf16.mxu0 0
      %1137 = vmatpush1.bf16.msra.mxu0 0
      %1138 = vmatprep.subr.bf16.mxu0 0
      %1139 = vmatpush1.bf16.msra.mxu0 0
      %1140 = vmatprep.subr.bf16.mxu0 0
      %1141 = vmatpush1.bf16.msra.mxu0 0
      %1142 = vmatprep.mubr.bf16.mxu0 0
      %1143 = vmatmul.mubr.bf16.gmra.mrb[0].mxu0 %v726
      %v1144 = vpop.f32.mrb[0].mxu0
      %v1145 = vadd.f32 0.0, %v1144
      %v1146 = vpop.f32.mrb[0].mxu0
      %v1147 = vpop.f32.mrb[0].mxu0
      %v1148 = vadd.f32 0.0, %v1147
      %v1149 = vpop.f32.mrb[0].mxu0
      %1150 = vmatprep.mubr.bf16.mxu0 0
      %1151 = vmatmul.mubr.bf16.gmra.mrb[0].mxu0 %v729
      %v1152 = vpop.f32.mrb[0].mxu0
      %v1153 = vadd.f32 0.0, %v1152
      %v1154 = vpop.f32.mrb[0].mxu0
      %v1155 = vpop.f32.mrb[0].mxu0
      %v1156 = vadd.f32 0.0, %v1155
      %v1157 = vpop.f32.mrb[0].mxu0
      %1158 = vmatprep.mubr.bf16.mxu0 0
      %1159 = vmatmul.mubr.bf16.gmra.mrb[0].mxu0 %v732
      %v1160 = vpop.f32.mrb[0].mxu0
      %v1161 = vadd.f32 0.0, %v1160
      %v1162 = vpop.f32.mrb[0].mxu0
      %v1163 = vpop.f32.mrb[0].mxu0
      %v1164 = vadd.f32 0.0, %v1163
      %v1165 = vpop.f32.mrb[0].mxu0
      %1166 = vmatprep.mubr.bf16.mxu0 0
      %1167 = vmatmul.mubr.bf16.gmra.mrb[0].mxu0 %v735
      %v1168 = vpop.f32.mrb[0].mxu0
      %v1169 = vadd.f32 0.0, %v1168
      %v1170 = vpop.f32.mrb[0].mxu0
      %v1171 = vpop.f32.mrb[0].mxu0
      %v1172 = vadd.f32 0.0, %v1171
      %v1173 = vpop.f32.mrb[0].mxu0
      %1174 = vmatprep.mubr.bf16.mxu0 0
      %1175 = vmatmul.mubr.bf16.gmra.mrb[0].mxu0 %v738
      %v1176 = vpop.f32.mrb[0].mxu0
      %v1177 = vadd.f32 0.0, %v1176
      %v1178 = vpop.f32.mrb[0].mxu0
      %v1179 = vpop.f32.mrb[0].mxu0
      %v1180 = vadd.f32 0.0, %v1179
      %v1181 = vpop.f32.mrb[0].mxu0
      %1182 = vmatprep.mubr.bf16.mxu0 0
      %1183 = vmatmul.mubr.bf16.gmra.mrb[0].mxu0 %v741
      %v1184 = vpop.f32.mrb[0].mxu0
      %v1185 = vadd.f32 0.0, %v1184
      %v1186 = vpop.f32.mrb[0].mxu0
      %v1187 = vpop.f32.mrb[0].mxu0
      %v1188 = vadd.f32 0.0, %v1187
      %v1189 = vpop.f32.mrb[0].mxu0
      %1190 = vmatprep.mubr.bf16.mxu0 0
      %1191 = vmatmul.mubr.bf16.gmra.mrb[0].mxu0 %v744
      %v1192 = vpop.f32.mrb[0].mxu0
      %v1193 = vadd.f32 0.0, %v1192
      %v1194 = vpop.f32.mrb[0].mxu0
      %v1195 = vpop.f32.mrb[0].mxu0
      %v1196 = vadd.f32 0.0, %v1195
      %v1197 = vpop.f32.mrb[0].mxu0
      %1198 = vmatprep.mubr.bf16.mxu0 0
      %1199 = vmatmul.mubr.bf16.gmra.mrb[0].mxu0 %v1108
      %v1200 = vpop.f32.mrb[0].mxu0
      %v1201 = vadd.f32 0.0, %v1200
      %v1202 = vpop.f32.mrb[0].mxu0
      %v1203 = vpop.f32.mrb[0].mxu0
      %v1204 = vadd.f32 0.0, %v1203
      %v1205 = vpop.f32.mrb[0].mxu0
      %1206 = vdwg.mxu0
      %v1207 = vadd.f32 %v1071, %v1145
      %v1208 = vadd.f32 %v1072, %v1148
      %v1209 = vadd.f32 %v1073, %v1153
      %v1210 = vadd.f32 %v1074, %v1156
      %v1211 = vadd.f32 %v1075, %v1161
      %v1212 = vadd.f32 %v1076, %v1164
      %v1213 = vadd.f32 %v1077, %v1169
      %v1214 = vadd.f32 %v1078, %v1172
      %v1215 = vadd.f32 %v1079, %v1177
      %v1216 = vadd.f32 %v1080, %v1180
      %v1217 = vadd.f32 %v1081, %v1185
      %v1218 = vadd.f32 %v1082, %v1188
      %v1219 = vadd.f32 %v1083, %v1193
      %v1220 = vadd.f32 %v1084, %v1196
      %v1221 = vadd.f32 %v1085, %v1201
      %v1222 = vadd.f32 %v1086, %v1204
      %s1223 = scalar_lea.vmem %s3, 32
      %v1224 = vld [vmem:[%s1223] sm:$0xf]
      %v1225 = vld [vmem:[%s1223 + $0x4] sm:$0xf]
      %vm1242 = vcmask 1046528
      %v1243 = vrot.slane %v593, 1
      %v1244 = vrot.slane %v603, 1
      %v1245 = vsel %vm1242, %v1243, %v1244
      %v1246 = vrot.slane %v594, 1
      %v1247 = vrot.slane %v604, 1
      %v1248 = vsel %vm1242, %v1246, %v1247
      %v1249 = vrot.slane %v595, 1
      %v1250 = vrot.slane %v605, 1
      %v1251 = vsel %vm1242, %v1249, %v1250
      %v1252 = vrot.slane %v596, 1
      %v1253 = vrot.slane %v606, 1
      %v1254 = vsel %vm1242, %v1252, %v1253
      %v1255 = vrot.slane %v597, 1
      %v1256 = vrot.slane %v607, 1
      %v1257 = vsel %vm1242, %v1255, %v1256
      %v1258 = vrot.slane %v598, 1
      %v1259 = vrot.slane %v608, 1
      %v1260 = vsel %vm1242, %v1258, %v1259
      %v1261 = vrot.slane %v599, 1
      %v1262 = vrot.slane %v609, 1
      %v1263 = vsel %vm1242, %v1261, %v1262
      %v1264 = vrot.slane %v600, 1
      %v1265 = vrot.slane %v610, 1
      %v1266 = vsel %vm1242, %v1264, %v1265
      %s1267 = scalar_lea.vmem %s3, 40
      %v1268 = vld [vmem:[%s1267] sm:$0xf]
      %v1269 = vld [vmem:[%s1267 + $0x4] sm:$0xf]
      %v1272 = vunpack.c.l.b16 %v1268
      %v1273 = vunpack.c.l.b16 %v1269
      %v1274 = vpack.c.b16 %v1273, %v1272
      %v1277 = vsel %vm721, %v1245, 0
      %v1280 = vsel %vm721, %v1248, 0
      %v1283 = vsel %vm721, %v1251, 0
      %v1286 = vsel %vm721, %v1254, 0
      %v1289 = vsel %vm721, %v1257, 0
      %v1292 = vsel %vm721, %v1260, 0
      %v1295 = vsel %vm721, %v1263, 0
      %v1298 = vsel %vm721, %v1266, 0
      %1300 = vmatprep.subr.bf16.mxu0 0
      %1301 = vmatpush1.bf16.msra.mxu0 %v1274
      %1302 = vmatprep.subr.bf16.mxu0 0
      %1303 = vmatpush1.bf16.msra.mxu0 0
      %1304 = vmatprep.subr.bf16.mxu0 0
      %1305 = vmatpush1.bf16.msra.mxu0 0
      %1306 = vmatprep.subr.bf16.mxu0 0
      %1307 = vmatpush1.bf16.msra.mxu0 0
      %1308 = vmatprep.subr.bf16.mxu0 0
      %1309 = vmatpush1.bf16.msra.mxu0 0
      %1310 = vmatprep.subr.bf16.mxu0 0
      %1311 = vmatpush1.bf16.msra.mxu0 0
      %1312 = vmatprep.subr.bf16.mxu0 0
      %1313 = vmatpush1.bf16.msra.mxu0 0
      %1314 = vmatprep.subr.bf16.mxu0 0
      %1315 = vmatpush1.bf16.msra.mxu0 0
      %1316 = vmatprep.subr.bf16.mxu0 0
      %1317 = vmatpush1.bf16.msra.mxu0 0
      %1318 = vmatprep.subr.bf16.mxu0 0
      %1319 = vmatpush1.bf16.msra.mxu0 0
      %1320 = vmatprep.subr.bf16.mxu0 0
      %1321 = vmatpush1.bf16.msra.mxu0 0
      %1322 = vmatprep.subr.bf16.mxu0 0
      %1323 = vmatpush1.bf16.msra.mxu0 0
      %1324 = vmatprep.subr.bf16.mxu0 0
      %1325 = vmatpush1.bf16.msra.mxu0 0
      %1326 = vmatprep.subr.bf16.mxu0 0
      %1327 = vmatpush1.bf16.msra.mxu0 0
      %1328 = vmatprep.subr.bf16.mxu0 0
      %1329 = vmatpush1.bf16.msra.mxu0 0
      %1330 = vmatprep.subr.bf16.mxu0 0
      %1331 = vmatpush1.bf16.msra.mxu0 0
      %1332 = vmatprep.mubr.bf16.mxu0 0
      %1333 = vmatmul.mubr.bf16.gmra.mrb[0].mxu0 %v1277
      %v1334 = vpop.f32.mrb[0].mxu0
      %v1335 = vadd.f32 0.0, %v1334
      %v1336 = vpop.f32.mrb[0].mxu0
      %v1337 = vpop.f32.mrb[0].mxu0
      %v1338 = vadd.f32 0.0, %v1337
      %v1339 = vpop.f32.mrb[0].mxu0
      %1340 = vmatprep.mubr.bf16.mxu0 0
      %1341 = vmatmul.mubr.bf16.gmra.mrb[0].mxu0 %v1280
      %v1342 = vpop.f32.mrb[0].mxu0
      %v1343 = vadd.f32 0.0, %v1342
      %v1344 = vpop.f32.mrb[0].mxu0
      %v1345 = vpop.f32.mrb[0].mxu0
      %v1346 = vadd.f32 0.0, %v1345
      %v1347 = vpop.f32.mrb[0].mxu0
      %1348 = vmatprep.mubr.bf16.mxu0 0
      %1349 = vmatmul.mubr.bf16.gmra.mrb[0].mxu0 %v1283
      %v1350 = vpop.f32.mrb[0].mxu0
      %v1351 = vadd.f32 0.0, %v1350
      %v1352 = vpop.f32.mrb[0].mxu0
      %v1353 = vpop.f32.mrb[0].mxu0
      %v1354 = vadd.f32 0.0, %v1353
      %v1355 = vpop.f32.mrb[0].mxu0
      %1356 = vmatprep.mubr.bf16.mxu0 0
      %1357 = vmatmul.mubr.bf16.gmra.mrb[0].mxu0 %v1286
      %v1358 = vpop.f32.mrb[0].mxu0
      %v1359 = vadd.f32 0.0, %v1358
      %v1360 = vpop.f32.mrb[0].mxu0
      %v1361 = vpop.f32.mrb[0].mxu0
      %v1362 = vadd.f32 0.0, %v1361
      %v1363 = vpop.f32.mrb[0].mxu0
      %1364 = vmatprep.mubr.bf16.mxu0 0
      %1365 = vmatmul.mubr.bf16.gmra.mrb[0].mxu0 %v1289
      %v1366 = vpop.f32.mrb[0].mxu0
      %v1367 = vadd.f32 0.0, %v1366
      %v1368 = vpop.f32.mrb[0].mxu0
      %v1369 = vpop.f32.mrb[0].mxu0
      %v1370 = vadd.f32 0.0, %v1369
      %v1371 = vpop.f32.mrb[0].mxu0
      %1372 = vmatprep.mubr.bf16.mxu0 0
      %1373 = vmatmul.mubr.bf16.gmra.mrb[0].mxu0 %v1292
      %v1374 = vpop.f32.mrb[0].mxu0
      %v1375 = vadd.f32 0.0, %v1374
      %v1376 = vpop.f32.mrb[0].mxu0
      %v1377 = vpop.f32.mrb[0].mxu0
      %v1378 = vadd.f32 0.0, %v1377
      %v1379 = vpop.f32.mrb[0].mxu0
      %1380 = vmatprep.mubr.bf16.mxu0 0
      %1381 = vmatmul.mubr.bf16.gmra.mrb[0].mxu0 %v1295
      %v1382 = vpop.f32.mrb[0].mxu0
      %v1383 = vadd.f32 0.0, %v1382
      %v1384 = vpop.f32.mrb[0].mxu0
      %v1385 = vpop.f32.mrb[0].mxu0
      %v1386 = vadd.f32 0.0, %v1385
      %v1387 = vpop.f32.mrb[0].mxu0
      %1388 = vmatprep.mubr.bf16.mxu0 0
      %1389 = vmatmul.mubr.bf16.gmra.mrb[0].mxu0 %v1298
      %v1390 = vpop.f32.mrb[0].mxu0
      %v1391 = vadd.f32 0.0, %v1390
      %v1392 = vpop.f32.mrb[0].mxu0
      %v1393 = vpop.f32.mrb[0].mxu0
      %v1394 = vadd.f32 0.0, %v1393
      %v1395 = vpop.f32.mrb[0].mxu0
      %1396 = vdwg.mxu0
      %v1399 = vunpack.c.l.b16 %v1224
      %v1400 = vunpack.c.l.b16 %v1225
      %v1401 = vpack.c.b16 %v1400, %v1399
      %1403 = vmatprep.subr.bf16.mxu0 0
      %1404 = vmatpush1.bf16.msra.mxu0 %v1401
      %1405 = vmatprep.subr.bf16.mxu0 0
      %1406 = vmatpush1.bf16.msra.mxu0 0
      %1407 = vmatprep.subr.bf16.mxu0 0
      %1408 = vmatpush1.bf16.msra.mxu0 0
      %1409 = vmatprep.subr.bf16.mxu0 0
      %1410 = vmatpush1.bf16.msra.mxu0 0
      %1411 = vmatprep.subr.bf16.mxu0 0
      %1412 = vmatpush1.bf16.msra.mxu0 0
      %1413 = vmatprep.subr.bf16.mxu0 0
      %1414 = vmatpush1.bf16.msra.mxu0 0
      %1415 = vmatprep.subr.bf16.mxu0 0
      %1416 = vmatpush1.bf16.msra.mxu0 0
      %1417 = vmatprep.subr.bf16.mxu0 0
      %1418 = vmatpush1.bf16.msra.mxu0 0
      %1419 = vmatprep.subr.bf16.mxu0 0
      %1420 = vmatpush1.bf16.msra.mxu0 0
      %1421 = vmatprep.subr.bf16.mxu0 0
      %1422 = vmatpush1.bf16.msra.mxu0 0
      %1423 = vmatprep.subr.bf16.mxu0 0
      %1424 = vmatpush1.bf16.msra.mxu0 0
      %1425 = vmatprep.subr.bf16.mxu0 0
      %1426 = vmatpush1.bf16.msra.mxu0 0
      %1427 = vmatprep.subr.bf16.mxu0 0
      %1428 = vmatpush1.bf16.msra.mxu0 0
      %1429 = vmatprep.subr.bf16.mxu0 0
      %1430 = vmatpush1.bf16.msra.mxu0 0
      %1431 = vmatprep.subr.bf16.mxu0 0
      %1432 = vmatpush1.bf16.msra.mxu0 0
      %1433 = vmatprep.subr.bf16.mxu0 0
      %1434 = vmatpush1.bf16.msra.mxu0 0
      %1435 = vmatprep.mubr.bf16.mxu0 0
      %1436 = vmatmul.mubr.bf16.gmra.mrb[0].mxu0 %v723
      %v1437 = vpop.f32.mrb[0].mxu0
      %v1438 = vadd.f32 %v1335, %v1437
      %v1439 = vpop.f32.mrb[0].mxu0
      %v1440 = vpop.f32.mrb[0].mxu0
      %v1441 = vadd.f32 %v1338, %v1440
      %v1442 = vpop.f32.mrb[0].mxu0
      %1443 = vmatprep.mubr.bf16.mxu0 0
      %1444 = vmatmul.mubr.bf16.gmra.mrb[0].mxu0 %v726
      %v1445 = vpop.f32.mrb[0].mxu0
      %v1446 = vadd.f32 %v1343, %v1445
      %v1447 = vpop.f32.mrb[0].mxu0
      %v1448 = vpop.f32.mrb[0].mxu0
      %v1449 = vadd.f32 %v1346, %v1448
      %v1450 = vpop.f32.mrb[0].mxu0
      %1451 = vmatprep.mubr.bf16.mxu0 0
      %1452 = vmatmul.mubr.bf16.gmra.mrb[0].mxu0 %v729
      %v1453 = vpop.f32.mrb[0].mxu0
      %v1454 = vadd.f32 %v1351, %v1453
      %v1455 = vpop.f32.mrb[0].mxu0
      %v1456 = vpop.f32.mrb[0].mxu0
      %v1457 = vadd.f32 %v1354, %v1456
      %v1458 = vpop.f32.mrb[0].mxu0
      %1459 = vmatprep.mubr.bf16.mxu0 0
      %1460 = vmatmul.mubr.bf16.gmra.mrb[0].mxu0 %v732
      %v1461 = vpop.f32.mrb[0].mxu0
      %v1462 = vadd.f32 %v1359, %v1461
      %v1463 = vpop.f32.mrb[0].mxu0
      %v1464 = vpop.f32.mrb[0].mxu0
      %v1465 = vadd.f32 %v1362, %v1464
      %v1466 = vpop.f32.mrb[0].mxu0
      %1467 = vmatprep.mubr.bf16.mxu0 0
      %1468 = vmatmul.mubr.bf16.gmra.mrb[0].mxu0 %v735
      %v1469 = vpop.f32.mrb[0].mxu0
      %v1470 = vadd.f32 %v1367, %v1469
      %v1471 = vpop.f32.mrb[0].mxu0
      %v1472 = vpop.f32.mrb[0].mxu0
      %v1473 = vadd.f32 %v1370, %v1472
      %v1474 = vpop.f32.mrb[0].mxu0
      %1475 = vmatprep.mubr.bf16.mxu0 0
      %1476 = vmatmul.mubr.bf16.gmra.mrb[0].mxu0 %v738
      %v1477 = vpop.f32.mrb[0].mxu0
      %v1478 = vadd.f32 %v1375, %v1477
      %v1479 = vpop.f32.mrb[0].mxu0
      %v1480 = vpop.f32.mrb[0].mxu0
      %v1481 = vadd.f32 %v1378, %v1480
      %v1482 = vpop.f32.mrb[0].mxu0
      %1483 = vmatprep.mubr.bf16.mxu0 0
      %1484 = vmatmul.mubr.bf16.gmra.mrb[0].mxu0 %v741
      %v1485 = vpop.f32.mrb[0].mxu0
      %v1486 = vadd.f32 %v1383, %v1485
      %v1487 = vpop.f32.mrb[0].mxu0
      %v1488 = vpop.f32.mrb[0].mxu0
      %v1489 = vadd.f32 %v1386, %v1488
      %v1490 = vpop.f32.mrb[0].mxu0
      %1491 = vmatprep.mubr.bf16.mxu0 0
      %1492 = vmatmul.mubr.bf16.gmra.mrb[0].mxu0 %v744
      %v1493 = vpop.f32.mrb[0].mxu0
      %v1494 = vadd.f32 %v1391, %v1493
      %v1495 = vpop.f32.mrb[0].mxu0
      %v1496 = vpop.f32.mrb[0].mxu0
      %v1497 = vadd.f32 %v1394, %v1496
      %v1498 = vpop.f32.mrb[0].mxu0
      %1499 = vdwg.mxu0
      %s1500 = scalar_lea.vmem %s3, 48
      %v1501 = vld [vmem:[%s1500] sm:$0xf]
      %v1502 = vld [vmem:[%s1500 + $0x4] sm:$0xf]
      %v1505 = vunpack.c.l.b16 %v1501
      %v1506 = vunpack.c.l.b16 %v1502
      %v1507 = vpack.c.b16 %v1506, %v1505
      %1509 = vmatprep.subr.bf16.mxu0 0
      %1510 = vmatpush1.bf16.msra.mxu0 %v1507
      %1511 = vmatprep.subr.bf16.mxu0 0
      %1512 = vmatpush1.bf16.msra.mxu0 0
      %1513 = vmatprep.subr.bf16.mxu0 0
      %1514 = vmatpush1.bf16.msra.mxu0 0
      %1515 = vmatprep.subr.bf16.mxu0 0
      %1516 = vmatpush1.bf16.msra.mxu0 0
      %1517 = vmatprep.subr.bf16.mxu0 0
      %1518 = vmatpush1.bf16.msra.mxu0 0
      %1519 = vmatprep.subr.bf16.mxu0 0
      %1520 = vmatpush1.bf16.msra.mxu0 0
      %1521 = vmatprep.subr.bf16.mxu0 0
      %1522 = vmatpush1.bf16.msra.mxu0 0
      %1523 = vmatprep.subr.bf16.mxu0 0
      %1524 = vmatpush1.bf16.msra.mxu0 0
      %1525 = vmatprep.subr.bf16.mxu0 0
      %1526 = vmatpush1.bf16.msra.mxu0 0
      %1527 = vmatprep.subr.bf16.mxu0 0
      %1528 = vmatpush1.bf16.msra.mxu0 0
      %1529 = vmatprep.subr.bf16.mxu0 0
      %1530 = vmatpush1.bf16.msra.mxu0 0
      %1531 = vmatprep.subr.bf16.mxu0 0
      %1532 = vmatpush1.bf16.msra.mxu0 0
      %1533 = vmatprep.subr.bf16.mxu0 0
      %1534 = vmatpush1.bf16.msra.mxu0 0
      %1535 = vmatprep.subr.bf16.mxu0 0
      %1536 = vmatpush1.bf16.msra.mxu0 0
      %1537 = vmatprep.subr.bf16.mxu0 0
      %1538 = vmatpush1.bf16.msra.mxu0 0
      %1539 = vmatprep.subr.bf16.mxu0 0
      %1540 = vmatpush1.bf16.msra.mxu0 0
      %1541 = vmatprep.mubr.bf16.mxu0 0
      %1542 = vmatmul.mubr.bf16.gmra.mrb[0].mxu0 %v726
      %v1543 = vpop.f32.mrb[0].mxu0
      %v1544 = vadd.f32 0.0, %v1543
      %v1545 = vpop.f32.mrb[0].mxu0
      %v1546 = vpop.f32.mrb[0].mxu0
      %v1547 = vadd.f32 0.0, %v1546
      %v1548 = vpop.f32.mrb[0].mxu0
      %1549 = vmatprep.mubr.bf16.mxu0 0
      %1550 = vmatmul.mubr.bf16.gmra.mrb[0].mxu0 %v729
      %v1551 = vpop.f32.mrb[0].mxu0
      %v1552 = vadd.f32 0.0, %v1551
      %v1553 = vpop.f32.mrb[0].mxu0
      %v1554 = vpop.f32.mrb[0].mxu0
      %v1555 = vadd.f32 0.0, %v1554
      %v1556 = vpop.f32.mrb[0].mxu0
      %1557 = vmatprep.mubr.bf16.mxu0 0
      %1558 = vmatmul.mubr.bf16.gmra.mrb[0].mxu0 %v732
      %v1559 = vpop.f32.mrb[0].mxu0
      %v1560 = vadd.f32 0.0, %v1559
      %v1561 = vpop.f32.mrb[0].mxu0
      %v1562 = vpop.f32.mrb[0].mxu0
      %v1563 = vadd.f32 0.0, %v1562
      %v1564 = vpop.f32.mrb[0].mxu0
      %1565 = vmatprep.mubr.bf16.mxu0 0
      %1566 = vmatmul.mubr.bf16.gmra.mrb[0].mxu0 %v735
      %v1567 = vpop.f32.mrb[0].mxu0
      %v1568 = vadd.f32 0.0, %v1567
      %v1569 = vpop.f32.mrb[0].mxu0
      %v1570 = vpop.f32.mrb[0].mxu0
      %v1571 = vadd.f32 0.0, %v1570
      %v1572 = vpop.f32.mrb[0].mxu0
      %1573 = vmatprep.mubr.bf16.mxu0 0
      %1574 = vmatmul.mubr.bf16.gmra.mrb[0].mxu0 %v738
      %v1575 = vpop.f32.mrb[0].mxu0
      %v1576 = vadd.f32 0.0, %v1575
      %v1577 = vpop.f32.mrb[0].mxu0
      %v1578 = vpop.f32.mrb[0].mxu0
      %v1579 = vadd.f32 0.0, %v1578
      %v1580 = vpop.f32.mrb[0].mxu0
      %1581 = vmatprep.mubr.bf16.mxu0 0
      %1582 = vmatmul.mubr.bf16.gmra.mrb[0].mxu0 %v741
      %v1583 = vpop.f32.mrb[0].mxu0
      %v1584 = vadd.f32 0.0, %v1583
      %v1585 = vpop.f32.mrb[0].mxu0
      %v1586 = vpop.f32.mrb[0].mxu0
      %v1587 = vadd.f32 0.0, %v1586
      %v1588 = vpop.f32.mrb[0].mxu0
      %1589 = vmatprep.mubr.bf16.mxu0 0
      %1590 = vmatmul.mubr.bf16.gmra.mrb[0].mxu0 %v744
      %v1591 = vpop.f32.mrb[0].mxu0
      %v1592 = vadd.f32 0.0, %v1591
      %v1593 = vpop.f32.mrb[0].mxu0
      %v1594 = vpop.f32.mrb[0].mxu0
      %v1595 = vadd.f32 0.0, %v1594
      %v1596 = vpop.f32.mrb[0].mxu0
      %1597 = vmatprep.mubr.bf16.mxu0 0
      %1598 = vmatmul.mubr.bf16.gmra.mrb[0].mxu0 %v1108
      %v1599 = vpop.f32.mrb[0].mxu0
      %v1600 = vadd.f32 0.0, %v1599
      %v1601 = vpop.f32.mrb[0].mxu0
      %v1602 = vpop.f32.mrb[0].mxu0
      %v1603 = vadd.f32 0.0, %v1602
      %v1604 = vpop.f32.mrb[0].mxu0
      %1605 = vdwg.mxu0
      %v1606 = vadd.f32 %v1438, %v1544
      %v1607 = vadd.f32 %v1441, %v1547
      %v1608 = vadd.f32 %v1446, %v1552
      %v1609 = vadd.f32 %v1449, %v1555
      %v1610 = vadd.f32 %v1454, %v1560
      %v1611 = vadd.f32 %v1457, %v1563
      %v1612 = vadd.f32 %v1462, %v1568
      %v1613 = vadd.f32 %v1465, %v1571
      %v1614 = vadd.f32 %v1470, %v1576
      %v1615 = vadd.f32 %v1473, %v1579
      %v1616 = vadd.f32 %v1478, %v1584
      %v1617 = vadd.f32 %v1481, %v1587
      %v1618 = vadd.f32 %v1486, %v1592
      %v1619 = vadd.f32 %v1489, %v1595
      %v1620 = vadd.f32 %v1494, %v1600
      %v1621 = vadd.f32 %v1497, %v1603
      %v1624 = vrot.slane %v601, 1
      %v1625 = vrot.slane %v611, 1
      %v1626 = vsel %vm1242, %v1624, %v1625
      %s1627 = scalar_lea.vmem %s3, 56
      %v1628 = vld [vmem:[%s1627] sm:$0xf]
      %v1629 = vld [vmem:[%s1627 + $0x4] sm:$0xf]
      %v1632 = vunpack.c.l.b16 %v1628
      %v1633 = vunpack.c.l.b16 %v1629
      %v1634 = vpack.c.b16 %v1633, %v1632
      %v1637 = vsel %vm721, %v1626, 0
      %1639 = vmatprep.subr.bf16.mxu0 0
      %1640 = vmatpush1.bf16.msra.mxu0 %v1634
      %1641 = vmatprep.subr.bf16.mxu0 0
      %1642 = vmatpush1.bf16.msra.mxu0 0
      %1643 = vmatprep.subr.bf16.mxu0 0
      %1644 = vmatpush1.bf16.msra.mxu0 0
      %1645 = vmatprep.subr.bf16.mxu0 0
      %1646 = vmatpush1.bf16.msra.mxu0 0
      %1647 = vmatprep.subr.bf16.mxu0 0
      %1648 = vmatpush1.bf16.msra.mxu0 0
      %1649 = vmatprep.subr.bf16.mxu0 0
      %1650 = vmatpush1.bf16.msra.mxu0 0
      %1651 = vmatprep.subr.bf16.mxu0 0
      %1652 = vmatpush1.bf16.msra.mxu0 0
      %1653 = vmatprep.subr.bf16.mxu0 0
      %1654 = vmatpush1.bf16.msra.mxu0 0
      %1655 = vmatprep.subr.bf16.mxu0 0
      %1656 = vmatpush1.bf16.msra.mxu0 0
      %1657 = vmatprep.subr.bf16.mxu0 0
      %1658 = vmatpush1.bf16.msra.mxu0 0
      %1659 = vmatprep.subr.bf16.mxu0 0
      %1660 = vmatpush1.bf16.msra.mxu0 0
      %1661 = vmatprep.subr.bf16.mxu0 0
      %1662 = vmatpush1.bf16.msra.mxu0 0
      %1663 = vmatprep.subr.bf16.mxu0 0
      %1664 = vmatpush1.bf16.msra.mxu0 0
      %1665 = vmatprep.subr.bf16.mxu0 0
      %1666 = vmatpush1.bf16.msra.mxu0 0
      %1667 = vmatprep.subr.bf16.mxu0 0
      %1668 = vmatpush1.bf16.msra.mxu0 0
      %1669 = vmatprep.subr.bf16.mxu0 0
      %1670 = vmatpush1.bf16.msra.mxu0 0
      %1671 = vmatprep.mubr.bf16.mxu0 0
      %1672 = vmatmul.mubr.bf16.gmra.mrb[0].mxu0 %v1280
      %v1673 = vpop.f32.mrb[0].mxu0
      %v1674 = vadd.f32 0.0, %v1673
      %v1675 = vpop.f32.mrb[0].mxu0
      %v1676 = vpop.f32.mrb[0].mxu0
      %v1677 = vadd.f32 0.0, %v1676
      %v1678 = vpop.f32.mrb[0].mxu0
      %1679 = vmatprep.mubr.bf16.mxu0 0
      %1680 = vmatmul.mubr.bf16.gmra.mrb[0].mxu0 %v1283
      %v1681 = vpop.f32.mrb[0].mxu0
      %v1682 = vadd.f32 0.0, %v1681
      %v1683 = vpop.f32.mrb[0].mxu0
      %v1684 = vpop.f32.mrb[0].mxu0
      %v1685 = vadd.f32 0.0, %v1684
      %v1686 = vpop.f32.mrb[0].mxu0
      %1687 = vmatprep.mubr.bf16.mxu0 0
      %1688 = vmatmul.mubr.bf16.gmra.mrb[0].mxu0 %v1286
      %v1689 = vpop.f32.mrb[0].mxu0
      %v1690 = vadd.f32 0.0, %v1689
      %v1691 = vpop.f32.mrb[0].mxu0
      %v1692 = vpop.f32.mrb[0].mxu0
      %v1693 = vadd.f32 0.0, %v1692
      %v1694 = vpop.f32.mrb[0].mxu0
      %1695 = vmatprep.mubr.bf16.mxu0 0
      %1696 = vmatmul.mubr.bf16.gmra.mrb[0].mxu0 %v1289
      %v1697 = vpop.f32.mrb[0].mxu0
      %v1698 = vadd.f32 0.0, %v1697
      %v1699 = vpop.f32.mrb[0].mxu0
      %v1700 = vpop.f32.mrb[0].mxu0
      %v1701 = vadd.f32 0.0, %v1700
      %v1702 = vpop.f32.mrb[0].mxu0
      %1703 = vmatprep.mubr.bf16.mxu0 0
      %1704 = vmatmul.mubr.bf16.gmra.mrb[0].mxu0 %v1292
      %v1705 = vpop.f32.mrb[0].mxu0
      %v1706 = vadd.f32 0.0, %v1705
      %v1707 = vpop.f32.mrb[0].mxu0
      %v1708 = vpop.f32.mrb[0].mxu0
      %v1709 = vadd.f32 0.0, %v1708
      %v1710 = vpop.f32.mrb[0].mxu0
      %1711 = vmatprep.mubr.bf16.mxu0 0
      %1712 = vmatmul.mubr.bf16.gmra.mrb[0].mxu0 %v1295
      %v1713 = vpop.f32.mrb[0].mxu0
      %v1714 = vadd.f32 0.0, %v1713
      %v1715 = vpop.f32.mrb[0].mxu0
      %v1716 = vpop.f32.mrb[0].mxu0
      %v1717 = vadd.f32 0.0, %v1716
      %v1718 = vpop.f32.mrb[0].mxu0
      %1719 = vmatprep.mubr.bf16.mxu0 0
      %1720 = vmatmul.mubr.bf16.gmra.mrb[0].mxu0 %v1298
      %v1721 = vpop.f32.mrb[0].mxu0
      %v1722 = vadd.f32 0.0, %v1721
      %v1723 = vpop.f32.mrb[0].mxu0
      %v1724 = vpop.f32.mrb[0].mxu0
      %v1725 = vadd.f32 0.0, %v1724
      %v1726 = vpop.f32.mrb[0].mxu0
      %1727 = vmatprep.mubr.bf16.mxu0 0
      %1728 = vmatmul.mubr.bf16.gmra.mrb[0].mxu0 %v1637
      %v1729 = vpop.f32.mrb[0].mxu0
      %v1730 = vadd.f32 0.0, %v1729
      %v1731 = vpop.f32.mrb[0].mxu0
      %v1732 = vpop.f32.mrb[0].mxu0
      %v1733 = vadd.f32 0.0, %v1732
      %v1734 = vpop.f32.mrb[0].mxu0
      %1735 = vdwg.mxu0
      %v1736 = vadd.f32 %v1606, %v1674
      %v1737 = vadd.f32 %v1607, %v1677
      %v1738 = vadd.f32 %v1608, %v1682
      %v1739 = vadd.f32 %v1609, %v1685
      %v1740 = vadd.f32 %v1610, %v1690
      %v1741 = vadd.f32 %v1611, %v1693
      %v1742 = vadd.f32 %v1612, %v1698
      %v1743 = vadd.f32 %v1613, %v1701
      %v1744 = vadd.f32 %v1614, %v1706
      %v1745 = vadd.f32 %v1615, %v1709
      %v1746 = vadd.f32 %v1616, %v1714
      %v1747 = vadd.f32 %v1617, %v1717
      %v1748 = vadd.f32 %v1618, %v1722
      %v1749 = vadd.f32 %v1619, %v1725
      %v1750 = vadd.f32 %v1620, %v1730
      %v1751 = vadd.f32 %v1621, %v1733
      %s1752 = scalar_lea.vmem %s3, 64
      %v1753 = vld [vmem:[%s1752] sm:$0xf]
      %v1754 = vld [vmem:[%s1752 + $0x4] sm:$0xf]
      %s1755 = scalar_lea.vmem %s3, 72
      %v1756 = vld [vmem:[%s1755] sm:$0xf]
      %v1757 = vld [vmem:[%s1755 + $0x4] sm:$0xf]
      %v1760 = vunpack.c.l.b16 %v1756
      %v1761 = vunpack.c.l.b16 %v1757
      %v1762 = vpack.c.b16 %v1761, %v1760
      %1764 = vmatprep.subr.bf16.mxu0 0
      %1765 = vmatpush1.bf16.msra.mxu0 %v1762
      %1766 = vmatprep.subr.bf16.mxu0 0
      %1767 = vmatpush1.bf16.msra.mxu0 0
      %1768 = vmatprep.subr.bf16.mxu0 0
      %1769 = vmatpush1.bf16.msra.mxu0 0
      %1770 = vmatprep.subr.bf16.mxu0 0
      %1771 = vmatpush1.bf16.msra.mxu0 0
      %1772 = vmatprep.subr.bf16.mxu0 0
      %1773 = vmatpush1.bf16.msra.mxu0 0
      %1774 = vmatprep.subr.bf16.mxu0 0
      %1775 = vmatpush1.bf16.msra.mxu0 0
      %1776 = vmatprep.subr.bf16.mxu0 0
      %1777 = vmatpush1.bf16.msra.mxu0 0
      %1778 = vmatprep.subr.bf16.mxu0 0
      %1779 = vmatpush1.bf16.msra.mxu0 0
      %1780 = vmatprep.subr.bf16.mxu0 0
      %1781 = vmatpush1.bf16.msra.mxu0 0
      %1782 = vmatprep.subr.bf16.mxu0 0
      %1783 = vmatpush1.bf16.msra.mxu0 0
      %1784 = vmatprep.subr.bf16.mxu0 0
      %1785 = vmatpush1.bf16.msra.mxu0 0
      %1786 = vmatprep.subr.bf16.mxu0 0
      %1787 = vmatpush1.bf16.msra.mxu0 0
      %1788 = vmatprep.subr.bf16.mxu0 0
      %1789 = vmatpush1.bf16.msra.mxu0 0
      %1790 = vmatprep.subr.bf16.mxu0 0
      %1791 = vmatpush1.bf16.msra.mxu0 0
      %1792 = vmatprep.subr.bf16.mxu0 0
      %1793 = vmatpush1.bf16.msra.mxu0 0
      %1794 = vmatprep.subr.bf16.mxu0 0
      %1795 = vmatpush1.bf16.msra.mxu0 0
      %1796 = vmatprep.mubr.bf16.mxu0 0
      %1797 = vmatmul.mubr.bf16.gmra.mrb[0].mxu0 %v726
      %v1798 = vpop.f32.mrb[0].mxu0
      %v1799 = vadd.f32 0.0, %v1798
      %v1800 = vpop.f32.mrb[0].mxu0
      %v1801 = vpop.f32.mrb[0].mxu0
      %v1802 = vadd.f32 0.0, %v1801
      %v1803 = vpop.f32.mrb[0].mxu0
      %1804 = vmatprep.mubr.bf16.mxu0 0
      %1805 = vmatmul.mubr.bf16.gmra.mrb[0].mxu0 %v729
      %v1806 = vpop.f32.mrb[0].mxu0
      %v1807 = vadd.f32 0.0, %v1806
      %v1808 = vpop.f32.mrb[0].mxu0
      %v1809 = vpop.f32.mrb[0].mxu0
      %v1810 = vadd.f32 0.0, %v1809
      %v1811 = vpop.f32.mrb[0].mxu0
      %1812 = vmatprep.mubr.bf16.mxu0 0
      %1813 = vmatmul.mubr.bf16.gmra.mrb[0].mxu0 %v732
      %v1814 = vpop.f32.mrb[0].mxu0
      %v1815 = vadd.f32 0.0, %v1814
      %v1816 = vpop.f32.mrb[0].mxu0
      %v1817 = vpop.f32.mrb[0].mxu0
      %v1818 = vadd.f32 0.0, %v1817
      %v1819 = vpop.f32.mrb[0].mxu0
      %1820 = vmatprep.mubr.bf16.mxu0 0
      %1821 = vmatmul.mubr.bf16.gmra.mrb[0].mxu0 %v735
      %v1822 = vpop.f32.mrb[0].mxu0
      %v1823 = vadd.f32 0.0, %v1822
      %v1824 = vpop.f32.mrb[0].mxu0
      %v1825 = vpop.f32.mrb[0].mxu0
      %v1826 = vadd.f32 0.0, %v1825
      %v1827 = vpop.f32.mrb[0].mxu0
      %1828 = vmatprep.mubr.bf16.mxu0 0
      %1829 = vmatmul.mubr.bf16.gmra.mrb[0].mxu0 %v738
      %v1830 = vpop.f32.mrb[0].mxu0
      %v1831 = vadd.f32 0.0, %v1830
      %v1832 = vpop.f32.mrb[0].mxu0
      %v1833 = vpop.f32.mrb[0].mxu0
      %v1834 = vadd.f32 0.0, %v1833
      %v1835 = vpop.f32.mrb[0].mxu0
      %1836 = vmatprep.mubr.bf16.mxu0 0
      %1837 = vmatmul.mubr.bf16.gmra.mrb[0].mxu0 %v741
      %v1838 = vpop.f32.mrb[0].mxu0
      %v1839 = vadd.f32 0.0, %v1838
      %v1840 = vpop.f32.mrb[0].mxu0
      %v1841 = vpop.f32.mrb[0].mxu0
      %v1842 = vadd.f32 0.0, %v1841
      %v1843 = vpop.f32.mrb[0].mxu0
      %1844 = vmatprep.mubr.bf16.mxu0 0
      %1845 = vmatmul.mubr.bf16.gmra.mrb[0].mxu0 %v744
      %v1846 = vpop.f32.mrb[0].mxu0
      %v1847 = vadd.f32 0.0, %v1846
      %v1848 = vpop.f32.mrb[0].mxu0
      %v1849 = vpop.f32.mrb[0].mxu0
      %v1850 = vadd.f32 0.0, %v1849
      %v1851 = vpop.f32.mrb[0].mxu0
      %1852 = vmatprep.mubr.bf16.mxu0 0
      %1853 = vmatmul.mubr.bf16.gmra.mrb[0].mxu0 %v1108
      %v1854 = vpop.f32.mrb[0].mxu0
      %v1855 = vadd.f32 0.0, %v1854
      %v1856 = vpop.f32.mrb[0].mxu0
      %v1857 = vpop.f32.mrb[0].mxu0
      %v1858 = vadd.f32 0.0, %v1857
      %v1859 = vpop.f32.mrb[0].mxu0
      %1860 = vdwg.mxu0
      %v1863 = vunpack.c.l.b16 %v1753
      %v1864 = vunpack.c.l.b16 %v1754
      %v1865 = vpack.c.b16 %v1864, %v1863
      %1867 = vmatprep.subr.bf16.mxu0 0
      %1868 = vmatpush1.bf16.msra.mxu0 %v1865
      %1869 = vmatprep.subr.bf16.mxu0 0
      %1870 = vmatpush1.bf16.msra.mxu0 0
      %1871 = vmatprep.subr.bf16.mxu0 0
      %1872 = vmatpush1.bf16.msra.mxu0 0
      %1873 = vmatprep.subr.bf16.mxu0 0
      %1874 = vmatpush1.bf16.msra.mxu0 0
      %1875 = vmatprep.subr.bf16.mxu0 0
      %1876 = vmatpush1.bf16.msra.mxu0 0
      %1877 = vmatprep.subr.bf16.mxu0 0
      %1878 = vmatpush1.bf16.msra.mxu0 0
      %1879 = vmatprep.subr.bf16.mxu0 0
      %1880 = vmatpush1.bf16.msra.mxu0 0
      %1881 = vmatprep.subr.bf16.mxu0 0
      %1882 = vmatpush1.bf16.msra.mxu0 0
      %1883 = vmatprep.subr.bf16.mxu0 0
      %1884 = vmatpush1.bf16.msra.mxu0 0
      %1885 = vmatprep.subr.bf16.mxu0 0
      %1886 = vmatpush1.bf16.msra.mxu0 0
      %1887 = vmatprep.subr.bf16.mxu0 0
      %1888 = vmatpush1.bf16.msra.mxu0 0
      %1889 = vmatprep.subr.bf16.mxu0 0
      %1890 = vmatpush1.bf16.msra.mxu0 0
      %1891 = vmatprep.subr.bf16.mxu0 0
      %1892 = vmatpush1.bf16.msra.mxu0 0
      %1893 = vmatprep.subr.bf16.mxu0 0
      %1894 = vmatpush1.bf16.msra.mxu0 0
      %1895 = vmatprep.subr.bf16.mxu0 0
      %1896 = vmatpush1.bf16.msra.mxu0 0
      %1897 = vmatprep.subr.bf16.mxu0 0
      %1898 = vmatpush1.bf16.msra.mxu0 0
      %1899 = vmatprep.mubr.bf16.mxu0 0
      %1900 = vmatmul.mubr.bf16.gmra.mrb[0].mxu0 %v851
      %v1901 = vpop.f32.mrb[0].mxu0
      %v1902 = vadd.f32 %v1799, %v1901
      %v1903 = vpop.f32.mrb[0].mxu0
      %v1904 = vpop.f32.mrb[0].mxu0
      %v1905 = vadd.f32 %v1802, %v1904
      %v1906 = vpop.f32.mrb[0].mxu0
      %1907 = vmatprep.mubr.bf16.mxu0 0
      %1908 = vmatmul.mubr.bf16.gmra.mrb[0].mxu0 %v853
      %v1909 = vpop.f32.mrb[0].mxu0
      %v1910 = vadd.f32 %v1807, %v1909
      %v1911 = vpop.f32.mrb[0].mxu0
      %v1912 = vpop.f32.mrb[0].mxu0
      %v1913 = vadd.f32 %v1810, %v1912
      %v1914 = vpop.f32.mrb[0].mxu0
      %1915 = vmatprep.mubr.bf16.mxu0 0
      %1916 = vmatmul.mubr.bf16.gmra.mrb[0].mxu0 %v855
      %v1917 = vpop.f32.mrb[0].mxu0
      %v1918 = vadd.f32 %v1815, %v1917
      %v1919 = vpop.f32.mrb[0].mxu0
      %v1920 = vpop.f32.mrb[0].mxu0
      %v1921 = vadd.f32 %v1818, %v1920
      %v1922 = vpop.f32.mrb[0].mxu0
      %1923 = vmatprep.mubr.bf16.mxu0 0
      %1924 = vmatmul.mubr.bf16.gmra.mrb[0].mxu0 %v857
      %v1925 = vpop.f32.mrb[0].mxu0
      %v1926 = vadd.f32 %v1823, %v1925
      %v1927 = vpop.f32.mrb[0].mxu0
      %v1928 = vpop.f32.mrb[0].mxu0
      %v1929 = vadd.f32 %v1826, %v1928
      %v1930 = vpop.f32.mrb[0].mxu0
      %1931 = vmatprep.mubr.bf16.mxu0 0
      %1932 = vmatmul.mubr.bf16.gmra.mrb[0].mxu0 %v859
      %v1933 = vpop.f32.mrb[0].mxu0
      %v1934 = vadd.f32 %v1831, %v1933
      %v1935 = vpop.f32.mrb[0].mxu0
      %v1936 = vpop.f32.mrb[0].mxu0
      %v1937 = vadd.f32 %v1834, %v1936
      %v1938 = vpop.f32.mrb[0].mxu0
      %1939 = vmatprep.mubr.bf16.mxu0 0
      %1940 = vmatmul.mubr.bf16.gmra.mrb[0].mxu0 %v861
      %v1941 = vpop.f32.mrb[0].mxu0
      %v1942 = vadd.f32 %v1839, %v1941
      %v1943 = vpop.f32.mrb[0].mxu0
      %v1944 = vpop.f32.mrb[0].mxu0
      %v1945 = vadd.f32 %v1842, %v1944
      %v1946 = vpop.f32.mrb[0].mxu0
      %1947 = vmatprep.mubr.bf16.mxu0 0
      %1948 = vmatmul.mubr.bf16.gmra.mrb[0].mxu0 %v863
      %v1949 = vpop.f32.mrb[0].mxu0
      %v1950 = vadd.f32 %v1847, %v1949
      %v1951 = vpop.f32.mrb[0].mxu0
      %v1952 = vpop.f32.mrb[0].mxu0
      %v1953 = vadd.f32 %v1850, %v1952
      %v1954 = vpop.f32.mrb[0].mxu0
      %1955 = vmatprep.mubr.bf16.mxu0 0
      %1956 = vmatmul.mubr.bf16.gmra.mrb[0].mxu0 %v972
      %v1957 = vpop.f32.mrb[0].mxu0
      %v1958 = vadd.f32 %v1855, %v1957
      %v1959 = vpop.f32.mrb[0].mxu0
      %v1960 = vpop.f32.mrb[0].mxu0
      %v1961 = vadd.f32 %v1858, %v1960
      %v1962 = vpop.f32.mrb[0].mxu0
      %1963 = vdwg.mxu0
      %s1964 = scalar_lea.vmem %s3, 80
      %v1965 = vld [vmem:[%s1964] sm:$0xf]
      %v1966 = vld [vmem:[%s1964 + $0x4] sm:$0xf]
      %v1969 = vunpack.c.l.b16 %v1965
      %v1970 = vunpack.c.l.b16 %v1966
      %v1971 = vpack.c.b16 %v1970, %v1969
      %v1974 = vsel %vm721, %v602, 0
      %1976 = vmatprep.subr.bf16.mxu0 0
      %1977 = vmatpush1.bf16.msra.mxu0 %v1971
      %1978 = vmatprep.subr.bf16.mxu0 0
      %1979 = vmatpush1.bf16.msra.mxu0 0
      %1980 = vmatprep.subr.bf16.mxu0 0
      %1981 = vmatpush1.bf16.msra.mxu0 0
      %1982 = vmatprep.subr.bf16.mxu0 0
      %1983 = vmatpush1.bf16.msra.mxu0 0
      %1984 = vmatprep.subr.bf16.mxu0 0
      %1985 = vmatpush1.bf16.msra.mxu0 0
      %1986 = vmatprep.subr.bf16.mxu0 0
      %1987 = vmatpush1.bf16.msra.mxu0 0
      %1988 = vmatprep.subr.bf16.mxu0 0
      %1989 = vmatpush1.bf16.msra.mxu0 0
      %1990 = vmatprep.subr.bf16.mxu0 0
      %1991 = vmatpush1.bf16.msra.mxu0 0
      %1992 = vmatprep.subr.bf16.mxu0 0
      %1993 = vmatpush1.bf16.msra.mxu0 0
      %1994 = vmatprep.subr.bf16.mxu0 0
      %1995 = vmatpush1.bf16.msra.mxu0 0
      %1996 = vmatprep.subr.bf16.mxu0 0
      %1997 = vmatpush1.bf16.msra.mxu0 0
      %1998 = vmatprep.subr.bf16.mxu0 0
      %1999 = vmatpush1.bf16.msra.mxu0 0
      %2000 = vmatprep.subr.bf16.mxu0 0
      %2001 = vmatpush1.bf16.msra.mxu0 0
      %2002 = vmatprep.subr.bf16.mxu0 0
      %2003 = vmatpush1.bf16.msra.mxu0 0
      %2004 = vmatprep.subr.bf16.mxu0 0
      %2005 = vmatpush1.bf16.msra.mxu0 0
      %2006 = vmatprep.subr.bf16.mxu0 0
      %2007 = vmatpush1.bf16.msra.mxu0 0
      %2008 = vmatprep.mubr.bf16.mxu0 0
      %2009 = vmatmul.mubr.bf16.gmra.mrb[0].mxu0 %v853
      %v2010 = vpop.f32.mrb[0].mxu0
      %v2011 = vadd.f32 0.0, %v2010
      %v2012 = vpop.f32.mrb[0].mxu0
      %v2013 = vpop.f32.mrb[0].mxu0
      %v2014 = vadd.f32 0.0, %v2013
      %v2015 = vpop.f32.mrb[0].mxu0
      %2016 = vmatprep.mubr.bf16.mxu0 0
      %2017 = vmatmul.mubr.bf16.gmra.mrb[0].mxu0 %v855
      %v2018 = vpop.f32.mrb[0].mxu0
      %v2019 = vadd.f32 0.0, %v2018
      %v2020 = vpop.f32.mrb[0].mxu0
      %v2021 = vpop.f32.mrb[0].mxu0
      %v2022 = vadd.f32 0.0, %v2021
      %v2023 = vpop.f32.mrb[0].mxu0
      %2024 = vmatprep.mubr.bf16.mxu0 0
      %2025 = vmatmul.mubr.bf16.gmra.mrb[0].mxu0 %v857
      %v2026 = vpop.f32.mrb[0].mxu0
      %v2027 = vadd.f32 0.0, %v2026
      %v2028 = vpop.f32.mrb[0].mxu0
      %v2029 = vpop.f32.mrb[0].mxu0
      %v2030 = vadd.f32 0.0, %v2029
      %v2031 = vpop.f32.mrb[0].mxu0
      %2032 = vmatprep.mubr.bf16.mxu0 0
      %2033 = vmatmul.mubr.bf16.gmra.mrb[0].mxu0 %v859
      %v2034 = vpop.f32.mrb[0].mxu0
      %v2035 = vadd.f32 0.0, %v2034
      %v2036 = vpop.f32.mrb[0].mxu0
      %v2037 = vpop.f32.mrb[0].mxu0
      %v2038 = vadd.f32 0.0, %v2037
      %v2039 = vpop.f32.mrb[0].mxu0
      %2040 = vmatprep.mubr.bf16.mxu0 0
      %2041 = vmatmul.mubr.bf16.gmra.mrb[0].mxu0 %v861
      %v2042 = vpop.f32.mrb[0].mxu0
      %v2043 = vadd.f32 0.0, %v2042
      %v2044 = vpop.f32.mrb[0].mxu0
      %v2045 = vpop.f32.mrb[0].mxu0
      %v2046 = vadd.f32 0.0, %v2045
      %v2047 = vpop.f32.mrb[0].mxu0
      %2048 = vmatprep.mubr.bf16.mxu0 0
      %2049 = vmatmul.mubr.bf16.gmra.mrb[0].mxu0 %v863
      %v2050 = vpop.f32.mrb[0].mxu0
      %v2051 = vadd.f32 0.0, %v2050
      %v2052 = vpop.f32.mrb[0].mxu0
      %v2053 = vpop.f32.mrb[0].mxu0
      %v2054 = vadd.f32 0.0, %v2053
      %v2055 = vpop.f32.mrb[0].mxu0
      %2056 = vmatprep.mubr.bf16.mxu0 0
      %2057 = vmatmul.mubr.bf16.gmra.mrb[0].mxu0 %v972
      %v2058 = vpop.f32.mrb[0].mxu0
      %v2059 = vadd.f32 0.0, %v2058
      %v2060 = vpop.f32.mrb[0].mxu0
      %v2061 = vpop.f32.mrb[0].mxu0
      %v2062 = vadd.f32 0.0, %v2061
      %v2063 = vpop.f32.mrb[0].mxu0
      %2064 = vmatprep.mubr.bf16.mxu0 0
      %2065 = vmatmul.mubr.bf16.gmra.mrb[0].mxu0 %v1974
      %v2066 = vpop.f32.mrb[0].mxu0
      %v2067 = vadd.f32 0.0, %v2066
      %v2068 = vpop.f32.mrb[0].mxu0
      %v2069 = vpop.f32.mrb[0].mxu0
      %v2070 = vadd.f32 0.0, %v2069
      %v2071 = vpop.f32.mrb[0].mxu0
      %2072 = vdwg.mxu0
      %v2073 = vadd.f32 %v1902, %v2011
      %v2074 = vadd.f32 %v1905, %v2014
      %v2075 = vadd.f32 %v1910, %v2019
      %v2076 = vadd.f32 %v1913, %v2022
      %v2077 = vadd.f32 %v1918, %v2027
      %v2078 = vadd.f32 %v1921, %v2030
      %v2079 = vadd.f32 %v1926, %v2035
      %v2080 = vadd.f32 %v1929, %v2038
      %v2081 = vadd.f32 %v1934, %v2043
      %v2082 = vadd.f32 %v1937, %v2046
      %v2083 = vadd.f32 %v1942, %v2051
      %v2084 = vadd.f32 %v1945, %v2054
      %v2085 = vadd.f32 %v1950, %v2059
      %v2086 = vadd.f32 %v1953, %v2062
      %v2087 = vadd.f32 %v1958, %v2067
      %v2088 = vadd.f32 %v1961, %v2070
      %v2089 = vshrl.u32 %v602, 16
      %v2091 = vshll.u32 %v602, 16
      %v2093 = vrot.slane %v2091, 1
      %v2094 = vor.u32 %v2089, %v2093
      %v2096 = vshll.u32 %v612, 16
      %v2098 = vrot.slane %v2096, 1
      %v2099 = vsel %vm615, %v2094, %v2098
      %s2100 = scalar_lea.vmem %s3, 88
      %v2101 = vld [vmem:[%s2100] sm:$0xf]
      %v2102 = vld [vmem:[%s2100 + $0x4] sm:$0xf]
      %v2105 = vunpack.c.l.b16 %v2101
      %v2106 = vunpack.c.l.b16 %v2102
      %v2107 = vpack.c.b16 %v2106, %v2105
      %v2110 = vsel %vm721, %v2099, 0
      %2112 = vmatprep.subr.bf16.mxu0 0
      %2113 = vmatpush1.bf16.msra.mxu0 %v2107
      %2114 = vmatprep.subr.bf16.mxu0 0
      %2115 = vmatpush1.bf16.msra.mxu0 0
      %2116 = vmatprep.subr.bf16.mxu0 0
      %2117 = vmatpush1.bf16.msra.mxu0 0
      %2118 = vmatprep.subr.bf16.mxu0 0
      %2119 = vmatpush1.bf16.msra.mxu0 0
      %2120 = vmatprep.subr.bf16.mxu0 0
      %2121 = vmatpush1.bf16.msra.mxu0 0
      %2122 = vmatprep.subr.bf16.mxu0 0
      %2123 = vmatpush1.bf16.msra.mxu0 0
      %2124 = vmatprep.subr.bf16.mxu0 0
      %2125 = vmatpush1.bf16.msra.mxu0 0
      %2126 = vmatprep.subr.bf16.mxu0 0
      %2127 = vmatpush1.bf16.msra.mxu0 0
      %2128 = vmatprep.subr.bf16.mxu0 0
      %2129 = vmatpush1.bf16.msra.mxu0 0
      %2130 = vmatprep.subr.bf16.mxu0 0
      %2131 = vmatpush1.bf16.msra.mxu0 0
      %2132 = vmatprep.subr.bf16.mxu0 0
      %2133 = vmatpush1.bf16.msra.mxu0 0
      %2134 = vmatprep.subr.bf16.mxu0 0
      %2135 = vmatpush1.bf16.msra.mxu0 0
      %2136 = vmatprep.subr.bf16.mxu0 0
      %2137 = vmatpush1.bf16.msra.mxu0 0
      %2138 = vmatprep.subr.bf16.mxu0 0
      %2139 = vmatpush1.bf16.msra.mxu0 0
      %2140 = vmatprep.subr.bf16.mxu0 0
      %2141 = vmatpush1.bf16.msra.mxu0 0
      %2142 = vmatprep.subr.bf16.mxu0 0
      %2143 = vmatpush1.bf16.msra.mxu0 0
      %2144 = vmatprep.mubr.bf16.mxu0 0
      %2145 = vmatmul.mubr.bf16.gmra.mrb[0].mxu0 %v729
      %v2146 = vpop.f32.mrb[0].mxu0
      %v2147 = vadd.f32 0.0, %v2146
      %v2148 = vpop.f32.mrb[0].mxu0
      %v2149 = vpop.f32.mrb[0].mxu0
      %v2150 = vadd.f32 0.0, %v2149
      %v2151 = vpop.f32.mrb[0].mxu0
      %2152 = vmatprep.mubr.bf16.mxu0 0
      %2153 = vmatmul.mubr.bf16.gmra.mrb[0].mxu0 %v732
      %v2154 = vpop.f32.mrb[0].mxu0
      %v2155 = vadd.f32 0.0, %v2154
      %v2156 = vpop.f32.mrb[0].mxu0
      %v2157 = vpop.f32.mrb[0].mxu0
      %v2158 = vadd.f32 0.0, %v2157
      %v2159 = vpop.f32.mrb[0].mxu0
      %2160 = vmatprep.mubr.bf16.mxu0 0
      %2161 = vmatmul.mubr.bf16.gmra.mrb[0].mxu0 %v735
      %v2162 = vpop.f32.mrb[0].mxu0
      %v2163 = vadd.f32 0.0, %v2162
      %v2164 = vpop.f32.mrb[0].mxu0
      %v2165 = vpop.f32.mrb[0].mxu0
      %v2166 = vadd.f32 0.0, %v2165
      %v2167 = vpop.f32.mrb[0].mxu0
      %2168 = vmatprep.mubr.bf16.mxu0 0
      %2169 = vmatmul.mubr.bf16.gmra.mrb[0].mxu0 %v738
      %v2170 = vpop.f32.mrb[0].mxu0
      %v2171 = vadd.f32 0.0, %v2170
      %v2172 = vpop.f32.mrb[0].mxu0
      %v2173 = vpop.f32.mrb[0].mxu0
      %v2174 = vadd.f32 0.0, %v2173
      %v2175 = vpop.f32.mrb[0].mxu0
      %2176 = vmatprep.mubr.bf16.mxu0 0
      %2177 = vmatmul.mubr.bf16.gmra.mrb[0].mxu0 %v741
      %v2178 = vpop.f32.mrb[0].mxu0
      %v2179 = vadd.f32 0.0, %v2178
      %v2180 = vpop.f32.mrb[0].mxu0
      %v2181 = vpop.f32.mrb[0].mxu0
      %v2182 = vadd.f32 0.0, %v2181
      %v2183 = vpop.f32.mrb[0].mxu0
      %2184 = vmatprep.mubr.bf16.mxu0 0
      %2185 = vmatmul.mubr.bf16.gmra.mrb[0].mxu0 %v744
      %v2186 = vpop.f32.mrb[0].mxu0
      %v2187 = vadd.f32 0.0, %v2186
      %v2188 = vpop.f32.mrb[0].mxu0
      %v2189 = vpop.f32.mrb[0].mxu0
      %v2190 = vadd.f32 0.0, %v2189
      %v2191 = vpop.f32.mrb[0].mxu0
      %2192 = vmatprep.mubr.bf16.mxu0 0
      %2193 = vmatmul.mubr.bf16.gmra.mrb[0].mxu0 %v1108
      %v2194 = vpop.f32.mrb[0].mxu0
      %v2195 = vadd.f32 0.0, %v2194
      %v2196 = vpop.f32.mrb[0].mxu0
      %v2197 = vpop.f32.mrb[0].mxu0
      %v2198 = vadd.f32 0.0, %v2197
      %v2199 = vpop.f32.mrb[0].mxu0
      %2200 = vmatprep.mubr.bf16.mxu0 0
      %2201 = vmatmul.mubr.bf16.gmra.mrb[0].mxu0 %v2110
      %v2202 = vpop.f32.mrb[0].mxu0
      %v2203 = vadd.f32 0.0, %v2202
      %v2204 = vpop.f32.mrb[0].mxu0
      %v2205 = vpop.f32.mrb[0].mxu0
      %v2206 = vadd.f32 0.0, %v2205
      %v2207 = vpop.f32.mrb[0].mxu0
      %2208 = vdwg.mxu0
      %v2209 = vadd.f32 %v2073, %v2147
      %v2210 = vadd.f32 %v2074, %v2150
      %v2211 = vadd.f32 %v2075, %v2155
      %v2212 = vadd.f32 %v2076, %v2158
      %v2213 = vadd.f32 %v2077, %v2163
      %v2214 = vadd.f32 %v2078, %v2166
      %v2215 = vadd.f32 %v2079, %v2171
      %v2216 = vadd.f32 %v2080, %v2174
      %v2217 = vadd.f32 %v2081, %v2179
      %v2218 = vadd.f32 %v2082, %v2182
      %v2219 = vadd.f32 %v2083, %v2187
      %v2220 = vadd.f32 %v2084, %v2190
      %v2221 = vadd.f32 %v2085, %v2195
      %v2222 = vadd.f32 %v2086, %v2198
      %v2223 = vadd.f32 %v2087, %v2203
      %v2224 = vadd.f32 %v2088, %v2206
      %s2225 = scalar_lea.vmem %s3, 96
      %v2226 = vld [vmem:[%s2225] sm:$0xf]
      %v2227 = vld [vmem:[%s2225 + $0x4] sm:$0xf]
      %s2228 = scalar_lea.vmem %s3, 104
      %v2229 = vld [vmem:[%s2228] sm:$0xf]
      %v2230 = vld [vmem:[%s2228 + $0x4] sm:$0xf]
      %v2233 = vunpack.c.l.b16 %v2229
      %v2234 = vunpack.c.l.b16 %v2230
      %v2235 = vpack.c.b16 %v2234, %v2233
      %2237 = vmatprep.subr.bf16.mxu0 0
      %2238 = vmatpush1.bf16.msra.mxu0 %v2235
      %2239 = vmatprep.subr.bf16.mxu0 0
      %2240 = vmatpush1.bf16.msra.mxu0 0
      %2241 = vmatprep.subr.bf16.mxu0 0
      %2242 = vmatpush1.bf16.msra.mxu0 0
      %2243 = vmatprep.subr.bf16.mxu0 0
      %2244 = vmatpush1.bf16.msra.mxu0 0
      %2245 = vmatprep.subr.bf16.mxu0 0
      %2246 = vmatpush1.bf16.msra.mxu0 0
      %2247 = vmatprep.subr.bf16.mxu0 0
      %2248 = vmatpush1.bf16.msra.mxu0 0
      %2249 = vmatprep.subr.bf16.mxu0 0
      %2250 = vmatpush1.bf16.msra.mxu0 0
      %2251 = vmatprep.subr.bf16.mxu0 0
      %2252 = vmatpush1.bf16.msra.mxu0 0
      %2253 = vmatprep.subr.bf16.mxu0 0
      %2254 = vmatpush1.bf16.msra.mxu0 0
      %2255 = vmatprep.subr.bf16.mxu0 0
      %2256 = vmatpush1.bf16.msra.mxu0 0
      %2257 = vmatprep.subr.bf16.mxu0 0
      %2258 = vmatpush1.bf16.msra.mxu0 0
      %2259 = vmatprep.subr.bf16.mxu0 0
      %2260 = vmatpush1.bf16.msra.mxu0 0
      %2261 = vmatprep.subr.bf16.mxu0 0
      %2262 = vmatpush1.bf16.msra.mxu0 0
      %2263 = vmatprep.subr.bf16.mxu0 0
      %2264 = vmatpush1.bf16.msra.mxu0 0
      %2265 = vmatprep.subr.bf16.mxu0 0
      %2266 = vmatpush1.bf16.msra.mxu0 0
      %2267 = vmatprep.subr.bf16.mxu0 0
      %2268 = vmatpush1.bf16.msra.mxu0 0
      %2269 = vmatprep.mubr.bf16.mxu0 0
      %2270 = vmatmul.mubr.bf16.gmra.mrb[0].mxu0 %v1280
      %v2271 = vpop.f32.mrb[0].mxu0
      %v2272 = vadd.f32 0.0, %v2271
      %v2273 = vpop.f32.mrb[0].mxu0
      %v2274 = vpop.f32.mrb[0].mxu0
      %v2275 = vadd.f32 0.0, %v2274
      %v2276 = vpop.f32.mrb[0].mxu0
      %2277 = vmatprep.mubr.bf16.mxu0 0
      %2278 = vmatmul.mubr.bf16.gmra.mrb[0].mxu0 %v1283
      %v2279 = vpop.f32.mrb[0].mxu0
      %v2280 = vadd.f32 0.0, %v2279
      %v2281 = vpop.f32.mrb[0].mxu0
      %v2282 = vpop.f32.mrb[0].mxu0
      %v2283 = vadd.f32 0.0, %v2282
      %v2284 = vpop.f32.mrb[0].mxu0
      %2285 = vmatprep.mubr.bf16.mxu0 0
      %2286 = vmatmul.mubr.bf16.gmra.mrb[0].mxu0 %v1286
      %v2287 = vpop.f32.mrb[0].mxu0
      %v2288 = vadd.f32 0.0, %v2287
      %v2289 = vpop.f32.mrb[0].mxu0
      %v2290 = vpop.f32.mrb[0].mxu0
      %v2291 = vadd.f32 0.0, %v2290
      %v2292 = vpop.f32.mrb[0].mxu0
      %2293 = vmatprep.mubr.bf16.mxu0 0
      %2294 = vmatmul.mubr.bf16.gmra.mrb[0].mxu0 %v1289
      %v2295 = vpop.f32.mrb[0].mxu0
      %v2296 = vadd.f32 0.0, %v2295
      %v2297 = vpop.f32.mrb[0].mxu0
      %v2298 = vpop.f32.mrb[0].mxu0
      %v2299 = vadd.f32 0.0, %v2298
      %v2300 = vpop.f32.mrb[0].mxu0
      %2301 = vmatprep.mubr.bf16.mxu0 0
      %2302 = vmatmul.mubr.bf16.gmra.mrb[0].mxu0 %v1292
      %v2303 = vpop.f32.mrb[0].mxu0
      %v2304 = vadd.f32 0.0, %v2303
      %v2305 = vpop.f32.mrb[0].mxu0
      %v2306 = vpop.f32.mrb[0].mxu0
      %v2307 = vadd.f32 0.0, %v2306
      %v2308 = vpop.f32.mrb[0].mxu0
      %2309 = vmatprep.mubr.bf16.mxu0 0
      %2310 = vmatmul.mubr.bf16.gmra.mrb[0].mxu0 %v1295
      %v2311 = vpop.f32.mrb[0].mxu0
      %v2312 = vadd.f32 0.0, %v2311
      %v2313 = vpop.f32.mrb[0].mxu0
      %v2314 = vpop.f32.mrb[0].mxu0
      %v2315 = vadd.f32 0.0, %v2314
      %v2316 = vpop.f32.mrb[0].mxu0
      %2317 = vmatprep.mubr.bf16.mxu0 0
      %2318 = vmatmul.mubr.bf16.gmra.mrb[0].mxu0 %v1298
      %v2319 = vpop.f32.mrb[0].mxu0
      %v2320 = vadd.f32 0.0, %v2319
      %v2321 = vpop.f32.mrb[0].mxu0
      %v2322 = vpop.f32.mrb[0].mxu0
      %v2323 = vadd.f32 0.0, %v2322
      %v2324 = vpop.f32.mrb[0].mxu0
      %2325 = vmatprep.mubr.bf16.mxu0 0
      %2326 = vmatmul.mubr.bf16.gmra.mrb[0].mxu0 %v1637
      %v2327 = vpop.f32.mrb[0].mxu0
      %v2328 = vadd.f32 0.0, %v2327
      %v2329 = vpop.f32.mrb[0].mxu0
      %v2330 = vpop.f32.mrb[0].mxu0
      %v2331 = vadd.f32 0.0, %v2330
      %v2332 = vpop.f32.mrb[0].mxu0
      %2333 = vdwg.mxu0
      %v2336 = vunpack.c.l.b16 %v2226
      %v2337 = vunpack.c.l.b16 %v2227
      %v2338 = vpack.c.b16 %v2337, %v2336
      %2340 = vmatprep.subr.bf16.mxu0 0
      %2341 = vmatpush1.bf16.msra.mxu0 %v2338
      %2342 = vmatprep.subr.bf16.mxu0 0
      %2343 = vmatpush1.bf16.msra.mxu0 0
      %2344 = vmatprep.subr.bf16.mxu0 0
      %2345 = vmatpush1.bf16.msra.mxu0 0
      %2346 = vmatprep.subr.bf16.mxu0 0
      %2347 = vmatpush1.bf16.msra.mxu0 0
      %2348 = vmatprep.subr.bf16.mxu0 0
      %2349 = vmatpush1.bf16.msra.mxu0 0
      %2350 = vmatprep.subr.bf16.mxu0 0
      %2351 = vmatpush1.bf16.msra.mxu0 0
      %2352 = vmatprep.subr.bf16.mxu0 0
      %2353 = vmatpush1.bf16.msra.mxu0 0
      %2354 = vmatprep.subr.bf16.mxu0 0
      %2355 = vmatpush1.bf16.msra.mxu0 0
      %2356 = vmatprep.subr.bf16.mxu0 0
      %2357 = vmatpush1.bf16.msra.mxu0 0
      %2358 = vmatprep.subr.bf16.mxu0 0
      %2359 = vmatpush1.bf16.msra.mxu0 0
      %2360 = vmatprep.subr.bf16.mxu0 0
      %2361 = vmatpush1.bf16.msra.mxu0 0
      %2362 = vmatprep.subr.bf16.mxu0 0
      %2363 = vmatpush1.bf16.msra.mxu0 0
      %2364 = vmatprep.subr.bf16.mxu0 0
      %2365 = vmatpush1.bf16.msra.mxu0 0
      %2366 = vmatprep.subr.bf16.mxu0 0
      %2367 = vmatpush1.bf16.msra.mxu0 0
      %2368 = vmatprep.subr.bf16.mxu0 0
      %2369 = vmatpush1.bf16.msra.mxu0 0
      %2370 = vmatprep.subr.bf16.mxu0 0
      %2371 = vmatpush1.bf16.msra.mxu0 0
      %2372 = vmatprep.mubr.bf16.mxu0 0
      %2373 = vmatmul.mubr.bf16.gmra.mrb[0].mxu0 %v726
      %v2374 = vpop.f32.mrb[0].mxu0
      %v2375 = vadd.f32 %v2272, %v2374
      %v2376 = vpop.f32.mrb[0].mxu0
      %v2377 = vpop.f32.mrb[0].mxu0
      %v2378 = vadd.f32 %v2275, %v2377
      %v2379 = vpop.f32.mrb[0].mxu0
      %2380 = vmatprep.mubr.bf16.mxu0 0
      %2381 = vmatmul.mubr.bf16.gmra.mrb[0].mxu0 %v729
      %v2382 = vpop.f32.mrb[0].mxu0
      %v2383 = vadd.f32 %v2280, %v2382
      %v2384 = vpop.f32.mrb[0].mxu0
      %v2385 = vpop.f32.mrb[0].mxu0
      %v2386 = vadd.f32 %v2283, %v2385
      %v2387 = vpop.f32.mrb[0].mxu0
      %2388 = vmatprep.mubr.bf16.mxu0 0
      %2389 = vmatmul.mubr.bf16.gmra.mrb[0].mxu0 %v732
      %v2390 = vpop.f32.mrb[0].mxu0
      %v2391 = vadd.f32 %v2288, %v2390
      %v2392 = vpop.f32.mrb[0].mxu0
      %v2393 = vpop.f32.mrb[0].mxu0
      %v2394 = vadd.f32 %v2291, %v2393
      %v2395 = vpop.f32.mrb[0].mxu0
      %2396 = vmatprep.mubr.bf16.mxu0 0
      %2397 = vmatmul.mubr.bf16.gmra.mrb[0].mxu0 %v735
      %v2398 = vpop.f32.mrb[0].mxu0
      %v2399 = vadd.f32 %v2296, %v2398
      %v2400 = vpop.f32.mrb[0].mxu0
      %v2401 = vpop.f32.mrb[0].mxu0
      %v2402 = vadd.f32 %v2299, %v2401
      %v2403 = vpop.f32.mrb[0].mxu0
      %2404 = vmatprep.mubr.bf16.mxu0 0
      %2405 = vmatmul.mubr.bf16.gmra.mrb[0].mxu0 %v738
      %v2406 = vpop.f32.mrb[0].mxu0
      %v2407 = vadd.f32 %v2304, %v2406
      %v2408 = vpop.f32.mrb[0].mxu0
      %v2409 = vpop.f32.mrb[0].mxu0
      %v2410 = vadd.f32 %v2307, %v2409
      %v2411 = vpop.f32.mrb[0].mxu0
      %2412 = vmatprep.mubr.bf16.mxu0 0
      %2413 = vmatmul.mubr.bf16.gmra.mrb[0].mxu0 %v741
      %v2414 = vpop.f32.mrb[0].mxu0
      %v2415 = vadd.f32 %v2312, %v2414
      %v2416 = vpop.f32.mrb[0].mxu0
      %v2417 = vpop.f32.mrb[0].mxu0
      %v2418 = vadd.f32 %v2315, %v2417
      %v2419 = vpop.f32.mrb[0].mxu0
      %2420 = vmatprep.mubr.bf16.mxu0 0
      %2421 = vmatmul.mubr.bf16.gmra.mrb[0].mxu0 %v744
      %v2422 = vpop.f32.mrb[0].mxu0
      %v2423 = vadd.f32 %v2320, %v2422
      %v2424 = vpop.f32.mrb[0].mxu0
      %v2425 = vpop.f32.mrb[0].mxu0
      %v2426 = vadd.f32 %v2323, %v2425
      %v2427 = vpop.f32.mrb[0].mxu0
      %2428 = vmatprep.mubr.bf16.mxu0 0
      %2429 = vmatmul.mubr.bf16.gmra.mrb[0].mxu0 %v1108
      %v2430 = vpop.f32.mrb[0].mxu0
      %v2431 = vadd.f32 %v2328, %v2430
      %v2432 = vpop.f32.mrb[0].mxu0
      %v2433 = vpop.f32.mrb[0].mxu0
      %v2434 = vadd.f32 %v2331, %v2433
      %v2435 = vpop.f32.mrb[0].mxu0
      %2436 = vdwg.mxu0
      %s2437 = scalar_lea.vmem %s3, 112
      %v2438 = vld [vmem:[%s2437] sm:$0xf]
      %v2439 = vld [vmem:[%s2437 + $0x4] sm:$0xf]
      %v2442 = vunpack.c.l.b16 %v2438
      %v2443 = vunpack.c.l.b16 %v2439
      %v2444 = vpack.c.b16 %v2443, %v2442
      %2446 = vmatprep.subr.bf16.mxu0 0
      %2447 = vmatpush1.bf16.msra.mxu0 %v2444
      %2448 = vmatprep.subr.bf16.mxu0 0
      %2449 = vmatpush1.bf16.msra.mxu0 0
      %2450 = vmatprep.subr.bf16.mxu0 0
      %2451 = vmatpush1.bf16.msra.mxu0 0
      %2452 = vmatprep.subr.bf16.mxu0 0
      %2453 = vmatpush1.bf16.msra.mxu0 0
      %2454 = vmatprep.subr.bf16.mxu0 0
      %2455 = vmatpush1.bf16.msra.mxu0 0
      %2456 = vmatprep.subr.bf16.mxu0 0
      %2457 = vmatpush1.bf16.msra.mxu0 0
      %2458 = vmatprep.subr.bf16.mxu0 0
      %2459 = vmatpush1.bf16.msra.mxu0 0
      %2460 = vmatprep.subr.bf16.mxu0 0
      %2461 = vmatpush1.bf16.msra.mxu0 0
      %2462 = vmatprep.subr.bf16.mxu0 0
      %2463 = vmatpush1.bf16.msra.mxu0 0
      %2464 = vmatprep.subr.bf16.mxu0 0
      %2465 = vmatpush1.bf16.msra.mxu0 0
      %2466 = vmatprep.subr.bf16.mxu0 0
      %2467 = vmatpush1.bf16.msra.mxu0 0
      %2468 = vmatprep.subr.bf16.mxu0 0
      %2469 = vmatpush1.bf16.msra.mxu0 0
      %2470 = vmatprep.subr.bf16.mxu0 0
      %2471 = vmatpush1.bf16.msra.mxu0 0
      %2472 = vmatprep.subr.bf16.mxu0 0
      %2473 = vmatpush1.bf16.msra.mxu0 0
      %2474 = vmatprep.subr.bf16.mxu0 0
      %2475 = vmatpush1.bf16.msra.mxu0 0
      %2476 = vmatprep.subr.bf16.mxu0 0
      %2477 = vmatpush1.bf16.msra.mxu0 0
      %2478 = vmatprep.mubr.bf16.mxu0 0
      %2479 = vmatmul.mubr.bf16.gmra.mrb[0].mxu0 %v729
      %v2480 = vpop.f32.mrb[0].mxu0
      %v2481 = vadd.f32 0.0, %v2480
      %v2482 = vpop.f32.mrb[0].mxu0
      %v2483 = vpop.f32.mrb[0].mxu0
      %v2484 = vadd.f32 0.0, %v2483
      %v2485 = vpop.f32.mrb[0].mxu0
      %2486 = vmatprep.mubr.bf16.mxu0 0
      %2487 = vmatmul.mubr.bf16.gmra.mrb[0].mxu0 %v732
      %v2488 = vpop.f32.mrb[0].mxu0
      %v2489 = vadd.f32 0.0, %v2488
      %v2490 = vpop.f32.mrb[0].mxu0
      %v2491 = vpop.f32.mrb[0].mxu0
      %v2492 = vadd.f32 0.0, %v2491
      %v2493 = vpop.f32.mrb[0].mxu0
      %2494 = vmatprep.mubr.bf16.mxu0 0
      %2495 = vmatmul.mubr.bf16.gmra.mrb[0].mxu0 %v735
      %v2496 = vpop.f32.mrb[0].mxu0
      %v2497 = vadd.f32 0.0, %v2496
      %v2498 = vpop.f32.mrb[0].mxu0
      %v2499 = vpop.f32.mrb[0].mxu0
      %v2500 = vadd.f32 0.0, %v2499
      %v2501 = vpop.f32.mrb[0].mxu0
      %2502 = vmatprep.mubr.bf16.mxu0 0
      %2503 = vmatmul.mubr.bf16.gmra.mrb[0].mxu0 %v738
      %v2504 = vpop.f32.mrb[0].mxu0
      %v2505 = vadd.f32 0.0, %v2504
      %v2506 = vpop.f32.mrb[0].mxu0
      %v2507 = vpop.f32.mrb[0].mxu0
      %v2508 = vadd.f32 0.0, %v2507
      %v2509 = vpop.f32.mrb[0].mxu0
      %2510 = vmatprep.mubr.bf16.mxu0 0
      %2511 = vmatmul.mubr.bf16.gmra.mrb[0].mxu0 %v741
      %v2512 = vpop.f32.mrb[0].mxu0
      %v2513 = vadd.f32 0.0, %v2512
      %v2514 = vpop.f32.mrb[0].mxu0
      %v2515 = vpop.f32.mrb[0].mxu0
      %v2516 = vadd.f32 0.0, %v2515
      %v2517 = vpop.f32.mrb[0].mxu0
      %2518 = vmatprep.mubr.bf16.mxu0 0
      %2519 = vmatmul.mubr.bf16.gmra.mrb[0].mxu0 %v744
      %v2520 = vpop.f32.mrb[0].mxu0
      %v2521 = vadd.f32 0.0, %v2520
      %v2522 = vpop.f32.mrb[0].mxu0
      %v2523 = vpop.f32.mrb[0].mxu0
      %v2524 = vadd.f32 0.0, %v2523
      %v2525 = vpop.f32.mrb[0].mxu0
      %2526 = vmatprep.mubr.bf16.mxu0 0
      %2527 = vmatmul.mubr.bf16.gmra.mrb[0].mxu0 %v1108
      %v2528 = vpop.f32.mrb[0].mxu0
      %v2529 = vadd.f32 0.0, %v2528
      %v2530 = vpop.f32.mrb[0].mxu0
      %v2531 = vpop.f32.mrb[0].mxu0
      %v2532 = vadd.f32 0.0, %v2531
      %v2533 = vpop.f32.mrb[0].mxu0
      %2534 = vmatprep.mubr.bf16.mxu0 0
      %2535 = vmatmul.mubr.bf16.gmra.mrb[0].mxu0 %v2110
      %v2536 = vpop.f32.mrb[0].mxu0
      %v2537 = vadd.f32 0.0, %v2536
      %v2538 = vpop.f32.mrb[0].mxu0
      %v2539 = vpop.f32.mrb[0].mxu0
      %v2540 = vadd.f32 0.0, %v2539
      %v2541 = vpop.f32.mrb[0].mxu0
      %2542 = vdwg.mxu0
      %v2543 = vadd.f32 %v2375, %v2481
      %v2544 = vadd.f32 %v2378, %v2484
      %v2545 = vadd.f32 %v2383, %v2489
      %v2546 = vadd.f32 %v2386, %v2492
      %v2547 = vadd.f32 %v2391, %v2497
      %v2548 = vadd.f32 %v2394, %v2500
      %v2549 = vadd.f32 %v2399, %v2505
      %v2550 = vadd.f32 %v2402, %v2508
      %v2551 = vadd.f32 %v2407, %v2513
      %v2552 = vadd.f32 %v2410, %v2516
      %v2553 = vadd.f32 %v2415, %v2521
      %v2554 = vadd.f32 %v2418, %v2524
      %v2555 = vadd.f32 %v2423, %v2529
      %v2556 = vadd.f32 %v2426, %v2532
      %v2557 = vadd.f32 %v2431, %v2537
      %v2558 = vadd.f32 %v2434, %v2540
      %v2561 = vrot.slane %v602, 1
      %v2562 = vrot.slane %v612, 1
      %v2563 = vsel %vm1242, %v2561, %v2562
      %s2564 = scalar_lea.vmem %s3, 120
      %v2565 = vld [vmem:[%s2564] sm:$0xf]
      %v2566 = vld [vmem:[%s2564 + $0x4] sm:$0xf]
      %v2569 = vunpack.c.l.b16 %v2565
      %v2570 = vunpack.c.l.b16 %v2566
      %v2571 = vpack.c.b16 %v2570, %v2569
      %v2574 = vsel %vm721, %v2563, 0
      %2576 = vmatprep.subr.bf16.mxu0 0
      %2577 = vmatpush1.bf16.msra.mxu0 %v2571
      %2578 = vmatprep.subr.bf16.mxu0 0
      %2579 = vmatpush1.bf16.msra.mxu0 0
      %2580 = vmatprep.subr.bf16.mxu0 0
      %2581 = vmatpush1.bf16.msra.mxu0 0
      %2582 = vmatprep.subr.bf16.mxu0 0
      %2583 = vmatpush1.bf16.msra.mxu0 0
      %2584 = vmatprep.subr.bf16.mxu0 0
      %2585 = vmatpush1.bf16.msra.mxu0 0
      %2586 = vmatprep.subr.bf16.mxu0 0
      %2587 = vmatpush1.bf16.msra.mxu0 0
      %2588 = vmatprep.subr.bf16.mxu0 0
      %2589 = vmatpush1.bf16.msra.mxu0 0
      %2590 = vmatprep.subr.bf16.mxu0 0
      %2591 = vmatpush1.bf16.msra.mxu0 0
      %2592 = vmatprep.subr.bf16.mxu0 0
      %2593 = vmatpush1.bf16.msra.mxu0 0
      %2594 = vmatprep.subr.bf16.mxu0 0
      %2595 = vmatpush1.bf16.msra.mxu0 0
      %2596 = vmatprep.subr.bf16.mxu0 0
      %2597 = vmatpush1.bf16.msra.mxu0 0
      %2598 = vmatprep.subr.bf16.mxu0 0
      %2599 = vmatpush1.bf16.msra.mxu0 0
      %2600 = vmatprep.subr.bf16.mxu0 0
      %2601 = vmatpush1.bf16.msra.mxu0 0
      %2602 = vmatprep.subr.bf16.mxu0 0
      %2603 = vmatpush1.bf16.msra.mxu0 0
      %2604 = vmatprep.subr.bf16.mxu0 0
      %2605 = vmatpush1.bf16.msra.mxu0 0
      %2606 = vmatprep.subr.bf16.mxu0 0
      %2607 = vmatpush1.bf16.msra.mxu0 0
      %2608 = vmatprep.mubr.bf16.mxu0 0
      %2609 = vmatmul.mubr.bf16.gmra.mrb[0].mxu0 %v1283
      %v2610 = vpop.f32.mrb[0].mxu0
      %v2611 = vadd.f32 0.0, %v2610
      %v2612 = vpop.f32.mrb[0].mxu0
      %v2613 = vpop.f32.mrb[0].mxu0
      %v2614 = vadd.f32 0.0, %v2613
      %v2615 = vpop.f32.mrb[0].mxu0
      %2616 = vmatprep.mubr.bf16.mxu0 0
      %2617 = vmatmul.mubr.bf16.gmra.mrb[0].mxu0 %v1286
      %v2618 = vpop.f32.mrb[0].mxu0
      %v2619 = vadd.f32 0.0, %v2618
      %v2620 = vpop.f32.mrb[0].mxu0
      %v2621 = vpop.f32.mrb[0].mxu0
      %v2622 = vadd.f32 0.0, %v2621
      %v2623 = vpop.f32.mrb[0].mxu0
      %2624 = vmatprep.mubr.bf16.mxu0 0
      %2625 = vmatmul.mubr.bf16.gmra.mrb[0].mxu0 %v1289
      %v2626 = vpop.f32.mrb[0].mxu0
      %v2627 = vadd.f32 0.0, %v2626
      %v2628 = vpop.f32.mrb[0].mxu0
      %v2629 = vpop.f32.mrb[0].mxu0
      %v2630 = vadd.f32 0.0, %v2629
      %v2631 = vpop.f32.mrb[0].mxu0
      %2632 = vmatprep.mubr.bf16.mxu0 0
      %2633 = vmatmul.mubr.bf16.gmra.mrb[0].mxu0 %v1292
      %v2634 = vpop.f32.mrb[0].mxu0
      %v2635 = vadd.f32 0.0, %v2634
      %v2636 = vpop.f32.mrb[0].mxu0
      %v2637 = vpop.f32.mrb[0].mxu0
      %v2638 = vadd.f32 0.0, %v2637
      %v2639 = vpop.f32.mrb[0].mxu0
      %2640 = vmatprep.mubr.bf16.mxu0 0
      %2641 = vmatmul.mubr.bf16.gmra.mrb[0].mxu0 %v1295
      %v2642 = vpop.f32.mrb[0].mxu0
      %v2643 = vadd.f32 0.0, %v2642
      %v2644 = vpop.f32.mrb[0].mxu0
      %v2645 = vpop.f32.mrb[0].mxu0
      %v2646 = vadd.f32 0.0, %v2645
      %v2647 = vpop.f32.mrb[0].mxu0
      %2648 = vmatprep.mubr.bf16.mxu0 0
      %2649 = vmatmul.mubr.bf16.gmra.mrb[0].mxu0 %v1298
      %v2650 = vpop.f32.mrb[0].mxu0
      %v2651 = vadd.f32 0.0, %v2650
      %v2652 = vpop.f32.mrb[0].mxu0
      %v2653 = vpop.f32.mrb[0].mxu0
      %v2654 = vadd.f32 0.0, %v2653
      %v2655 = vpop.f32.mrb[0].mxu0
      %2656 = vmatprep.mubr.bf16.mxu0 0
      %2657 = vmatmul.mubr.bf16.gmra.mrb[0].mxu0 %v1637
      %v2658 = vpop.f32.mrb[0].mxu0
      %v2659 = vadd.f32 0.0, %v2658
      %v2660 = vpop.f32.mrb[0].mxu0
      %v2661 = vpop.f32.mrb[0].mxu0
      %v2662 = vadd.f32 0.0, %v2661
      %v2663 = vpop.f32.mrb[0].mxu0
      %2664 = vmatprep.mubr.bf16.mxu0 0
      %2665 = vmatmul.mubr.bf16.gmra.mrb[0].mxu0 %v2574
      %v2666 = vpop.f32.mrb[0].mxu0
      %v2667 = vadd.f32 0.0, %v2666
      %v2668 = vpop.f32.mrb[0].mxu0
      %v2669 = vpop.f32.mrb[0].mxu0
      %v2670 = vadd.f32 0.0, %v2669
      %v2671 = vpop.f32.mrb[0].mxu0
      %2672 = vdwg.mxu0
      %v2673 = vadd.f32 %v2543, %v2611
      %v2674 = vadd.f32 %v2544, %v2614
      %v2675 = vadd.f32 %v2545, %v2619
      %v2676 = vadd.f32 %v2546, %v2622
      %v2677 = vadd.f32 %v2547, %v2627
      %v2678 = vadd.f32 %v2548, %v2630
      %v2679 = vadd.f32 %v2549, %v2635
      %v2680 = vadd.f32 %v2550, %v2638
      %v2681 = vadd.f32 %v2551, %v2643
      %v2682 = vadd.f32 %v2552, %v2646
      %v2683 = vadd.f32 %v2553, %v2651
      %v2684 = vadd.f32 %v2554, %v2654
      %v2685 = vadd.f32 %v2555, %v2659
      %v2686 = vadd.f32 %v2556, %v2662
      %v2687 = vadd.f32 %v2557, %v2667
      %v2688 = vadd.f32 %v2558, %v2670
      %2705 = vrot.lane.b32.xlu0 %v1736, 3
      %v2706 = vpop.permute.xlu0 %2705
      %2707 = vrot.lane.b32.xlu0 %v1737, 3
      %v2708 = vpop.permute.xlu0 %2707
      %2709 = vrot.lane.b32.xlu0 %v1738, 3
      %v2710 = vpop.permute.xlu0 %2709
      %2711 = vrot.lane.b32.xlu0 %v1739, 3
      %v2712 = vpop.permute.xlu0 %2711
      %2713 = vrot.lane.b32.xlu0 %v1740, 3
      %v2714 = vpop.permute.xlu0 %2713
      %2715 = vrot.lane.b32.xlu0 %v1741, 3
      %v2716 = vpop.permute.xlu0 %2715
      %2717 = vrot.lane.b32.xlu0 %v1742, 3
      %v2718 = vpop.permute.xlu0 %2717
      %2719 = vrot.lane.b32.xlu0 %v1743, 3
      %v2720 = vpop.permute.xlu0 %2719
      %2721 = vrot.lane.b32.xlu0 %v1744, 3
      %v2722 = vpop.permute.xlu0 %2721
      %2723 = vrot.lane.b32.xlu0 %v1745, 3
      %v2724 = vpop.permute.xlu0 %2723
      %2725 = vrot.lane.b32.xlu0 %v1746, 3
      %v2726 = vpop.permute.xlu0 %2725
      %2727 = vrot.lane.b32.xlu0 %v1747, 3
      %v2728 = vpop.permute.xlu0 %2727
      %2729 = vrot.lane.b32.xlu0 %v1748, 3
      %v2730 = vpop.permute.xlu0 %2729
      %2731 = vrot.lane.b32.xlu0 %v1749, 3
      %v2732 = vpop.permute.xlu0 %2731
      %2733 = vrot.lane.b32.xlu0 %v1750, 3
      %v2734 = vpop.permute.xlu0 %2733
      %2735 = vrot.lane.b32.xlu0 %v1751, 3
      %v2736 = vpop.permute.xlu0 %2735
      %2769 = vrot.lane.b32.xlu0 %v2209, 6
      %v2770 = vpop.permute.xlu0 %2769
      %2771 = vrot.lane.b32.xlu0 %v2210, 6
      %v2772 = vpop.permute.xlu0 %2771
      %2773 = vrot.lane.b32.xlu0 %v2211, 6
      %v2774 = vpop.permute.xlu0 %2773
      %2775 = vrot.lane.b32.xlu0 %v2212, 6
      %v2776 = vpop.permute.xlu0 %2775
      %2777 = vrot.lane.b32.xlu0 %v2213, 6
      %v2778 = vpop.permute.xlu0 %2777
      %2779 = vrot.lane.b32.xlu0 %v2214, 6
      %v2780 = vpop.permute.xlu0 %2779
      %2781 = vrot.lane.b32.xlu0 %v2215, 6
      %v2782 = vpop.permute.xlu0 %2781
      %2783 = vrot.lane.b32.xlu0 %v2216, 6
      %v2784 = vpop.permute.xlu0 %2783
      %2785 = vrot.lane.b32.xlu0 %v2217, 6
      %v2786 = vpop.permute.xlu0 %2785
      %2787 = vrot.lane.b32.xlu0 %v2218, 6
      %v2788 = vpop.permute.xlu0 %2787
      %2789 = vrot.lane.b32.xlu0 %v2219, 6
      %v2790 = vpop.permute.xlu0 %2789
      %2791 = vrot.lane.b32.xlu0 %v2220, 6
      %v2792 = vpop.permute.xlu0 %2791
      %2793 = vrot.lane.b32.xlu0 %v2221, 6
      %v2794 = vpop.permute.xlu0 %2793
      %2795 = vrot.lane.b32.xlu0 %v2222, 6
      %v2796 = vpop.permute.xlu0 %2795
      %2797 = vrot.lane.b32.xlu0 %v2223, 6
      %v2798 = vpop.permute.xlu0 %2797
      %2799 = vrot.lane.b32.xlu0 %v2224, 6
      %v2800 = vpop.permute.xlu0 %2799
      %2833 = vrot.lane.b32.xlu0 %v2673, 9
      %v2834 = vpop.permute.xlu0 %2833
      %2835 = vrot.lane.b32.xlu0 %v2674, 9
      %v2836 = vpop.permute.xlu0 %2835
      %2837 = vrot.lane.b32.xlu0 %v2675, 9
      %v2838 = vpop.permute.xlu0 %2837
      %2839 = vrot.lane.b32.xlu0 %v2676, 9
      %v2840 = vpop.permute.xlu0 %2839
      %2841 = vrot.lane.b32.xlu0 %v2677, 9
      %v2842 = vpop.permute.xlu0 %2841
      %2843 = vrot.lane.b32.xlu0 %v2678, 9
      %v2844 = vpop.permute.xlu0 %2843
      %2845 = vrot.lane.b32.xlu0 %v2679, 9
      %v2846 = vpop.permute.xlu0 %2845
      %2847 = vrot.lane.b32.xlu0 %v2680, 9
      %v2848 = vpop.permute.xlu0 %2847
      %2849 = vrot.lane.b32.xlu0 %v2681, 9
      %v2850 = vpop.permute.xlu0 %2849
      %2851 = vrot.lane.b32.xlu0 %v2682, 9
      %v2852 = vpop.permute.xlu0 %2851
      %2853 = vrot.lane.b32.xlu0 %v2683, 9
      %v2854 = vpop.permute.xlu0 %2853
      %2855 = vrot.lane.b32.xlu0 %v2684, 9
      %v2856 = vpop.permute.xlu0 %2855
      %2857 = vrot.lane.b32.xlu0 %v2685, 9
      %v2858 = vpop.permute.xlu0 %2857
      %2859 = vrot.lane.b32.xlu0 %v2686, 9
      %v2860 = vpop.permute.xlu0 %2859
      %2861 = vrot.lane.b32.xlu0 %v2687, 9
      %v2862 = vpop.permute.xlu0 %2861
      %2863 = vrot.lane.b32.xlu0 %v2688, 9
      %v2864 = vpop.permute.xlu0 %2863
      %vm2881 = vcmask 23552
      %v2882 = vsel %vm2881, %v1207, %v2706
      %v2883 = vsel %vm2881, %v1208, %v2708
      %v2884 = vsel %vm2881, %v1209, %v2710
      %v2885 = vsel %vm2881, %v1210, %v2712
      %v2886 = vsel %vm2881, %v1211, %v2714
      %v2887 = vsel %vm2881, %v1212, %v2716
      %v2888 = vsel %vm2881, %v1213, %v2718
      %v2889 = vsel %vm2881, %v1214, %v2720
      %v2890 = vsel %vm2881, %v1215, %v2722
      %v2891 = vsel %vm2881, %v1216, %v2724
      %v2892 = vsel %vm2881, %v1217, %v2726
      %v2893 = vsel %vm2881, %v1218, %v2728
      %v2894 = vsel %vm2881, %v1219, %v2730
      %v2895 = vsel %vm2881, %v1220, %v2732
      %v2896 = vsel %vm2881, %v1221, %v2734
      %v2897 = vsel %vm2881, %v1222, %v2736
      %vm2898 = vcmask 48128
      %v2899 = vsel %vm2898, %v2882, %v2770
      %v2900 = vsel %vm2898, %v2883, %v2772
      %v2901 = vsel %vm2898, %v2884, %v2774
      %v2902 = vsel %vm2898, %v2885, %v2776
      %v2903 = vsel %vm2898, %v2886, %v2778
      %v2904 = vsel %vm2898, %v2887, %v2780
      %v2905 = vsel %vm2898, %v2888, %v2782
      %v2906 = vsel %vm2898, %v2889, %v2784
      %v2907 = vsel %vm2898, %v2890, %v2786
      %v2908 = vsel %vm2898, %v2891, %v2788
      %v2909 = vsel %vm2898, %v2892, %v2790
      %v2910 = vsel %vm2898, %v2893, %v2792
      %v2911 = vsel %vm2898, %v2894, %v2794
      %v2912 = vsel %vm2898, %v2895, %v2796
      %v2913 = vsel %vm2898, %v2896, %v2798
      %v2914 = vsel %vm2898, %v2897, %v2800
      %vm2915 = vcmask 72704
      %v2916 = vsel %vm2915, %v2899, %v2834
      %v2917 = vsel %vm2915, %v2900, %v2836
      %v2918 = vsel %vm2915, %v2901, %v2838
      %v2919 = vsel %vm2915, %v2902, %v2840
      %v2920 = vsel %vm2915, %v2903, %v2842
      %v2921 = vsel %vm2915, %v2904, %v2844
      %v2922 = vsel %vm2915, %v2905, %v2846
      %v2923 = vsel %vm2915, %v2906, %v2848
      %v2924 = vsel %vm2915, %v2907, %v2850
      %v2925 = vsel %vm2915, %v2908, %v2852
      %v2926 = vsel %vm2915, %v2909, %v2854
      %v2927 = vsel %vm2915, %v2910, %v2856
      %v2928 = vsel %vm2915, %v2911, %v2858
      %v2929 = vsel %vm2915, %v2912, %v2860
      %v2930 = vsel %vm2915, %v2913, %v2862
      %v2931 = vsel %vm2915, %v2914, %v2864
      %v2932 = vld [vmem:[%s4] sm:$0x1]
      %v2934 = vlaneseq
      %v2935 = vshrl.u32 %v2934, 7
      %v2936 = vsub.s32 0, %v2935
      %v2937 = vrot.slane %v2932, %v2936
      %v2939 = vadd.f32 %v2916, %v2937
      %v2940 = vadd.f32 %v2917, %v2937
      %v2941 = vadd.f32 %v2918, %v2937
      %v2942 = vadd.f32 %v2919, %v2937
      %v2943 = vadd.f32 %v2920, %v2937
      %v2944 = vadd.f32 %v2921, %v2937
      %v2945 = vadd.f32 %v2922, %v2937
      %v2946 = vadd.f32 %v2923, %v2937
      %v2947 = vadd.f32 %v2924, %v2937
      %v2948 = vadd.f32 %v2925, %v2937
      %v2949 = vadd.f32 %v2926, %v2937
      %v2950 = vadd.f32 %v2927, %v2937
      %v2951 = vadd.f32 %v2928, %v2937
      %v2952 = vadd.f32 %v2929, %v2937
      %v2953 = vadd.f32 %v2930, %v2937
      %v2954 = vadd.f32 %v2931, %v2937
      %vm2955 = vcmask 97280
      %2956 = vst.msk [vmem:[%s391] sm:$0xff] %vm2955, %v2939
      %2957 = vst.msk [vmem:[%s391 + $0x8] sm:$0xff] %vm2955, %v2940
      %2958 = vst.msk [vmem:[%s391 + $0x10] sm:$0xff] %vm2955, %v2941
      %2959 = vst.msk [vmem:[%s391 + $0x18] sm:$0xff] %vm2955, %v2942
      %2960 = vst.msk [vmem:[%s391 + $0x20] sm:$0xff] %vm2955, %v2943
      %2961 = vst.msk [vmem:[%s391 + $0x28] sm:$0xff] %vm2955, %v2944
      %2962 = vst.msk [vmem:[%s391 + $0x30] sm:$0xff] %vm2955, %v2945
      %2963 = vst.msk [vmem:[%s391 + $0x38] sm:$0xff] %vm2955, %v2946
      %2964 = vst.msk [vmem:[%s391 + $0x40] sm:$0xff] %vm2955, %v2947
      %2965 = vst.msk [vmem:[%s391 + $0x48] sm:$0xff] %vm2955, %v2948
      %2966 = vst.msk [vmem:[%s391 + $0x50] sm:$0xff] %vm2955, %v2949
      %2967 = vst.msk [vmem:[%s391 + $0x58] sm:$0xff] %vm2955, %v2950
      %2968 = vst.msk [vmem:[%s391 + $0x60] sm:$0xff] %vm2955, %v2951
      %2969 = vst.msk [vmem:[%s391 + $0x68] sm:$0xff] %vm2955, %v2952
      %2970 = vst.msk [vmem:[%s391 + $0x70] sm:$0xff] %vm2955, %v2953
      %2971 = vst.msk [vmem:[%s391 + $0x78] sm:$0xff] %vm2955, %v2954
      %s2972 = smul.u32 8, %s20
      %p2973 = scmp.lt.s32.totalorder %s21, 1
      %s2974 = scalar_select %p2973, %s21, 1
      %p2975 = scmp.lt.s32.totalorder %s2972, 15
      %s2976 = scalar_select %p2975, %s2972, 15
      %s2977 = smul.addr %s2976, 2
      %s2978 = smul.addr %s2974, 32
      %s2979 = sadd.s32 %s2977, %s2978
      %s2980 = smul.addr %s2979, 8
      %s2981 = scalar_lea.vmem %s5, %s2980
      // Predicated region
      $region41: #{wavemix_forward.13} parent=39 // pred_check
        %p2982 = pneg %p190
      $region42: #{wavemix_forward.13} parent=39 // pred_check_branch
        %2984 = sbr.rel (%p2982) target = $region44
      $region43: #{wavemix_forward.13} parent=39 // pred_region
        %s2985 = smul.u32 8, %s20
      $region44: #{wavemix_forward.13} parent=39 // pred_fallthru
        _
    $region40: #{wavemix_forward.13} parent=5 // pred_fallthru
      _
    %p2986 = scmp.le.s32.totalorder 2, %s11
    // Predicated region
    $region45: #{wavemix_forward.13} parent=5 // pred_check
      %p2987 = pneg %p2986
    $region46: #{wavemix_forward.13} parent=5 // pred_check_branch
      %2989 = sbr.rel (%p2987) target = $region48
    $region47: #{wavemix_forward.13} parent=5 // pred_region
      %s2990 = ssub.s32 %s11, 2
      // Predicated region
      $region49: #{wavemix_forward.13} parent=47 // pred_check
        %p2991 = pneg %p196
      $region50: #{wavemix_forward.13} parent=47 // pred_check_branch
        %2993 = sbr.rel (%p2991) target = $region52
      $region51: #{wavemix_forward.13} parent=47 // pred_region
        %s2994 = smul.u32 8, %s22
        %p2995 = scmp.lt.s32.totalorder %s23, 1
        %s2996 = scalar_select %p2995, %s23, 1
        %p2997 = scmp.lt.s32.totalorder %s2994, 15
        %s2998 = scalar_select %p2997, %s2994, 15
        %s2999 = smul.addr %s2998, 2
        %s3000 = smul.addr %s2996, 32
        %s3001 = sadd.s32 %s2999, %s3000
        %s3002 = smul.addr %s3001, 8
        %s3003 = scalar_lea.vmem %s5, %s3002
      $region52: #{wavemix_forward.13} parent=47 // pred_fallthru
        _
    $region48: #{wavemix_forward.13} parent=5 // pred_fallthru
      _
  $region6: #{wavemix_forward.13} parent=0 // loop_footer
    %s15 = sadd.s32 1, %s11
  $region7: #{wavemix_forward.13} parent=0 // loop_footer_branch
    %10 = sbr.rel target = $region3
  $region8: #{wavemix_forward.13} parent=0 // loop_exit
    _

</llo_original>
